<compile_context>
chip_gen: v5e
topology: v5e:2x2
jax: 0.10.0
libtpu: 0.0.40
codegen_flags: <defaults>
</compile_context>

<pallas_src>
import math

import jax
import jax.numpy as jnp
from jax.experimental import pallas as pl
from jax.experimental.pallas import tpu as pltpu

# ----- small, module-consistent shapes -------------------------------------
B = 2                  # batch
IMG_TOK = 98           # 49 (swin stage3) + 49 (swin stage4) tokens -> hard-coded [:98]
TXT_TOK = 30           # synthetic DistilBERT sequence length
TXT_PAD = 32           # text block padded with 2 leading zero rows (sublane-aligned store)
N = IMG_TOK + TXT_TOK  # 128 visiolinguistic tokens per sample
TOKEN_DIM = 256        # stand-in for swin token dim (1024 in the original)
D = 128                # d_model (768 in the original, scaled down)
H = 8                  # num_heads in CompositionBlock
HD = H * D
FF = 128               # ff_hidden_dim (== D here, so its bias packs into a 128-wide row)
EPS = 1e-5             # torch.nn.LayerNorm default eps


def _zero_map(ndim):
    return lambda i: (0,) * ndim


def _layernorm(x, g, b):
    mu = jnp.mean(x, axis=-1, keepdims=True)
    var = jnp.mean((x - mu) ** 2, axis=-1, keepdims=True)
    return (x - mu) * jax.lax.rsqrt(var + EPS) * g + b


# ----------------------------------------------------------------------------
# Fused kernel: image projection + concat + CompositionBlock + [:98] slice.
# One grid step handles `bs` samples (bs = block batch size = out_ref.shape[0]).
# ----------------------------------------------------------------------------
def aacl_kernel(img_ref, txt_ref, wimg_ref, wh_ref, bh_ref, ws_ref, e_ref,
                wproj_ref, wop_ref, wf1_ref, wf2_ref, vec_ref,
                out_ref, x_scr):
    bs = out_ref.shape[0]                      # samples handled in this step

    # packed (1,128) bias / gain rows
    vec = vec_ref[...]
    b_img, b_tot = vec[0:1], vec[1:2]
    g1, b1 = vec[2:3], vec[3:4]
    bf1, bf2 = vec[4:5], vec[5:6]
    g2, b2 = vec[6:7], vec[7:8]

    # ---- fused image projection + token concat into the VMEM scratch ------
    # text rows (padded to an aligned 32-row block) land on rows 96..127 of
    # each sample; pad rows 96/97 are overwritten by the image store below.
    # Keep this store order.
    for b in range(bs):
        base = b * N
        x_scr[pl.ds(base + N - TXT_PAD, TXT_PAD), :] = txt_ref[b]
        img_emb = jnp.dot(img_ref[b], wimg_ref[...],
                          preferred_element_type=jnp.float32) + b_img
        x_scr[pl.ds(base, IMG_TOK), :] = img_emb

    x = x_scr[...]                             # (bs*N, D) f32
    x_b = x.astype(jnp.bfloat16)

    # ---- all 8 AdditiveSelfAttention heads, merged -------------------------
    # HM[:, h*D:(h+1)*D] == Fh_h(x); only the bf16 copy stays live.
    hm_b = (jnp.dot(x_b, wh_ref[...], preferred_element_type=jnp.float32)
            + bh_ref[...]).astype(jnp.bfloat16)               # (bs*N, H*D)

    # additive scores straight from x (Fh/w_h/scale folded at trace time;
    # per-head bias term is token-independent and cancels in softmax).
    scores = jnp.dot(x_b, ws_ref[...],
                     preferred_element_type=jnp.float32)       # (bs*N, H)

    # per-sample softmax over tokens, per-head context, v = c * HM
    v_parts = []
    for b in range(bs):
        rows = slice(b * N, (b + 1) * N)
        sc_t = scores[rows].T                                  # (H, N)
        m = jnp.max(sc_t, axis=1, keepdims=True)
        e = jnp.exp(sc_t - m)
        alpha_t = e * pl.reciprocal(jnp.sum(e, axis=1, keepdims=True),
                                    approx=True)               # (H, N)
        hm_rows = hm_b[rows]                                   # (N, H*D) bf16
        ctx = jnp.dot(alpha_t.astype(jnp.bfloat16), hm_rows,
                      preferred_element_type=jnp.float32)      # (H, H*D)
        # c[h*D+d] = ctx[h, h*D+d]  (E is the head-block indicator mask)
        c = jnp.sum(ctx * e_ref[...], axis=0, keepdims=True)   # (1, H*D) f32
        v_parts.append(hm_rows * c.astype(jnp.bfloat16))       # (N, H*D) bf16
    v_b = jnp.concatenate(v_parts, axis=0)                     # (bs*N, H*D)

    # head-concat projection with Fo algebraically folded:
    #   HM@Wproj_all + (c*HM)@(Wo@Wproj)_all + (bproj + sum_h bo_h@Wproj_h)
    acc = (b_tot
           + jnp.dot(hm_b, wproj_ref[...], preferred_element_type=jnp.float32)
           + jnp.dot(v_b, wop_ref[...], preferred_element_type=jnp.float32))

    # residual + LayerNorm1 + FFN + LayerNorm2 on all rows; the [:98] slice
    # only happens at the final (masked) output store.
    n1 = _layernorm(x + acc, g1, b1)
    f1 = jnp.maximum(
        jnp.dot(n1.astype(jnp.bfloat16), wf1_ref[...],
                preferred_element_type=jnp.float32) + bf1, 0.0)
    f2 = (jnp.dot(f1.astype(jnp.bfloat16), wf2_ref[...],
                  preferred_element_type=jnp.float32) + bf2)
    y = _layernorm(f2 + n1, g2, b2)                            # (bs*N, D)

    for b in range(bs):
        out_ref[b] = y[b * N: b * N + IMG_TOK]                 # (98, D)


def _samples_per_grid_step():
    # v7x packs two TensorCores per chip -> keep one sample per grid step so
    # the "parallel" grid axis shards the batch across cores.  Single-TC
    # chips (v5e / v6e) fuse the whole batch into one step: one set of weight
    # DMAs, no per-step pipeline overhead, M = B*128 rows in the big matmuls.
    try:
        kind = jax.devices()[0].device_kind.lower()
    except Exception:
        kind = ""
    return 1 if "v7" in kind else B


def aacl_forward(img_tokens, text_emb, kernel_params, *, samples_per_step=None):
    (w_img, wh_all, bh_flat, ws_fold, e_mat, wproj_all, wop_all,
     wf1, wf2, vecs) = kernel_params

    bs = samples_per_step or _samples_per_grid_step()
    assert B % bs == 0
    steps = B // bs

    img_bf = img_tokens.astype(jnp.bfloat16)
    txt_pad = jnp.concatenate(
        [jnp.zeros((B, TXT_PAD - TXT_TOK, D), jnp.float32), text_emb], axis=1)

    weights = [w_img, wh_all, bh_flat, ws_fold, e_mat, wproj_all, wop_all,
               wf1, wf2, vecs]

    in_specs = [
        pl.BlockSpec((bs, IMG_TOK, TOKEN_DIM), lambda i: (i, 0, 0)),
        pl.BlockSpec((bs, TXT_PAD, D), lambda i: (i, 0, 0)),
    ] + [pl.BlockSpec(w.shape, _zero_map(w.ndim)) for w in weights]

    return pl.pallas_call(
        aacl_kernel,
        out_shape=jax.ShapeDtypeStruct((B, IMG_TOK, D), jnp.float32),
        grid=(steps,),
        in_specs=in_specs,
        out_specs=pl.BlockSpec((bs, IMG_TOK, D), lambda i: (i, 0, 0)),
        scratch_shapes=[pltpu.VMEM((bs * N, D), jnp.float32)],
        compiler_params=pltpu.CompilerParams(
            dimension_semantics=("parallel",)),
    )(img_bf, txt_pad, *weights)


# ----------------------------------------------------------------------------
# Deterministic module-style params (math layout: (in, out) matrices), then
# trace-time fusion/merging into the kernel's parameter set.
# ----------------------------------------------------------------------------
def init_module_params(key):
    ks = list(jax.random.split(key, 13))
    s = 0.05
    p = {}
    p["w_img"] = jax.random.normal(ks[0], (TOKEN_DIM, D), jnp.float32) * s
    p["b_img"] = jax.random.normal(ks[1], (1, D), jnp.float32) * s
    p["wh"] = jax.random.normal(ks[2], (H, D, D), jnp.float32) * s      # Fh weights
    p["bh"] = jax.random.normal(ks[3], (H, 1, D), jnp.float32) * s      # Fh biases
    p["wsc"] = jax.random.normal(ks[4], (D, H), jnp.float32)            # per-head w_h
    p["wo"] = jax.random.normal(ks[5], (H, D, D), jnp.float32) * s      # Fo weights
    p["bo"] = jax.random.normal(ks[6], (H, 1, D), jnp.float32) * s      # Fo biases
    p["wproj"] = jax.random.normal(ks[7], (H, D, D), jnp.float32) * s   # linear_projection
    p["bproj"] = jax.random.normal(ks[8], (1, D), jnp.float32) * s
    p["g1"] = jnp.ones((1, D), jnp.float32)
    p["b1"] = jnp.zeros((1, D), jnp.float32)
    p["wf1"] = jax.random.normal(ks[9], (D, FF), jnp.float32) * s
    p["bf1"] = jax.random.normal(ks[10], (1, FF), jnp.float32) * s
    p["wf2"] = jax.random.normal(ks[11], (FF, D), jnp.float32) * s
    p["bf2"] = jax.random.normal(ks[12], (1, D), jnp.float32) * s
    p["g2"] = jnp.ones((1, D), jnp.float32)
    p["b2"] = jnp.zeros((1, D), jnp.float32)
    return p


def prepare_kernel_params(p):
    bf16 = jnp.bfloat16
    scale = 1.0 / math.sqrt(D)
    # merged Fh: column block h of wh_all == wh[h]
    wh_all = jnp.transpose(p["wh"], (1, 0, 2)).reshape(D, HD).astype(bf16)
    bh_flat = p["bh"].reshape(1, HD)
    # additive scores straight from x: ws_fold[:, h] = scale * wh[h] @ wsc[:, h]
    # (the matching per-head bias term is constant across tokens and cancels
    #  in the softmax, so it is dropped entirely)
    ws_fold = (scale * jnp.einsum("hio,oh->ih", p["wh"], p["wsc"])).astype(bf16)
    # head-block indicator: E[h, h*D+d] = 1 (selects head h's slice of ctx)
    e_mat = jnp.kron(jnp.eye(H, dtype=jnp.float32), jnp.ones((1, D), jnp.float32))
    # head-concat projection, with Fo algebraically folded in
    wproj_all = p["wproj"].reshape(HD, D).astype(bf16)                  # (H*D, D)
    wop_all = jnp.einsum("hij,hjk->hik", p["wo"], p["wproj"]).reshape(HD, D).astype(bf16)
    b_total = p["bproj"] + jnp.einsum("hud,hde->ue", p["bo"], p["wproj"])
    # pack all (1, 128) bias/gain rows into one sublane-aligned (8, 128) block
    vecs = jnp.concatenate([p["b_img"], b_total, p["g1"], p["b1"],
                            p["bf1"], p["bf2"], p["g2"], p["b2"]], axis=0)
    return (p["w_img"].astype(bf16), wh_all, bh_flat, ws_fold, e_mat,
            wproj_all, wop_all, p["wf1"].astype(bf16), p["wf2"].astype(bf16),
            vecs)


if __name__ == "__main__":
    key = jax.random.PRNGKey(0)
    k_feat, k_text, k_param = jax.random.split(key, 3)

    # TODO(synk): stand-ins for the pretrained Swin-B stage3/stage4 tokens and
    # DistilBERT last_hidden_state.
    img_tokens = jax.random.normal(k_feat, (B, IMG_TOK, TOKEN_DIM), jnp.float32)
    text_emb = jax.random.normal(k_text, (B, TXT_TOK, D), jnp.float32)

    kernel_params = prepare_kernel_params(init_module_params(k_param))

    out = aacl_forward(img_tokens, text_emb, kernel_params)
    out = jax.block_until_ready(out)
    assert out.shape == (B, IMG_TOK, D) and out.dtype == jnp.float32
    assert bool(jnp.all(jnp.isfinite(out)))
    print("KERNEL_OK")
</pallas_src>

<mosaic_0001>
module attributes {stable_mosaic.version = 11 : i64} {
  func.func @aacl_kernel(%arg0: i32, %arg1: memref<2x98x256xbf16, #tpu.memory_space<vmem>>, %arg2: memref<2x32x128xf32, #tpu.memory_space<vmem>>, %arg3: memref<256x128xbf16, #tpu.memory_space<vmem>>, %arg4: memref<128x1024xbf16, #tpu.memory_space<vmem>>, %arg5: memref<1x1024xf32, #tpu.memory_space<vmem>>, %arg6: memref<128x8xbf16, #tpu.memory_space<vmem>>, %arg7: memref<8x1024xf32, #tpu.memory_space<vmem>>, %arg8: memref<1024x128xbf16, #tpu.memory_space<vmem>>, %arg9: memref<1024x128xbf16, #tpu.memory_space<vmem>>, %arg10: memref<128x128xbf16, #tpu.memory_space<vmem>>, %arg11: memref<128x128xbf16, #tpu.memory_space<vmem>>, %arg12: memref<8x128xf32, #tpu.memory_space<vmem>>, %arg13: memref<2x98x128xf32, #tpu.memory_space<vmem>>, %arg14: memref<256x128xf32, #tpu.memory_space<vmem>>) attributes {dimension_semantics = [#tpu.dimension_semantics<parallel>], iteration_bounds = array<i64: 1>, scalar_prefetch = 0 : i64, scratch_operands = 1 : i64, tpu.core_type = #tpu.core_type<tc>, window_params = [{transform_indices = @transform_0, window_bounds = array<i64: 2, 98, 256>}, {transform_indices = @transform_1, window_bounds = array<i64: 2, 32, 128>}, {pipeline_mode = #tpu.pipeline_mode<synchronous>, transform_indices = @transform_2, window_bounds = array<i64: 256, 128>}, {pipeline_mode = #tpu.pipeline_mode<synchronous>, transform_indices = @transform_3, window_bounds = array<i64: 128, 1024>}, {pipeline_mode = #tpu.pipeline_mode<synchronous>, transform_indices = @transform_4, window_bounds = array<i64: 1, 1024>}, {pipeline_mode = #tpu.pipeline_mode<synchronous>, transform_indices = @transform_5, window_bounds = array<i64: 128, 8>}, {pipeline_mode = #tpu.pipeline_mode<synchronous>, transform_indices = @transform_6, window_bounds = array<i64: 8, 1024>}, {pipeline_mode = #tpu.pipeline_mode<synchronous>, transform_indices = @transform_7, window_bounds = array<i64: 1024, 128>}, {pipeline_mode = #tpu.pipeline_mode<synchronous>, transform_indices = @transform_8, window_bounds = array<i64: 1024, 128>}, {pipeline_mode = #tpu.pipeline_mode<synchronous>, transform_indices = @transform_9, window_bounds = array<i64: 128, 128>}, {pipeline_mode = #tpu.pipeline_mode<synchronous>, transform_indices = @transform_10, window_bounds = array<i64: 128, 128>}, {pipeline_mode = #tpu.pipeline_mode<synchronous>, transform_indices = @transform_11, window_bounds = array<i64: 8, 128>}, {transform_indices = @transform_12, window_bounds = array<i64: 2, 98, 128>}]} {
    %c0 = arith.constant 0 : index
    %c0_0 = arith.constant 0 : index
    %0 = vector.load %arg12[%c0, %c0_0] : memref<8x128xf32, #tpu.memory_space<vmem>>, vector<8x128xf32>
    %1 = vector.extract_strided_slice %0 {offsets = [0, 0], sizes = [1, 128], strides = [1, 1]} : vector<8x128xf32> to vector<1x128xf32>
    %2 = vector.extract_strided_slice %0 {offsets = [1, 0], sizes = [1, 128], strides = [1, 1]} : vector<8x128xf32> to vector<1x128xf32>
    %3 = vector.extract_strided_slice %0 {offsets = [2, 0], sizes = [1, 128], strides = [1, 1]} : vector<8x128xf32> to vector<1x128xf32>
    %4 = vector.extract_strided_slice %0 {offsets = [3, 0], sizes = [1, 128], strides = [1, 1]} : vector<8x128xf32> to vector<1x128xf32>
    %5 = vector.extract_strided_slice %0 {offsets = [4, 0], sizes = [1, 128], strides = [1, 1]} : vector<8x128xf32> to vector<1x128xf32>
    %6 = vector.extract_strided_slice %0 {offsets = [5, 0], sizes = [1, 128], strides = [1, 1]} : vector<8x128xf32> to vector<1x128xf32>
    %7 = vector.extract_strided_slice %0 {offsets = [6, 0], sizes = [1, 128], strides = [1, 1]} : vector<8x128xf32> to vector<1x128xf32>
    %8 = vector.extract_strided_slice %0 {offsets = [7, 0], sizes = [1, 128], strides = [1, 1]} : vector<8x128xf32> to vector<1x128xf32>
    %c0_1 = arith.constant 0 : index
    %c0_2 = arith.constant 0 : index
    %c0_3 = arith.constant 0 : index
    %9 = vector.load %arg2[%c0_1, %c0_2, %c0_3] : memref<2x32x128xf32, #tpu.memory_space<vmem>>, vector<1x32x128xf32>
    %10 = vector.shape_cast %9 : vector<1x32x128xf32> to vector<32x128xf32>
    %c96 = arith.constant 96 : index
    %c0_4 = arith.constant 0 : index
    %11 = vector.load %arg14[%c96, %c0_4] : memref<256x128xf32, #tpu.memory_space<vmem>>, vector<32x128xf32>
    tpu.vector_store %arg14[%c96, %c0_4], %10 {strides = array<i32>} : memref<256x128xf32, #tpu.memory_space<vmem>>, vector<32x128xf32>,
    %c0_5 = arith.constant 0 : index
    %c0_6 = arith.constant 0 : index
    %c0_7 = arith.constant 0 : index
    %12 = vector.load %arg1[%c0_5, %c0_6, %c0_7] : memref<2x98x256xbf16, #tpu.memory_space<vmem>>, vector<1x98x256xbf16>
    %13 = vector.shape_cast %12 : vector<1x98x256xbf16> to vector<98x256xbf16>
    %c0_8 = arith.constant 0 : index
    %c0_9 = arith.constant 0 : index
    %14 = vector.load %arg3[%c0_8, %c0_9] : memref<256x128xbf16, #tpu.memory_space<vmem>>, vector<256x128xbf16>
    %cst = arith.constant dense<0.000000e+00> : vector<98x128xf32>
    %15 = tpu.matmul %13, %14, %cst {dimension_numbers = #tpu.dot_dimension_numbers<[1], [0], [0], [1], [0, 0, 1, 1], [], []>} : vector<98x256xbf16>, vector<256x128xbf16>, vector<98x128xf32> -> vector<98x128xf32>
    %16 = vector.broadcast %1 : vector<1x128xf32> to vector<98x128xf32>
    %17 = arith.addf %15, %16 : vector<98x128xf32>
    %c0_10 = arith.constant 0 : index
    %c0_11 = arith.constant 0 : index
    %18 = vector.load %arg14[%c0_10, %c0_11] : memref<256x128xf32, #tpu.memory_space<vmem>>, vector<98x128xf32>
    tpu.vector_store %arg14[%c0_10, %c0_11], %17 {strides = array<i32>} : memref<256x128xf32, #tpu.memory_space<vmem>>, vector<98x128xf32>,
    %c1 = arith.constant 1 : index
    %c0_12 = arith.constant 0 : index
    %c0_13 = arith.constant 0 : index
    %19 = vector.load %arg2[%c1, %c0_12, %c0_13] : memref<2x32x128xf32, #tpu.memory_space<vmem>>, vector<1x32x128xf32>
    %20 = vector.shape_cast %19 : vector<1x32x128xf32> to vector<32x128xf32>
    %c224 = arith.constant 224 : index
    %c0_14 = arith.constant 0 : index
    %21 = vector.load %arg14[%c224, %c0_14] : memref<256x128xf32, #tpu.memory_space<vmem>>, vector<32x128xf32>
    tpu.vector_store %arg14[%c224, %c0_14], %20 {strides = array<i32>} : memref<256x128xf32, #tpu.memory_space<vmem>>, vector<32x128xf32>,
    %c1_15 = arith.constant 1 : index
    %c0_16 = arith.constant 0 : index
    %c0_17 = arith.constant 0 : index
    %22 = vector.load %arg1[%c1_15, %c0_16, %c0_17] : memref<2x98x256xbf16, #tpu.memory_space<vmem>>, vector<1x98x256xbf16>
    %23 = vector.shape_cast %22 : vector<1x98x256xbf16> to vector<98x256xbf16>
    %c0_18 = arith.constant 0 : index
    %c0_19 = arith.constant 0 : index
    %24 = vector.load %arg3[%c0_18, %c0_19] : memref<256x128xbf16, #tpu.memory_space<vmem>>, vector<256x128xbf16>
    %cst_20 = arith.constant dense<0.000000e+00> : vector<98x128xf32>
    %25 = tpu.matmul %23, %24, %cst_20 {dimension_numbers = #tpu.dot_dimension_numbers<[1], [0], [0], [1], [0, 0, 1, 1], [], []>} : vector<98x256xbf16>, vector<256x128xbf16>, vector<98x128xf32> -> vector<98x128xf32>
    %26 = vector.broadcast %1 : vector<1x128xf32> to vector<98x128xf32>
    %27 = arith.addf %25, %26 : vector<98x128xf32>
    %c128 = arith.constant 128 : index
    %c0_21 = arith.constant 0 : index
    %28 = vector.load %arg14[%c128, %c0_21] : memref<256x128xf32, #tpu.memory_space<vmem>>, vector<98x128xf32>
    tpu.vector_store %arg14[%c128, %c0_21], %27 {strides = array<i32>} : memref<256x128xf32, #tpu.memory_space<vmem>>, vector<98x128xf32>,
    %c0_22 = arith.constant 0 : index
    %c0_23 = arith.constant 0 : index
    %29 = vector.load %arg14[%c0_22, %c0_23] : memref<256x128xf32, #tpu.memory_space<vmem>>, vector<256x128xf32>
    %30 = arith.truncf %29 : vector<256x128xf32> to vector<256x128xbf16>
    %c0_24 = arith.constant 0 : index
    %c0_25 = arith.constant 0 : index
    %31 = vector.load %arg4[%c0_24, %c0_25] : memref<128x1024xbf16, #tpu.memory_space<vmem>>, vector<128x1024xbf16>
    %cst_26 = arith.constant dense<0.000000e+00> : vector<256x1024xf32>
    %32 = tpu.matmul %30, %31, %cst_26 {dimension_numbers = #tpu.dot_dimension_numbers<[1], [0], [0], [1], [0, 0, 1, 1], [], []>} : vector<256x128xbf16>, vector<128x1024xbf16>, vector<256x1024xf32> -> vector<256x1024xf32>
    %c0_27 = arith.constant 0 : index
    %c0_28 = arith.constant 0 : index
    %33 = vector.load %arg5[%c0_27, %c0_28] : memref<1x1024xf32, #tpu.memory_space<vmem>>, vector<1x1024xf32>
    %34 = vector.broadcast %33 : vector<1x1024xf32> to vector<256x1024xf32>
    %35 = arith.addf %32, %34 : vector<256x1024xf32>
    %36 = arith.truncf %35 : vector<256x1024xf32> to vector<256x1024xbf16>
    %c0_29 = arith.constant 0 : index
    %c0_30 = arith.constant 0 : index
    %37 = vector.load %arg6[%c0_29, %c0_30] : memref<128x8xbf16, #tpu.memory_space<vmem>>, vector<128x8xbf16>
    %cst_31 = arith.constant dense<0.000000e+00> : vector<256x8xf32>
    %38 = tpu.matmul %30, %37, %cst_31 {dimension_numbers = #tpu.dot_dimension_numbers<[1], [0], [0], [1], [0, 0, 1, 1], [], []>} : vector<256x128xbf16>, vector<128x8xbf16>, vector<256x8xf32> -> vector<256x8xf32>
    %39 = vector.extract_strided_slice %38 {offsets = [0, 0], sizes = [128, 8], strides = [1, 1]} : vector<256x8xf32> to vector<128x8xf32>
    %40 = tpu.transpose %39, [1, 0] : vector<128x8xf32> -> vector<8x128xf32>
    %cst_32 = arith.constant dense<0xFF800000> : vector<8xf32>
    %41 = vector.multi_reduction <maximumf>, %40, %cst_32 [1] : vector<8x128xf32> to vector<8xf32>
    %42 = vector.shape_cast %41 : vector<8xf32> to vector<8x1xf32>
    %43 = vector.broadcast %42 : vector<8x1xf32> to vector<8x128xf32>
    %44 = arith.subf %40, %43 : vector<8x128xf32>
    %45 = math.exp %44 : vector<8x128xf32>
    %cst_33 = arith.constant dense<0.000000e+00> : vector<8xf32>
    %46 = vector.multi_reduction <add>, %45, %cst_33 [1] : vector<8x128xf32> to vector<8xf32>
    %47 = vector.shape_cast %46 : vector<8xf32> to vector<8x1xf32>
    %48 = tpu.reciprocal %47 {approx = true} : vector<8x1xf32> -> vector<8x1xf32>
    %49 = vector.broadcast %48 : vector<8x1xf32> to vector<8x128xf32>
    %50 = arith.mulf %45, %49 : vector<8x128xf32>
    %51 = vector.extract_strided_slice %36 {offsets = [0, 0], sizes = [128, 1024], strides = [1, 1]} : vector<256x1024xbf16> to vector<128x1024xbf16>
    %52 = arith.truncf %50 : vector<8x128xf32> to vector<8x128xbf16>
    %cst_34 = arith.constant dense<0.000000e+00> : vector<8x1024xf32>
    %53 = tpu.matmul %52, %51, %cst_34 {dimension_numbers = #tpu.dot_dimension_numbers<[1], [0], [0], [1], [0, 0, 1, 1], [], []>} : vector<8x128xbf16>, vector<128x1024xbf16>, vector<8x1024xf32> -> vector<8x1024xf32>
    %c0_35 = arith.constant 0 : index
    %c0_36 = arith.constant 0 : index
    %54 = vector.load %arg7[%c0_35, %c0_36] : memref<8x1024xf32, #tpu.memory_space<vmem>>, vector<8x1024xf32>
    %55 = arith.mulf %53, %54 : vector<8x1024xf32>
    %cst_37 = arith.constant dense<0.000000e+00> : vector<1024xf32>
    %56 = vector.multi_reduction <add>, %55, %cst_37 [0] : vector<8x1024xf32> to vector<1024xf32>
    %57 = vector.shape_cast %56 : vector<1024xf32> to vector<1x1024xf32>
    %58 = arith.truncf %57 : vector<1x1024xf32> to vector<1x1024xbf16>
    %59 = vector.broadcast %58 : vector<1x1024xbf16> to vector<128x1024xbf16>
    %60 = arith.mulf %51, %59 : vector<128x1024xbf16>
    %61 = vector.extract_strided_slice %38 {offsets = [128, 0], sizes = [128, 8], strides = [1, 1]} : vector<256x8xf32> to vector<128x8xf32>
    %62 = tpu.transpose %61, [1, 0] : vector<128x8xf32> -> vector<8x128xf32>
    %cst_38 = arith.constant dense<0xFF800000> : vector<8xf32>
    %63 = vector.multi_reduction <maximumf>, %62, %cst_38 [1] : vector<8x128xf32> to vector<8xf32>
    %64 = vector.shape_cast %63 : vector<8xf32> to vector<8x1xf32>
    %65 = vector.broadcast %64 : vector<8x1xf32> to vector<8x128xf32>
    %66 = arith.subf %62, %65 : vector<8x128xf32>
    %67 = math.exp %66 : vector<8x128xf32>
    %cst_39 = arith.constant dense<0.000000e+00> : vector<8xf32>
    %68 = vector.multi_reduction <add>, %67, %cst_39 [1] : vector<8x128xf32> to vector<8xf32>
    %69 = vector.shape_cast %68 : vector<8xf32> to vector<8x1xf32>
    %70 = tpu.reciprocal %69 {approx = true} : vector<8x1xf32> -> vector<8x1xf32>
    %71 = vector.broadcast %70 : vector<8x1xf32> to vector<8x128xf32>
    %72 = arith.mulf %67, %71 : vector<8x128xf32>
    %73 = vector.extract_strided_slice %36 {offsets = [128, 0], sizes = [128, 1024], strides = [1, 1]} : vector<256x1024xbf16> to vector<128x1024xbf16>
    %74 = arith.truncf %72 : vector<8x128xf32> to vector<8x128xbf16>
    %cst_40 = arith.constant dense<0.000000e+00> : vector<8x1024xf32>
    %75 = tpu.matmul %74, %73, %cst_40 {dimension_numbers = #tpu.dot_dimension_numbers<[1], [0], [0], [1], [0, 0, 1, 1], [], []>} : vector<8x128xbf16>, vector<128x1024xbf16>, vector<8x1024xf32> -> vector<8x1024xf32>
    %c0_41 = arith.constant 0 : index
    %c0_42 = arith.constant 0 : index
    %76 = vector.load %arg7[%c0_41, %c0_42] : memref<8x1024xf32, #tpu.memory_space<vmem>>, vector<8x1024xf32>
    %77 = arith.mulf %75, %76 : vector<8x1024xf32>
    %cst_43 = arith.constant dense<0.000000e+00> : vector<1024xf32>
    %78 = vector.multi_reduction <add>, %77, %cst_43 [0] : vector<8x1024xf32> to vector<1024xf32>
    %79 = vector.shape_cast %78 : vector<1024xf32> to vector<1x1024xf32>
    %80 = arith.truncf %79 : vector<1x1024xf32> to vector<1x1024xbf16>
    %81 = vector.broadcast %80 : vector<1x1024xbf16> to vector<128x1024xbf16>
    %82 = arith.mulf %73, %81 : vector<128x1024xbf16>
    %83 = tpu.concatenate %60, %82 in 0 : vector<128x1024xbf16>, vector<128x1024xbf16> -> vector<256x1024xbf16>
    %c0_44 = arith.constant 0 : index
    %c0_45 = arith.constant 0 : index
    %84 = vector.load %arg8[%c0_44, %c0_45] : memref<1024x128xbf16, #tpu.memory_space<vmem>>, vector<1024x128xbf16>
    %cst_46 = arith.constant dense<0.000000e+00> : vector<256x128xf32>
    %85 = tpu.matmul %36, %84, %cst_46 {dimension_numbers = #tpu.dot_dimension_numbers<[1], [0], [0], [1], [0, 0, 1, 1], [], []>} : vector<256x1024xbf16>, vector<1024x128xbf16>, vector<256x128xf32> -> vector<256x128xf32>
    %86 = vector.broadcast %2 : vector<1x128xf32> to vector<256x128xf32>
    %87 = arith.addf %86, %85 : vector<256x128xf32>
    %c0_47 = arith.constant 0 : index
    %c0_48 = arith.constant 0 : index
    %88 = vector.load %arg9[%c0_47, %c0_48] : memref<1024x128xbf16, #tpu.memory_space<vmem>>, vector<1024x128xbf16>
    %cst_49 = arith.constant dense<0.000000e+00> : vector<256x128xf32>
    %89 = tpu.matmul %83, %88, %cst_49 {dimension_numbers = #tpu.dot_dimension_numbers<[1], [0], [0], [1], [0, 0, 1, 1], [], []>} : vector<256x1024xbf16>, vector<1024x128xbf16>, vector<256x128xf32> -> vector<256x128xf32>
    %90 = arith.addf %87, %89 : vector<256x128xf32>
    %91 = arith.addf %29, %90 : vector<256x128xf32>
    %cst_50 = arith.constant dense<0.000000e+00> : vector<256xf32>
    %92 = vector.multi_reduction <add>, %91, %cst_50 [1] : vector<256x128xf32> to vector<256xf32>
    %93 = vector.shape_cast %92 : vector<256xf32> to vector<256x1xf32>
    %cst_51 = arith.constant 1.280000e+02 : f32
    %94 = vector.broadcast %cst_51 : f32 to vector<256x1xf32>
    %95 = arith.divf %93, %94 : vector<256x1xf32>
    %96 = vector.broadcast %95 : vector<256x1xf32> to vector<256x128xf32>
    %97 = arith.subf %91, %96 : vector<256x128xf32>
    %98 = arith.mulf %97, %97 : vector<256x128xf32>
    %cst_52 = arith.constant dense<0.000000e+00> : vector<256xf32>
    %99 = vector.multi_reduction <add>, %98, %cst_52 [1] : vector<256x128xf32> to vector<256xf32>
    %100 = vector.shape_cast %99 : vector<256xf32> to vector<256x1xf32>
    %cst_53 = arith.constant 1.280000e+02 : f32
    %101 = vector.broadcast %cst_53 : f32 to vector<256x1xf32>
    %102 = arith.divf %100, %101 : vector<256x1xf32>
    %103 = vector.broadcast %95 : vector<256x1xf32> to vector<256x128xf32>
    %104 = arith.subf %91, %103 : vector<256x128xf32>
    %cst_54 = arith.constant 9.99999974E-6 : f32
    %105 = vector.broadcast %cst_54 : f32 to vector<256x1xf32>
    %106 = arith.addf %102, %105 : vector<256x1xf32>
    %107 = math.rsqrt %106 : vector<256x1xf32>
    %108 = vector.broadcast %107 : vector<256x1xf32> to vector<256x128xf32>
    %109 = arith.mulf %104, %108 : vector<256x128xf32>
    %110 = vector.broadcast %3 : vector<1x128xf32> to vector<256x128xf32>
    %111 = arith.mulf %109, %110 : vector<256x128xf32>
    %112 = vector.broadcast %4 : vector<1x128xf32> to vector<256x128xf32>
    %113 = arith.addf %111, %112 : vector<256x128xf32>
    %114 = arith.truncf %113 : vector<256x128xf32> to vector<256x128xbf16>
    %c0_55 = arith.constant 0 : index
    %c0_56 = arith.constant 0 : index
    %115 = vector.load %arg10[%c0_55, %c0_56] : memref<128x128xbf16, #tpu.memory_space<vmem>>, vector<128x128xbf16>
    %cst_57 = arith.constant dense<0.000000e+00> : vector<256x128xf32>
    %116 = tpu.matmul %114, %115, %cst_57 {dimension_numbers = #tpu.dot_dimension_numbers<[1], [0], [0], [1], [0, 0, 1, 1], [], []>} : vector<256x128xbf16>, vector<128x128xbf16>, vector<256x128xf32> -> vector<256x128xf32>
    %117 = vector.broadcast %5 : vector<1x128xf32> to vector<256x128xf32>
    %118 = arith.addf %116, %117 : vector<256x128xf32>
    %cst_58 = arith.constant 0.000000e+00 : f32
    %119 = vector.broadcast %cst_58 : f32 to vector<256x128xf32>
    %120 = arith.maximumf %118, %119 : vector<256x128xf32>
    %121 = arith.truncf %120 : vector<256x128xf32> to vector<256x128xbf16>
    %c0_59 = arith.constant 0 : index
    %c0_60 = arith.constant 0 : index
    %122 = vector.load %arg11[%c0_59, %c0_60] : memref<128x128xbf16, #tpu.memory_space<vmem>>, vector<128x128xbf16>
    %cst_61 = arith.constant dense<0.000000e+00> : vector<256x128xf32>
    %123 = tpu.matmul %121, %122, %cst_61 {dimension_numbers = #tpu.dot_dimension_numbers<[1], [0], [0], [1], [0, 0, 1, 1], [], []>} : vector<256x128xbf16>, vector<128x128xbf16>, vector<256x128xf32> -> vector<256x128xf32>
    %124 = vector.broadcast %6 : vector<1x128xf32> to vector<256x128xf32>
    %125 = arith.addf %123, %124 : vector<256x128xf32>
    %126 = arith.addf %125, %113 : vector<256x128xf32>
    %cst_62 = arith.constant dense<0.000000e+00> : vector<256xf32>
    %127 = vector.multi_reduction <add>, %126, %cst_62 [1] : vector<256x128xf32> to vector<256xf32>
    %128 = vector.shape_cast %127 : vector<256xf32> to vector<256x1xf32>
    %cst_63 = arith.constant 1.280000e+02 : f32
    %129 = vector.broadcast %cst_63 : f32 to vector<256x1xf32>
    %130 = arith.divf %128, %129 : vector<256x1xf32>
    %131 = vector.broadcast %130 : vector<256x1xf32> to vector<256x128xf32>
    %132 = arith.subf %126, %131 : vector<256x128xf32>
    %133 = arith.mulf %132, %132 : vector<256x128xf32>
    %cst_64 = arith.constant dense<0.000000e+00> : vector<256xf32>
    %134 = vector.multi_reduction <add>, %133, %cst_64 [1] : vector<256x128xf32> to vector<256xf32>
    %135 = vector.shape_cast %134 : vector<256xf32> to vector<256x1xf32>
    %cst_65 = arith.constant 1.280000e+02 : f32
    %136 = vector.broadcast %cst_65 : f32 to vector<256x1xf32>
    %137 = arith.divf %135, %136 : vector<256x1xf32>
    %138 = vector.broadcast %130 : vector<256x1xf32> to vector<256x128xf32>
    %139 = arith.subf %126, %138 : vector<256x128xf32>
    %cst_66 = arith.constant 9.99999974E-6 : f32
    %140 = vector.broadcast %cst_66 : f32 to vector<256x1xf32>
    %141 = arith.addf %137, %140 : vector<256x1xf32>
    %142 = math.rsqrt %141 : vector<256x1xf32>
    %143 = vector.broadcast %142 : vector<256x1xf32> to vector<256x128xf32>
    %144 = arith.mulf %139, %143 : vector<256x128xf32>
    %145 = vector.broadcast %7 : vector<1x128xf32> to vector<256x128xf32>
    %146 = arith.mulf %144, %145 : vector<256x128xf32>
    %147 = vector.broadcast %8 : vector<1x128xf32> to vector<256x128xf32>
    %148 = arith.addf %146, %147 : vector<256x128xf32>
    %149 = vector.extract_strided_slice %148 {offsets = [0, 0], sizes = [98, 128], strides = [1, 1]} : vector<256x128xf32> to vector<98x128xf32>
    %c0_67 = arith.constant 0 : index
    %c0_68 = arith.constant 0 : index
    %c0_69 = arith.constant 0 : index
    %150 = vector.load %arg13[%c0_67, %c0_68, %c0_69] : memref<2x98x128xf32, #tpu.memory_space<vmem>>, vector<1x98x128xf32>
    %151 = vector.shape_cast %150 : vector<1x98x128xf32> to vector<98x128xf32>
    %152 = vector.shape_cast %149 : vector<98x128xf32> to vector<1x98x128xf32>
    tpu.vector_store %arg13[%c0_67, %c0_68, %c0_69], %152 {strides = array<i32>} : memref<2x98x128xf32, #tpu.memory_space<vmem>>, vector<1x98x128xf32>,
    %153 = vector.extract_strided_slice %148 {offsets = [128, 0], sizes = [98, 128], strides = [1, 1]} : vector<256x128xf32> to vector<98x128xf32>
    %c1_70 = arith.constant 1 : index
    %c0_71 = arith.constant 0 : index
    %c0_72 = arith.constant 0 : index
    %154 = vector.load %arg13[%c1_70, %c0_71, %c0_72] : memref<2x98x128xf32, #tpu.memory_space<vmem>>, vector<1x98x128xf32>
    %155 = vector.shape_cast %154 : vector<1x98x128xf32> to vector<98x128xf32>
    %156 = vector.shape_cast %153 : vector<98x128xf32> to vector<1x98x128xf32>
    tpu.vector_store %arg13[%c1_70, %c0_71, %c0_72], %156 {strides = array<i32>} : memref<2x98x128xf32, #tpu.memory_space<vmem>>, vector<1x98x128xf32>,
    return
  }
  func.func @transform_0(%arg0: i32) -> (i32, i32, i32) {
    %c0_i32 = arith.constant 0 : i32
    %c0_i32_0 = arith.constant 0 : i32
    %c0_i32_1 = arith.constant 0 : i32
    return %arg0, %c0_i32, %c0_i32_0 : i32, i32, i32
  }
  func.func @transform_1(%arg0: i32) -> (i32, i32, i32) {
    %c0_i32 = arith.constant 0 : i32
    %c0_i32_0 = arith.constant 0 : i32
    %c0_i32_1 = arith.constant 0 : i32
    return %arg0, %c0_i32, %c0_i32_0 : i32, i32, i32
  }
  func.func @transform_2(%arg0: i32) -> (i32, i32) {
    %c0_i32 = arith.constant 0 : i32
    %c0_i32_0 = arith.constant 0 : i32
    %c0_i32_1 = arith.constant 0 : i32
    return %c0_i32, %c0_i32_0 : i32, i32
  }
  func.func @transform_3(%arg0: i32) -> (i32, i32) {
    %c0_i32 = arith.constant 0 : i32
    %c0_i32_0 = arith.constant 0 : i32
    %c0_i32_1 = arith.constant 0 : i32
    return %c0_i32, %c0_i32_0 : i32, i32
  }
  func.func @transform_4(%arg0: i32) -> (i32, i32) {
    %c0_i32 = arith.constant 0 : i32
    %c0_i32_0 = arith.constant 0 : i32
    %c0_i32_1 = arith.constant 0 : i32
    return %c0_i32, %c0_i32_0 : i32, i32
  }
  func.func @transform_5(%arg0: i32) -> (i32, i32) {
    %c0_i32 = arith.constant 0 : i32
    %c0_i32_0 = arith.constant 0 : i32
    %c0_i32_1 = arith.constant 0 : i32
    return %c0_i32, %c0_i32_0 : i32, i32
  }
  func.func @transform_6(%arg0: i32) -> (i32, i32) {
    %c0_i32 = arith.constant 0 : i32
    %c0_i32_0 = arith.constant 0 : i32
    %c0_i32_1 = arith.constant 0 : i32
    return %c0_i32, %c0_i32_0 : i32, i32
  }
  func.func @transform_7(%arg0: i32) -> (i32, i32) {
    %c0_i32 = arith.constant 0 : i32
    %c0_i32_0 = arith.constant 0 : i32
    %c0_i32_1 = arith.constant 0 : i32
    return %c0_i32, %c0_i32_0 : i32, i32
  }
  func.func @transform_8(%arg0: i32) -> (i32, i32) {
    %c0_i32 = arith.constant 0 : i32
    %c0_i32_0 = arith.constant 0 : i32
    %c0_i32_1 = arith.constant 0 : i32
    return %c0_i32, %c0_i32_0 : i32, i32
  }
  func.func @transform_9(%arg0: i32) -> (i32, i32) {
    %c0_i32 = arith.constant 0 : i32
    %c0_i32_0 = arith.constant 0 : i32
    %c0_i32_1 = arith.constant 0 : i32
    return %c0_i32, %c0_i32_0 : i32, i32
  }
  func.func @transform_10(%arg0: i32) -> (i32, i32) {
    %c0_i32 = arith.constant 0 : i32
    %c0_i32_0 = arith.constant 0 : i32
    %c0_i32_1 = arith.constant 0 : i32
    return %c0_i32, %c0_i32_0 : i32, i32
  }
  func.func @transform_11(%arg0: i32) -> (i32, i32) {
    %c0_i32 = arith.constant 0 : i32
    %c0_i32_0 = arith.constant 0 : i32
    %c0_i32_1 = arith.constant 0 : i32
    return %c0_i32, %c0_i32_0 : i32, i32
  }
  func.func @transform_12(%arg0: i32) -> (i32, i32, i32) {
    %c0_i32 = arith.constant 0 : i32
    %c0_i32_0 = arith.constant 0 : i32
    %c0_i32_1 = arith.constant 0 : i32
    return %arg0, %c0_i32, %c0_i32_0 : i32, i32, i32
  }
}

</mosaic_0001>

<llo_original>
// kernel: tpu_custom_call.1
$region0: #{tpu_custom_call.1}
  #allocation0 [shape = 'u32[]', space=smem, size = 0x4, offset = 0x4, fixed_abs, tag = 'smem constant byte address 0x4 - core index']
  #allocation1 [shape = 'u32[72,128]{1,0:T(1,128)}', space=vmem, size = 0x9000, scoped, tag = 'internal scratch']
  #allocation2 [shape = 'f32[256,128]{1,0:T(8,128)}', space=vmem, size = 0x20000, scoped, tag = 'scratch operand']
  %s0 = inlined_call_operand.vmem [shape: bf16[2,98,256], index: 0, kind: input, shape index: {}]
  %s1 = inlined_call_operand.vmem [shape: f32[2,32,128], index: 1, kind: input, shape index: {}]
  %s2 = inlined_call_operand.vmem [shape: bf16[256,128], index: 2, kind: input, shape index: {}]
  %s3 = inlined_call_operand.hbm [shape: bf16[128,1024], index: 3, kind: input, shape index: {}]
  %s4 = inlined_call_operand.vmem [shape: f32[1,1024], index: 4, kind: input, shape index: {}]
  %s5 = inlined_call_operand.vmem [shape: bf16[128,8], index: 5, kind: input, shape index: {}]
  %s6 = inlined_call_operand.vmem [shape: f32[8,1024], index: 6, kind: input, shape index: {}]
  %s7 = inlined_call_operand.hbm [shape: bf16[1024,128], index: 7, kind: input, shape index: {}]
  %s8 = inlined_call_operand.hbm [shape: bf16[1024,128], index: 8, kind: input, shape index: {}]
  %s9 = inlined_call_operand.vmem [shape: bf16[128,128], index: 9, kind: input, shape index: {}]
  %s10 = inlined_call_operand.vmem [shape: bf16[128,128], index: 10, kind: input, shape index: {}]
  %s11 = inlined_call_operand.vmem [shape: f32[8,128], index: 11, kind: input, shape index: {}]
  %s12 = inlined_call_operand.vmem [shape: f32[2,98,128], index: 12, kind: output, shape index: {}]
  %s13 = sld [smem:[#allocation0]]
  $region70: #{tpu_custom_call.1} parent=0
    _
  %s15 = ssub.s32 1, %s13
  %s16 = scalar_select 0, %s15, %s13
  $region1: #{tpu_custom_call.1} parent=0
    #allocation3 [shape = 'u8[262144]{0}', space=vmem, size = 0x40000, scoped, tag = 'input window, operand 3, single buffered']
    #allocation4 [shape = 's32[1]{0}', space=sflag, size = 0x4, scoped, tag = 'scoped memory for tpu_custom_call.1']
    #allocation5 [shape = 'u8[262144]{0}', space=vmem, size = 0x40000, scoped, tag = 'input window, operand 7, single buffered']
    #allocation6 [shape = 's32[1]{0}', space=sflag, size = 0x4, scoped, tag = 'scoped memory for tpu_custom_call.1']
    #allocation7 [shape = 'u8[262144]{0}', space=vmem, size = 0x40000, scoped, tag = 'input window, operand 8, single buffered']
    %17 = vsyncpa [#allocation4], 0
    %18 = vsyncpa [#allocation6], 0
    // Predicated region
    $region2: #{tpu_custom_call.1} parent=1 // pred_check
      _
    $region3: #{tpu_custom_call.1} parent=1 // pred_check_branch
      %20 = sbr.rel (0) target = $region5
    $region4: #{tpu_custom_call.1} parent=1 // pred_region
      _
    $region5: #{tpu_custom_call.1} parent=1 // pred_fallthru
      _
    // Predicated region
    $region6: #{tpu_custom_call.1} parent=1 // pred_check
      _
    $region7: #{tpu_custom_call.1} parent=1 // pred_check_branch
      %22 = sbr.rel (0) target = $region9
    $region8: #{tpu_custom_call.1} parent=1 // pred_region
      _
    $region9: #{tpu_custom_call.1} parent=1 // pred_fallthru
      _
    // Predicated region
    $region10: #{tpu_custom_call.1} parent=1 // pred_check
      _
    $region11: #{tpu_custom_call.1} parent=1 // pred_check_branch
      %24 = sbr.rel (0) target = $region13
    $region12: #{tpu_custom_call.1} parent=1 // pred_region
      _
    $region13: #{tpu_custom_call.1} parent=1 // pred_fallthru
      _
    // Predicated region
    $region14: #{tpu_custom_call.1} parent=1 // pred_check
      _
    $region15: #{tpu_custom_call.1} parent=1 // pred_check_branch
      %26 = sbr.rel (0) target = $region17
    $region16: #{tpu_custom_call.1} parent=1 // pred_region
      %28 = vsyncadd [#allocation4], 0
      %s29 = sshll.u32 %s3, 4
      %s30 = int_to_ptr.hbm [resolvable:$true] %s29
      %s31 = sshll.u32 [#allocation3], 4
      %s32 = int_to_ptr.vmem [resolvable:$true] %s31
      %37 = dma.hbm_to_vmem [thread:$0]  %s30, 8192, %s32, [#allocation4], 512, 512, 32
    $region17: #{tpu_custom_call.1} parent=1 // pred_fallthru
      _
    // Predicated region
    $region18: #{tpu_custom_call.1} parent=1 // pred_check
      _
    $region19: #{tpu_custom_call.1} parent=1 // pred_check_branch
      %39 = sbr.rel (0) target = $region21
    $region20: #{tpu_custom_call.1} parent=1 // pred_region
      _
    $region21: #{tpu_custom_call.1} parent=1 // pred_fallthru
      _
    // Predicated region
    $region22: #{tpu_custom_call.1} parent=1 // pred_check
      _
    $region23: #{tpu_custom_call.1} parent=1 // pred_check_branch
      %41 = sbr.rel (0) target = $region25
    $region24: #{tpu_custom_call.1} parent=1 // pred_region
      _
    $region25: #{tpu_custom_call.1} parent=1 // pred_fallthru
      _
    // Predicated region
    $region26: #{tpu_custom_call.1} parent=1 // pred_check
      _
    $region27: #{tpu_custom_call.1} parent=1 // pred_check_branch
      %43 = sbr.rel (0) target = $region29
    $region28: #{tpu_custom_call.1} parent=1 // pred_region
      _
    $region29: #{tpu_custom_call.1} parent=1 // pred_fallthru
      _
    // Predicated region
    $region30: #{tpu_custom_call.1} parent=1 // pred_check
      _
    $region31: #{tpu_custom_call.1} parent=1 // pred_check_branch
      %45 = sbr.rel (0) target = $region33
    $region32: #{tpu_custom_call.1} parent=1 // pred_region
      %47 = vsyncadd [#allocation6], 0
      %s48 = sshll.u32 %s7, 4
      %s49 = int_to_ptr.hbm [resolvable:$true] %s48
      %s50 = sshll.u32 [#allocation5], 4
      %s51 = int_to_ptr.vmem [resolvable:$true] %s50
      %56 = dma.hbm_to_vmem [thread:$0]  %s49, 8192, %s51, [#allocation6], 64, 64, 4
    $region33: #{tpu_custom_call.1} parent=1 // pred_fallthru
      _
    // Predicated region
    $region34: #{tpu_custom_call.1} parent=1 // pred_check
      _
    $region35: #{tpu_custom_call.1} parent=1 // pred_check_branch
      %58 = sbr.rel (0) target = $region37
    $region36: #{tpu_custom_call.1} parent=1 // pred_region
      %60 = vsyncadd [#allocation6], 0
      %s61 = sshll.u32 %s8, 4
      %s62 = int_to_ptr.hbm [resolvable:$true] %s61
      %s63 = sshll.u32 [#allocation7], 4
      %s64 = int_to_ptr.vmem [resolvable:$true] %s63
      %69 = dma.hbm_to_vmem [thread:$0]  %s62, 8192, %s64, [#allocation6], 64, 64, 4
    $region37: #{tpu_custom_call.1} parent=1 // pred_fallthru
      _
    // Predicated region
    $region38: #{tpu_custom_call.1} parent=1 // pred_check
      _
    $region39: #{tpu_custom_call.1} parent=1 // pred_check_branch
      %71 = sbr.rel (0) target = $region41
    $region40: #{tpu_custom_call.1} parent=1 // pred_region
      _
    $region41: #{tpu_custom_call.1} parent=1 // pred_fallthru
      _
    // Predicated region
    $region42: #{tpu_custom_call.1} parent=1 // pred_check
      _
    $region43: #{tpu_custom_call.1} parent=1 // pred_check_branch
      %73 = sbr.rel (0) target = $region45
    $region44: #{tpu_custom_call.1} parent=1 // pred_region
      _
    $region45: #{tpu_custom_call.1} parent=1 // pred_fallthru
      _
    // Predicated region
    $region46: #{tpu_custom_call.1} parent=1 // pred_check
      _
    $region47: #{tpu_custom_call.1} parent=1 // pred_check_branch
      %75 = sbr.rel (0) target = $region49
    $region48: #{tpu_custom_call.1} parent=1 // pred_region
      _
    $region49: #{tpu_custom_call.1} parent=1 // pred_fallthru
      _
    // Predicated region
    $region50: #{tpu_custom_call.1} parent=1 // pred_check
      _
    $region51: #{tpu_custom_call.1} parent=1 // pred_check_branch
      %77 = sbr.rel (0) target = $region53
    $region52: #{tpu_custom_call.1} parent=1 // pred_region
      %79 = dma.done [#allocation4], 8192
    $region53: #{tpu_custom_call.1} parent=1 // pred_fallthru
      _
    // Predicated region
    $region54: #{tpu_custom_call.1} parent=1 // pred_check
      _
    $region55: #{tpu_custom_call.1} parent=1 // pred_check_branch
      %81 = sbr.rel (0) target = $region57
    $region56: #{tpu_custom_call.1} parent=1 // pred_region
      %83 = dma.done [#allocation6], 8192
    $region57: #{tpu_custom_call.1} parent=1 // pred_fallthru
      _
    // Predicated region
    $region58: #{tpu_custom_call.1} parent=1 // pred_check
      _
    $region59: #{tpu_custom_call.1} parent=1 // pred_check_branch
      %85 = sbr.rel (0) target = $region61
    $region60: #{tpu_custom_call.1} parent=1 // pred_region
      %87 = dma.done [#allocation6], 8192
    $region61: #{tpu_custom_call.1} parent=1 // pred_fallthru
      _
    %v88 = vld [vmem:[%s11] sm:$0xff]
    %v89 = vld [vmem:[%s1] sm:$0xff]
    %v90 = vld [vmem:[%s1 + $0x8] sm:$0xff]
    %v91 = vld [vmem:[%s1 + $0x10] sm:$0xff]
    %v92 = vld [vmem:[%s1 + $0x18] sm:$0xff]
    %93 = vst [vmem:[#allocation2 + $0x60] sm:$0xff] %v89
    %94 = vst [vmem:[#allocation2 + $0x68] sm:$0xff] %v90
    %95 = vst [vmem:[#allocation2 + $0x70] sm:$0xff] %v91
    %96 = vst [vmem:[#allocation2 + $0x78] sm:$0xff] %v92
    %v97 = vld [vmem:[%s0] sm:$0xff]
    %v98 = vld [vmem:[%s0 + $0x8] sm:$0xff]
    %v99 = vld [vmem:[%s0 + $0x10] sm:$0xff]
    %v100 = vld [vmem:[%s0 + $0x18] sm:$0xff]
    %v101 = vld [vmem:[%s0 + $0x20] sm:$0xff]
    %v102 = vld [vmem:[%s0 + $0x28] sm:$0xff]
    %v103 = vld [vmem:[%s0 + $0x30] sm:$0xff]
    %v104 = vld [vmem:[%s0 + $0x38] sm:$0xff]
    %v105 = vld [vmem:[%s0 + $0x40] sm:$0xff]
    %v106 = vld [vmem:[%s0 + $0x48] sm:$0xff]
    %v107 = vld [vmem:[%s0 + $0x50] sm:$0xff]
    %v108 = vld [vmem:[%s0 + $0x58] sm:$0xff]
    %v109 = vld [vmem:[%s0 + $0x60] sm:$0x11]
    %v110 = vld [vmem:[%s2] sm:$0xf]
    %v111 = vld [vmem:[%s2 + $0x4] sm:$0xf]
    %v112 = vld [vmem:[%s2 + $0x8] sm:$0xf]
    %v113 = vld [vmem:[%s2 + $0xc] sm:$0xf]
    %v114 = vld [vmem:[%s2 + $0x10] sm:$0xf]
    %v115 = vld [vmem:[%s2 + $0x14] sm:$0xf]
    %v116 = vld [vmem:[%s2 + $0x18] sm:$0xf]
    %v117 = vld [vmem:[%s2 + $0x1c] sm:$0xf]
    %v118 = vld [vmem:[%s2 + $0x20] sm:$0xf]
    %v119 = vld [vmem:[%s2 + $0x24] sm:$0xf]
    %v120 = vld [vmem:[%s2 + $0x28] sm:$0xf]
    %v121 = vld [vmem:[%s2 + $0x2c] sm:$0xf]
    %v122 = vld [vmem:[%s2 + $0x30] sm:$0xf]
    %v123 = vld [vmem:[%s2 + $0x34] sm:$0xf]
    %v124 = vld [vmem:[%s2 + $0x38] sm:$0xf]
    %v125 = vld [vmem:[%s2 + $0x3c] sm:$0xf]
    %v126 = vld [vmem:[%s2 + $0x40] sm:$0xf]
    %v127 = vld [vmem:[%s2 + $0x44] sm:$0xf]
    %v128 = vld [vmem:[%s2 + $0x48] sm:$0xf]
    %v129 = vld [vmem:[%s2 + $0x4c] sm:$0xf]
    %v130 = vld [vmem:[%s2 + $0x50] sm:$0xf]
    %v131 = vld [vmem:[%s2 + $0x54] sm:$0xf]
    %v132 = vld [vmem:[%s2 + $0x58] sm:$0xf]
    %v133 = vld [vmem:[%s2 + $0x5c] sm:$0xf]
    %v134 = vld [vmem:[%s2 + $0x60] sm:$0xf]
    %v135 = vld [vmem:[%s2 + $0x64] sm:$0xf]
    %v136 = vld [vmem:[%s2 + $0x68] sm:$0xf]
    %v137 = vld [vmem:[%s2 + $0x6c] sm:$0xf]
    %v138 = vld [vmem:[%s2 + $0x70] sm:$0xf]
    %v139 = vld [vmem:[%s2 + $0x74] sm:$0xf]
    %v140 = vld [vmem:[%s2 + $0x78] sm:$0xf]
    %v141 = vld [vmem:[%s2 + $0x7c] sm:$0xf]
    %v142 = vperm.slane %v88, 0
    %v156 = vunpack.c.l.b16 %v97
    %v157 = vunpack.c.h.b16 %v97
    %v158 = vunpack.c.l.b16 %v98
    %v159 = vunpack.c.h.b16 %v98
    %v160 = vunpack.c.l.b16 %v99
    %v161 = vunpack.c.h.b16 %v99
    %v162 = vunpack.c.l.b16 %v100
    %v163 = vunpack.c.h.b16 %v100
    %v164 = vunpack.c.l.b16 %v101
    %v165 = vunpack.c.h.b16 %v101
    %v166 = vunpack.c.l.b16 %v102
    %v167 = vunpack.c.h.b16 %v102
    %v168 = vunpack.c.l.b16 %v103
    %v169 = vunpack.c.h.b16 %v103
    %v170 = vunpack.c.l.b16 %v104
    %v171 = vunpack.c.h.b16 %v104
    %v172 = vunpack.c.l.b16 %v105
    %v173 = vunpack.c.h.b16 %v105
    %v174 = vunpack.c.l.b16 %v106
    %v175 = vunpack.c.h.b16 %v106
    %v176 = vunpack.c.l.b16 %v107
    %v177 = vunpack.c.h.b16 %v107
    %v178 = vunpack.c.l.b16 %v108
    %v179 = vunpack.c.h.b16 %v108
    %v180 = vunpack.c.l.b16 %v109
    %v181 = vunpack.c.h.b16 %v109
    %v182 = vpack.c.b16 %v158, %v156
    %v183 = vpack.c.b16 %v159, %v157
    %v184 = vpack.c.b16 %v162, %v160
    %v185 = vpack.c.b16 %v163, %v161
    %v186 = vpack.c.b16 %v166, %v164
    %v187 = vpack.c.b16 %v167, %v165
    %v188 = vpack.c.b16 %v170, %v168
    %v189 = vpack.c.b16 %v171, %v169
    %v190 = vpack.c.b16 %v174, %v172
    %v191 = vpack.c.b16 %v175, %v173
    %v192 = vpack.c.b16 %v178, %v176
    %v193 = vpack.c.b16 %v179, %v177
    %v194 = vpack.c.b16 %v180, %v180
    %v195 = vpack.c.b16 %v181, %v181
    %v242 = vunpack.c.l.b16 %v110
    %v243 = vunpack.c.l.b16 %v111
    %v244 = vunpack.c.l.b16 %v112
    %v245 = vunpack.c.l.b16 %v113
    %v246 = vunpack.c.l.b16 %v114
    %v247 = vunpack.c.l.b16 %v115
    %v248 = vunpack.c.l.b16 %v116
    %v249 = vunpack.c.l.b16 %v117
    %v250 = vunpack.c.l.b16 %v118
    %v251 = vunpack.c.l.b16 %v119
    %v252 = vunpack.c.l.b16 %v120
    %v253 = vunpack.c.l.b16 %v121
    %v254 = vunpack.c.l.b16 %v122
    %v255 = vunpack.c.l.b16 %v123
    %v256 = vunpack.c.l.b16 %v124
    %v257 = vunpack.c.l.b16 %v125
    %v258 = vunpack.c.l.b16 %v126
    %v259 = vunpack.c.l.b16 %v127
    %v260 = vunpack.c.l.b16 %v128
    %v261 = vunpack.c.l.b16 %v129
    %v262 = vunpack.c.l.b16 %v130
    %v263 = vunpack.c.l.b16 %v131
    %v264 = vunpack.c.l.b16 %v132
    %v265 = vunpack.c.l.b16 %v133
    %v266 = vunpack.c.l.b16 %v134
    %v267 = vunpack.c.l.b16 %v135
    %v268 = vunpack.c.l.b16 %v136
    %v269 = vunpack.c.l.b16 %v137
    %v270 = vunpack.c.l.b16 %v138
    %v271 = vunpack.c.l.b16 %v139
    %v272 = vunpack.c.l.b16 %v140
    %v273 = vunpack.c.l.b16 %v141
    %v274 = vpack.c.b16 %v243, %v242
    %v275 = vpack.c.b16 %v245, %v244
    %v276 = vpack.c.b16 %v247, %v246
    %v277 = vpack.c.b16 %v249, %v248
    %v278 = vpack.c.b16 %v251, %v250
    %v279 = vpack.c.b16 %v253, %v252
    %v280 = vpack.c.b16 %v255, %v254
    %v281 = vpack.c.b16 %v257, %v256
    %v282 = vpack.c.b16 %v259, %v258
    %v283 = vpack.c.b16 %v261, %v260
    %v284 = vpack.c.b16 %v263, %v262
    %v285 = vpack.c.b16 %v265, %v264
    %v286 = vpack.c.b16 %v267, %v266
    %v287 = vpack.c.b16 %v269, %v268
    %v288 = vpack.c.b16 %v271, %v270
    %v289 = vpack.c.b16 %v273, %v272
    %306 = vmatpush.bf16.msra.mxu0 %v281
    %307 = vmatpush.bf16.msra.mxu0 %v280
    %308 = vmatpush.bf16.msra.mxu0 %v279
    %309 = vmatpush.bf16.msra.mxu0 %v278
    %310 = vmatpush.bf16.msra.mxu0 %v277
    %311 = vmatpush.bf16.msra.mxu0 %v276
    %312 = vmatpush.bf16.msra.mxu0 %v275
    %313 = vmatpush.bf16.msra.mxu0 %v274
    %314 = vmatmul.bf16.gmra.mxu0 %v182
    %v315 = vpop.f32.mrf.mxu0
    %v316 = vadd.f32 %v142, %v315
    %v317 = vpop.f32.mrf.mxu0
    %v318 = vadd.f32 %v142, %v317
    %319 = vmatmul.bf16.gmra.mxu0 %v184
    %v320 = vpop.f32.mrf.mxu0
    %v321 = vadd.f32 %v142, %v320
    %v322 = vpop.f32.mrf.mxu0
    %v323 = vadd.f32 %v142, %v322
    %324 = vmatmul.bf16.gmra.mxu0 %v186
    %v325 = vpop.f32.mrf.mxu0
    %v326 = vadd.f32 %v142, %v325
    %v327 = vpop.f32.mrf.mxu0
    %v328 = vadd.f32 %v142, %v327
    %329 = vmatmul.bf16.gmra.mxu0 %v188
    %v330 = vpop.f32.mrf.mxu0
    %v331 = vadd.f32 %v142, %v330
    %v332 = vpop.f32.mrf.mxu0
    %v333 = vadd.f32 %v142, %v332
    %334 = vmatmul.bf16.gmra.mxu0 %v190
    %v335 = vpop.f32.mrf.mxu0
    %v336 = vadd.f32 %v142, %v335
    %v337 = vpop.f32.mrf.mxu0
    %v338 = vadd.f32 %v142, %v337
    %339 = vmatmul.bf16.gmra.mxu0 %v192
    %v340 = vpop.f32.mrf.mxu0
    %v341 = vadd.f32 %v142, %v340
    %v342 = vpop.f32.mrf.mxu0
    %v343 = vadd.f32 %v142, %v342
    %344 = vmatmul.bf16.gmra.mxu0 %v194
    %v345 = vpop.f32.mrf.mxu0
    %v346 = vadd.f32 %v142, %v345
    %v347 = vpop.f32.mrf.mxu0
    %348 = vdwg.mxu0
    %349 = vmatpush.bf16.msra.mxu0 %v289
    %350 = vmatpush.bf16.msra.mxu0 %v288
    %351 = vmatpush.bf16.msra.mxu0 %v287
    %352 = vmatpush.bf16.msra.mxu0 %v286
    %353 = vmatpush.bf16.msra.mxu0 %v285
    %354 = vmatpush.bf16.msra.mxu0 %v284
    %355 = vmatpush.bf16.msra.mxu0 %v283
    %356 = vmatpush.bf16.msra.mxu0 %v282
    %357 = vmatmul.bf16.gmra.mxu0 %v183
    %v358 = vpop.f32.mrf.mxu0
    %v359 = vadd.f32 %v316, %v358
    %v360 = vpop.f32.mrf.mxu0
    %v361 = vadd.f32 %v318, %v360
    %362 = vmatmul.bf16.gmra.mxu0 %v185
    %v363 = vpop.f32.mrf.mxu0
    %v364 = vadd.f32 %v321, %v363
    %v365 = vpop.f32.mrf.mxu0
    %v366 = vadd.f32 %v323, %v365
    %367 = vmatmul.bf16.gmra.mxu0 %v187
    %v368 = vpop.f32.mrf.mxu0
    %v369 = vadd.f32 %v326, %v368
    %v370 = vpop.f32.mrf.mxu0
    %v371 = vadd.f32 %v328, %v370
    %372 = vmatmul.bf16.gmra.mxu0 %v189
    %v373 = vpop.f32.mrf.mxu0
    %v374 = vadd.f32 %v331, %v373
    %v375 = vpop.f32.mrf.mxu0
    %v376 = vadd.f32 %v333, %v375
    %377 = vmatmul.bf16.gmra.mxu0 %v191
    %v378 = vpop.f32.mrf.mxu0
    %v379 = vadd.f32 %v336, %v378
    %v380 = vpop.f32.mrf.mxu0
    %v381 = vadd.f32 %v338, %v380
    %382 = vmatmul.bf16.gmra.mxu0 %v193
    %v383 = vpop.f32.mrf.mxu0
    %v384 = vadd.f32 %v341, %v383
    %v385 = vpop.f32.mrf.mxu0
    %v386 = vadd.f32 %v343, %v385
    %387 = vmatmul.bf16.gmra.mxu0 %v195
    %v388 = vpop.f32.mrf.mxu0
    %v389 = vadd.f32 %v346, %v388
    %v390 = vpop.f32.mrf.mxu0
    %391 = vdwg.mxu0
    %392 = vst [vmem:[#allocation2] sm:$0xff] %v359
    %393 = vst [vmem:[#allocation2 + $0x8] sm:$0xff] %v361
    %394 = vst [vmem:[#allocation2 + $0x10] sm:$0xff] %v364
    %395 = vst [vmem:[#allocation2 + $0x18] sm:$0xff] %v366
    %396 = vst [vmem:[#allocation2 + $0x20] sm:$0xff] %v369
    %397 = vst [vmem:[#allocation2 + $0x28] sm:$0xff] %v371
    %398 = vst [vmem:[#allocation2 + $0x30] sm:$0xff] %v374
    %399 = vst [vmem:[#allocation2 + $0x38] sm:$0xff] %v376
    %400 = vst [vmem:[#allocation2 + $0x40] sm:$0xff] %v379
    %401 = vst [vmem:[#allocation2 + $0x48] sm:$0xff] %v381
    %402 = vst [vmem:[#allocation2 + $0x50] sm:$0xff] %v384
    %403 = vst [vmem:[#allocation2 + $0x58] sm:$0xff] %v386
    %404 = vst [vmem:[#allocation2 + $0x60] sm:$0x3] %v389
    %s405 = scalar_lea.vmem %s1, 32
    %v406 = vld [vmem:[%s405] sm:$0xff]
    %v407 = vld [vmem:[%s405 + $0x8] sm:$0xff]
    %v408 = vld [vmem:[%s405 + $0x10] sm:$0xff]
    %v409 = vld [vmem:[%s405 + $0x18] sm:$0xff]
    %410 = vst [vmem:[#allocation2 + $0xe0] sm:$0xff] %v406
    %411 = vst [vmem:[#allocation2 + $0xe8] sm:$0xff] %v407
    %412 = vst [vmem:[#allocation2 + $0xf0] sm:$0xff] %v408
    %413 = vst [vmem:[#allocation2 + $0xf8] sm:$0xff] %v409
    %s414 = scalar_lea.vmem %s0, 104
    %v415 = vld [vmem:[%s414] sm:$0xff]
    %v416 = vld [vmem:[%s414 + $0x8] sm:$0xff]
    %v417 = vld [vmem:[%s414 + $0x10] sm:$0xff]
    %v418 = vld [vmem:[%s414 + $0x18] sm:$0xff]
    %v419 = vld [vmem:[%s414 + $0x20] sm:$0xff]
    %v420 = vld [vmem:[%s414 + $0x28] sm:$0xff]
    %v421 = vld [vmem:[%s414 + $0x30] sm:$0xff]
    %v422 = vld [vmem:[%s414 + $0x38] sm:$0xff]
    %v423 = vld [vmem:[%s414 + $0x40] sm:$0xff]
    %v424 = vld [vmem:[%s414 + $0x48] sm:$0xff]
    %v425 = vld [vmem:[%s414 + $0x50] sm:$0xff]
    %v426 = vld [vmem:[%s414 + $0x58] sm:$0xff]
    %v427 = vld [vmem:[%s414 + $0x60] sm:$0x11]
    %v428 = vld [vmem:[%s2] sm:$0xf]
    %v429 = vld [vmem:[%s2 + $0x4] sm:$0xf]
    %v430 = vld [vmem:[%s2 + $0x8] sm:$0xf]
    %v431 = vld [vmem:[%s2 + $0xc] sm:$0xf]
    %v432 = vld [vmem:[%s2 + $0x10] sm:$0xf]
    %v433 = vld [vmem:[%s2 + $0x14] sm:$0xf]
    %v434 = vld [vmem:[%s2 + $0x18] sm:$0xf]
    %v435 = vld [vmem:[%s2 + $0x1c] sm:$0xf]
    %v436 = vld [vmem:[%s2 + $0x20] sm:$0xf]
    %v437 = vld [vmem:[%s2 + $0x24] sm:$0xf]
    %v438 = vld [vmem:[%s2 + $0x28] sm:$0xf]
    %v439 = vld [vmem:[%s2 + $0x2c] sm:$0xf]
    %v440 = vld [vmem:[%s2 + $0x30] sm:$0xf]
    %v441 = vld [vmem:[%s2 + $0x34] sm:$0xf]
    %v442 = vld [vmem:[%s2 + $0x38] sm:$0xf]
    %v443 = vld [vmem:[%s2 + $0x3c] sm:$0xf]
    %v444 = vld [vmem:[%s2 + $0x40] sm:$0xf]
    %v445 = vld [vmem:[%s2 + $0x44] sm:$0xf]
    %v446 = vld [vmem:[%s2 + $0x48] sm:$0xf]
    %v447 = vld [vmem:[%s2 + $0x4c] sm:$0xf]
    %v448 = vld [vmem:[%s2 + $0x50] sm:$0xf]
    %v449 = vld [vmem:[%s2 + $0x54] sm:$0xf]
    %v450 = vld [vmem:[%s2 + $0x58] sm:$0xf]
    %v451 = vld [vmem:[%s2 + $0x5c] sm:$0xf]
    %v452 = vld [vmem:[%s2 + $0x60] sm:$0xf]
    %v453 = vld [vmem:[%s2 + $0x64] sm:$0xf]
    %v454 = vld [vmem:[%s2 + $0x68] sm:$0xf]
    %v455 = vld [vmem:[%s2 + $0x6c] sm:$0xf]
    %v456 = vld [vmem:[%s2 + $0x70] sm:$0xf]
    %v457 = vld [vmem:[%s2 + $0x74] sm:$0xf]
    %v458 = vld [vmem:[%s2 + $0x78] sm:$0xf]
    %v459 = vld [vmem:[%s2 + $0x7c] sm:$0xf]
    %v473 = vunpack.c.l.b16 %v415
    %v474 = vunpack.c.h.b16 %v415
    %v475 = vunpack.c.l.b16 %v416
    %v476 = vunpack.c.h.b16 %v416
    %v477 = vunpack.c.l.b16 %v417
    %v478 = vunpack.c.h.b16 %v417
    %v479 = vunpack.c.l.b16 %v418
    %v480 = vunpack.c.h.b16 %v418
    %v481 = vunpack.c.l.b16 %v419
    %v482 = vunpack.c.h.b16 %v419
    %v483 = vunpack.c.l.b16 %v420
    %v484 = vunpack.c.h.b16 %v420
    %v485 = vunpack.c.l.b16 %v421
    %v486 = vunpack.c.h.b16 %v421
    %v487 = vunpack.c.l.b16 %v422
    %v488 = vunpack.c.h.b16 %v422
    %v489 = vunpack.c.l.b16 %v423
    %v490 = vunpack.c.h.b16 %v423
    %v491 = vunpack.c.l.b16 %v424
    %v492 = vunpack.c.h.b16 %v424
    %v493 = vunpack.c.l.b16 %v425
    %v494 = vunpack.c.h.b16 %v425
    %v495 = vunpack.c.l.b16 %v426
    %v496 = vunpack.c.h.b16 %v426
    %v497 = vunpack.c.l.b16 %v427
    %v498 = vunpack.c.h.b16 %v427
    %v499 = vpack.c.b16 %v475, %v473
    %v500 = vpack.c.b16 %v476, %v474
    %v501 = vpack.c.b16 %v479, %v477
    %v502 = vpack.c.b16 %v480, %v478
    %v503 = vpack.c.b16 %v483, %v481
    %v504 = vpack.c.b16 %v484, %v482
    %v505 = vpack.c.b16 %v487, %v485
    %v506 = vpack.c.b16 %v488, %v486
    %v507 = vpack.c.b16 %v491, %v489
    %v508 = vpack.c.b16 %v492, %v490
    %v509 = vpack.c.b16 %v495, %v493
    %v510 = vpack.c.b16 %v496, %v494
    %v511 = vpack.c.b16 %v497, %v497
    %v512 = vpack.c.b16 %v498, %v498
    %v559 = vunpack.c.l.b16 %v428
    %v560 = vunpack.c.l.b16 %v429
    %v561 = vunpack.c.l.b16 %v430
    %v562 = vunpack.c.l.b16 %v431
    %v563 = vunpack.c.l.b16 %v432
    %v564 = vunpack.c.l.b16 %v433
    %v565 = vunpack.c.l.b16 %v434
    %v566 = vunpack.c.l.b16 %v435
    %v567 = vunpack.c.l.b16 %v436
    %v568 = vunpack.c.l.b16 %v437
    %v569 = vunpack.c.l.b16 %v438
    %v570 = vunpack.c.l.b16 %v439
    %v571 = vunpack.c.l.b16 %v440
    %v572 = vunpack.c.l.b16 %v441
    %v573 = vunpack.c.l.b16 %v442
    %v574 = vunpack.c.l.b16 %v443
    %v575 = vunpack.c.l.b16 %v444
    %v576 = vunpack.c.l.b16 %v445
    %v577 = vunpack.c.l.b16 %v446
    %v578 = vunpack.c.l.b16 %v447
    %v579 = vunpack.c.l.b16 %v448
    %v580 = vunpack.c.l.b16 %v449
    %v581 = vunpack.c.l.b16 %v450
    %v582 = vunpack.c.l.b16 %v451
    %v583 = vunpack.c.l.b16 %v452
    %v584 = vunpack.c.l.b16 %v453
    %v585 = vunpack.c.l.b16 %v454
    %v586 = vunpack.c.l.b16 %v455
    %v587 = vunpack.c.l.b16 %v456
    %v588 = vunpack.c.l.b16 %v457
    %v589 = vunpack.c.l.b16 %v458
    %v590 = vunpack.c.l.b16 %v459
    %v591 = vpack.c.b16 %v560, %v559
    %v592 = vpack.c.b16 %v562, %v561
    %v593 = vpack.c.b16 %v564, %v563
    %v594 = vpack.c.b16 %v566, %v565
    %v595 = vpack.c.b16 %v568, %v567
    %v596 = vpack.c.b16 %v570, %v569
    %v597 = vpack.c.b16 %v572, %v571
    %v598 = vpack.c.b16 %v574, %v573
    %v599 = vpack.c.b16 %v576, %v575
    %v600 = vpack.c.b16 %v578, %v577
    %v601 = vpack.c.b16 %v580, %v579
    %v602 = vpack.c.b16 %v582, %v581
    %v603 = vpack.c.b16 %v584, %v583
    %v604 = vpack.c.b16 %v586, %v585
    %v605 = vpack.c.b16 %v588, %v587
    %v606 = vpack.c.b16 %v590, %v589
    %623 = vmatpush.bf16.msra.mxu0 %v598
    %624 = vmatpush.bf16.msra.mxu0 %v597
    %625 = vmatpush.bf16.msra.mxu0 %v596
    %626 = vmatpush.bf16.msra.mxu0 %v595
    %627 = vmatpush.bf16.msra.mxu0 %v594
    %628 = vmatpush.bf16.msra.mxu0 %v593
    %629 = vmatpush.bf16.msra.mxu0 %v592
    %630 = vmatpush.bf16.msra.mxu0 %v591
    %631 = vmatmul.bf16.gmra.mxu0 %v499
    %v632 = vpop.f32.mrf.mxu0
    %v633 = vadd.f32 %v142, %v632
    %v634 = vpop.f32.mrf.mxu0
    %v635 = vadd.f32 %v142, %v634
    %636 = vmatmul.bf16.gmra.mxu0 %v501
    %v637 = vpop.f32.mrf.mxu0
    %v638 = vadd.f32 %v142, %v637
    %v639 = vpop.f32.mrf.mxu0
    %v640 = vadd.f32 %v142, %v639
    %641 = vmatmul.bf16.gmra.mxu0 %v503
    %v642 = vpop.f32.mrf.mxu0
    %v643 = vadd.f32 %v142, %v642
    %v644 = vpop.f32.mrf.mxu0
    %v645 = vadd.f32 %v142, %v644
    %646 = vmatmul.bf16.gmra.mxu0 %v505
    %v647 = vpop.f32.mrf.mxu0
    %v648 = vadd.f32 %v142, %v647
    %v649 = vpop.f32.mrf.mxu0
    %v650 = vadd.f32 %v142, %v649
    %651 = vmatmul.bf16.gmra.mxu0 %v507
    %v652 = vpop.f32.mrf.mxu0
    %v653 = vadd.f32 %v142, %v652
    %v654 = vpop.f32.mrf.mxu0
    %v655 = vadd.f32 %v142, %v654
    %656 = vmatmul.bf16.gmra.mxu0 %v509
    %v657 = vpop.f32.mrf.mxu0
    %v658 = vadd.f32 %v142, %v657
    %v659 = vpop.f32.mrf.mxu0
    %v660 = vadd.f32 %v142, %v659
    %661 = vmatmul.bf16.gmra.mxu0 %v511
    %v662 = vpop.f32.mrf.mxu0
    %v663 = vadd.f32 %v142, %v662
    %v664 = vpop.f32.mrf.mxu0
    %665 = vdwg.mxu0
    %666 = vmatpush.bf16.msra.mxu0 %v606
    %667 = vmatpush.bf16.msra.mxu0 %v605
    %668 = vmatpush.bf16.msra.mxu0 %v604
    %669 = vmatpush.bf16.msra.mxu0 %v603
    %670 = vmatpush.bf16.msra.mxu0 %v602
    %671 = vmatpush.bf16.msra.mxu0 %v601
    %672 = vmatpush.bf16.msra.mxu0 %v600
    %673 = vmatpush.bf16.msra.mxu0 %v599
    %674 = vmatmul.bf16.gmra.mxu0 %v500
    %v675 = vpop.f32.mrf.mxu0
    %v676 = vadd.f32 %v633, %v675
    %v677 = vpop.f32.mrf.mxu0
    %v678 = vadd.f32 %v635, %v677
    %679 = vmatmul.bf16.gmra.mxu0 %v502
    %v680 = vpop.f32.mrf.mxu0
    %v681 = vadd.f32 %v638, %v680
    %v682 = vpop.f32.mrf.mxu0
    %v683 = vadd.f32 %v640, %v682
    %684 = vmatmul.bf16.gmra.mxu0 %v504
    %v685 = vpop.f32.mrf.mxu0
    %v686 = vadd.f32 %v643, %v685
    %v687 = vpop.f32.mrf.mxu0
    %v688 = vadd.f32 %v645, %v687
    %689 = vmatmul.bf16.gmra.mxu0 %v506
    %v690 = vpop.f32.mrf.mxu0
    %v691 = vadd.f32 %v648, %v690
    %v692 = vpop.f32.mrf.mxu0
    %v693 = vadd.f32 %v650, %v692
    %694 = vmatmul.bf16.gmra.mxu0 %v508
    %v695 = vpop.f32.mrf.mxu0
    %v696 = vadd.f32 %v653, %v695
    %v697 = vpop.f32.mrf.mxu0
    %v698 = vadd.f32 %v655, %v697
    %699 = vmatmul.bf16.gmra.mxu0 %v510
    %v700 = vpop.f32.mrf.mxu0
    %v701 = vadd.f32 %v658, %v700
    %v702 = vpop.f32.mrf.mxu0
    %v703 = vadd.f32 %v660, %v702
    %704 = vmatmul.bf16.gmra.mxu0 %v512
    %v705 = vpop.f32.mrf.mxu0
    %v706 = vadd.f32 %v663, %v705
    %v707 = vpop.f32.mrf.mxu0
    %708 = vdwg.mxu0
    %709 = vst [vmem:[#allocation2 + $0x80] sm:$0xff] %v676
    %710 = vst [vmem:[#allocation2 + $0x88] sm:$0xff] %v678
    %711 = vst [vmem:[#allocation2 + $0x90] sm:$0xff] %v681
    %712 = vst [vmem:[#allocation2 + $0x98] sm:$0xff] %v683
    %713 = vst [vmem:[#allocation2 + $0xa0] sm:$0xff] %v686
    %714 = vst [vmem:[#allocation2 + $0xa8] sm:$0xff] %v688
    %715 = vst [vmem:[#allocation2 + $0xb0] sm:$0xff] %v691
    %716 = vst [vmem:[#allocation2 + $0xb8] sm:$0xff] %v693
    %717 = vst [vmem:[#allocation2 + $0xc0] sm:$0xff] %v696
    %718 = vst [vmem:[#allocation2 + $0xc8] sm:$0xff] %v698
    %719 = vst [vmem:[#allocation2 + $0xd0] sm:$0xff] %v701
    %720 = vst [vmem:[#allocation2 + $0xd8] sm:$0xff] %v703
    %721 = vst [vmem:[#allocation2 + $0xe0] sm:$0x3] %v706
    %v722 = vld [vmem:[#allocation2] sm:$0xff]
    %v723 = vld [vmem:[#allocation2 + $0x8] sm:$0xff]
    %v724 = vld [vmem:[#allocation2 + $0x10] sm:$0xff]
    %v725 = vld [vmem:[#allocation2 + $0x18] sm:$0xff]
    %v726 = vld [vmem:[#allocation2 + $0x20] sm:$0xff]
    %v727 = vld [vmem:[#allocation2 + $0x28] sm:$0xff]
    %v728 = vld [vmem:[#allocation2 + $0x30] sm:$0xff]
    %v729 = vld [vmem:[#allocation2 + $0x38] sm:$0xff]
    %v730 = vld [vmem:[#allocation2 + $0x40] sm:$0xff]
    %v731 = vld [vmem:[#allocation2 + $0x48] sm:$0xff]
    %v732 = vld [vmem:[#allocation2 + $0x50] sm:$0xff]
    %v733 = vld [vmem:[#allocation2 + $0x58] sm:$0xff]
    %v734 = vld [vmem:[#allocation2 + $0x60] sm:$0xff]
    %v735 = vld [vmem:[#allocation2 + $0x68] sm:$0xff]
    %v736 = vld [vmem:[#allocation2 + $0x70] sm:$0xff]
    %v737 = vld [vmem:[#allocation2 + $0x78] sm:$0xff]
    %v738 = vld [vmem:[#allocation2 + $0x80] sm:$0xff]
    %v739 = vld [vmem:[#allocation2 + $0x88] sm:$0xff]
    %v740 = vld [vmem:[#allocation2 + $0x90] sm:$0xff]
    %v741 = vld [vmem:[#allocation2 + $0x98] sm:$0xff]
    %v742 = vld [vmem:[#allocation2 + $0xa0] sm:$0xff]
    %v743 = vld [vmem:[#allocation2 + $0xa8] sm:$0xff]
    %v744 = vld [vmem:[#allocation2 + $0xb0] sm:$0xff]
    %v745 = vld [vmem:[#allocation2 + $0xb8] sm:$0xff]
    %v746 = vld [vmem:[#allocation2 + $0xc0] sm:$0xff]
    %v747 = vld [vmem:[#allocation2 + $0xc8] sm:$0xff]
    %v748 = vld [vmem:[#allocation2 + $0xd0] sm:$0xff]
    %v749 = vld [vmem:[#allocation2 + $0xd8] sm:$0xff]
    %v750 = vld [vmem:[#allocation2 + $0xe0] sm:$0xff]
    %v751 = vld [vmem:[#allocation2 + $0xe8] sm:$0xff]
    %v752 = vld [vmem:[#allocation2 + $0xf0] sm:$0xff]
    %v753 = vld [vmem:[#allocation2 + $0xf8] sm:$0xff]
    %v754 = vpack.c.bf16 %v723, %v722
    %v755 = vpack.c.bf16 %v725, %v724
    %v756 = vpack.c.bf16 %v727, %v726
    %v757 = vpack.c.bf16 %v729, %v728
    %v758 = vpack.c.bf16 %v731, %v730
    %v759 = vpack.c.bf16 %v733, %v732
    %v760 = vpack.c.bf16 %v735, %v734
    %v761 = vpack.c.bf16 %v737, %v736
    %v762 = vpack.c.bf16 %v739, %v738
    %v763 = vpack.c.bf16 %v741, %v740
    %v764 = vpack.c.bf16 %v743, %v742
    %v765 = vpack.c.bf16 %v745, %v744
    %v766 = vpack.c.bf16 %v747, %v746
    %v767 = vpack.c.bf16 %v749, %v748
    %v768 = vpack.c.bf16 %v751, %v750
    %v769 = vpack.c.bf16 %v753, %v752
    %v770 = vld [vmem:[#allocation3] sm:$0xff]
    %v771 = vld [vmem:[#allocation3 + $0x8] sm:$0xff]
    %v772 = vld [vmem:[#allocation3 + $0x10] sm:$0xff]
    %v773 = vld [vmem:[#allocation3 + $0x18] sm:$0xff]
    %v774 = vld [vmem:[#allocation3 + $0x20] sm:$0xff]
    %v775 = vld [vmem:[#allocation3 + $0x28] sm:$0xff]
    %v776 = vld [vmem:[#allocation3 + $0x30] sm:$0xff]
    %v777 = vld [vmem:[#allocation3 + $0x38] sm:$0xff]
    %v778 = vld [vmem:[#allocation3 + $0x40] sm:$0xff]
    %v779 = vld [vmem:[#allocation3 + $0x48] sm:$0xff]
    %v780 = vld [vmem:[#allocation3 + $0x50] sm:$0xff]
    %v781 = vld [vmem:[#allocation3 + $0x58] sm:$0xff]
    %v782 = vld [vmem:[#allocation3 + $0x60] sm:$0xff]
    %v783 = vld [vmem:[#allocation3 + $0x68] sm:$0xff]
    %v784 = vld [vmem:[#allocation3 + $0x70] sm:$0xff]
    %v785 = vld [vmem:[#allocation3 + $0x78] sm:$0xff]
    %v786 = vld [vmem:[#allocation3 + $0x80] sm:$0xff]
    %v787 = vld [vmem:[#allocation3 + $0x88] sm:$0xff]
    %v788 = vld [vmem:[#allocation3 + $0x90] sm:$0xff]
    %v789 = vld [vmem:[#allocation3 + $0x98] sm:$0xff]
    %v790 = vld [vmem:[#allocation3 + $0xa0] sm:$0xff]
    %v791 = vld [vmem:[#allocation3 + $0xa8] sm:$0xff]
    %v792 = vld [vmem:[#allocation3 + $0xb0] sm:$0xff]
    %v793 = vld [vmem:[#allocation3 + $0xb8] sm:$0xff]
    %v794 = vld [vmem:[#allocation3 + $0xc0] sm:$0xff]
    %v795 = vld [vmem:[#allocation3 + $0xc8] sm:$0xff]
    %v796 = vld [vmem:[#allocation3 + $0xd0] sm:$0xff]
    %v797 = vld [vmem:[#allocation3 + $0xd8] sm:$0xff]
    %v798 = vld [vmem:[#allocation3 + $0xe0] sm:$0xff]
    %v799 = vld [vmem:[#allocation3 + $0xe8] sm:$0xff]
    %v800 = vld [vmem:[#allocation3 + $0xf0] sm:$0xff]
    %v801 = vld [vmem:[#allocation3 + $0xf8] sm:$0xff]
    %v802 = vld [vmem:[#allocation3 + $0x100] sm:$0xff]
    %v803 = vld [vmem:[#allocation3 + $0x108] sm:$0xff]
    %v804 = vld [vmem:[#allocation3 + $0x110] sm:$0xff]
    %v805 = vld [vmem:[#allocation3 + $0x118] sm:$0xff]
    %v806 = vld [vmem:[#allocation3 + $0x120] sm:$0xff]
    %v807 = vld [vmem:[#allocation3 + $0x128] sm:$0xff]
    %v808 = vld [vmem:[#allocation3 + $0x130] sm:$0xff]
    %v809 = vld [vmem:[#allocation3 + $0x138] sm:$0xff]
    %v810 = vld [vmem:[#allocation3 + $0x140] sm:$0xff]
    %v811 = vld [vmem:[#allocation3 + $0x148] sm:$0xff]
    %v812 = vld [vmem:[#allocation3 + $0x150] sm:$0xff]
    %v813 = vld [vmem:[#allocation3 + $0x158] sm:$0xff]
    %v814 = vld [vmem:[#allocation3 + $0x160] sm:$0xff]
    %v815 = vld [vmem:[#allocation3 + $0x168] sm:$0xff]
    %v816 = vld [vmem:[#allocation3 + $0x170] sm:$0xff]
    %v817 = vld [vmem:[#allocation3 + $0x178] sm:$0xff]
    %v818 = vld [vmem:[#allocation3 + $0x180] sm:$0xff]
    %v819 = vld [vmem:[#allocation3 + $0x188] sm:$0xff]
    %v820 = vld [vmem:[#allocation3 + $0x190] sm:$0xff]
    %v821 = vld [vmem:[#allocation3 + $0x198] sm:$0xff]
    %v822 = vld [vmem:[#allocation3 + $0x1a0] sm:$0xff]
    %v823 = vld [vmem:[#allocation3 + $0x1a8] sm:$0xff]
    %v824 = vld [vmem:[#allocation3 + $0x1b0] sm:$0xff]
    %v825 = vld [vmem:[#allocation3 + $0x1b8] sm:$0xff]
    %v826 = vld [vmem:[#allocation3 + $0x1c0] sm:$0xff]
    %v827 = vld [vmem:[#allocation3 + $0x1c8] sm:$0xff]
    %v828 = vld [vmem:[#allocation3 + $0x1d0] sm:$0xff]
    %v829 = vld [vmem:[#allocation3 + $0x1d8] sm:$0xff]
    %v830 = vld [vmem:[#allocation3 + $0x1e0] sm:$0xff]
    %v831 = vld [vmem:[#allocation3 + $0x1e8] sm:$0xff]
    %v832 = vld [vmem:[#allocation3 + $0x1f0] sm:$0xff]
    %v833 = vld [vmem:[#allocation3 + $0x1f8] sm:$0xff]
    %v834 = vld [vmem:[%s4] sm:$0xff]
    %v836 = vperm.slane %v834, 0
    %v837 = vperm.slane %v834, 1
    %v838 = vperm.slane %v834, 2
    %v839 = vperm.slane %v834, 3
    %v840 = vperm.slane %v834, 4
    %v841 = vperm.slane %v834, 5
    %v842 = vperm.slane %v834, 6
    %v843 = vperm.slane %v834, 7
    %v916 = vunpack.c.l.b16 %v770
    %v917 = vunpack.c.h.b16 %v770
    %v918 = vunpack.c.l.b16 %v771
    %v919 = vunpack.c.h.b16 %v771
    %v920 = vunpack.c.l.b16 %v772
    %v921 = vunpack.c.h.b16 %v772
    %v922 = vunpack.c.l.b16 %v773
    %v923 = vunpack.c.h.b16 %v773
    %v924 = vunpack.c.l.b16 %v774
    %v925 = vunpack.c.h.b16 %v774
    %v926 = vunpack.c.l.b16 %v775
    %v927 = vunpack.c.h.b16 %v775
    %v928 = vunpack.c.l.b16 %v776
    %v929 = vunpack.c.h.b16 %v776
    %v930 = vunpack.c.l.b16 %v777
    %v931 = vunpack.c.h.b16 %v777
    %v932 = vunpack.c.l.b16 %v778
    %v933 = vunpack.c.h.b16 %v778
    %v934 = vunpack.c.l.b16 %v779
    %v935 = vunpack.c.h.b16 %v779
    %v936 = vunpack.c.l.b16 %v780
    %v937 = vunpack.c.h.b16 %v780
    %v938 = vunpack.c.l.b16 %v781
    %v939 = vunpack.c.h.b16 %v781
    %v940 = vunpack.c.l.b16 %v782
    %v941 = vunpack.c.h.b16 %v782
    %v942 = vunpack.c.l.b16 %v783
    %v943 = vunpack.c.h.b16 %v783
    %v944 = vunpack.c.l.b16 %v784
    %v945 = vunpack.c.h.b16 %v784
    %v946 = vunpack.c.l.b16 %v785
    %v947 = vunpack.c.h.b16 %v785
    %v948 = vunpack.c.l.b16 %v786
    %v949 = vunpack.c.h.b16 %v786
    %v950 = vunpack.c.l.b16 %v787
    %v951 = vunpack.c.h.b16 %v787
    %v952 = vunpack.c.l.b16 %v788
    %v953 = vunpack.c.h.b16 %v788
    %v954 = vunpack.c.l.b16 %v789
    %v955 = vunpack.c.h.b16 %v789
    %v956 = vunpack.c.l.b16 %v790
    %v957 = vunpack.c.h.b16 %v790
    %v958 = vunpack.c.l.b16 %v791
    %v959 = vunpack.c.h.b16 %v791
    %v960 = vunpack.c.l.b16 %v792
    %v961 = vunpack.c.h.b16 %v792
    %v962 = vunpack.c.l.b16 %v793
    %v963 = vunpack.c.h.b16 %v793
    %v964 = vunpack.c.l.b16 %v794
    %v965 = vunpack.c.h.b16 %v794
    %v966 = vunpack.c.l.b16 %v795
    %v967 = vunpack.c.h.b16 %v795
    %v968 = vunpack.c.l.b16 %v796
    %v969 = vunpack.c.h.b16 %v796
    %v970 = vunpack.c.l.b16 %v797
    %v971 = vunpack.c.h.b16 %v797
    %v972 = vunpack.c.l.b16 %v798
    %v973 = vunpack.c.h.b16 %v798
    %v974 = vunpack.c.l.b16 %v799
    %v975 = vunpack.c.h.b16 %v799
    %v976 = vunpack.c.l.b16 %v800
    %v977 = vunpack.c.h.b16 %v800
    %v978 = vunpack.c.l.b16 %v801
    %v979 = vunpack.c.h.b16 %v801
    %v980 = vunpack.c.l.b16 %v802
    %v981 = vunpack.c.h.b16 %v802
    %v982 = vunpack.c.l.b16 %v803
    %v983 = vunpack.c.h.b16 %v803
    %v984 = vunpack.c.l.b16 %v804
    %v985 = vunpack.c.h.b16 %v804
    %v986 = vunpack.c.l.b16 %v805
    %v987 = vunpack.c.h.b16 %v805
    %v988 = vunpack.c.l.b16 %v806
    %v989 = vunpack.c.h.b16 %v806
    %v990 = vunpack.c.l.b16 %v807
    %v991 = vunpack.c.h.b16 %v807
    %v992 = vunpack.c.l.b16 %v808
    %v993 = vunpack.c.h.b16 %v808
    %v994 = vunpack.c.l.b16 %v809
    %v995 = vunpack.c.h.b16 %v809
    %v996 = vunpack.c.l.b16 %v810
    %v997 = vunpack.c.h.b16 %v810
    %v998 = vunpack.c.l.b16 %v811
    %v999 = vunpack.c.h.b16 %v811
    %v1000 = vunpack.c.l.b16 %v812
    %v1001 = vunpack.c.h.b16 %v812
    %v1002 = vunpack.c.l.b16 %v813
    %v1003 = vunpack.c.h.b16 %v813
    %v1004 = vunpack.c.l.b16 %v814
    %v1005 = vunpack.c.h.b16 %v814
    %v1006 = vunpack.c.l.b16 %v815
    %v1007 = vunpack.c.h.b16 %v815
    %v1008 = vunpack.c.l.b16 %v816
    %v1009 = vunpack.c.h.b16 %v816
    %v1010 = vunpack.c.l.b16 %v817
    %v1011 = vunpack.c.h.b16 %v817
    %v1012 = vunpack.c.l.b16 %v818
    %v1013 = vunpack.c.h.b16 %v818
    %v1014 = vunpack.c.l.b16 %v819
    %v1015 = vunpack.c.h.b16 %v819
    %v1016 = vunpack.c.l.b16 %v820
    %v1017 = vunpack.c.h.b16 %v820
    %v1018 = vunpack.c.l.b16 %v821
    %v1019 = vunpack.c.h.b16 %v821
    %v1020 = vunpack.c.l.b16 %v822
    %v1021 = vunpack.c.h.b16 %v822
    %v1022 = vunpack.c.l.b16 %v823
    %v1023 = vunpack.c.h.b16 %v823
    %v1024 = vunpack.c.l.b16 %v824
    %v1025 = vunpack.c.h.b16 %v824
    %v1026 = vunpack.c.l.b16 %v825
    %v1027 = vunpack.c.h.b16 %v825
    %v1028 = vunpack.c.l.b16 %v826
    %v1029 = vunpack.c.h.b16 %v826
    %v1030 = vunpack.c.l.b16 %v827
    %v1031 = vunpack.c.h.b16 %v827
    %v1032 = vunpack.c.l.b16 %v828
    %v1033 = vunpack.c.h.b16 %v828
    %v1034 = vunpack.c.l.b16 %v829
    %v1035 = vunpack.c.h.b16 %v829
    %v1036 = vunpack.c.l.b16 %v830
    %v1037 = vunpack.c.h.b16 %v830
    %v1038 = vunpack.c.l.b16 %v831
    %v1039 = vunpack.c.h.b16 %v831
    %v1040 = vunpack.c.l.b16 %v832
    %v1041 = vunpack.c.h.b16 %v832
    %v1042 = vunpack.c.l.b16 %v833
    %v1043 = vunpack.c.h.b16 %v833
    %v1044 = vpack.c.b16 %v924, %v916
    %v1045 = vpack.c.b16 %v925, %v917
    %v1046 = vpack.c.b16 %v926, %v918
    %v1047 = vpack.c.b16 %v927, %v919
    %v1048 = vpack.c.b16 %v928, %v920
    %v1049 = vpack.c.b16 %v929, %v921
    %v1050 = vpack.c.b16 %v930, %v922
    %v1051 = vpack.c.b16 %v931, %v923
    %v1052 = vpack.c.b16 %v940, %v932
    %v1053 = vpack.c.b16 %v941, %v933
    %v1054 = vpack.c.b16 %v942, %v934
    %v1055 = vpack.c.b16 %v943, %v935
    %v1056 = vpack.c.b16 %v944, %v936
    %v1057 = vpack.c.b16 %v945, %v937
    %v1058 = vpack.c.b16 %v946, %v938
    %v1059 = vpack.c.b16 %v947, %v939
    %v1060 = vpack.c.b16 %v956, %v948
    %v1061 = vpack.c.b16 %v957, %v949
    %v1062 = vpack.c.b16 %v958, %v950
    %v1063 = vpack.c.b16 %v959, %v951
    %v1064 = vpack.c.b16 %v960, %v952
    %v1065 = vpack.c.b16 %v961, %v953
    %v1066 = vpack.c.b16 %v962, %v954
    %v1067 = vpack.c.b16 %v963, %v955
    %v1068 = vpack.c.b16 %v972, %v964
    %v1069 = vpack.c.b16 %v973, %v965
    %v1070 = vpack.c.b16 %v974, %v966
    %v1071 = vpack.c.b16 %v975, %v967
    %v1072 = vpack.c.b16 %v976, %v968
    %v1073 = vpack.c.b16 %v977, %v969
    %v1074 = vpack.c.b16 %v978, %v970
    %v1075 = vpack.c.b16 %v979, %v971
    %v1076 = vpack.c.b16 %v988, %v980
    %v1077 = vpack.c.b16 %v989, %v981
    %v1078 = vpack.c.b16 %v990, %v982
    %v1079 = vpack.c.b16 %v991, %v983
    %v1080 = vpack.c.b16 %v992, %v984
    %v1081 = vpack.c.b16 %v993, %v985
    %v1082 = vpack.c.b16 %v994, %v986
    %v1083 = vpack.c.b16 %v995, %v987
    %v1084 = vpack.c.b16 %v1004, %v996
    %v1085 = vpack.c.b16 %v1005, %v997
    %v1086 = vpack.c.b16 %v1006, %v998
    %v1087 = vpack.c.b16 %v1007, %v999
    %v1088 = vpack.c.b16 %v1008, %v1000
    %v1089 = vpack.c.b16 %v1009, %v1001
    %v1090 = vpack.c.b16 %v1010, %v1002
    %v1091 = vpack.c.b16 %v1011, %v1003
    %v1092 = vpack.c.b16 %v1020, %v1012
    %v1093 = vpack.c.b16 %v1021, %v1013
    %v1094 = vpack.c.b16 %v1022, %v1014
    %v1095 = vpack.c.b16 %v1023, %v1015
    %v1096 = vpack.c.b16 %v1024, %v1016
    %v1097 = vpack.c.b16 %v1025, %v1017
    %v1098 = vpack.c.b16 %v1026, %v1018
    %v1099 = vpack.c.b16 %v1027, %v1019
    %v1100 = vpack.c.b16 %v1036, %v1028
    %v1101 = vpack.c.b16 %v1037, %v1029
    %v1102 = vpack.c.b16 %v1038, %v1030
    %v1103 = vpack.c.b16 %v1039, %v1031
    %v1104 = vpack.c.b16 %v1040, %v1032
    %v1105 = vpack.c.b16 %v1041, %v1033
    %v1106 = vpack.c.b16 %v1042, %v1034
    %v1107 = vpack.c.b16 %v1043, %v1035
    %1172 = vmatpush.bf16.msra.mxu0 %v1100
    %1173 = vmatpush.bf16.msra.mxu0 %v1092
    %1174 = vmatpush.bf16.msra.mxu0 %v1084
    %1175 = vmatpush.bf16.msra.mxu0 %v1076
    %1176 = vmatpush.bf16.msra.mxu0 %v1068
    %1177 = vmatpush.bf16.msra.mxu0 %v1060
    %1178 = vmatpush.bf16.msra.mxu0 %v1052
    %1179 = vmatpush.bf16.msra.mxu0 %v1044
    %1180 = vmatmul.bf16.gmra.mxu0 %v754
    %v1181 = vpop.f32.mrf.mxu0
    %v1182 = vadd.f32 %v836, %v1181
    %v1183 = vpop.f32.mrf.mxu0
    %v1184 = vadd.f32 %v836, %v1183
    %1185 = vmatmul.bf16.gmra.mxu0 %v755
    %v1186 = vpop.f32.mrf.mxu0
    %v1187 = vadd.f32 %v836, %v1186
    %v1188 = vpop.f32.mrf.mxu0
    %v1189 = vadd.f32 %v836, %v1188
    %1190 = vmatmul.bf16.gmra.mxu0 %v756
    %v1191 = vpop.f32.mrf.mxu0
    %v1192 = vadd.f32 %v836, %v1191
    %v1193 = vpop.f32.mrf.mxu0
    %v1194 = vadd.f32 %v836, %v1193
    %1195 = vmatmul.bf16.gmra.mxu0 %v757
    %v1196 = vpop.f32.mrf.mxu0
    %v1197 = vadd.f32 %v836, %v1196
    %v1198 = vpop.f32.mrf.mxu0
    %v1199 = vadd.f32 %v836, %v1198
    %1200 = vmatmul.bf16.gmra.mxu0 %v758
    %v1201 = vpop.f32.mrf.mxu0
    %v1202 = vadd.f32 %v836, %v1201
    %v1203 = vpop.f32.mrf.mxu0
    %v1204 = vadd.f32 %v836, %v1203
    %1205 = vmatmul.bf16.gmra.mxu0 %v759
    %v1206 = vpop.f32.mrf.mxu0
    %v1207 = vadd.f32 %v836, %v1206
    %v1208 = vpop.f32.mrf.mxu0
    %v1209 = vadd.f32 %v836, %v1208
    %1210 = vmatmul.bf16.gmra.mxu0 %v760
    %v1211 = vpop.f32.mrf.mxu0
    %v1212 = vadd.f32 %v836, %v1211
    %v1213 = vpop.f32.mrf.mxu0
    %v1214 = vadd.f32 %v836, %v1213
    %1215 = vmatmul.bf16.gmra.mxu0 %v761
    %v1216 = vpop.f32.mrf.mxu0
    %v1217 = vadd.f32 %v836, %v1216
    %v1218 = vpop.f32.mrf.mxu0
    %v1219 = vadd.f32 %v836, %v1218
    %1220 = vmatmul.bf16.gmra.mxu0 %v762
    %v1221 = vpop.f32.mrf.mxu0
    %v1222 = vadd.f32 %v836, %v1221
    %v1223 = vpop.f32.mrf.mxu0
    %v1224 = vadd.f32 %v836, %v1223
    %1225 = vmatmul.bf16.gmra.mxu0 %v763
    %v1226 = vpop.f32.mrf.mxu0
    %v1227 = vadd.f32 %v836, %v1226
    %v1228 = vpop.f32.mrf.mxu0
    %v1229 = vadd.f32 %v836, %v1228
    %1230 = vmatmul.bf16.gmra.mxu0 %v764
    %v1231 = vpop.f32.mrf.mxu0
    %v1232 = vadd.f32 %v836, %v1231
    %v1233 = vpop.f32.mrf.mxu0
    %v1234 = vadd.f32 %v836, %v1233
    %1235 = vmatmul.bf16.gmra.mxu0 %v765
    %v1236 = vpop.f32.mrf.mxu0
    %v1237 = vadd.f32 %v836, %v1236
    %v1238 = vpop.f32.mrf.mxu0
    %v1239 = vadd.f32 %v836, %v1238
    %1240 = vmatmul.bf16.gmra.mxu0 %v766
    %v1241 = vpop.f32.mrf.mxu0
    %v1242 = vadd.f32 %v836, %v1241
    %v1243 = vpop.f32.mrf.mxu0
    %v1244 = vadd.f32 %v836, %v1243
    %1245 = vmatmul.bf16.gmra.mxu0 %v767
    %v1246 = vpop.f32.mrf.mxu0
    %v1247 = vadd.f32 %v836, %v1246
    %v1248 = vpop.f32.mrf.mxu0
    %v1249 = vadd.f32 %v836, %v1248
    %1250 = vmatmul.bf16.gmra.mxu0 %v768
    %v1251 = vpop.f32.mrf.mxu0
    %v1252 = vadd.f32 %v836, %v1251
    %v1253 = vpop.f32.mrf.mxu0
    %v1254 = vadd.f32 %v836, %v1253
    %1255 = vmatmul.bf16.gmra.mxu0 %v769
    %v1256 = vpop.f32.mrf.mxu0
    %v1257 = vadd.f32 %v836, %v1256
    %v1258 = vpop.f32.mrf.mxu0
    %v1259 = vadd.f32 %v836, %v1258
    %1260 = vdwg.mxu0
    %1261 = vmatpush.bf16.msra.mxu0 %v1101
    %1262 = vmatpush.bf16.msra.mxu0 %v1093
    %1263 = vmatpush.bf16.msra.mxu0 %v1085
    %1264 = vmatpush.bf16.msra.mxu0 %v1077
    %1265 = vmatpush.bf16.msra.mxu0 %v1069
    %1266 = vmatpush.bf16.msra.mxu0 %v1061
    %1267 = vmatpush.bf16.msra.mxu0 %v1053
    %1268 = vmatpush.bf16.msra.mxu0 %v1045
    %1269 = vmatmul.bf16.gmra.mxu0 %v754
    %v1270 = vpop.f32.mrf.mxu0
    %v1271 = vadd.f32 %v837, %v1270
    %v1272 = vpop.f32.mrf.mxu0
    %v1273 = vadd.f32 %v837, %v1272
    %1274 = vmatmul.bf16.gmra.mxu0 %v755
    %v1275 = vpop.f32.mrf.mxu0
    %v1276 = vadd.f32 %v837, %v1275
    %v1277 = vpop.f32.mrf.mxu0
    %v1278 = vadd.f32 %v837, %v1277
    %1279 = vmatmul.bf16.gmra.mxu0 %v756
    %v1280 = vpop.f32.mrf.mxu0
    %v1281 = vadd.f32 %v837, %v1280
    %v1282 = vpop.f32.mrf.mxu0
    %v1283 = vadd.f32 %v837, %v1282
    %1284 = vmatmul.bf16.gmra.mxu0 %v757
    %v1285 = vpop.f32.mrf.mxu0
    %v1286 = vadd.f32 %v837, %v1285
    %v1287 = vpop.f32.mrf.mxu0
    %v1288 = vadd.f32 %v837, %v1287
    %1289 = vmatmul.bf16.gmra.mxu0 %v758
    %v1290 = vpop.f32.mrf.mxu0
    %v1291 = vadd.f32 %v837, %v1290
    %v1292 = vpop.f32.mrf.mxu0
    %v1293 = vadd.f32 %v837, %v1292
    %1294 = vmatmul.bf16.gmra.mxu0 %v759
    %v1295 = vpop.f32.mrf.mxu0
    %v1296 = vadd.f32 %v837, %v1295
    %v1297 = vpop.f32.mrf.mxu0
    %v1298 = vadd.f32 %v837, %v1297
    %1299 = vmatmul.bf16.gmra.mxu0 %v760
    %v1300 = vpop.f32.mrf.mxu0
    %v1301 = vadd.f32 %v837, %v1300
    %v1302 = vpop.f32.mrf.mxu0
    %v1303 = vadd.f32 %v837, %v1302
    %1304 = vmatmul.bf16.gmra.mxu0 %v761
    %v1305 = vpop.f32.mrf.mxu0
    %v1306 = vadd.f32 %v837, %v1305
    %v1307 = vpop.f32.mrf.mxu0
    %v1308 = vadd.f32 %v837, %v1307
    %1309 = vmatmul.bf16.gmra.mxu0 %v762
    %v1310 = vpop.f32.mrf.mxu0
    %v1311 = vadd.f32 %v837, %v1310
    %v1312 = vpop.f32.mrf.mxu0
    %v1313 = vadd.f32 %v837, %v1312
    %1314 = vmatmul.bf16.gmra.mxu0 %v763
    %v1315 = vpop.f32.mrf.mxu0
    %v1316 = vadd.f32 %v837, %v1315
    %v1317 = vpop.f32.mrf.mxu0
    %v1318 = vadd.f32 %v837, %v1317
    %1319 = vmatmul.bf16.gmra.mxu0 %v764
    %v1320 = vpop.f32.mrf.mxu0
    %v1321 = vadd.f32 %v837, %v1320
    %v1322 = vpop.f32.mrf.mxu0
    %v1323 = vadd.f32 %v837, %v1322
    %1324 = vmatmul.bf16.gmra.mxu0 %v765
    %v1325 = vpop.f32.mrf.mxu0
    %v1326 = vadd.f32 %v837, %v1325
    %v1327 = vpop.f32.mrf.mxu0
    %v1328 = vadd.f32 %v837, %v1327
    %1329 = vmatmul.bf16.gmra.mxu0 %v766
    %v1330 = vpop.f32.mrf.mxu0
    %v1331 = vadd.f32 %v837, %v1330
    %v1332 = vpop.f32.mrf.mxu0
    %v1333 = vadd.f32 %v837, %v1332
    %1334 = vmatmul.bf16.gmra.mxu0 %v767
    %v1335 = vpop.f32.mrf.mxu0
    %v1336 = vadd.f32 %v837, %v1335
    %v1337 = vpop.f32.mrf.mxu0
    %v1338 = vadd.f32 %v837, %v1337
    %1339 = vmatmul.bf16.gmra.mxu0 %v768
    %v1340 = vpop.f32.mrf.mxu0
    %v1341 = vadd.f32 %v837, %v1340
    %v1342 = vpop.f32.mrf.mxu0
    %v1343 = vadd.f32 %v837, %v1342
    %1344 = vmatmul.bf16.gmra.mxu0 %v769
    %v1345 = vpop.f32.mrf.mxu0
    %v1346 = vadd.f32 %v837, %v1345
    %v1347 = vpop.f32.mrf.mxu0
    %v1348 = vadd.f32 %v837, %v1347
    %1349 = vdwg.mxu0
    %1350 = vmatpush.bf16.msra.mxu0 %v1102
    %1351 = vmatpush.bf16.msra.mxu0 %v1094
    %1352 = vmatpush.bf16.msra.mxu0 %v1086
    %1353 = vmatpush.bf16.msra.mxu0 %v1078
    %1354 = vmatpush.bf16.msra.mxu0 %v1070
    %1355 = vmatpush.bf16.msra.mxu0 %v1062
    %1356 = vmatpush.bf16.msra.mxu0 %v1054
    %1357 = vmatpush.bf16.msra.mxu0 %v1046
    %1358 = vmatmul.bf16.gmra.mxu0 %v754
    %v1359 = vpop.f32.mrf.mxu0
    %v1360 = vadd.f32 %v838, %v1359
    %v1361 = vpop.f32.mrf.mxu0
    %v1362 = vadd.f32 %v838, %v1361
    %1363 = vmatmul.bf16.gmra.mxu0 %v755
    %v1364 = vpop.f32.mrf.mxu0
    %v1365 = vadd.f32 %v838, %v1364
    %v1366 = vpop.f32.mrf.mxu0
    %v1367 = vadd.f32 %v838, %v1366
    %1368 = vmatmul.bf16.gmra.mxu0 %v756
    %v1369 = vpop.f32.mrf.mxu0
    %v1370 = vadd.f32 %v838, %v1369
    %v1371 = vpop.f32.mrf.mxu0
    %v1372 = vadd.f32 %v838, %v1371
    %1373 = vmatmul.bf16.gmra.mxu0 %v757
    %v1374 = vpop.f32.mrf.mxu0
    %v1375 = vadd.f32 %v838, %v1374
    %v1376 = vpop.f32.mrf.mxu0
    %v1377 = vadd.f32 %v838, %v1376
    %1378 = vmatmul.bf16.gmra.mxu0 %v758
    %v1379 = vpop.f32.mrf.mxu0
    %v1380 = vadd.f32 %v838, %v1379
    %v1381 = vpop.f32.mrf.mxu0
    %v1382 = vadd.f32 %v838, %v1381
    %1383 = vmatmul.bf16.gmra.mxu0 %v759
    %v1384 = vpop.f32.mrf.mxu0
    %v1385 = vadd.f32 %v838, %v1384
    %v1386 = vpop.f32.mrf.mxu0
    %v1387 = vadd.f32 %v838, %v1386
    %1388 = vmatmul.bf16.gmra.mxu0 %v760
    %v1389 = vpop.f32.mrf.mxu0
    %v1390 = vadd.f32 %v838, %v1389
    %v1391 = vpop.f32.mrf.mxu0
    %v1392 = vadd.f32 %v838, %v1391
    %1393 = vmatmul.bf16.gmra.mxu0 %v761
    %v1394 = vpop.f32.mrf.mxu0
    %v1395 = vadd.f32 %v838, %v1394
    %v1396 = vpop.f32.mrf.mxu0
    %v1397 = vadd.f32 %v838, %v1396
    %1398 = vmatmul.bf16.gmra.mxu0 %v762
    %v1399 = vpop.f32.mrf.mxu0
    %v1400 = vadd.f32 %v838, %v1399
    %v1401 = vpop.f32.mrf.mxu0
    %v1402 = vadd.f32 %v838, %v1401
    %1403 = vmatmul.bf16.gmra.mxu0 %v763
    %v1404 = vpop.f32.mrf.mxu0
    %v1405 = vadd.f32 %v838, %v1404
    %v1406 = vpop.f32.mrf.mxu0
    %v1407 = vadd.f32 %v838, %v1406
    %1408 = vmatmul.bf16.gmra.mxu0 %v764
    %v1409 = vpop.f32.mrf.mxu0
    %v1410 = vadd.f32 %v838, %v1409
    %v1411 = vpop.f32.mrf.mxu0
    %v1412 = vadd.f32 %v838, %v1411
    %1413 = vmatmul.bf16.gmra.mxu0 %v765
    %v1414 = vpop.f32.mrf.mxu0
    %v1415 = vadd.f32 %v838, %v1414
    %v1416 = vpop.f32.mrf.mxu0
    %v1417 = vadd.f32 %v838, %v1416
    %1418 = vmatmul.bf16.gmra.mxu0 %v766
    %v1419 = vpop.f32.mrf.mxu0
    %v1420 = vadd.f32 %v838, %v1419
    %v1421 = vpop.f32.mrf.mxu0
    %v1422 = vadd.f32 %v838, %v1421
    %1423 = vmatmul.bf16.gmra.mxu0 %v767
    %v1424 = vpop.f32.mrf.mxu0
    %v1425 = vadd.f32 %v838, %v1424
    %v1426 = vpop.f32.mrf.mxu0
    %v1427 = vadd.f32 %v838, %v1426
    %1428 = vmatmul.bf16.gmra.mxu0 %v768
    %v1429 = vpop.f32.mrf.mxu0
    %v1430 = vadd.f32 %v838, %v1429
    %v1431 = vpop.f32.mrf.mxu0
    %v1432 = vadd.f32 %v838, %v1431
    %1433 = vmatmul.bf16.gmra.mxu0 %v769
    %v1434 = vpop.f32.mrf.mxu0
    %v1435 = vadd.f32 %v838, %v1434
    %v1436 = vpop.f32.mrf.mxu0
    %v1437 = vadd.f32 %v838, %v1436
    %1438 = vdwg.mxu0
    %1439 = vmatpush.bf16.msra.mxu0 %v1103
    %1440 = vmatpush.bf16.msra.mxu0 %v1095
    %1441 = vmatpush.bf16.msra.mxu0 %v1087
    %1442 = vmatpush.bf16.msra.mxu0 %v1079
    %1443 = vmatpush.bf16.msra.mxu0 %v1071
    %1444 = vmatpush.bf16.msra.mxu0 %v1063
    %1445 = vmatpush.bf16.msra.mxu0 %v1055
    %1446 = vmatpush.bf16.msra.mxu0 %v1047
    %1447 = vmatmul.bf16.gmra.mxu0 %v754
    %v1448 = vpop.f32.mrf.mxu0
    %v1449 = vadd.f32 %v839, %v1448
    %v1450 = vpop.f32.mrf.mxu0
    %v1451 = vadd.f32 %v839, %v1450
    %1452 = vmatmul.bf16.gmra.mxu0 %v755
    %v1453 = vpop.f32.mrf.mxu0
    %v1454 = vadd.f32 %v839, %v1453
    %v1455 = vpop.f32.mrf.mxu0
    %v1456 = vadd.f32 %v839, %v1455
    %1457 = vmatmul.bf16.gmra.mxu0 %v756
    %v1458 = vpop.f32.mrf.mxu0
    %v1459 = vadd.f32 %v839, %v1458
    %v1460 = vpop.f32.mrf.mxu0
    %v1461 = vadd.f32 %v839, %v1460
    %1462 = vmatmul.bf16.gmra.mxu0 %v757
    %v1463 = vpop.f32.mrf.mxu0
    %v1464 = vadd.f32 %v839, %v1463
    %v1465 = vpop.f32.mrf.mxu0
    %v1466 = vadd.f32 %v839, %v1465
    %1467 = vmatmul.bf16.gmra.mxu0 %v758
    %v1468 = vpop.f32.mrf.mxu0
    %v1469 = vadd.f32 %v839, %v1468
    %v1470 = vpop.f32.mrf.mxu0
    %v1471 = vadd.f32 %v839, %v1470
    %1472 = vmatmul.bf16.gmra.mxu0 %v759
    %v1473 = vpop.f32.mrf.mxu0
    %v1474 = vadd.f32 %v839, %v1473
    %v1475 = vpop.f32.mrf.mxu0
    %v1476 = vadd.f32 %v839, %v1475
    %1477 = vmatmul.bf16.gmra.mxu0 %v760
    %v1478 = vpop.f32.mrf.mxu0
    %v1479 = vadd.f32 %v839, %v1478
    %v1480 = vpop.f32.mrf.mxu0
    %v1481 = vadd.f32 %v839, %v1480
    %1482 = vmatmul.bf16.gmra.mxu0 %v761
    %v1483 = vpop.f32.mrf.mxu0
    %v1484 = vadd.f32 %v839, %v1483
    %v1485 = vpop.f32.mrf.mxu0
    %v1486 = vadd.f32 %v839, %v1485
    %1487 = vmatmul.bf16.gmra.mxu0 %v762
    %v1488 = vpop.f32.mrf.mxu0
    %v1489 = vadd.f32 %v839, %v1488
    %v1490 = vpop.f32.mrf.mxu0
    %v1491 = vadd.f32 %v839, %v1490
    %1492 = vmatmul.bf16.gmra.mxu0 %v763
    %v1493 = vpop.f32.mrf.mxu0
    %v1494 = vadd.f32 %v839, %v1493
    %v1495 = vpop.f32.mrf.mxu0
    %v1496 = vadd.f32 %v839, %v1495
    %1497 = vmatmul.bf16.gmra.mxu0 %v764
    %v1498 = vpop.f32.mrf.mxu0
    %v1499 = vadd.f32 %v839, %v1498
    %v1500 = vpop.f32.mrf.mxu0
    %v1501 = vadd.f32 %v839, %v1500
    %1502 = vmatmul.bf16.gmra.mxu0 %v765
    %v1503 = vpop.f32.mrf.mxu0
    %v1504 = vadd.f32 %v839, %v1503
    %v1505 = vpop.f32.mrf.mxu0
    %v1506 = vadd.f32 %v839, %v1505
    %1507 = vmatmul.bf16.gmra.mxu0 %v766
    %v1508 = vpop.f32.mrf.mxu0
    %v1509 = vadd.f32 %v839, %v1508
    %v1510 = vpop.f32.mrf.mxu0
    %v1511 = vadd.f32 %v839, %v1510
    %1512 = vmatmul.bf16.gmra.mxu0 %v767
    %v1513 = vpop.f32.mrf.mxu0
    %v1514 = vadd.f32 %v839, %v1513
    %v1515 = vpop.f32.mrf.mxu0
    %v1516 = vadd.f32 %v839, %v1515
    %1517 = vmatmul.bf16.gmra.mxu0 %v768
    %v1518 = vpop.f32.mrf.mxu0
    %v1519 = vadd.f32 %v839, %v1518
    %v1520 = vpop.f32.mrf.mxu0
    %v1521 = vadd.f32 %v839, %v1520
    %1522 = vmatmul.bf16.gmra.mxu0 %v769
    %v1523 = vpop.f32.mrf.mxu0
    %v1524 = vadd.f32 %v839, %v1523
    %v1525 = vpop.f32.mrf.mxu0
    %v1526 = vadd.f32 %v839, %v1525
    %1527 = vdwg.mxu0
    %1528 = vmatpush.bf16.msra.mxu0 %v1104
    %1529 = vmatpush.bf16.msra.mxu0 %v1096
    %1530 = vmatpush.bf16.msra.mxu0 %v1088
    %1531 = vmatpush.bf16.msra.mxu0 %v1080
    %1532 = vmatpush.bf16.msra.mxu0 %v1072
    %1533 = vmatpush.bf16.msra.mxu0 %v1064
    %1534 = vmatpush.bf16.msra.mxu0 %v1056
    %1535 = vmatpush.bf16.msra.mxu0 %v1048
    %1536 = vmatmul.bf16.gmra.mxu0 %v754
    %v1537 = vpop.f32.mrf.mxu0
    %v1538 = vadd.f32 %v840, %v1537
    %v1539 = vpop.f32.mrf.mxu0
    %v1540 = vadd.f32 %v840, %v1539
    %1541 = vmatmul.bf16.gmra.mxu0 %v755
    %v1542 = vpop.f32.mrf.mxu0
    %v1543 = vadd.f32 %v840, %v1542
    %v1544 = vpop.f32.mrf.mxu0
    %v1545 = vadd.f32 %v840, %v1544
    %1546 = vmatmul.bf16.gmra.mxu0 %v756
    %v1547 = vpop.f32.mrf.mxu0
    %v1548 = vadd.f32 %v840, %v1547
    %v1549 = vpop.f32.mrf.mxu0
    %v1550 = vadd.f32 %v840, %v1549
    %1551 = vmatmul.bf16.gmra.mxu0 %v757
    %v1552 = vpop.f32.mrf.mxu0
    %v1553 = vadd.f32 %v840, %v1552
    %v1554 = vpop.f32.mrf.mxu0
    %v1555 = vadd.f32 %v840, %v1554
    %1556 = vmatmul.bf16.gmra.mxu0 %v758
    %v1557 = vpop.f32.mrf.mxu0
    %v1558 = vadd.f32 %v840, %v1557
    %v1559 = vpop.f32.mrf.mxu0
    %v1560 = vadd.f32 %v840, %v1559
    %1561 = vmatmul.bf16.gmra.mxu0 %v759
    %v1562 = vpop.f32.mrf.mxu0
    %v1563 = vadd.f32 %v840, %v1562
    %v1564 = vpop.f32.mrf.mxu0
    %v1565 = vadd.f32 %v840, %v1564
    %1566 = vmatmul.bf16.gmra.mxu0 %v760
    %v1567 = vpop.f32.mrf.mxu0
    %v1568 = vadd.f32 %v840, %v1567
    %v1569 = vpop.f32.mrf.mxu0
    %v1570 = vadd.f32 %v840, %v1569
    %1571 = vmatmul.bf16.gmra.mxu0 %v761
    %v1572 = vpop.f32.mrf.mxu0
    %v1573 = vadd.f32 %v840, %v1572
    %v1574 = vpop.f32.mrf.mxu0
    %v1575 = vadd.f32 %v840, %v1574
    %1576 = vmatmul.bf16.gmra.mxu0 %v762
    %v1577 = vpop.f32.mrf.mxu0
    %v1578 = vadd.f32 %v840, %v1577
    %v1579 = vpop.f32.mrf.mxu0
    %v1580 = vadd.f32 %v840, %v1579
    %1581 = vmatmul.bf16.gmra.mxu0 %v763
    %v1582 = vpop.f32.mrf.mxu0
    %v1583 = vadd.f32 %v840, %v1582
    %v1584 = vpop.f32.mrf.mxu0
    %v1585 = vadd.f32 %v840, %v1584
    %1586 = vmatmul.bf16.gmra.mxu0 %v764
    %v1587 = vpop.f32.mrf.mxu0
    %v1588 = vadd.f32 %v840, %v1587
    %v1589 = vpop.f32.mrf.mxu0
    %v1590 = vadd.f32 %v840, %v1589
    %1591 = vmatmul.bf16.gmra.mxu0 %v765
    %v1592 = vpop.f32.mrf.mxu0
    %v1593 = vadd.f32 %v840, %v1592
    %v1594 = vpop.f32.mrf.mxu0
    %v1595 = vadd.f32 %v840, %v1594
    %1596 = vmatmul.bf16.gmra.mxu0 %v766
    %v1597 = vpop.f32.mrf.mxu0
    %v1598 = vadd.f32 %v840, %v1597
    %v1599 = vpop.f32.mrf.mxu0
    %v1600 = vadd.f32 %v840, %v1599
    %1601 = vmatmul.bf16.gmra.mxu0 %v767
    %v1602 = vpop.f32.mrf.mxu0
    %v1603 = vadd.f32 %v840, %v1602
    %v1604 = vpop.f32.mrf.mxu0
    %v1605 = vadd.f32 %v840, %v1604
    %1606 = vmatmul.bf16.gmra.mxu0 %v768
    %v1607 = vpop.f32.mrf.mxu0
    %v1608 = vadd.f32 %v840, %v1607
    %v1609 = vpop.f32.mrf.mxu0
    %v1610 = vadd.f32 %v840, %v1609
    %1611 = vmatmul.bf16.gmra.mxu0 %v769
    %v1612 = vpop.f32.mrf.mxu0
    %v1613 = vadd.f32 %v840, %v1612
    %v1614 = vpop.f32.mrf.mxu0
    %v1615 = vadd.f32 %v840, %v1614
    %1616 = vdwg.mxu0
    %1617 = vmatpush.bf16.msra.mxu0 %v1105
    %1618 = vmatpush.bf16.msra.mxu0 %v1097
    %1619 = vmatpush.bf16.msra.mxu0 %v1089
    %1620 = vmatpush.bf16.msra.mxu0 %v1081
    %1621 = vmatpush.bf16.msra.mxu0 %v1073
    %1622 = vmatpush.bf16.msra.mxu0 %v1065
    %1623 = vmatpush.bf16.msra.mxu0 %v1057
    %1624 = vmatpush.bf16.msra.mxu0 %v1049
    %1625 = vmatmul.bf16.gmra.mxu0 %v754
    %v1626 = vpop.f32.mrf.mxu0
    %v1627 = vadd.f32 %v841, %v1626
    %v1628 = vpop.f32.mrf.mxu0
    %v1629 = vadd.f32 %v841, %v1628
    %1630 = vmatmul.bf16.gmra.mxu0 %v755
    %v1631 = vpop.f32.mrf.mxu0
    %v1632 = vadd.f32 %v841, %v1631
    %v1633 = vpop.f32.mrf.mxu0
    %v1634 = vadd.f32 %v841, %v1633
    %1635 = vmatmul.bf16.gmra.mxu0 %v756
    %v1636 = vpop.f32.mrf.mxu0
    %v1637 = vadd.f32 %v841, %v1636
    %v1638 = vpop.f32.mrf.mxu0
    %v1639 = vadd.f32 %v841, %v1638
    %1640 = vmatmul.bf16.gmra.mxu0 %v757
    %v1641 = vpop.f32.mrf.mxu0
    %v1642 = vadd.f32 %v841, %v1641
    %v1643 = vpop.f32.mrf.mxu0
    %v1644 = vadd.f32 %v841, %v1643
    %1645 = vmatmul.bf16.gmra.mxu0 %v758
    %v1646 = vpop.f32.mrf.mxu0
    %v1647 = vadd.f32 %v841, %v1646
    %v1648 = vpop.f32.mrf.mxu0
    %v1649 = vadd.f32 %v841, %v1648
    %1650 = vmatmul.bf16.gmra.mxu0 %v759
    %v1651 = vpop.f32.mrf.mxu0
    %v1652 = vadd.f32 %v841, %v1651
    %v1653 = vpop.f32.mrf.mxu0
    %v1654 = vadd.f32 %v841, %v1653
    %1655 = vmatmul.bf16.gmra.mxu0 %v760
    %v1656 = vpop.f32.mrf.mxu0
    %v1657 = vadd.f32 %v841, %v1656
    %v1658 = vpop.f32.mrf.mxu0
    %v1659 = vadd.f32 %v841, %v1658
    %1660 = vmatmul.bf16.gmra.mxu0 %v761
    %v1661 = vpop.f32.mrf.mxu0
    %v1662 = vadd.f32 %v841, %v1661
    %v1663 = vpop.f32.mrf.mxu0
    %v1664 = vadd.f32 %v841, %v1663
    %1665 = vmatmul.bf16.gmra.mxu0 %v762
    %v1666 = vpop.f32.mrf.mxu0
    %v1667 = vadd.f32 %v841, %v1666
    %v1668 = vpop.f32.mrf.mxu0
    %v1669 = vadd.f32 %v841, %v1668
    %1670 = vmatmul.bf16.gmra.mxu0 %v763
    %v1671 = vpop.f32.mrf.mxu0
    %v1672 = vadd.f32 %v841, %v1671
    %v1673 = vpop.f32.mrf.mxu0
    %v1674 = vadd.f32 %v841, %v1673
    %1675 = vmatmul.bf16.gmra.mxu0 %v764
    %v1676 = vpop.f32.mrf.mxu0
    %v1677 = vadd.f32 %v841, %v1676
    %v1678 = vpop.f32.mrf.mxu0
    %v1679 = vadd.f32 %v841, %v1678
    %1680 = vmatmul.bf16.gmra.mxu0 %v765
    %v1681 = vpop.f32.mrf.mxu0
    %v1682 = vadd.f32 %v841, %v1681
    %v1683 = vpop.f32.mrf.mxu0
    %v1684 = vadd.f32 %v841, %v1683
    %1685 = vmatmul.bf16.gmra.mxu0 %v766
    %v1686 = vpop.f32.mrf.mxu0
    %v1687 = vadd.f32 %v841, %v1686
    %v1688 = vpop.f32.mrf.mxu0
    %v1689 = vadd.f32 %v841, %v1688
    %1690 = vmatmul.bf16.gmra.mxu0 %v767
    %v1691 = vpop.f32.mrf.mxu0
    %v1692 = vadd.f32 %v841, %v1691
    %v1693 = vpop.f32.mrf.mxu0
    %v1694 = vadd.f32 %v841, %v1693
    %1695 = vmatmul.bf16.gmra.mxu0 %v768
    %v1696 = vpop.f32.mrf.mxu0
    %v1697 = vadd.f32 %v841, %v1696
    %v1698 = vpop.f32.mrf.mxu0
    %v1699 = vadd.f32 %v841, %v1698
    %1700 = vmatmul.bf16.gmra.mxu0 %v769
    %v1701 = vpop.f32.mrf.mxu0
    %v1702 = vadd.f32 %v841, %v1701
    %v1703 = vpop.f32.mrf.mxu0
    %v1704 = vadd.f32 %v841, %v1703
    %1705 = vdwg.mxu0
    %1706 = vmatpush.bf16.msra.mxu0 %v1106
    %1707 = vmatpush.bf16.msra.mxu0 %v1098
    %1708 = vmatpush.bf16.msra.mxu0 %v1090
    %1709 = vmatpush.bf16.msra.mxu0 %v1082
    %1710 = vmatpush.bf16.msra.mxu0 %v1074
    %1711 = vmatpush.bf16.msra.mxu0 %v1066
    %1712 = vmatpush.bf16.msra.mxu0 %v1058
    %1713 = vmatpush.bf16.msra.mxu0 %v1050
    %1714 = vmatmul.bf16.gmra.mxu0 %v754
    %v1715 = vpop.f32.mrf.mxu0
    %v1716 = vadd.f32 %v842, %v1715
    %v1717 = vpop.f32.mrf.mxu0
    %v1718 = vadd.f32 %v842, %v1717
    %1719 = vmatmul.bf16.gmra.mxu0 %v755
    %v1720 = vpop.f32.mrf.mxu0
    %v1721 = vadd.f32 %v842, %v1720
    %v1722 = vpop.f32.mrf.mxu0
    %v1723 = vadd.f32 %v842, %v1722
    %1724 = vmatmul.bf16.gmra.mxu0 %v756
    %v1725 = vpop.f32.mrf.mxu0
    %v1726 = vadd.f32 %v842, %v1725
    %v1727 = vpop.f32.mrf.mxu0
    %v1728 = vadd.f32 %v842, %v1727
    %1729 = vmatmul.bf16.gmra.mxu0 %v757
    %v1730 = vpop.f32.mrf.mxu0
    %v1731 = vadd.f32 %v842, %v1730
    %v1732 = vpop.f32.mrf.mxu0
    %v1733 = vadd.f32 %v842, %v1732
    %1734 = vmatmul.bf16.gmra.mxu0 %v758
    %v1735 = vpop.f32.mrf.mxu0
    %v1736 = vadd.f32 %v842, %v1735
    %v1737 = vpop.f32.mrf.mxu0
    %v1738 = vadd.f32 %v842, %v1737
    %1739 = vmatmul.bf16.gmra.mxu0 %v759
    %v1740 = vpop.f32.mrf.mxu0
    %v1741 = vadd.f32 %v842, %v1740
    %v1742 = vpop.f32.mrf.mxu0
    %v1743 = vadd.f32 %v842, %v1742
    %1744 = vmatmul.bf16.gmra.mxu0 %v760
    %v1745 = vpop.f32.mrf.mxu0
    %v1746 = vadd.f32 %v842, %v1745
    %v1747 = vpop.f32.mrf.mxu0
    %v1748 = vadd.f32 %v842, %v1747
    %1749 = vmatmul.bf16.gmra.mxu0 %v761
    %v1750 = vpop.f32.mrf.mxu0
    %v1751 = vadd.f32 %v842, %v1750
    %v1752 = vpop.f32.mrf.mxu0
    %v1753 = vadd.f32 %v842, %v1752
    %1754 = vmatmul.bf16.gmra.mxu0 %v762
    %v1755 = vpop.f32.mrf.mxu0
    %v1756 = vadd.f32 %v842, %v1755
    %v1757 = vpop.f32.mrf.mxu0
    %v1758 = vadd.f32 %v842, %v1757
    %1759 = vmatmul.bf16.gmra.mxu0 %v763
    %v1760 = vpop.f32.mrf.mxu0
    %v1761 = vadd.f32 %v842, %v1760
    %v1762 = vpop.f32.mrf.mxu0
    %v1763 = vadd.f32 %v842, %v1762
    %1764 = vmatmul.bf16.gmra.mxu0 %v764
    %v1765 = vpop.f32.mrf.mxu0
    %v1766 = vadd.f32 %v842, %v1765
    %v1767 = vpop.f32.mrf.mxu0
    %v1768 = vadd.f32 %v842, %v1767
    %1769 = vmatmul.bf16.gmra.mxu0 %v765
    %v1770 = vpop.f32.mrf.mxu0
    %v1771 = vadd.f32 %v842, %v1770
    %v1772 = vpop.f32.mrf.mxu0
    %v1773 = vadd.f32 %v842, %v1772
    %1774 = vmatmul.bf16.gmra.mxu0 %v766
    %v1775 = vpop.f32.mrf.mxu0
    %v1776 = vadd.f32 %v842, %v1775
    %v1777 = vpop.f32.mrf.mxu0
    %v1778 = vadd.f32 %v842, %v1777
    %1779 = vmatmul.bf16.gmra.mxu0 %v767
    %v1780 = vpop.f32.mrf.mxu0
    %v1781 = vadd.f32 %v842, %v1780
    %v1782 = vpop.f32.mrf.mxu0
    %v1783 = vadd.f32 %v842, %v1782
    %1784 = vmatmul.bf16.gmra.mxu0 %v768
    %v1785 = vpop.f32.mrf.mxu0
    %v1786 = vadd.f32 %v842, %v1785
    %v1787 = vpop.f32.mrf.mxu0
    %v1788 = vadd.f32 %v842, %v1787
    %1789 = vmatmul.bf16.gmra.mxu0 %v769
    %v1790 = vpop.f32.mrf.mxu0
    %v1791 = vadd.f32 %v842, %v1790
    %v1792 = vpop.f32.mrf.mxu0
    %v1793 = vadd.f32 %v842, %v1792
    %1794 = vdwg.mxu0
    %1795 = vmatpush.bf16.msra.mxu0 %v1107
    %1796 = vmatpush.bf16.msra.mxu0 %v1099
    %1797 = vmatpush.bf16.msra.mxu0 %v1091
    %1798 = vmatpush.bf16.msra.mxu0 %v1083
    %1799 = vmatpush.bf16.msra.mxu0 %v1075
    %1800 = vmatpush.bf16.msra.mxu0 %v1067
    %1801 = vmatpush.bf16.msra.mxu0 %v1059
    %1802 = vmatpush.bf16.msra.mxu0 %v1051
    %1803 = vmatmul.bf16.gmra.mxu0 %v754
    %v1804 = vpop.f32.mrf.mxu0
    %v1805 = vadd.f32 %v843, %v1804
    %v1806 = vpop.f32.mrf.mxu0
    %v1807 = vadd.f32 %v843, %v1806
    %1808 = vmatmul.bf16.gmra.mxu0 %v755
    %v1809 = vpop.f32.mrf.mxu0
    %v1810 = vadd.f32 %v843, %v1809
    %v1811 = vpop.f32.mrf.mxu0
    %v1812 = vadd.f32 %v843, %v1811
    %1813 = vmatmul.bf16.gmra.mxu0 %v756
    %v1814 = vpop.f32.mrf.mxu0
    %v1815 = vadd.f32 %v843, %v1814
    %v1816 = vpop.f32.mrf.mxu0
    %v1817 = vadd.f32 %v843, %v1816
    %1818 = vmatmul.bf16.gmra.mxu0 %v757
    %v1819 = vpop.f32.mrf.mxu0
    %v1820 = vadd.f32 %v843, %v1819
    %v1821 = vpop.f32.mrf.mxu0
    %v1822 = vadd.f32 %v843, %v1821
    %1823 = vmatmul.bf16.gmra.mxu0 %v758
    %v1824 = vpop.f32.mrf.mxu0
    %v1825 = vadd.f32 %v843, %v1824
    %v1826 = vpop.f32.mrf.mxu0
    %v1827 = vadd.f32 %v843, %v1826
    %1828 = vmatmul.bf16.gmra.mxu0 %v759
    %v1829 = vpop.f32.mrf.mxu0
    %v1830 = vadd.f32 %v843, %v1829
    %v1831 = vpop.f32.mrf.mxu0
    %v1832 = vadd.f32 %v843, %v1831
    %1833 = vmatmul.bf16.gmra.mxu0 %v760
    %v1834 = vpop.f32.mrf.mxu0
    %v1835 = vadd.f32 %v843, %v1834
    %v1836 = vpop.f32.mrf.mxu0
    %v1837 = vadd.f32 %v843, %v1836
    %1838 = vmatmul.bf16.gmra.mxu0 %v761
    %v1839 = vpop.f32.mrf.mxu0
    %v1840 = vadd.f32 %v843, %v1839
    %v1841 = vpop.f32.mrf.mxu0
    %v1842 = vadd.f32 %v843, %v1841
    %1843 = vmatmul.bf16.gmra.mxu0 %v762
    %v1844 = vpop.f32.mrf.mxu0
    %v1845 = vadd.f32 %v843, %v1844
    %v1846 = vpop.f32.mrf.mxu0
    %v1847 = vadd.f32 %v843, %v1846
    %1848 = vmatmul.bf16.gmra.mxu0 %v763
    %v1849 = vpop.f32.mrf.mxu0
    %v1850 = vadd.f32 %v843, %v1849
    %v1851 = vpop.f32.mrf.mxu0
    %v1852 = vadd.f32 %v843, %v1851
    %1853 = vmatmul.bf16.gmra.mxu0 %v764
    %v1854 = vpop.f32.mrf.mxu0
    %v1855 = vadd.f32 %v843, %v1854
    %v1856 = vpop.f32.mrf.mxu0
    %v1857 = vadd.f32 %v843, %v1856
    %1858 = vmatmul.bf16.gmra.mxu0 %v765
    %v1859 = vpop.f32.mrf.mxu0
    %v1860 = vadd.f32 %v843, %v1859
    %v1861 = vpop.f32.mrf.mxu0
    %v1862 = vadd.f32 %v843, %v1861
    %1863 = vmatmul.bf16.gmra.mxu0 %v766
    %v1864 = vpop.f32.mrf.mxu0
    %v1865 = vadd.f32 %v843, %v1864
    %v1866 = vpop.f32.mrf.mxu0
    %v1867 = vadd.f32 %v843, %v1866
    %1868 = vmatmul.bf16.gmra.mxu0 %v767
    %v1869 = vpop.f32.mrf.mxu0
    %v1870 = vadd.f32 %v843, %v1869
    %v1871 = vpop.f32.mrf.mxu0
    %v1872 = vadd.f32 %v843, %v1871
    %1873 = vmatmul.bf16.gmra.mxu0 %v768
    %v1874 = vpop.f32.mrf.mxu0
    %v1875 = vadd.f32 %v843, %v1874
    %v1876 = vpop.f32.mrf.mxu0
    %v1877 = vadd.f32 %v843, %v1876
    %1878 = vmatmul.bf16.gmra.mxu0 %v769
    %v1879 = vpop.f32.mrf.mxu0
    %v1880 = vadd.f32 %v843, %v1879
    %v1881 = vpop.f32.mrf.mxu0
    %v1882 = vadd.f32 %v843, %v1881
    %1883 = vdwg.mxu0
    %v1884 = vpack.c.bf16 %v1271, %v1182
    %v1885 = vpack.c.bf16 %v1449, %v1360
    %v1886 = vpack.c.bf16 %v1627, %v1538
    %v1887 = vpack.c.bf16 %v1805, %v1716
    %v1888 = vpack.c.bf16 %v1273, %v1184
    %v1889 = vpack.c.bf16 %v1451, %v1362
    %v1890 = vpack.c.bf16 %v1629, %v1540
    %v1891 = vpack.c.bf16 %v1807, %v1718
    %v1892 = vpack.c.bf16 %v1276, %v1187
    %v1893 = vpack.c.bf16 %v1454, %v1365
    %v1894 = vpack.c.bf16 %v1632, %v1543
    %v1895 = vpack.c.bf16 %v1810, %v1721
    %v1896 = vpack.c.bf16 %v1278, %v1189
    %v1897 = vpack.c.bf16 %v1456, %v1367
    %v1898 = vpack.c.bf16 %v1634, %v1545
    %v1899 = vpack.c.bf16 %v1812, %v1723
    %v1900 = vpack.c.bf16 %v1281, %v1192
    %v1901 = vpack.c.bf16 %v1459, %v1370
    %v1902 = vpack.c.bf16 %v1637, %v1548
    %v1903 = vpack.c.bf16 %v1815, %v1726
    %v1904 = vpack.c.bf16 %v1283, %v1194
    %v1905 = vpack.c.bf16 %v1461, %v1372
    %v1906 = vpack.c.bf16 %v1639, %v1550
    %v1907 = vpack.c.bf16 %v1817, %v1728
    %v1908 = vpack.c.bf16 %v1286, %v1197
    %v1909 = vpack.c.bf16 %v1464, %v1375
    %v1910 = vpack.c.bf16 %v1642, %v1553
    %v1911 = vpack.c.bf16 %v1820, %v1731
    %v1912 = vpack.c.bf16 %v1288, %v1199
    %v1913 = vpack.c.bf16 %v1466, %v1377
    %v1914 = vpack.c.bf16 %v1644, %v1555
    %v1915 = vpack.c.bf16 %v1822, %v1733
    %v1916 = vpack.c.bf16 %v1291, %v1202
    %v1917 = vpack.c.bf16 %v1469, %v1380
    %v1918 = vpack.c.bf16 %v1647, %v1558
    %v1919 = vpack.c.bf16 %v1825, %v1736
    %v1920 = vpack.c.bf16 %v1293, %v1204
    %v1921 = vpack.c.bf16 %v1471, %v1382
    %v1922 = vpack.c.bf16 %v1649, %v1560
    %v1923 = vpack.c.bf16 %v1827, %v1738
    %v1924 = vpack.c.bf16 %v1296, %v1207
    %v1925 = vpack.c.bf16 %v1474, %v1385
    %v1926 = vpack.c.bf16 %v1652, %v1563
    %v1927 = vpack.c.bf16 %v1830, %v1741
    %v1928 = vpack.c.bf16 %v1298, %v1209
    %v1929 = vpack.c.bf16 %v1476, %v1387
    %v1930 = vpack.c.bf16 %v1654, %v1565
    %v1931 = vpack.c.bf16 %v1832, %v1743
    %v1932 = vpack.c.bf16 %v1301, %v1212
    %v1933 = vpack.c.bf16 %v1479, %v1390
    %v1934 = vpack.c.bf16 %v1657, %v1568
    %v1935 = vpack.c.bf16 %v1835, %v1746
    %v1936 = vpack.c.bf16 %v1303, %v1214
    %v1937 = vpack.c.bf16 %v1481, %v1392
    %v1938 = vpack.c.bf16 %v1659, %v1570
    %v1939 = vpack.c.bf16 %v1837, %v1748
    %v1940 = vpack.c.bf16 %v1306, %v1217
    %v1941 = vpack.c.bf16 %v1484, %v1395
    %v1942 = vpack.c.bf16 %v1662, %v1573
    %v1943 = vpack.c.bf16 %v1840, %v1751
    %v1944 = vpack.c.bf16 %v1308, %v1219
    %v1945 = vpack.c.bf16 %v1486, %v1397
    %v1946 = vpack.c.bf16 %v1664, %v1575
    %v1947 = vpack.c.bf16 %v1842, %v1753
    %v1948 = vpack.c.bf16 %v1311, %v1222
    %v1949 = vpack.c.bf16 %v1489, %v1400
    %v1950 = vpack.c.bf16 %v1667, %v1578
    %v1951 = vpack.c.bf16 %v1845, %v1756
    %v1952 = vpack.c.bf16 %v1313, %v1224
    %v1953 = vpack.c.bf16 %v1491, %v1402
    %v1954 = vpack.c.bf16 %v1669, %v1580
    %v1955 = vpack.c.bf16 %v1847, %v1758
    %v1956 = vpack.c.bf16 %v1316, %v1227
    %v1957 = vpack.c.bf16 %v1494, %v1405
    %v1958 = vpack.c.bf16 %v1672, %v1583
    %v1959 = vpack.c.bf16 %v1850, %v1761
    %v1960 = vpack.c.bf16 %v1318, %v1229
    %v1961 = vpack.c.bf16 %v1496, %v1407
    %v1962 = vpack.c.bf16 %v1674, %v1585
    %v1963 = vpack.c.bf16 %v1852, %v1763
    %v1964 = vpack.c.bf16 %v1321, %v1232
    %v1965 = vpack.c.bf16 %v1499, %v1410
    %v1966 = vpack.c.bf16 %v1677, %v1588
    %v1967 = vpack.c.bf16 %v1855, %v1766
    %v1968 = vpack.c.bf16 %v1323, %v1234
    %v1969 = vpack.c.bf16 %v1501, %v1412
    %v1970 = vpack.c.bf16 %v1679, %v1590
    %v1971 = vpack.c.bf16 %v1857, %v1768
    %v1972 = vpack.c.bf16 %v1326, %v1237
    %v1973 = vpack.c.bf16 %v1504, %v1415
    %v1974 = vpack.c.bf16 %v1682, %v1593
    %v1975 = vpack.c.bf16 %v1860, %v1771
    %v1976 = vpack.c.bf16 %v1328, %v1239
    %v1977 = vpack.c.bf16 %v1506, %v1417
    %v1978 = vpack.c.bf16 %v1684, %v1595
    %v1979 = vpack.c.bf16 %v1862, %v1773
    %v1980 = vpack.c.bf16 %v1331, %v1242
    %v1981 = vpack.c.bf16 %v1509, %v1420
    %v1982 = vpack.c.bf16 %v1687, %v1598
    %v1983 = vpack.c.bf16 %v1865, %v1776
    %v1984 = vpack.c.bf16 %v1333, %v1244
    %v1985 = vpack.c.bf16 %v1511, %v1422
    %v1986 = vpack.c.bf16 %v1689, %v1600
    %v1987 = vpack.c.bf16 %v1867, %v1778
    %v1988 = vpack.c.bf16 %v1336, %v1247
    %v1989 = vpack.c.bf16 %v1514, %v1425
    %v1990 = vpack.c.bf16 %v1692, %v1603
    %v1991 = vpack.c.bf16 %v1870, %v1781
    %v1992 = vpack.c.bf16 %v1338, %v1249
    %v1993 = vpack.c.bf16 %v1516, %v1427
    %v1994 = vpack.c.bf16 %v1694, %v1605
    %v1995 = vpack.c.bf16 %v1872, %v1783
    %v1996 = vpack.c.bf16 %v1341, %v1252
    %v1997 = vpack.c.bf16 %v1519, %v1430
    %v1998 = vpack.c.bf16 %v1697, %v1608
    %v1999 = vpack.c.bf16 %v1875, %v1786
    %v2000 = vpack.c.bf16 %v1343, %v1254
    %v2001 = vpack.c.bf16 %v1521, %v1432
    %v2002 = vpack.c.bf16 %v1699, %v1610
    %v2003 = vpack.c.bf16 %v1877, %v1788
    %v2004 = vpack.c.bf16 %v1346, %v1257
    %v2005 = vpack.c.bf16 %v1524, %v1435
    %v2006 = vpack.c.bf16 %v1702, %v1613
    %v2007 = vpack.c.bf16 %v1880, %v1791
    %v2008 = vpack.c.bf16 %v1348, %v1259
    %v2009 = vpack.c.bf16 %v1526, %v1437
    %v2010 = vpack.c.bf16 %v1704, %v1615
    %v2011 = vpack.c.bf16 %v1882, %v1793
    %v2012 = vld [vmem:[%s5] sm:$0xf]
    %v2013 = vld [vmem:[%s5 + $0x4] sm:$0xf]
    %v2014 = vld [vmem:[%s5 + $0x8] sm:$0xf]
    %v2015 = vld [vmem:[%s5 + $0xc] sm:$0xf]
    %v2016 = vld [vmem:[%s5 + $0x10] sm:$0xf]
    %v2017 = vld [vmem:[%s5 + $0x14] sm:$0xf]
    %v2018 = vld [vmem:[%s5 + $0x18] sm:$0xf]
    %v2019 = vld [vmem:[%s5 + $0x1c] sm:$0xf]
    %v2020 = vld [vmem:[%s5 + $0x20] sm:$0xf]
    %v2021 = vld [vmem:[%s5 + $0x24] sm:$0xf]
    %v2022 = vld [vmem:[%s5 + $0x28] sm:$0xf]
    %v2023 = vld [vmem:[%s5 + $0x2c] sm:$0xf]
    %v2024 = vld [vmem:[%s5 + $0x30] sm:$0xf]
    %v2025 = vld [vmem:[%s5 + $0x34] sm:$0xf]
    %v2026 = vld [vmem:[%s5 + $0x38] sm:$0xf]
    %v2027 = vld [vmem:[%s5 + $0x3c] sm:$0xf]
    %v2044 = vunpack.c.l.b16 %v2012
    %v2045 = vunpack.c.l.b16 %v2013
    %v2046 = vunpack.c.l.b16 %v2014
    %v2047 = vunpack.c.l.b16 %v2015
    %v2048 = vunpack.c.l.b16 %v2016
    %v2049 = vunpack.c.l.b16 %v2017
    %v2050 = vunpack.c.l.b16 %v2018
    %v2051 = vunpack.c.l.b16 %v2019
    %v2052 = vunpack.c.l.b16 %v2020
    %v2053 = vunpack.c.l.b16 %v2021
    %v2054 = vunpack.c.l.b16 %v2022
    %v2055 = vunpack.c.l.b16 %v2023
    %v2056 = vunpack.c.l.b16 %v2024
    %v2057 = vunpack.c.l.b16 %v2025
    %v2058 = vunpack.c.l.b16 %v2026
    %v2059 = vunpack.c.l.b16 %v2027
    %v2060 = vpack.c.b16 %v2045, %v2044
    %v2061 = vpack.c.b16 %v2047, %v2046
    %v2062 = vpack.c.b16 %v2049, %v2048
    %v2063 = vpack.c.b16 %v2051, %v2050
    %v2064 = vpack.c.b16 %v2053, %v2052
    %v2065 = vpack.c.b16 %v2055, %v2054
    %v2066 = vpack.c.b16 %v2057, %v2056
    %v2067 = vpack.c.b16 %v2059, %v2058
    %2076 = vmatpush.bf16.msra.mxu0 %v2067
    %2077 = vmatpush.bf16.msra.mxu0 %v2066
    %2078 = vmatpush.bf16.msra.mxu0 %v2065
    %2079 = vmatpush.bf16.msra.mxu0 %v2064
    %2080 = vmatpush.bf16.msra.mxu0 %v2063
    %2081 = vmatpush.bf16.msra.mxu0 %v2062
    %2082 = vmatpush.bf16.msra.mxu0 %v2061
    %2083 = vmatpush.bf16.msra.mxu0 %v2060
    %2084 = vmatmul.bf16.gmra.mxu0 %v754
    %v2085 = vpop.f32.mrf.mxu0
    %v2086 = vadd.f32 0.0, %v2085
    %v2087 = vpop.f32.mrf.mxu0
    %v2088 = vadd.f32 0.0, %v2087
    %2089 = vmatmul.bf16.gmra.mxu0 %v755
    %v2090 = vpop.f32.mrf.mxu0
    %v2091 = vadd.f32 0.0, %v2090
    %v2092 = vpop.f32.mrf.mxu0
    %v2093 = vadd.f32 0.0, %v2092
    %2094 = vmatmul.bf16.gmra.mxu0 %v756
    %v2095 = vpop.f32.mrf.mxu0
    %v2096 = vadd.f32 0.0, %v2095
    %v2097 = vpop.f32.mrf.mxu0
    %v2098 = vadd.f32 0.0, %v2097
    %2099 = vmatmul.bf16.gmra.mxu0 %v757
    %v2100 = vpop.f32.mrf.mxu0
    %v2101 = vadd.f32 0.0, %v2100
    %v2102 = vpop.f32.mrf.mxu0
    %v2103 = vadd.f32 0.0, %v2102
    %2104 = vmatmul.bf16.gmra.mxu0 %v758
    %v2105 = vpop.f32.mrf.mxu0
    %v2106 = vadd.f32 0.0, %v2105
    %v2107 = vpop.f32.mrf.mxu0
    %v2108 = vadd.f32 0.0, %v2107
    %2109 = vmatmul.bf16.gmra.mxu0 %v759
    %v2110 = vpop.f32.mrf.mxu0
    %v2111 = vadd.f32 0.0, %v2110
    %v2112 = vpop.f32.mrf.mxu0
    %v2113 = vadd.f32 0.0, %v2112
    %2114 = vmatmul.bf16.gmra.mxu0 %v760
    %v2115 = vpop.f32.mrf.mxu0
    %v2116 = vadd.f32 0.0, %v2115
    %v2117 = vpop.f32.mrf.mxu0
    %v2118 = vadd.f32 0.0, %v2117
    %2119 = vmatmul.bf16.gmra.mxu0 %v761
    %v2120 = vpop.f32.mrf.mxu0
    %v2121 = vadd.f32 0.0, %v2120
    %v2122 = vpop.f32.mrf.mxu0
    %v2123 = vadd.f32 0.0, %v2122
    %2124 = vmatmul.bf16.gmra.mxu0 %v762
    %v2125 = vpop.f32.mrf.mxu0
    %v2126 = vadd.f32 0.0, %v2125
    %v2127 = vpop.f32.mrf.mxu0
    %v2128 = vadd.f32 0.0, %v2127
    %2129 = vmatmul.bf16.gmra.mxu0 %v763
    %v2130 = vpop.f32.mrf.mxu0
    %v2131 = vadd.f32 0.0, %v2130
    %v2132 = vpop.f32.mrf.mxu0
    %v2133 = vadd.f32 0.0, %v2132
    %2134 = vmatmul.bf16.gmra.mxu0 %v764
    %v2135 = vpop.f32.mrf.mxu0
    %v2136 = vadd.f32 0.0, %v2135
    %v2137 = vpop.f32.mrf.mxu0
    %v2138 = vadd.f32 0.0, %v2137
    %2139 = vmatmul.bf16.gmra.mxu0 %v765
    %v2140 = vpop.f32.mrf.mxu0
    %v2141 = vadd.f32 0.0, %v2140
    %v2142 = vpop.f32.mrf.mxu0
    %v2143 = vadd.f32 0.0, %v2142
    %2144 = vmatmul.bf16.gmra.mxu0 %v766
    %v2145 = vpop.f32.mrf.mxu0
    %v2146 = vadd.f32 0.0, %v2145
    %v2147 = vpop.f32.mrf.mxu0
    %v2148 = vadd.f32 0.0, %v2147
    %2149 = vmatmul.bf16.gmra.mxu0 %v767
    %v2150 = vpop.f32.mrf.mxu0
    %v2151 = vadd.f32 0.0, %v2150
    %v2152 = vpop.f32.mrf.mxu0
    %v2153 = vadd.f32 0.0, %v2152
    %2154 = vmatmul.bf16.gmra.mxu0 %v768
    %v2155 = vpop.f32.mrf.mxu0
    %v2156 = vadd.f32 0.0, %v2155
    %v2157 = vpop.f32.mrf.mxu0
    %v2158 = vadd.f32 0.0, %v2157
    %2159 = vmatmul.bf16.gmra.mxu0 %v769
    %v2160 = vpop.f32.mrf.mxu0
    %v2161 = vadd.f32 0.0, %v2160
    %v2162 = vpop.f32.mrf.mxu0
    %v2163 = vadd.f32 0.0, %v2162
    %2164 = vdwg.mxu0
    %2165 = vxpose.xlu0.b32.start [1/16] %v2086, 128
    %2166 = vxpose.xlu0.b32.cont [2/16] %v2088, 128
    %2167 = vxpose.xlu0.b32.cont [3/16] %v2091, 128
    %2168 = vxpose.xlu0.b32.cont [4/16] %v2093, 128
    %2169 = vxpose.xlu0.b32.cont [5/16] %v2096, 128
    %2170 = vxpose.xlu0.b32.cont [6/16] %v2098, 128
    %2171 = vxpose.xlu0.b32.cont [7/16] %v2101, 128
    %2172 = vxpose.xlu0.b32.cont [8/16] %v2103, 128
    %2173 = vxpose.xlu0.b32.cont [9/16] %v2106, 128
    %2174 = vxpose.xlu0.b32.cont [10/16] %v2108, 128
    %2175 = vxpose.xlu0.b32.cont [11/16] %v2111, 128
    %2176 = vxpose.xlu0.b32.cont [12/16] %v2113, 128
    %2177 = vxpose.xlu0.b32.cont [13/16] %v2116, 128
    %2178 = vxpose.xlu0.b32.cont [14/16] %v2118, 128
    %2179 = vxpose.xlu0.b32.cont [15/16] %v2121, 128
    %2180 = vxpose.xlu0.b32.end [16/16] %v2123, 128
    %v2181 = vpop.trf.xlu0
    %v2182 = vpop.trf.xlu0
    %v2183 = vpop.trf.xlu0
    %v2184 = vpop.trf.xlu0
    %v2185 = vpop.trf.xlu0
    %v2186 = vpop.trf.xlu0
    %v2187 = vpop.trf.xlu0
    %v2188 = vpop.trf.xlu0
    %v2189 = vpop.trf.xlu0
    %v2190 = vpop.trf.xlu0
    %v2191 = vpop.trf.xlu0
    %v2192 = vpop.trf.xlu0
    %v2193 = vpop.trf.xlu0
    %v2194 = vpop.trf.xlu0
    %v2195 = vpop.trf.xlu0
    %v2196 = vpop.trf.xlu0
    %2197 = vmax.xlane.f32.xlu0 %v2181
    %v2198 = vpop.xlane.xlu0 %2197
    %v2199 = vsub.f32 %v2181, %v2198
    %v2200 = vmul.f32 %v2199, 1.442695
    %v2201 = vpow.pop %v2200
    %2202 = vadd.xlane.f32.xlu0 %v2201
    %v2203 = vpop.xlane.xlu0 %2202
    %v2204 = vrcp.pop %v2203
    %v2205 = vmul.f32 %v2201, %v2204
    %v2206 = vpack.c.bf16 %v2205, %v2205
    %v2271 = vunpack.c.l.b16 %v1884
    %v2272 = vunpack.c.h.b16 %v1884
    %v2273 = vunpack.c.l.b16 %v1885
    %v2274 = vunpack.c.h.b16 %v1885
    %v2275 = vunpack.c.l.b16 %v1886
    %v2276 = vunpack.c.h.b16 %v1886
    %v2277 = vunpack.c.l.b16 %v1887
    %v2278 = vunpack.c.h.b16 %v1887
    %v2279 = vunpack.c.l.b16 %v1888
    %v2280 = vunpack.c.h.b16 %v1888
    %v2281 = vunpack.c.l.b16 %v1889
    %v2282 = vunpack.c.h.b16 %v1889
    %v2283 = vunpack.c.l.b16 %v1890
    %v2284 = vunpack.c.h.b16 %v1890
    %v2285 = vunpack.c.l.b16 %v1891
    %v2286 = vunpack.c.h.b16 %v1891
    %v2287 = vunpack.c.l.b16 %v1892
    %v2288 = vunpack.c.h.b16 %v1892
    %v2289 = vunpack.c.l.b16 %v1893
    %v2290 = vunpack.c.h.b16 %v1893
    %v2291 = vunpack.c.l.b16 %v1894
    %v2292 = vunpack.c.h.b16 %v1894
    %v2293 = vunpack.c.l.b16 %v1895
    %v2294 = vunpack.c.h.b16 %v1895
    %v2295 = vunpack.c.l.b16 %v1896
    %v2296 = vunpack.c.h.b16 %v1896
    %v2297 = vunpack.c.l.b16 %v1897
    %v2298 = vunpack.c.h.b16 %v1897
    %v2299 = vunpack.c.l.b16 %v1898
    %v2300 = vunpack.c.h.b16 %v1898
    %v2301 = vunpack.c.l.b16 %v1899
    %v2302 = vunpack.c.h.b16 %v1899
    %v2303 = vunpack.c.l.b16 %v1900
    %v2304 = vunpack.c.h.b16 %v1900
    %v2305 = vunpack.c.l.b16 %v1901
    %v2306 = vunpack.c.h.b16 %v1901
    %v2307 = vunpack.c.l.b16 %v1902
    %v2308 = vunpack.c.h.b16 %v1902
    %v2309 = vunpack.c.l.b16 %v1903
    %v2310 = vunpack.c.h.b16 %v1903
    %v2311 = vunpack.c.l.b16 %v1904
    %v2312 = vunpack.c.h.b16 %v1904
    %v2313 = vunpack.c.l.b16 %v1905
    %v2314 = vunpack.c.h.b16 %v1905
    %v2315 = vunpack.c.l.b16 %v1906
    %v2316 = vunpack.c.h.b16 %v1906
    %v2317 = vunpack.c.l.b16 %v1907
    %v2318 = vunpack.c.h.b16 %v1907
    %v2319 = vunpack.c.l.b16 %v1908
    %v2320 = vunpack.c.h.b16 %v1908
    %v2321 = vunpack.c.l.b16 %v1909
    %v2322 = vunpack.c.h.b16 %v1909
    %v2323 = vunpack.c.l.b16 %v1910
    %v2324 = vunpack.c.h.b16 %v1910
    %v2325 = vunpack.c.l.b16 %v1911
    %v2326 = vunpack.c.h.b16 %v1911
    %v2327 = vunpack.c.l.b16 %v1912
    %v2328 = vunpack.c.h.b16 %v1912
    %v2329 = vunpack.c.l.b16 %v1913
    %v2330 = vunpack.c.h.b16 %v1913
    %v2331 = vunpack.c.l.b16 %v1914
    %v2332 = vunpack.c.h.b16 %v1914
    %v2333 = vunpack.c.l.b16 %v1915
    %v2334 = vunpack.c.h.b16 %v1915
    %v2335 = vunpack.c.l.b16 %v1916
    %v2336 = vunpack.c.h.b16 %v1916
    %v2337 = vunpack.c.l.b16 %v1917
    %v2338 = vunpack.c.h.b16 %v1917
    %v2339 = vunpack.c.l.b16 %v1918
    %v2340 = vunpack.c.h.b16 %v1918
    %v2341 = vunpack.c.l.b16 %v1919
    %v2342 = vunpack.c.h.b16 %v1919
    %v2343 = vunpack.c.l.b16 %v1920
    %v2344 = vunpack.c.h.b16 %v1920
    %v2345 = vunpack.c.l.b16 %v1921
    %v2346 = vunpack.c.h.b16 %v1921
    %v2347 = vunpack.c.l.b16 %v1922
    %v2348 = vunpack.c.h.b16 %v1922
    %v2349 = vunpack.c.l.b16 %v1923
    %v2350 = vunpack.c.h.b16 %v1923
    %v2351 = vunpack.c.l.b16 %v1924
    %v2352 = vunpack.c.h.b16 %v1924
    %v2353 = vunpack.c.l.b16 %v1925
    %v2354 = vunpack.c.h.b16 %v1925
    %v2355 = vunpack.c.l.b16 %v1926
    %v2356 = vunpack.c.h.b16 %v1926
    %v2357 = vunpack.c.l.b16 %v1927
    %v2358 = vunpack.c.h.b16 %v1927
    %v2359 = vunpack.c.l.b16 %v1928
    %v2360 = vunpack.c.h.b16 %v1928
    %v2361 = vunpack.c.l.b16 %v1929
    %v2362 = vunpack.c.h.b16 %v1929
    %v2363 = vunpack.c.l.b16 %v1930
    %v2364 = vunpack.c.h.b16 %v1930
    %v2365 = vunpack.c.l.b16 %v1931
    %v2366 = vunpack.c.h.b16 %v1931
    %v2367 = vunpack.c.l.b16 %v1932
    %v2368 = vunpack.c.h.b16 %v1932
    %v2369 = vunpack.c.l.b16 %v1933
    %v2370 = vunpack.c.h.b16 %v1933
    %v2371 = vunpack.c.l.b16 %v1934
    %v2372 = vunpack.c.h.b16 %v1934
    %v2373 = vunpack.c.l.b16 %v1935
    %v2374 = vunpack.c.h.b16 %v1935
    %v2375 = vunpack.c.l.b16 %v1936
    %v2376 = vunpack.c.h.b16 %v1936
    %v2377 = vunpack.c.l.b16 %v1937
    %v2378 = vunpack.c.h.b16 %v1937
    %v2379 = vunpack.c.l.b16 %v1938
    %v2380 = vunpack.c.h.b16 %v1938
    %v2381 = vunpack.c.l.b16 %v1939
    %v2382 = vunpack.c.h.b16 %v1939
    %v2383 = vunpack.c.l.b16 %v1940
    %v2384 = vunpack.c.h.b16 %v1940
    %v2385 = vunpack.c.l.b16 %v1941
    %v2386 = vunpack.c.h.b16 %v1941
    %v2387 = vunpack.c.l.b16 %v1942
    %v2388 = vunpack.c.h.b16 %v1942
    %v2389 = vunpack.c.l.b16 %v1943
    %v2390 = vunpack.c.h.b16 %v1943
    %v2391 = vunpack.c.l.b16 %v1944
    %v2392 = vunpack.c.h.b16 %v1944
    %v2393 = vunpack.c.l.b16 %v1945
    %v2394 = vunpack.c.h.b16 %v1945
    %v2395 = vunpack.c.l.b16 %v1946
    %v2396 = vunpack.c.h.b16 %v1946
    %v2397 = vunpack.c.l.b16 %v1947
    %v2398 = vunpack.c.h.b16 %v1947
    %v2399 = vpack.c.b16 %v2279, %v2271
    %v2400 = vpack.c.b16 %v2280, %v2272
    %v2401 = vpack.c.b16 %v2281, %v2273
    %v2402 = vpack.c.b16 %v2282, %v2274
    %v2403 = vpack.c.b16 %v2283, %v2275
    %v2404 = vpack.c.b16 %v2284, %v2276
    %v2405 = vpack.c.b16 %v2285, %v2277
    %v2406 = vpack.c.b16 %v2286, %v2278
    %v2407 = vpack.c.b16 %v2295, %v2287
    %v2408 = vpack.c.b16 %v2296, %v2288
    %v2409 = vpack.c.b16 %v2297, %v2289
    %v2410 = vpack.c.b16 %v2298, %v2290
    %v2411 = vpack.c.b16 %v2299, %v2291
    %v2412 = vpack.c.b16 %v2300, %v2292
    %v2413 = vpack.c.b16 %v2301, %v2293
    %v2414 = vpack.c.b16 %v2302, %v2294
    %v2415 = vpack.c.b16 %v2311, %v2303
    %v2416 = vpack.c.b16 %v2312, %v2304
    %v2417 = vpack.c.b16 %v2313, %v2305
    %v2418 = vpack.c.b16 %v2314, %v2306
    %v2419 = vpack.c.b16 %v2315, %v2307
    %v2420 = vpack.c.b16 %v2316, %v2308
    %v2421 = vpack.c.b16 %v2317, %v2309
    %v2422 = vpack.c.b16 %v2318, %v2310
    %v2423 = vpack.c.b16 %v2327, %v2319
    %v2424 = vpack.c.b16 %v2328, %v2320
    %v2425 = vpack.c.b16 %v2329, %v2321
    %v2426 = vpack.c.b16 %v2330, %v2322
    %v2427 = vpack.c.b16 %v2331, %v2323
    %v2428 = vpack.c.b16 %v2332, %v2324
    %v2429 = vpack.c.b16 %v2333, %v2325
    %v2430 = vpack.c.b16 %v2334, %v2326
    %v2431 = vpack.c.b16 %v2343, %v2335
    %v2432 = vpack.c.b16 %v2344, %v2336
    %v2433 = vpack.c.b16 %v2345, %v2337
    %v2434 = vpack.c.b16 %v2346, %v2338
    %v2435 = vpack.c.b16 %v2347, %v2339
    %v2436 = vpack.c.b16 %v2348, %v2340
    %v2437 = vpack.c.b16 %v2349, %v2341
    %v2438 = vpack.c.b16 %v2350, %v2342
    %v2439 = vpack.c.b16 %v2359, %v2351
    %v2440 = vpack.c.b16 %v2360, %v2352
    %v2441 = vpack.c.b16 %v2361, %v2353
    %v2442 = vpack.c.b16 %v2362, %v2354
    %v2443 = vpack.c.b16 %v2363, %v2355
    %v2444 = vpack.c.b16 %v2364, %v2356
    %v2445 = vpack.c.b16 %v2365, %v2357
    %v2446 = vpack.c.b16 %v2366, %v2358
    %v2447 = vpack.c.b16 %v2375, %v2367
    %v2448 = vpack.c.b16 %v2376, %v2368
    %v2449 = vpack.c.b16 %v2377, %v2369
    %v2450 = vpack.c.b16 %v2378, %v2370
    %v2451 = vpack.c.b16 %v2379, %v2371
    %v2452 = vpack.c.b16 %v2380, %v2372
    %v2453 = vpack.c.b16 %v2381, %v2373
    %v2454 = vpack.c.b16 %v2382, %v2374
    %v2455 = vpack.c.b16 %v2391, %v2383
    %v2456 = vpack.c.b16 %v2392, %v2384
    %v2457 = vpack.c.b16 %v2393, %v2385
    %v2458 = vpack.c.b16 %v2394, %v2386
    %v2459 = vpack.c.b16 %v2395, %v2387
    %v2460 = vpack.c.b16 %v2396, %v2388
    %v2461 = vpack.c.b16 %v2397, %v2389
    %v2462 = vpack.c.b16 %v2398, %v2390
    %2527 = vmatpush.bf16.msra.mxu0 %v2455
    %2528 = vmatpush.bf16.msra.mxu0 %v2447
    %2529 = vmatpush.bf16.msra.mxu0 %v2439
    %2530 = vmatpush.bf16.msra.mxu0 %v2431
    %2531 = vmatpush.bf16.msra.mxu0 %v2423
    %2532 = vmatpush.bf16.msra.mxu0 %v2415
    %2533 = vmatpush.bf16.msra.mxu0 %v2407
    %2534 = vmatpush.bf16.msra.mxu0 %v2399
    %2535 = vmatmul.bf16.gmra.mxu0 %v2206
    %v2536 = vpop.f32.mrf.mxu0
    %v2537 = vadd.f32 0.0, %v2536
    %v2538 = vpop.f32.mrf.mxu0
    %2539 = vdwg.mxu0
    %2540 = vmatpush.bf16.msra.mxu0 %v2456
    %2541 = vmatpush.bf16.msra.mxu0 %v2448
    %2542 = vmatpush.bf16.msra.mxu0 %v2440
    %2543 = vmatpush.bf16.msra.mxu0 %v2432
    %2544 = vmatpush.bf16.msra.mxu0 %v2424
    %2545 = vmatpush.bf16.msra.mxu0 %v2416
    %2546 = vmatpush.bf16.msra.mxu0 %v2408
    %2547 = vmatpush.bf16.msra.mxu0 %v2400
    %2548 = vmatmul.bf16.gmra.mxu0 %v2206
    %v2549 = vpop.f32.mrf.mxu0
    %v2550 = vadd.f32 0.0, %v2549
    %v2551 = vpop.f32.mrf.mxu0
    %2552 = vdwg.mxu0
    %2553 = vmatpush.bf16.msra.mxu0 %v2457
    %2554 = vmatpush.bf16.msra.mxu0 %v2449
    %2555 = vmatpush.bf16.msra.mxu0 %v2441
    %2556 = vmatpush.bf16.msra.mxu0 %v2433
    %2557 = vmatpush.bf16.msra.mxu0 %v2425
    %2558 = vmatpush.bf16.msra.mxu0 %v2417
    %2559 = vmatpush.bf16.msra.mxu0 %v2409
    %2560 = vmatpush.bf16.msra.mxu0 %v2401
    %2561 = vmatmul.bf16.gmra.mxu0 %v2206
    %v2562 = vpop.f32.mrf.mxu0
    %v2563 = vadd.f32 0.0, %v2562
    %v2564 = vpop.f32.mrf.mxu0
    %2565 = vdwg.mxu0
    %2566 = vmatpush.bf16.msra.mxu0 %v2458
    %2567 = vmatpush.bf16.msra.mxu0 %v2450
    %2568 = vmatpush.bf16.msra.mxu0 %v2442
    %2569 = vmatpush.bf16.msra.mxu0 %v2434
    %2570 = vmatpush.bf16.msra.mxu0 %v2426
    %2571 = vmatpush.bf16.msra.mxu0 %v2418
    %2572 = vmatpush.bf16.msra.mxu0 %v2410
    %2573 = vmatpush.bf16.msra.mxu0 %v2402
    %2574 = vmatmul.bf16.gmra.mxu0 %v2206
    %v2575 = vpop.f32.mrf.mxu0
    %v2576 = vadd.f32 0.0, %v2575
    %v2577 = vpop.f32.mrf.mxu0
    %2578 = vdwg.mxu0
    %2579 = vmatpush.bf16.msra.mxu0 %v2459
    %2580 = vmatpush.bf16.msra.mxu0 %v2451
    %2581 = vmatpush.bf16.msra.mxu0 %v2443
    %2582 = vmatpush.bf16.msra.mxu0 %v2435
    %2583 = vmatpush.bf16.msra.mxu0 %v2427
    %2584 = vmatpush.bf16.msra.mxu0 %v2419
    %2585 = vmatpush.bf16.msra.mxu0 %v2411
    %2586 = vmatpush.bf16.msra.mxu0 %v2403
    %2587 = vmatmul.bf16.gmra.mxu0 %v2206
    %v2588 = vpop.f32.mrf.mxu0
    %v2589 = vadd.f32 0.0, %v2588
    %v2590 = vpop.f32.mrf.mxu0
    %2591 = vdwg.mxu0
    %2592 = vmatpush.bf16.msra.mxu0 %v2460
    %2593 = vmatpush.bf16.msra.mxu0 %v2452
    %2594 = vmatpush.bf16.msra.mxu0 %v2444
    %2595 = vmatpush.bf16.msra.mxu0 %v2436
    %2596 = vmatpush.bf16.msra.mxu0 %v2428
    %2597 = vmatpush.bf16.msra.mxu0 %v2420
    %2598 = vmatpush.bf16.msra.mxu0 %v2412
    %2599 = vmatpush.bf16.msra.mxu0 %v2404
    %2600 = vmatmul.bf16.gmra.mxu0 %v2206
    %v2601 = vpop.f32.mrf.mxu0
    %v2602 = vadd.f32 0.0, %v2601
    %v2603 = vpop.f32.mrf.mxu0
    %2604 = vdwg.mxu0
    %2605 = vmatpush.bf16.msra.mxu0 %v2461
    %2606 = vmatpush.bf16.msra.mxu0 %v2453
    %2607 = vmatpush.bf16.msra.mxu0 %v2445
    %2608 = vmatpush.bf16.msra.mxu0 %v2437
    %2609 = vmatpush.bf16.msra.mxu0 %v2429
    %2610 = vmatpush.bf16.msra.mxu0 %v2421
    %2611 = vmatpush.bf16.msra.mxu0 %v2413
    %2612 = vmatpush.bf16.msra.mxu0 %v2405
    %2613 = vmatmul.bf16.gmra.mxu0 %v2206
    %v2614 = vpop.f32.mrf.mxu0
    %v2615 = vadd.f32 0.0, %v2614
    %v2616 = vpop.f32.mrf.mxu0
    %2617 = vdwg.mxu0
    %2618 = vmatpush.bf16.msra.mxu0 %v2462
    %2619 = vmatpush.bf16.msra.mxu0 %v2454
    %2620 = vmatpush.bf16.msra.mxu0 %v2446
    %2621 = vmatpush.bf16.msra.mxu0 %v2438
    %2622 = vmatpush.bf16.msra.mxu0 %v2430
    %2623 = vmatpush.bf16.msra.mxu0 %v2422
    %2624 = vmatpush.bf16.msra.mxu0 %v2414
    %2625 = vmatpush.bf16.msra.mxu0 %v2406
    %2626 = vmatmul.bf16.gmra.mxu0 %v2206
    %v2627 = vpop.f32.mrf.mxu0
    %v2628 = vadd.f32 0.0, %v2627
    %v2629 = vpop.f32.mrf.mxu0
    %2630 = vdwg.mxu0
    %v2631 = vld [vmem:[%s6] sm:$0xff]
    %v2632 = vld [vmem:[%s6 + $0x8] sm:$0xff]
    %v2633 = vld [vmem:[%s6 + $0x10] sm:$0xff]
    %v2634 = vld [vmem:[%s6 + $0x18] sm:$0xff]
    %v2635 = vld [vmem:[%s6 + $0x20] sm:$0xff]
    %v2636 = vld [vmem:[%s6 + $0x28] sm:$0xff]
    %v2637 = vld [vmem:[%s6 + $0x30] sm:$0xff]
    %v2638 = vld [vmem:[%s6 + $0x38] sm:$0xff]
    %v2639 = vmul.f32 %v2537, %v2631
    %v2640 = vmul.f32 %v2550, %v2632
    %v2641 = vmul.f32 %v2563, %v2633
    %v2642 = vmul.f32 %v2576, %v2634
    %v2643 = vmul.f32 %v2589, %v2635
    %v2644 = vmul.f32 %v2602, %v2636
    %v2645 = vmul.f32 %v2615, %v2637
    %v2646 = vmul.f32 %v2628, %v2638
    %v2647 = vrot.slane %v2639, 4
    %v2648 = vadd.f32 %v2639, %v2647
    %v2649 = vrot.slane %v2648, 2
    %v2650 = vadd.f32 %v2648, %v2649
    %v2651 = vrot.slane %v2650, 1
    %v2652 = vadd.f32 %v2650, %v2651
    %v2653 = vrot.slane %v2640, 4
    %v2654 = vadd.f32 %v2640, %v2653
    %v2655 = vrot.slane %v2654, 2
    %v2656 = vadd.f32 %v2654, %v2655
    %v2657 = vrot.slane %v2656, 1
    %v2658 = vadd.f32 %v2656, %v2657
    %v2659 = vrot.slane %v2641, 4
    %v2660 = vadd.f32 %v2641, %v2659
    %v2661 = vrot.slane %v2660, 2
    %v2662 = vadd.f32 %v2660, %v2661
    %v2663 = vrot.slane %v2662, 1
    %v2664 = vadd.f32 %v2662, %v2663
    %v2665 = vrot.slane %v2642, 4
    %v2666 = vadd.f32 %v2642, %v2665
    %v2667 = vrot.slane %v2666, 2
    %v2668 = vadd.f32 %v2666, %v2667
    %v2669 = vrot.slane %v2668, 1
    %v2670 = vadd.f32 %v2668, %v2669
    %v2671 = vrot.slane %v2643, 4
    %v2672 = vadd.f32 %v2643, %v2671
    %v2673 = vrot.slane %v2672, 2
    %v2674 = vadd.f32 %v2672, %v2673
    %v2675 = vrot.slane %v2674, 1
    %v2676 = vadd.f32 %v2674, %v2675
    %v2677 = vrot.slane %v2644, 4
    %v2678 = vadd.f32 %v2644, %v2677
    %v2679 = vrot.slane %v2678, 2
    %v2680 = vadd.f32 %v2678, %v2679
    %v2681 = vrot.slane %v2680, 1
    %v2682 = vadd.f32 %v2680, %v2681
    %v2683 = vrot.slane %v2645, 4
    %v2684 = vadd.f32 %v2645, %v2683
    %v2685 = vrot.slane %v2684, 2
    %v2686 = vadd.f32 %v2684, %v2685
    %v2687 = vrot.slane %v2686, 1
    %v2688 = vadd.f32 %v2686, %v2687
    %v2689 = vrot.slane %v2646, 4
    %v2690 = vadd.f32 %v2646, %v2689
    %v2691 = vrot.slane %v2690, 2
    %v2692 = vadd.f32 %v2690, %v2691
    %v2693 = vrot.slane %v2692, 1
    %v2694 = vadd.f32 %v2692, %v2693
    %v2695 = vpack.c.bf16 %v2658, %v2652
    %v2696 = vpack.c.bf16 %v2670, %v2664
    %v2697 = vpack.c.bf16 %v2682, %v2676
    %v2698 = vpack.c.bf16 %v2694, %v2688
    %v2699 = vunpack.c.l.bf16 %v1884
    %v2700 = vunpack.c.h.bf16 %v1884
    %v2701 = vunpack.c.l.bf16 %v1885
    %v2702 = vunpack.c.h.bf16 %v1885
    %v2703 = vunpack.c.l.bf16 %v1886
    %v2704 = vunpack.c.h.bf16 %v1886
    %v2705 = vunpack.c.l.bf16 %v1887
    %v2706 = vunpack.c.h.bf16 %v1887
    %v2707 = vunpack.c.l.bf16 %v1888
    %v2708 = vunpack.c.h.bf16 %v1888
    %v2709 = vunpack.c.l.bf16 %v1889
    %v2710 = vunpack.c.h.bf16 %v1889
    %v2711 = vunpack.c.l.bf16 %v1890
    %v2712 = vunpack.c.h.bf16 %v1890
    %v2713 = vunpack.c.l.bf16 %v1891
    %v2714 = vunpack.c.h.bf16 %v1891
    %v2715 = vunpack.c.l.bf16 %v1892
    %v2716 = vunpack.c.h.bf16 %v1892
    %v2717 = vunpack.c.l.bf16 %v1893
    %v2718 = vunpack.c.h.bf16 %v1893
    %v2719 = vunpack.c.l.bf16 %v1894
    %v2720 = vunpack.c.h.bf16 %v1894
    %v2721 = vunpack.c.l.bf16 %v1895
    %v2722 = vunpack.c.h.bf16 %v1895
    %v2723 = vunpack.c.l.bf16 %v1896
    %v2724 = vunpack.c.h.bf16 %v1896
    %v2725 = vunpack.c.l.bf16 %v1897
    %v2726 = vunpack.c.h.bf16 %v1897
    %v2727 = vunpack.c.l.bf16 %v1898
    %v2728 = vunpack.c.h.bf16 %v1898
    %v2729 = vunpack.c.l.bf16 %v1899
    %v2730 = vunpack.c.h.bf16 %v1899
    %v2731 = vunpack.c.l.bf16 %v1900
    %v2732 = vunpack.c.h.bf16 %v1900
    %v2733 = vunpack.c.l.bf16 %v1901
    %v2734 = vunpack.c.h.bf16 %v1901
    %v2735 = vunpack.c.l.bf16 %v1902
    %v2736 = vunpack.c.h.bf16 %v1902
    %v2737 = vunpack.c.l.bf16 %v1903
    %v2738 = vunpack.c.h.bf16 %v1903
    %v2739 = vunpack.c.l.bf16 %v1904
    %v2740 = vunpack.c.h.bf16 %v1904
    %v2741 = vunpack.c.l.bf16 %v1905
    %v2742 = vunpack.c.h.bf16 %v1905
    %v2743 = vunpack.c.l.bf16 %v1906
    %v2744 = vunpack.c.h.bf16 %v1906
    %v2745 = vunpack.c.l.bf16 %v1907
    %v2746 = vunpack.c.h.bf16 %v1907
    %v2747 = vunpack.c.l.bf16 %v1908
    %v2748 = vunpack.c.h.bf16 %v1908
    %v2749 = vunpack.c.l.bf16 %v1909
    %v2750 = vunpack.c.h.bf16 %v1909
    %v2751 = vunpack.c.l.bf16 %v1910
    %v2752 = vunpack.c.h.bf16 %v1910
    %v2753 = vunpack.c.l.bf16 %v1911
    %v2754 = vunpack.c.h.bf16 %v1911
    %v2755 = vunpack.c.l.bf16 %v1912
    %v2756 = vunpack.c.h.bf16 %v1912
    %v2757 = vunpack.c.l.bf16 %v1913
    %v2758 = vunpack.c.h.bf16 %v1913
    %v2759 = vunpack.c.l.bf16 %v1914
    %v2760 = vunpack.c.h.bf16 %v1914
    %v2761 = vunpack.c.l.bf16 %v1915
    %v2762 = vunpack.c.h.bf16 %v1915
    %v2763 = vunpack.c.l.bf16 %v1916
    %v2764 = vunpack.c.h.bf16 %v1916
    %v2765 = vunpack.c.l.bf16 %v1917
    %v2766 = vunpack.c.h.bf16 %v1917
    %v2767 = vunpack.c.l.bf16 %v1918
    %v2768 = vunpack.c.h.bf16 %v1918
    %v2769 = vunpack.c.l.bf16 %v1919
    %v2770 = vunpack.c.h.bf16 %v1919
    %v2771 = vunpack.c.l.bf16 %v1920
    %v2772 = vunpack.c.h.bf16 %v1920
    %v2773 = vunpack.c.l.bf16 %v1921
    %v2774 = vunpack.c.h.bf16 %v1921
    %v2775 = vunpack.c.l.bf16 %v1922
    %v2776 = vunpack.c.h.bf16 %v1922
    %v2777 = vunpack.c.l.bf16 %v1923
    %v2778 = vunpack.c.h.bf16 %v1923
    %v2779 = vunpack.c.l.bf16 %v1924
    %v2780 = vunpack.c.h.bf16 %v1924
    %v2781 = vunpack.c.l.bf16 %v1925
    %v2782 = vunpack.c.h.bf16 %v1925
    %v2783 = vunpack.c.l.bf16 %v1926
    %v2784 = vunpack.c.h.bf16 %v1926
    %v2785 = vunpack.c.l.bf16 %v1927
    %v2786 = vunpack.c.h.bf16 %v1927
    %v2787 = vunpack.c.l.bf16 %v1928
    %v2788 = vunpack.c.h.bf16 %v1928
    %v2789 = vunpack.c.l.bf16 %v1929
    %v2790 = vunpack.c.h.bf16 %v1929
    %v2791 = vunpack.c.l.bf16 %v1930
    %v2792 = vunpack.c.h.bf16 %v1930
    %v2793 = vunpack.c.l.bf16 %v1931
    %v2794 = vunpack.c.h.bf16 %v1931
    %v2795 = vunpack.c.l.bf16 %v1932
    %v2796 = vunpack.c.h.bf16 %v1932
    %v2797 = vunpack.c.l.bf16 %v1933
    %v2798 = vunpack.c.h.bf16 %v1933
    %v2799 = vunpack.c.l.bf16 %v1934
    %v2800 = vunpack.c.h.bf16 %v1934
    %v2801 = vunpack.c.l.bf16 %v1935
    %v2802 = vunpack.c.h.bf16 %v1935
    %v2803 = vunpack.c.l.bf16 %v1936
    %v2804 = vunpack.c.h.bf16 %v1936
    %v2805 = vunpack.c.l.bf16 %v1937
    %v2806 = vunpack.c.h.bf16 %v1937
    %v2807 = vunpack.c.l.bf16 %v1938
    %v2808 = vunpack.c.h.bf16 %v1938
    %v2809 = vunpack.c.l.bf16 %v1939
    %v2810 = vunpack.c.h.bf16 %v1939
    %v2811 = vunpack.c.l.bf16 %v1940
    %v2812 = vunpack.c.h.bf16 %v1940
    %v2813 = vunpack.c.l.bf16 %v1941
    %v2814 = vunpack.c.h.bf16 %v1941
    %v2815 = vunpack.c.l.bf16 %v1942
    %v2816 = vunpack.c.h.bf16 %v1942
    %v2817 = vunpack.c.l.bf16 %v1943
    %v2818 = vunpack.c.h.bf16 %v1943
    %v2819 = vunpack.c.l.bf16 %v1944
    %v2820 = vunpack.c.h.bf16 %v1944
    %v2821 = vunpack.c.l.bf16 %v1945
    %v2822 = vunpack.c.h.bf16 %v1945
    %v2823 = vunpack.c.l.bf16 %v1946
    %v2824 = vunpack.c.h.bf16 %v1946
    %v2825 = vunpack.c.l.bf16 %v1947
    %v2826 = vunpack.c.h.bf16 %v1947
    %v2827 = vunpack.c.l.bf16 %v2695
    %v2828 = vunpack.c.h.bf16 %v2695
    %v2829 = vunpack.c.l.bf16 %v2696
    %v2830 = vunpack.c.h.bf16 %v2696
    %v2831 = vunpack.c.l.bf16 %v2697
    %v2832 = vunpack.c.h.bf16 %v2697
    %v2833 = vunpack.c.l.bf16 %v2698
    %v2834 = vunpack.c.h.bf16 %v2698
    %v2835 = vmul.f32 %v2699, %v2827
    %v2836 = vmul.f32 %v2700, %v2828
    %v2837 = vmul.f32 %v2701, %v2829
    %v2838 = vmul.f32 %v2702, %v2830
    %v2839 = vmul.f32 %v2703, %v2831
    %v2840 = vmul.f32 %v2704, %v2832
    %v2841 = vmul.f32 %v2705, %v2833
    %v2842 = vmul.f32 %v2706, %v2834
    %v2843 = vmul.f32 %v2707, %v2827
    %v2844 = vmul.f32 %v2708, %v2828
    %v2845 = vmul.f32 %v2709, %v2829
    %v2846 = vmul.f32 %v2710, %v2830
    %v2847 = vmul.f32 %v2711, %v2831
    %v2848 = vmul.f32 %v2712, %v2832
    %v2849 = vmul.f32 %v2713, %v2833
    %v2850 = vmul.f32 %v2714, %v2834
    %v2851 = vmul.f32 %v2715, %v2827
    %v2852 = vmul.f32 %v2716, %v2828
    %v2853 = vmul.f32 %v2717, %v2829
    %v2854 = vmul.f32 %v2718, %v2830
    %v2855 = vmul.f32 %v2719, %v2831
    %v2856 = vmul.f32 %v2720, %v2832
    %v2857 = vmul.f32 %v2721, %v2833
    %v2858 = vmul.f32 %v2722, %v2834
    %v2859 = vmul.f32 %v2723, %v2827
    %v2860 = vmul.f32 %v2724, %v2828
    %v2861 = vmul.f32 %v2725, %v2829
    %v2862 = vmul.f32 %v2726, %v2830
    %v2863 = vmul.f32 %v2727, %v2831
    %v2864 = vmul.f32 %v2728, %v2832
    %v2865 = vmul.f32 %v2729, %v2833
    %v2866 = vmul.f32 %v2730, %v2834
    %v2867 = vmul.f32 %v2731, %v2827
    %v2868 = vmul.f32 %v2732, %v2828
    %v2869 = vmul.f32 %v2733, %v2829
    %v2870 = vmul.f32 %v2734, %v2830
    %v2871 = vmul.f32 %v2735, %v2831
    %v2872 = vmul.f32 %v2736, %v2832
    %v2873 = vmul.f32 %v2737, %v2833
    %v2874 = vmul.f32 %v2738, %v2834
    %v2875 = vmul.f32 %v2739, %v2827
    %v2876 = vmul.f32 %v2740, %v2828
    %v2877 = vmul.f32 %v2741, %v2829
    %v2878 = vmul.f32 %v2742, %v2830
    %v2879 = vmul.f32 %v2743, %v2831
    %v2880 = vmul.f32 %v2744, %v2832
    %v2881 = vmul.f32 %v2745, %v2833
    %v2882 = vmul.f32 %v2746, %v2834
    %v2883 = vmul.f32 %v2747, %v2827
    %v2884 = vmul.f32 %v2748, %v2828
    %v2885 = vmul.f32 %v2749, %v2829
    %v2886 = vmul.f32 %v2750, %v2830
    %v2887 = vmul.f32 %v2751, %v2831
    %v2888 = vmul.f32 %v2752, %v2832
    %v2889 = vmul.f32 %v2753, %v2833
    %v2890 = vmul.f32 %v2754, %v2834
    %v2891 = vmul.f32 %v2755, %v2827
    %v2892 = vmul.f32 %v2756, %v2828
    %v2893 = vmul.f32 %v2757, %v2829
    %v2894 = vmul.f32 %v2758, %v2830
    %v2895 = vmul.f32 %v2759, %v2831
    %v2896 = vmul.f32 %v2760, %v2832
    %v2897 = vmul.f32 %v2761, %v2833
    %v2898 = vmul.f32 %v2762, %v2834
    %v2899 = vmul.f32 %v2763, %v2827
    %v2900 = vmul.f32 %v2764, %v2828
    %v2901 = vmul.f32 %v2765, %v2829
    %v2902 = vmul.f32 %v2766, %v2830
    %v2903 = vmul.f32 %v2767, %v2831
    %v2904 = vmul.f32 %v2768, %v2832
    %v2905 = vmul.f32 %v2769, %v2833
    %v2906 = vmul.f32 %v2770, %v2834
    %v2907 = vmul.f32 %v2771, %v2827
    %v2908 = vmul.f32 %v2772, %v2828
    %v2909 = vmul.f32 %v2773, %v2829
    %v2910 = vmul.f32 %v2774, %v2830
    %v2911 = vmul.f32 %v2775, %v2831
    %v2912 = vmul.f32 %v2776, %v2832
    %v2913 = vmul.f32 %v2777, %v2833
    %v2914 = vmul.f32 %v2778, %v2834
    %v2915 = vmul.f32 %v2779, %v2827
    %v2916 = vmul.f32 %v2780, %v2828
    %v2917 = vmul.f32 %v2781, %v2829
    %v2918 = vmul.f32 %v2782, %v2830
    %v2919 = vmul.f32 %v2783, %v2831
    %v2920 = vmul.f32 %v2784, %v2832
    %v2921 = vmul.f32 %v2785, %v2833
    %v2922 = vmul.f32 %v2786, %v2834
    %v2923 = vmul.f32 %v2787, %v2827
    %v2924 = vmul.f32 %v2788, %v2828
    %v2925 = vmul.f32 %v2789, %v2829
    %v2926 = vmul.f32 %v2790, %v2830
    %v2927 = vmul.f32 %v2791, %v2831
    %v2928 = vmul.f32 %v2792, %v2832
    %v2929 = vmul.f32 %v2793, %v2833
    %v2930 = vmul.f32 %v2794, %v2834
    %v2931 = vmul.f32 %v2795, %v2827
    %v2932 = vmul.f32 %v2796, %v2828
    %v2933 = vmul.f32 %v2797, %v2829
    %v2934 = vmul.f32 %v2798, %v2830
    %v2935 = vmul.f32 %v2799, %v2831
    %v2936 = vmul.f32 %v2800, %v2832
    %v2937 = vmul.f32 %v2801, %v2833
    %v2938 = vmul.f32 %v2802, %v2834
    %v2939 = vmul.f32 %v2803, %v2827
    %v2940 = vmul.f32 %v2804, %v2828
    %v2941 = vmul.f32 %v2805, %v2829
    %v2942 = vmul.f32 %v2806, %v2830
    %v2943 = vmul.f32 %v2807, %v2831
    %v2944 = vmul.f32 %v2808, %v2832
    %v2945 = vmul.f32 %v2809, %v2833
    %v2946 = vmul.f32 %v2810, %v2834
    %v2947 = vmul.f32 %v2811, %v2827
    %v2948 = vmul.f32 %v2812, %v2828
    %v2949 = vmul.f32 %v2813, %v2829
    %v2950 = vmul.f32 %v2814, %v2830
    %v2951 = vmul.f32 %v2815, %v2831
    %v2952 = vmul.f32 %v2816, %v2832
    %v2953 = vmul.f32 %v2817, %v2833
    %v2954 = vmul.f32 %v2818, %v2834
    %v2955 = vmul.f32 %v2819, %v2827
    %v2956 = vmul.f32 %v2820, %v2828
    %v2957 = vmul.f32 %v2821, %v2829
    %v2958 = vmul.f32 %v2822, %v2830
    %v2959 = vmul.f32 %v2823, %v2831
    %v2960 = vmul.f32 %v2824, %v2832
    %v2961 = vmul.f32 %v2825, %v2833
    %v2962 = vmul.f32 %v2826, %v2834
    %v2963 = vpack.c.bf16 %v2836, %v2835
    %v2964 = vpack.c.bf16 %v2838, %v2837
    %v2965 = vpack.c.bf16 %v2840, %v2839
    %v2966 = vpack.c.bf16 %v2842, %v2841
    %v2967 = vpack.c.bf16 %v2844, %v2843
    %v2968 = vpack.c.bf16 %v2846, %v2845
    %v2969 = vpack.c.bf16 %v2848, %v2847
    %v2970 = vpack.c.bf16 %v2850, %v2849
    %v2971 = vpack.c.bf16 %v2852, %v2851
    %v2972 = vpack.c.bf16 %v2854, %v2853
    %v2973 = vpack.c.bf16 %v2856, %v2855
    %v2974 = vpack.c.bf16 %v2858, %v2857
    %v2975 = vpack.c.bf16 %v2860, %v2859
    %v2976 = vpack.c.bf16 %v2862, %v2861
    %v2977 = vpack.c.bf16 %v2864, %v2863
    %v2978 = vpack.c.bf16 %v2866, %v2865
    %v2979 = vpack.c.bf16 %v2868, %v2867
    %v2980 = vpack.c.bf16 %v2870, %v2869
    %v2981 = vpack.c.bf16 %v2872, %v2871
    %v2982 = vpack.c.bf16 %v2874, %v2873
    %v2983 = vpack.c.bf16 %v2876, %v2875
    %v2984 = vpack.c.bf16 %v2878, %v2877
    %v2985 = vpack.c.bf16 %v2880, %v2879
    %v2986 = vpack.c.bf16 %v2882, %v2881
    %v2987 = vpack.c.bf16 %v2884, %v2883
    %v2988 = vpack.c.bf16 %v2886, %v2885
    %v2989 = vpack.c.bf16 %v2888, %v2887
    %v2990 = vpack.c.bf16 %v2890, %v2889
    %v2991 = vpack.c.bf16 %v2892, %v2891
    %v2992 = vpack.c.bf16 %v2894, %v2893
    %v2993 = vpack.c.bf16 %v2896, %v2895
    %v2994 = vpack.c.bf16 %v2898, %v2897
    %v2995 = vpack.c.bf16 %v2900, %v2899
    %v2996 = vpack.c.bf16 %v2902, %v2901
    %v2997 = vpack.c.bf16 %v2904, %v2903
    %v2998 = vpack.c.bf16 %v2906, %v2905
    %v2999 = vpack.c.bf16 %v2908, %v2907
    %v3000 = vpack.c.bf16 %v2910, %v2909
    %v3001 = vpack.c.bf16 %v2912, %v2911
    %v3002 = vpack.c.bf16 %v2914, %v2913
    %v3003 = vpack.c.bf16 %v2916, %v2915
    %v3004 = vpack.c.bf16 %v2918, %v2917
    %v3005 = vpack.c.bf16 %v2920, %v2919
    %v3006 = vpack.c.bf16 %v2922, %v2921
    %v3007 = vpack.c.bf16 %v2924, %v2923
    %v3008 = vpack.c.bf16 %v2926, %v2925
    %v3009 = vpack.c.bf16 %v2928, %v2927
    %v3010 = vpack.c.bf16 %v2930, %v2929
    %v3011 = vpack.c.bf16 %v2932, %v2931
    %v3012 = vpack.c.bf16 %v2934, %v2933
    %v3013 = vpack.c.bf16 %v2936, %v2935
    %v3014 = vpack.c.bf16 %v2938, %v2937
    %v3015 = vpack.c.bf16 %v2940, %v2939
    %v3016 = vpack.c.bf16 %v2942, %v2941
    %v3017 = vpack.c.bf16 %v2944, %v2943
    %v3018 = vpack.c.bf16 %v2946, %v2945
    %v3019 = vpack.c.bf16 %v2948, %v2947
    %v3020 = vpack.c.bf16 %v2950, %v2949
    %v3021 = vpack.c.bf16 %v2952, %v2951
    %v3022 = vpack.c.bf16 %v2954, %v2953
    %v3023 = vpack.c.bf16 %v2956, %v2955
    %v3024 = vpack.c.bf16 %v2958, %v2957
    %v3025 = vpack.c.bf16 %v2960, %v2959
    %v3026 = vpack.c.bf16 %v2962, %v2961
    %3027 = vxpose.xlu0.b32.start [1/16] %v2126, 128
    %3028 = vxpose.xlu0.b32.cont [2/16] %v2128, 128
    %3029 = vxpose.xlu0.b32.cont [3/16] %v2131, 128
    %3030 = vxpose.xlu0.b32.cont [4/16] %v2133, 128
    %3031 = vxpose.xlu0.b32.cont [5/16] %v2136, 128
    %3032 = vxpose.xlu0.b32.cont [6/16] %v2138, 128
    %3033 = vxpose.xlu0.b32.cont [7/16] %v2141, 128
    %3034 = vxpose.xlu0.b32.cont [8/16] %v2143, 128
    %3035 = vxpose.xlu0.b32.cont [9/16] %v2146, 128
    %3036 = vxpose.xlu0.b32.cont [10/16] %v2148, 128
    %3037 = vxpose.xlu0.b32.cont [11/16] %v2151, 128
    %3038 = vxpose.xlu0.b32.cont [12/16] %v2153, 128
    %3039 = vxpose.xlu0.b32.cont [13/16] %v2156, 128
    %3040 = vxpose.xlu0.b32.cont [14/16] %v2158, 128
    %3041 = vxpose.xlu0.b32.cont [15/16] %v2161, 128
    %3042 = vxpose.xlu0.b32.end [16/16] %v2163, 128
    %v3043 = vpop.trf.xlu0
    %v3044 = vpop.trf.xlu0
    %v3045 = vpop.trf.xlu0
    %v3046 = vpop.trf.xlu0
    %v3047 = vpop.trf.xlu0
    %v3048 = vpop.trf.xlu0
    %v3049 = vpop.trf.xlu0
    %v3050 = vpop.trf.xlu0
    %v3051 = vpop.trf.xlu0
    %v3052 = vpop.trf.xlu0
    %v3053 = vpop.trf.xlu0
    %v3054 = vpop.trf.xlu0
    %v3055 = vpop.trf.xlu0
    %v3056 = vpop.trf.xlu0
    %v3057 = vpop.trf.xlu0
    %v3058 = vpop.trf.xlu0
    %3059 = vmax.xlane.f32.xlu0 %v3043
    %v3060 = vpop.xlane.xlu0 %3059
    %v3061 = vsub.f32 %v3043, %v3060
    %v3062 = vmul.f32 %v3061, 1.442695
    %v3063 = vpow.pop %v3062
    %3064 = vadd.xlane.f32.xlu0 %v3063
    %v3065 = vpop.xlane.xlu0 %3064
    %v3066 = vrcp.pop %v3065
    %v3067 = vmul.f32 %v3063, %v3066
    %v3068 = vpack.c.bf16 %v3067, %v3067
    %v3133 = vunpack.c.l.b16 %v1948
    %v3134 = vunpack.c.h.b16 %v1948
    %v3135 = vunpack.c.l.b16 %v1949
    %v3136 = vunpack.c.h.b16 %v1949
    %v3137 = vunpack.c.l.b16 %v1950
    %v3138 = vunpack.c.h.b16 %v1950
    %v3139 = vunpack.c.l.b16 %v1951
    %v3140 = vunpack.c.h.b16 %v1951
    %v3141 = vunpack.c.l.b16 %v1952
    %v3142 = vunpack.c.h.b16 %v1952
    %v3143 = vunpack.c.l.b16 %v1953
    %v3144 = vunpack.c.h.b16 %v1953
    %v3145 = vunpack.c.l.b16 %v1954
    %v3146 = vunpack.c.h.b16 %v1954
    %v3147 = vunpack.c.l.b16 %v1955
    %v3148 = vunpack.c.h.b16 %v1955
    %v3149 = vunpack.c.l.b16 %v1956
    %v3150 = vunpack.c.h.b16 %v1956
    %v3151 = vunpack.c.l.b16 %v1957
    %v3152 = vunpack.c.h.b16 %v1957
    %v3153 = vunpack.c.l.b16 %v1958
    %v3154 = vunpack.c.h.b16 %v1958
    %v3155 = vunpack.c.l.b16 %v1959
    %v3156 = vunpack.c.h.b16 %v1959
    %v3157 = vunpack.c.l.b16 %v1960
    %v3158 = vunpack.c.h.b16 %v1960
    %v3159 = vunpack.c.l.b16 %v1961
    %v3160 = vunpack.c.h.b16 %v1961
    %v3161 = vunpack.c.l.b16 %v1962
    %v3162 = vunpack.c.h.b16 %v1962
    %v3163 = vunpack.c.l.b16 %v1963
    %v3164 = vunpack.c.h.b16 %v1963
    %v3165 = vunpack.c.l.b16 %v1964
    %v3166 = vunpack.c.h.b16 %v1964
    %v3167 = vunpack.c.l.b16 %v1965
    %v3168 = vunpack.c.h.b16 %v1965
    %v3169 = vunpack.c.l.b16 %v1966
    %v3170 = vunpack.c.h.b16 %v1966
    %v3171 = vunpack.c.l.b16 %v1967
    %v3172 = vunpack.c.h.b16 %v1967
    %v3173 = vunpack.c.l.b16 %v1968
    %v3174 = vunpack.c.h.b16 %v1968
    %v3175 = vunpack.c.l.b16 %v1969
    %v3176 = vunpack.c.h.b16 %v1969
    %v3177 = vunpack.c.l.b16 %v1970
    %v3178 = vunpack.c.h.b16 %v1970
    %v3179 = vunpack.c.l.b16 %v1971
    %v3180 = vunpack.c.h.b16 %v1971
    %v3181 = vunpack.c.l.b16 %v1972
    %v3182 = vunpack.c.h.b16 %v1972
    %v3183 = vunpack.c.l.b16 %v1973
    %v3184 = vunpack.c.h.b16 %v1973
    %v3185 = vunpack.c.l.b16 %v1974
    %v3186 = vunpack.c.h.b16 %v1974
    %v3187 = vunpack.c.l.b16 %v1975
    %v3188 = vunpack.c.h.b16 %v1975
    %v3189 = vunpack.c.l.b16 %v1976
    %v3190 = vunpack.c.h.b16 %v1976
    %v3191 = vunpack.c.l.b16 %v1977
    %v3192 = vunpack.c.h.b16 %v1977
    %v3193 = vunpack.c.l.b16 %v1978
    %v3194 = vunpack.c.h.b16 %v1978
    %v3195 = vunpack.c.l.b16 %v1979
    %v3196 = vunpack.c.h.b16 %v1979
    %v3197 = vunpack.c.l.b16 %v1980
    %v3198 = vunpack.c.h.b16 %v1980
    %v3199 = vunpack.c.l.b16 %v1981
    %v3200 = vunpack.c.h.b16 %v1981
    %v3201 = vunpack.c.l.b16 %v1982
    %v3202 = vunpack.c.h.b16 %v1982
    %v3203 = vunpack.c.l.b16 %v1983
    %v3204 = vunpack.c.h.b16 %v1983
    %v3205 = vunpack.c.l.b16 %v1984
    %v3206 = vunpack.c.h.b16 %v1984
    %v3207 = vunpack.c.l.b16 %v1985
    %v3208 = vunpack.c.h.b16 %v1985
    %v3209 = vunpack.c.l.b16 %v1986
    %v3210 = vunpack.c.h.b16 %v1986
    %v3211 = vunpack.c.l.b16 %v1987
    %v3212 = vunpack.c.h.b16 %v1987
    %v3213 = vunpack.c.l.b16 %v1988
    %v3214 = vunpack.c.h.b16 %v1988
    %v3215 = vunpack.c.l.b16 %v1989
    %v3216 = vunpack.c.h.b16 %v1989
    %v3217 = vunpack.c.l.b16 %v1990
    %v3218 = vunpack.c.h.b16 %v1990
    %v3219 = vunpack.c.l.b16 %v1991
    %v3220 = vunpack.c.h.b16 %v1991
    %v3221 = vunpack.c.l.b16 %v1992
    %v3222 = vunpack.c.h.b16 %v1992
    %v3223 = vunpack.c.l.b16 %v1993
    %v3224 = vunpack.c.h.b16 %v1993
    %v3225 = vunpack.c.l.b16 %v1994
    %v3226 = vunpack.c.h.b16 %v1994
    %v3227 = vunpack.c.l.b16 %v1995
    %v3228 = vunpack.c.h.b16 %v1995
    %v3229 = vunpack.c.l.b16 %v1996
    %v3230 = vunpack.c.h.b16 %v1996
    %v3231 = vunpack.c.l.b16 %v1997
    %v3232 = vunpack.c.h.b16 %v1997
    %v3233 = vunpack.c.l.b16 %v1998
    %v3234 = vunpack.c.h.b16 %v1998
    %v3235 = vunpack.c.l.b16 %v1999
    %v3236 = vunpack.c.h.b16 %v1999
    %v3237 = vunpack.c.l.b16 %v2000
    %v3238 = vunpack.c.h.b16 %v2000
    %v3239 = vunpack.c.l.b16 %v2001
    %v3240 = vunpack.c.h.b16 %v2001
    %v3241 = vunpack.c.l.b16 %v2002
    %v3242 = vunpack.c.h.b16 %v2002
    %v3243 = vunpack.c.l.b16 %v2003
    %v3244 = vunpack.c.h.b16 %v2003
    %v3245 = vunpack.c.l.b16 %v2004
    %v3246 = vunpack.c.h.b16 %v2004
    %v3247 = vunpack.c.l.b16 %v2005
    %v3248 = vunpack.c.h.b16 %v2005
    %v3249 = vunpack.c.l.b16 %v2006
    %v3250 = vunpack.c.h.b16 %v2006
    %v3251 = vunpack.c.l.b16 %v2007
    %v3252 = vunpack.c.h.b16 %v2007
    %v3253 = vunpack.c.l.b16 %v2008
    %v3254 = vunpack.c.h.b16 %v2008
    %v3255 = vunpack.c.l.b16 %v2009
    %v3256 = vunpack.c.h.b16 %v2009
    %v3257 = vunpack.c.l.b16 %v2010
    %v3258 = vunpack.c.h.b16 %v2010
    %v3259 = vunpack.c.l.b16 %v2011
    %v3260 = vunpack.c.h.b16 %v2011
    %v3261 = vpack.c.b16 %v3141, %v3133
    %v3262 = vpack.c.b16 %v3142, %v3134
    %v3263 = vpack.c.b16 %v3143, %v3135
    %v3264 = vpack.c.b16 %v3144, %v3136
    %v3265 = vpack.c.b16 %v3145, %v3137
    %v3266 = vpack.c.b16 %v3146, %v3138
    %v3267 = vpack.c.b16 %v3147, %v3139
    %v3268 = vpack.c.b16 %v3148, %v3140
    %v3269 = vpack.c.b16 %v3157, %v3149
    %v3270 = vpack.c.b16 %v3158, %v3150
    %v3271 = vpack.c.b16 %v3159, %v3151
    %v3272 = vpack.c.b16 %v3160, %v3152
    %v3273 = vpack.c.b16 %v3161, %v3153
    %v3274 = vpack.c.b16 %v3162, %v3154
    %v3275 = vpack.c.b16 %v3163, %v3155
    %v3276 = vpack.c.b16 %v3164, %v3156
    %v3277 = vpack.c.b16 %v3173, %v3165
    %v3278 = vpack.c.b16 %v3174, %v3166
    %v3279 = vpack.c.b16 %v3175, %v3167
    %v3280 = vpack.c.b16 %v3176, %v3168
    %v3281 = vpack.c.b16 %v3177, %v3169
    %v3282 = vpack.c.b16 %v3178, %v3170
    %v3283 = vpack.c.b16 %v3179, %v3171
    %v3284 = vpack.c.b16 %v3180, %v3172
    %v3285 = vpack.c.b16 %v3189, %v3181
    %v3286 = vpack.c.b16 %v3190, %v3182
    %v3287 = vpack.c.b16 %v3191, %v3183
    %v3288 = vpack.c.b16 %v3192, %v3184
    %v3289 = vpack.c.b16 %v3193, %v3185
    %v3290 = vpack.c.b16 %v3194, %v3186
    %v3291 = vpack.c.b16 %v3195, %v3187
    %v3292 = vpack.c.b16 %v3196, %v3188
    %v3293 = vpack.c.b16 %v3205, %v3197
    %v3294 = vpack.c.b16 %v3206, %v3198
    %v3295 = vpack.c.b16 %v3207, %v3199
    %v3296 = vpack.c.b16 %v3208, %v3200
    %v3297 = vpack.c.b16 %v3209, %v3201
    %v3298 = vpack.c.b16 %v3210, %v3202
    %v3299 = vpack.c.b16 %v3211, %v3203
    %v3300 = vpack.c.b16 %v3212, %v3204
    %v3301 = vpack.c.b16 %v3221, %v3213
    %v3302 = vpack.c.b16 %v3222, %v3214
    %v3303 = vpack.c.b16 %v3223, %v3215
    %v3304 = vpack.c.b16 %v3224, %v3216
    %v3305 = vpack.c.b16 %v3225, %v3217
    %v3306 = vpack.c.b16 %v3226, %v3218
    %v3307 = vpack.c.b16 %v3227, %v3219
    %v3308 = vpack.c.b16 %v3228, %v3220
    %v3309 = vpack.c.b16 %v3237, %v3229
    %v3310 = vpack.c.b16 %v3238, %v3230
    %v3311 = vpack.c.b16 %v3239, %v3231
    %v3312 = vpack.c.b16 %v3240, %v3232
    %v3313 = vpack.c.b16 %v3241, %v3233
    %v3314 = vpack.c.b16 %v3242, %v3234
    %v3315 = vpack.c.b16 %v3243, %v3235
    %v3316 = vpack.c.b16 %v3244, %v3236
    %v3317 = vpack.c.b16 %v3253, %v3245
    %v3318 = vpack.c.b16 %v3254, %v3246
    %v3319 = vpack.c.b16 %v3255, %v3247
    %v3320 = vpack.c.b16 %v3256, %v3248
    %v3321 = vpack.c.b16 %v3257, %v3249
    %v3322 = vpack.c.b16 %v3258, %v3250
    %v3323 = vpack.c.b16 %v3259, %v3251
    %v3324 = vpack.c.b16 %v3260, %v3252
    %3389 = vmatpush.bf16.msra.mxu0 %v3317
    %3390 = vmatpush.bf16.msra.mxu0 %v3309
    %3391 = vmatpush.bf16.msra.mxu0 %v3301
    %3392 = vmatpush.bf16.msra.mxu0 %v3293
    %3393 = vmatpush.bf16.msra.mxu0 %v3285
    %3394 = vmatpush.bf16.msra.mxu0 %v3277
    %3395 = vmatpush.bf16.msra.mxu0 %v3269
    %3396 = vmatpush.bf16.msra.mxu0 %v3261
    %3397 = vmatmul.bf16.gmra.mxu0 %v3068
    %v3398 = vpop.f32.mrf.mxu0
    %v3399 = vadd.f32 0.0, %v3398
    %v3400 = vpop.f32.mrf.mxu0
    %3401 = vdwg.mxu0
    %3402 = vmatpush.bf16.msra.mxu0 %v3318
    %3403 = vmatpush.bf16.msra.mxu0 %v3310
    %3404 = vmatpush.bf16.msra.mxu0 %v3302
    %3405 = vmatpush.bf16.msra.mxu0 %v3294
    %3406 = vmatpush.bf16.msra.mxu0 %v3286
    %3407 = vmatpush.bf16.msra.mxu0 %v3278
    %3408 = vmatpush.bf16.msra.mxu0 %v3270
    %3409 = vmatpush.bf16.msra.mxu0 %v3262
    %3410 = vmatmul.bf16.gmra.mxu0 %v3068
    %v3411 = vpop.f32.mrf.mxu0
    %v3412 = vadd.f32 0.0, %v3411
    %v3413 = vpop.f32.mrf.mxu0
    %3414 = vdwg.mxu0
    %3415 = vmatpush.bf16.msra.mxu0 %v3319
    %3416 = vmatpush.bf16.msra.mxu0 %v3311
    %3417 = vmatpush.bf16.msra.mxu0 %v3303
    %3418 = vmatpush.bf16.msra.mxu0 %v3295
    %3419 = vmatpush.bf16.msra.mxu0 %v3287
    %3420 = vmatpush.bf16.msra.mxu0 %v3279
    %3421 = vmatpush.bf16.msra.mxu0 %v3271
    %3422 = vmatpush.bf16.msra.mxu0 %v3263
    %3423 = vmatmul.bf16.gmra.mxu0 %v3068
    %v3424 = vpop.f32.mrf.mxu0
    %v3425 = vadd.f32 0.0, %v3424
    %v3426 = vpop.f32.mrf.mxu0
    %3427 = vdwg.mxu0
    %3428 = vmatpush.bf16.msra.mxu0 %v3320
    %3429 = vmatpush.bf16.msra.mxu0 %v3312
    %3430 = vmatpush.bf16.msra.mxu0 %v3304
    %3431 = vmatpush.bf16.msra.mxu0 %v3296
    %3432 = vmatpush.bf16.msra.mxu0 %v3288
    %3433 = vmatpush.bf16.msra.mxu0 %v3280
    %3434 = vmatpush.bf16.msra.mxu0 %v3272
    %3435 = vmatpush.bf16.msra.mxu0 %v3264
    %3436 = vmatmul.bf16.gmra.mxu0 %v3068
    %v3437 = vpop.f32.mrf.mxu0
    %v3438 = vadd.f32 0.0, %v3437
    %v3439 = vpop.f32.mrf.mxu0
    %3440 = vdwg.mxu0
    %3441 = vmatpush.bf16.msra.mxu0 %v3321
    %3442 = vmatpush.bf16.msra.mxu0 %v3313
    %3443 = vmatpush.bf16.msra.mxu0 %v3305
    %3444 = vmatpush.bf16.msra.mxu0 %v3297
    %3445 = vmatpush.bf16.msra.mxu0 %v3289
    %3446 = vmatpush.bf16.msra.mxu0 %v3281
    %3447 = vmatpush.bf16.msra.mxu0 %v3273
    %3448 = vmatpush.bf16.msra.mxu0 %v3265
    %3449 = vmatmul.bf16.gmra.mxu0 %v3068
    %v3450 = vpop.f32.mrf.mxu0
    %v3451 = vadd.f32 0.0, %v3450
    %v3452 = vpop.f32.mrf.mxu0
    %3453 = vdwg.mxu0
    %3454 = vmatpush.bf16.msra.mxu0 %v3322
    %3455 = vmatpush.bf16.msra.mxu0 %v3314
    %3456 = vmatpush.bf16.msra.mxu0 %v3306
    %3457 = vmatpush.bf16.msra.mxu0 %v3298
    %3458 = vmatpush.bf16.msra.mxu0 %v3290
    %3459 = vmatpush.bf16.msra.mxu0 %v3282
    %3460 = vmatpush.bf16.msra.mxu0 %v3274
    %3461 = vmatpush.bf16.msra.mxu0 %v3266
    %3462 = vmatmul.bf16.gmra.mxu0 %v3068
    %v3463 = vpop.f32.mrf.mxu0
    %v3464 = vadd.f32 0.0, %v3463
    %v3465 = vpop.f32.mrf.mxu0
    %3466 = vdwg.mxu0
    %3467 = vmatpush.bf16.msra.mxu0 %v3323
    %3468 = vmatpush.bf16.msra.mxu0 %v3315
    %3469 = vmatpush.bf16.msra.mxu0 %v3307
    %3470 = vmatpush.bf16.msra.mxu0 %v3299
    %3471 = vmatpush.bf16.msra.mxu0 %v3291
    %3472 = vmatpush.bf16.msra.mxu0 %v3283
    %3473 = vmatpush.bf16.msra.mxu0 %v3275
    %3474 = vmatpush.bf16.msra.mxu0 %v3267
    %3475 = vmatmul.bf16.gmra.mxu0 %v3068
    %v3476 = vpop.f32.mrf.mxu0
    %v3477 = vadd.f32 0.0, %v3476
    %v3478 = vpop.f32.mrf.mxu0
    %3479 = vdwg.mxu0
    %3480 = vmatpush.bf16.msra.mxu0 %v3324
    %3481 = vmatpush.bf16.msra.mxu0 %v3316
    %3482 = vmatpush.bf16.msra.mxu0 %v3308
    %3483 = vmatpush.bf16.msra.mxu0 %v3300
    %3484 = vmatpush.bf16.msra.mxu0 %v3292
    %3485 = vmatpush.bf16.msra.mxu0 %v3284
    %3486 = vmatpush.bf16.msra.mxu0 %v3276
    %3487 = vmatpush.bf16.msra.mxu0 %v3268
    %3488 = vmatmul.bf16.gmra.mxu0 %v3068
    %v3489 = vpop.f32.mrf.mxu0
    %v3490 = vadd.f32 0.0, %v3489
    %v3491 = vpop.f32.mrf.mxu0
    %3492 = vdwg.mxu0
    %v3493 = vmul.f32 %v3399, %v2631
    %v3494 = vmul.f32 %v3412, %v2632
    %v3495 = vmul.f32 %v3425, %v2633
    %v3496 = vmul.f32 %v3438, %v2634
    %v3497 = vmul.f32 %v3451, %v2635
    %v3498 = vmul.f32 %v3464, %v2636
    %v3499 = vmul.f32 %v3477, %v2637
    %v3500 = vmul.f32 %v3490, %v2638
    %v3501 = vrot.slane %v3493, 4
    %v3502 = vadd.f32 %v3493, %v3501
    %v3503 = vrot.slane %v3502, 2
    %v3504 = vadd.f32 %v3502, %v3503
    %v3505 = vrot.slane %v3504, 1
    %v3506 = vadd.f32 %v3504, %v3505
    %v3507 = vrot.slane %v3494, 4
    %v3508 = vadd.f32 %v3494, %v3507
    %v3509 = vrot.slane %v3508, 2
    %v3510 = vadd.f32 %v3508, %v3509
    %v3511 = vrot.slane %v3510, 1
    %v3512 = vadd.f32 %v3510, %v3511
    %v3513 = vrot.slane %v3495, 4
    %v3514 = vadd.f32 %v3495, %v3513
    %v3515 = vrot.slane %v3514, 2
    %v3516 = vadd.f32 %v3514, %v3515
    %v3517 = vrot.slane %v3516, 1
    %v3518 = vadd.f32 %v3516, %v3517
    %v3519 = vrot.slane %v3496, 4
    %v3520 = vadd.f32 %v3496, %v3519
    %v3521 = vrot.slane %v3520, 2
    %v3522 = vadd.f32 %v3520, %v3521
    %v3523 = vrot.slane %v3522, 1
    %v3524 = vadd.f32 %v3522, %v3523
    %v3525 = vrot.slane %v3497, 4
    %v3526 = vadd.f32 %v3497, %v3525
    %v3527 = vrot.slane %v3526, 2
    %v3528 = vadd.f32 %v3526, %v3527
    %v3529 = vrot.slane %v3528, 1
    %v3530 = vadd.f32 %v3528, %v3529
    %v3531 = vrot.slane %v3498, 4
    %v3532 = vadd.f32 %v3498, %v3531
    %v3533 = vrot.slane %v3532, 2
    %v3534 = vadd.f32 %v3532, %v3533
    %v3535 = vrot.slane %v3534, 1
    %v3536 = vadd.f32 %v3534, %v3535
    %v3537 = vrot.slane %v3499, 4
    %v3538 = vadd.f32 %v3499, %v3537
    %v3539 = vrot.slane %v3538, 2
    %v3540 = vadd.f32 %v3538, %v3539
    %v3541 = vrot.slane %v3540, 1
    %v3542 = vadd.f32 %v3540, %v3541
    %v3543 = vrot.slane %v3500, 4
    %v3544 = vadd.f32 %v3500, %v3543
    %v3545 = vrot.slane %v3544, 2
    %v3546 = vadd.f32 %v3544, %v3545
    %v3547 = vrot.slane %v3546, 1
    %v3548 = vadd.f32 %v3546, %v3547
    %v3549 = vpack.c.bf16 %v3512, %v3506
    %v3550 = vpack.c.bf16 %v3524, %v3518
    %v3551 = vpack.c.bf16 %v3536, %v3530
    %v3552 = vpack.c.bf16 %v3548, %v3542
    %v3553 = vunpack.c.l.bf16 %v1948
    %v3554 = vunpack.c.h.bf16 %v1948
    %v3555 = vunpack.c.l.bf16 %v1949
    %v3556 = vunpack.c.h.bf16 %v1949
    %v3557 = vunpack.c.l.bf16 %v1950
    %v3558 = vunpack.c.h.bf16 %v1950
    %v3559 = vunpack.c.l.bf16 %v1951
    %v3560 = vunpack.c.h.bf16 %v1951
    %v3561 = vunpack.c.l.bf16 %v1952
    %v3562 = vunpack.c.h.bf16 %v1952
    %v3563 = vunpack.c.l.bf16 %v1953
    %v3564 = vunpack.c.h.bf16 %v1953
    %v3565 = vunpack.c.l.bf16 %v1954
    %v3566 = vunpack.c.h.bf16 %v1954
    %v3567 = vunpack.c.l.bf16 %v1955
    %v3568 = vunpack.c.h.bf16 %v1955
    %v3569 = vunpack.c.l.bf16 %v1956
    %v3570 = vunpack.c.h.bf16 %v1956
    %v3571 = vunpack.c.l.bf16 %v1957
    %v3572 = vunpack.c.h.bf16 %v1957
    %v3573 = vunpack.c.l.bf16 %v1958
    %v3574 = vunpack.c.h.bf16 %v1958
    %v3575 = vunpack.c.l.bf16 %v1959
    %v3576 = vunpack.c.h.bf16 %v1959
    %v3577 = vunpack.c.l.bf16 %v1960
    %v3578 = vunpack.c.h.bf16 %v1960
    %v3579 = vunpack.c.l.bf16 %v1961
    %v3580 = vunpack.c.h.bf16 %v1961
    %v3581 = vunpack.c.l.bf16 %v1962
    %v3582 = vunpack.c.h.bf16 %v1962
    %v3583 = vunpack.c.l.bf16 %v1963
    %v3584 = vunpack.c.h.bf16 %v1963
    %v3585 = vunpack.c.l.bf16 %v1964
    %v3586 = vunpack.c.h.bf16 %v1964
    %v3587 = vunpack.c.l.bf16 %v1965
    %v3588 = vunpack.c.h.bf16 %v1965
    %v3589 = vunpack.c.l.bf16 %v1966
    %v3590 = vunpack.c.h.bf16 %v1966
    %v3591 = vunpack.c.l.bf16 %v1967
    %v3592 = vunpack.c.h.bf16 %v1967
    %v3593 = vunpack.c.l.bf16 %v1968
    %v3594 = vunpack.c.h.bf16 %v1968
    %v3595 = vunpack.c.l.bf16 %v1969
    %v3596 = vunpack.c.h.bf16 %v1969
    %v3597 = vunpack.c.l.bf16 %v1970
    %v3598 = vunpack.c.h.bf16 %v1970
    %v3599 = vunpack.c.l.bf16 %v1971
    %v3600 = vunpack.c.h.bf16 %v1971
    %v3601 = vunpack.c.l.bf16 %v1972
    %v3602 = vunpack.c.h.bf16 %v1972
    %v3603 = vunpack.c.l.bf16 %v1973
    %v3604 = vunpack.c.h.bf16 %v1973
    %v3605 = vunpack.c.l.bf16 %v1974
    %v3606 = vunpack.c.h.bf16 %v1974
    %v3607 = vunpack.c.l.bf16 %v1975
    %v3608 = vunpack.c.h.bf16 %v1975
    %v3609 = vunpack.c.l.bf16 %v1976
    %v3610 = vunpack.c.h.bf16 %v1976
    %v3611 = vunpack.c.l.bf16 %v1977
    %v3612 = vunpack.c.h.bf16 %v1977
    %v3613 = vunpack.c.l.bf16 %v1978
    %v3614 = vunpack.c.h.bf16 %v1978
    %v3615 = vunpack.c.l.bf16 %v1979
    %v3616 = vunpack.c.h.bf16 %v1979
    %v3617 = vunpack.c.l.bf16 %v1980
    %v3618 = vunpack.c.h.bf16 %v1980
    %v3619 = vunpack.c.l.bf16 %v1981
    %v3620 = vunpack.c.h.bf16 %v1981
    %v3621 = vunpack.c.l.bf16 %v1982
    %v3622 = vunpack.c.h.bf16 %v1982
    %v3623 = vunpack.c.l.bf16 %v1983
    %v3624 = vunpack.c.h.bf16 %v1983
    %v3625 = vunpack.c.l.bf16 %v1984
    %v3626 = vunpack.c.h.bf16 %v1984
    %v3627 = vunpack.c.l.bf16 %v1985
    %v3628 = vunpack.c.h.bf16 %v1985
    %v3629 = vunpack.c.l.bf16 %v1986
    %v3630 = vunpack.c.h.bf16 %v1986
    %v3631 = vunpack.c.l.bf16 %v1987
    %v3632 = vunpack.c.h.bf16 %v1987
    %v3633 = vunpack.c.l.bf16 %v1988
    %v3634 = vunpack.c.h.bf16 %v1988
    %v3635 = vunpack.c.l.bf16 %v1989
    %v3636 = vunpack.c.h.bf16 %v1989
    %v3637 = vunpack.c.l.bf16 %v1990
    %v3638 = vunpack.c.h.bf16 %v1990
    %v3639 = vunpack.c.l.bf16 %v1991
    %v3640 = vunpack.c.h.bf16 %v1991
    %v3641 = vunpack.c.l.bf16 %v1992
    %v3642 = vunpack.c.h.bf16 %v1992
    %v3643 = vunpack.c.l.bf16 %v1993
    %v3644 = vunpack.c.h.bf16 %v1993
    %v3645 = vunpack.c.l.bf16 %v1994
    %v3646 = vunpack.c.h.bf16 %v1994
    %v3647 = vunpack.c.l.bf16 %v1995
    %v3648 = vunpack.c.h.bf16 %v1995
    %v3649 = vunpack.c.l.bf16 %v1996
    %v3650 = vunpack.c.h.bf16 %v1996
    %v3651 = vunpack.c.l.bf16 %v1997
    %v3652 = vunpack.c.h.bf16 %v1997
    %v3653 = vunpack.c.l.bf16 %v1998
    %v3654 = vunpack.c.h.bf16 %v1998
    %v3655 = vunpack.c.l.bf16 %v1999
    %v3656 = vunpack.c.h.bf16 %v1999
    %v3657 = vunpack.c.l.bf16 %v2000
    %v3658 = vunpack.c.h.bf16 %v2000
    %v3659 = vunpack.c.l.bf16 %v2001
    %v3660 = vunpack.c.h.bf16 %v2001
    %v3661 = vunpack.c.l.bf16 %v2002
    %v3662 = vunpack.c.h.bf16 %v2002
    %v3663 = vunpack.c.l.bf16 %v2003
    %v3664 = vunpack.c.h.bf16 %v2003
    %v3665 = vunpack.c.l.bf16 %v2004
    %v3666 = vunpack.c.h.bf16 %v2004
    %v3667 = vunpack.c.l.bf16 %v2005
    %v3668 = vunpack.c.h.bf16 %v2005
    %v3669 = vunpack.c.l.bf16 %v2006
    %v3670 = vunpack.c.h.bf16 %v2006
    %v3671 = vunpack.c.l.bf16 %v2007
    %v3672 = vunpack.c.h.bf16 %v2007
    %v3673 = vunpack.c.l.bf16 %v2008
    %v3674 = vunpack.c.h.bf16 %v2008
    %v3675 = vunpack.c.l.bf16 %v2009
    %v3676 = vunpack.c.h.bf16 %v2009
    %v3677 = vunpack.c.l.bf16 %v2010
    %v3678 = vunpack.c.h.bf16 %v2010
    %v3679 = vunpack.c.l.bf16 %v2011
    %v3680 = vunpack.c.h.bf16 %v2011
    %v3681 = vunpack.c.l.bf16 %v3549
    %v3682 = vunpack.c.h.bf16 %v3549
    %v3683 = vunpack.c.l.bf16 %v3550
    %v3684 = vunpack.c.h.bf16 %v3550
    %v3685 = vunpack.c.l.bf16 %v3551
    %v3686 = vunpack.c.h.bf16 %v3551
    %v3687 = vunpack.c.l.bf16 %v3552
    %v3688 = vunpack.c.h.bf16 %v3552
    %v3689 = vmul.f32 %v3553, %v3681
    %v3690 = vmul.f32 %v3554, %v3682
    %v3691 = vmul.f32 %v3555, %v3683
    %v3692 = vmul.f32 %v3556, %v3684
    %v3693 = vmul.f32 %v3557, %v3685
    %v3694 = vmul.f32 %v3558, %v3686
    %v3695 = vmul.f32 %v3559, %v3687
    %v3696 = vmul.f32 %v3560, %v3688
    %v3697 = vmul.f32 %v3561, %v3681
    %v3698 = vmul.f32 %v3562, %v3682
    %v3699 = vmul.f32 %v3563, %v3683
    %v3700 = vmul.f32 %v3564, %v3684
    %v3701 = vmul.f32 %v3565, %v3685
    %v3702 = vmul.f32 %v3566, %v3686
    %v3703 = vmul.f32 %v3567, %v3687
    %v3704 = vmul.f32 %v3568, %v3688
    %v3705 = vmul.f32 %v3569, %v3681
    %v3706 = vmul.f32 %v3570, %v3682
    %v3707 = vmul.f32 %v3571, %v3683
    %v3708 = vmul.f32 %v3572, %v3684
    %v3709 = vmul.f32 %v3573, %v3685
    %v3710 = vmul.f32 %v3574, %v3686
    %v3711 = vmul.f32 %v3575, %v3687
    %v3712 = vmul.f32 %v3576, %v3688
    %v3713 = vmul.f32 %v3577, %v3681
    %v3714 = vmul.f32 %v3578, %v3682
    %v3715 = vmul.f32 %v3579, %v3683
    %v3716 = vmul.f32 %v3580, %v3684
    %v3717 = vmul.f32 %v3581, %v3685
    %v3718 = vmul.f32 %v3582, %v3686
    %v3719 = vmul.f32 %v3583, %v3687
    %v3720 = vmul.f32 %v3584, %v3688
    %v3721 = vmul.f32 %v3585, %v3681
    %v3722 = vmul.f32 %v3586, %v3682
    %v3723 = vmul.f32 %v3587, %v3683
    %v3724 = vmul.f32 %v3588, %v3684
    %v3725 = vmul.f32 %v3589, %v3685
    %v3726 = vmul.f32 %v3590, %v3686
    %v3727 = vmul.f32 %v3591, %v3687
    %v3728 = vmul.f32 %v3592, %v3688
    %v3729 = vmul.f32 %v3593, %v3681
    %v3730 = vmul.f32 %v3594, %v3682
    %v3731 = vmul.f32 %v3595, %v3683
    %v3732 = vmul.f32 %v3596, %v3684
    %v3733 = vmul.f32 %v3597, %v3685
    %v3734 = vmul.f32 %v3598, %v3686
    %v3735 = vmul.f32 %v3599, %v3687
    %v3736 = vmul.f32 %v3600, %v3688
    %v3737 = vmul.f32 %v3601, %v3681
    %v3738 = vmul.f32 %v3602, %v3682
    %v3739 = vmul.f32 %v3603, %v3683
    %v3740 = vmul.f32 %v3604, %v3684
    %v3741 = vmul.f32 %v3605, %v3685
    %v3742 = vmul.f32 %v3606, %v3686
    %v3743 = vmul.f32 %v3607, %v3687
    %v3744 = vmul.f32 %v3608, %v3688
    %v3745 = vmul.f32 %v3609, %v3681
    %v3746 = vmul.f32 %v3610, %v3682
    %v3747 = vmul.f32 %v3611, %v3683
    %v3748 = vmul.f32 %v3612, %v3684
    %v3749 = vmul.f32 %v3613, %v3685
    %v3750 = vmul.f32 %v3614, %v3686
    %v3751 = vmul.f32 %v3615, %v3687
    %v3752 = vmul.f32 %v3616, %v3688
    %v3753 = vmul.f32 %v3617, %v3681
    %v3754 = vmul.f32 %v3618, %v3682
    %v3755 = vmul.f32 %v3619, %v3683
    %v3756 = vmul.f32 %v3620, %v3684
    %v3757 = vmul.f32 %v3621, %v3685
    %v3758 = vmul.f32 %v3622, %v3686
    %v3759 = vmul.f32 %v3623, %v3687
    %v3760 = vmul.f32 %v3624, %v3688
    %v3761 = vmul.f32 %v3625, %v3681
    %v3762 = vmul.f32 %v3626, %v3682
    %v3763 = vmul.f32 %v3627, %v3683
    %v3764 = vmul.f32 %v3628, %v3684
    %v3765 = vmul.f32 %v3629, %v3685
    %v3766 = vmul.f32 %v3630, %v3686
    %v3767 = vmul.f32 %v3631, %v3687
    %v3768 = vmul.f32 %v3632, %v3688
    %v3769 = vmul.f32 %v3633, %v3681
    %v3770 = vmul.f32 %v3634, %v3682
    %v3771 = vmul.f32 %v3635, %v3683
    %v3772 = vmul.f32 %v3636, %v3684
    %v3773 = vmul.f32 %v3637, %v3685
    %v3774 = vmul.f32 %v3638, %v3686
    %v3775 = vmul.f32 %v3639, %v3687
    %v3776 = vmul.f32 %v3640, %v3688
    %v3777 = vmul.f32 %v3641, %v3681
    %v3778 = vmul.f32 %v3642, %v3682
    %v3779 = vmul.f32 %v3643, %v3683
    %v3780 = vmul.f32 %v3644, %v3684
    %v3781 = vmul.f32 %v3645, %v3685
    %v3782 = vmul.f32 %v3646, %v3686
    %v3783 = vmul.f32 %v3647, %v3687
    %v3784 = vmul.f32 %v3648, %v3688
    %v3785 = vmul.f32 %v3649, %v3681
    %v3786 = vmul.f32 %v3650, %v3682
    %v3787 = vmul.f32 %v3651, %v3683
    %v3788 = vmul.f32 %v3652, %v3684
    %v3789 = vmul.f32 %v3653, %v3685
    %v3790 = vmul.f32 %v3654, %v3686
    %v3791 = vmul.f32 %v3655, %v3687
    %v3792 = vmul.f32 %v3656, %v3688
    %v3793 = vmul.f32 %v3657, %v3681
    %v3794 = vmul.f32 %v3658, %v3682
    %v3795 = vmul.f32 %v3659, %v3683
    %v3796 = vmul.f32 %v3660, %v3684
    %v3797 = vmul.f32 %v3661, %v3685
    %v3798 = vmul.f32 %v3662, %v3686
    %v3799 = vmul.f32 %v3663, %v3687
    %v3800 = vmul.f32 %v3664, %v3688
    %v3801 = vmul.f32 %v3665, %v3681
    %v3802 = vmul.f32 %v3666, %v3682
    %v3803 = vmul.f32 %v3667, %v3683
    %v3804 = vmul.f32 %v3668, %v3684
    %v3805 = vmul.f32 %v3669, %v3685
    %v3806 = vmul.f32 %v3670, %v3686
    %v3807 = vmul.f32 %v3671, %v3687
    %v3808 = vmul.f32 %v3672, %v3688
    %v3809 = vmul.f32 %v3673, %v3681
    %v3810 = vmul.f32 %v3674, %v3682
    %v3811 = vmul.f32 %v3675, %v3683
    %v3812 = vmul.f32 %v3676, %v3684
    %v3813 = vmul.f32 %v3677, %v3685
    %v3814 = vmul.f32 %v3678, %v3686
    %v3815 = vmul.f32 %v3679, %v3687
    %v3816 = vmul.f32 %v3680, %v3688
    %v3817 = vpack.c.bf16 %v3690, %v3689
    %v3818 = vpack.c.bf16 %v3692, %v3691
    %v3819 = vpack.c.bf16 %v3694, %v3693
    %v3820 = vpack.c.bf16 %v3696, %v3695
    %v3821 = vpack.c.bf16 %v3698, %v3697
    %v3822 = vpack.c.bf16 %v3700, %v3699
    %v3823 = vpack.c.bf16 %v3702, %v3701
    %v3824 = vpack.c.bf16 %v3704, %v3703
    %v3825 = vpack.c.bf16 %v3706, %v3705
    %v3826 = vpack.c.bf16 %v3708, %v3707
    %v3827 = vpack.c.bf16 %v3710, %v3709
    %v3828 = vpack.c.bf16 %v3712, %v3711
    %v3829 = vpack.c.bf16 %v3714, %v3713
    %v3830 = vpack.c.bf16 %v3716, %v3715
    %v3831 = vpack.c.bf16 %v3718, %v3717
    %v3832 = vpack.c.bf16 %v3720, %v3719
    %v3833 = vpack.c.bf16 %v3722, %v3721
    %v3834 = vpack.c.bf16 %v3724, %v3723
    %v3835 = vpack.c.bf16 %v3726, %v3725
    %v3836 = vpack.c.bf16 %v3728, %v3727
    %v3837 = vpack.c.bf16 %v3730, %v3729
    %v3838 = vpack.c.bf16 %v3732, %v3731
    %v3839 = vpack.c.bf16 %v3734, %v3733
    %v3840 = vpack.c.bf16 %v3736, %v3735
    %v3841 = vpack.c.bf16 %v3738, %v3737
    %v3842 = vpack.c.bf16 %v3740, %v3739
    %v3843 = vpack.c.bf16 %v3742, %v3741
    %v3844 = vpack.c.bf16 %v3744, %v3743
    %v3845 = vpack.c.bf16 %v3746, %v3745
    %v3846 = vpack.c.bf16 %v3748, %v3747
    %v3847 = vpack.c.bf16 %v3750, %v3749
    %v3848 = vpack.c.bf16 %v3752, %v3751
    %v3849 = vpack.c.bf16 %v3754, %v3753
    %v3850 = vpack.c.bf16 %v3756, %v3755
    %v3851 = vpack.c.bf16 %v3758, %v3757
    %v3852 = vpack.c.bf16 %v3760, %v3759
    %v3853 = vpack.c.bf16 %v3762, %v3761
    %v3854 = vpack.c.bf16 %v3764, %v3763
    %v3855 = vpack.c.bf16 %v3766, %v3765
    %v3856 = vpack.c.bf16 %v3768, %v3767
    %v3857 = vpack.c.bf16 %v3770, %v3769
    %v3858 = vpack.c.bf16 %v3772, %v3771
    %v3859 = vpack.c.bf16 %v3774, %v3773
    %v3860 = vpack.c.bf16 %v3776, %v3775
    %v3861 = vpack.c.bf16 %v3778, %v3777
    %v3862 = vpack.c.bf16 %v3780, %v3779
    %v3863 = vpack.c.bf16 %v3782, %v3781
    %v3864 = vpack.c.bf16 %v3784, %v3783
    %v3865 = vpack.c.bf16 %v3786, %v3785
    %v3866 = vpack.c.bf16 %v3788, %v3787
    %v3867 = vpack.c.bf16 %v3790, %v3789
    %v3868 = vpack.c.bf16 %v3792, %v3791
    %v3869 = vpack.c.bf16 %v3794, %v3793
    %v3870 = vpack.c.bf16 %v3796, %v3795
    %v3871 = vpack.c.bf16 %v3798, %v3797
    %v3872 = vpack.c.bf16 %v3800, %v3799
    %v3873 = vpack.c.bf16 %v3802, %v3801
    %v3874 = vpack.c.bf16 %v3804, %v3803
    %v3875 = vpack.c.bf16 %v3806, %v3805
    %v3876 = vpack.c.bf16 %v3808, %v3807
    %v3877 = vpack.c.bf16 %v3810, %v3809
    %v3878 = vpack.c.bf16 %v3812, %v3811
    %v3879 = vpack.c.bf16 %v3814, %v3813
    %v3880 = vpack.c.bf16 %v3816, %v3815
    %v3945 = vunpack.c.l.b16 %v2963
    %v3946 = vunpack.c.h.b16 %v2963
    %v3947 = vunpack.c.l.b16 %v2964
    %v3948 = vunpack.c.h.b16 %v2964
    %v3949 = vunpack.c.l.b16 %v2965
    %v3950 = vunpack.c.h.b16 %v2965
    %v3951 = vunpack.c.l.b16 %v2966
    %v3952 = vunpack.c.h.b16 %v2966
    %v3953 = vunpack.c.l.b16 %v2967
    %v3954 = vunpack.c.h.b16 %v2967
    %v3955 = vunpack.c.l.b16 %v2968
    %v3956 = vunpack.c.h.b16 %v2968
    %v3957 = vunpack.c.l.b16 %v2969
    %v3958 = vunpack.c.h.b16 %v2969
    %v3959 = vunpack.c.l.b16 %v2970
    %v3960 = vunpack.c.h.b16 %v2970
    %v3961 = vunpack.c.l.b16 %v2971
    %v3962 = vunpack.c.h.b16 %v2971
    %v3963 = vunpack.c.l.b16 %v2972
    %v3964 = vunpack.c.h.b16 %v2972
    %v3965 = vunpack.c.l.b16 %v2973
    %v3966 = vunpack.c.h.b16 %v2973
    %v3967 = vunpack.c.l.b16 %v2974
    %v3968 = vunpack.c.h.b16 %v2974
    %v3969 = vunpack.c.l.b16 %v2975
    %v3970 = vunpack.c.h.b16 %v2975
    %v3971 = vunpack.c.l.b16 %v2976
    %v3972 = vunpack.c.h.b16 %v2976
    %v3973 = vunpack.c.l.b16 %v2977
    %v3974 = vunpack.c.h.b16 %v2977
    %v3975 = vunpack.c.l.b16 %v2978
    %v3976 = vunpack.c.h.b16 %v2978
    %v3977 = vunpack.c.l.b16 %v2979
    %v3978 = vunpack.c.h.b16 %v2979
    %v3979 = vunpack.c.l.b16 %v2980
    %v3980 = vunpack.c.h.b16 %v2980
    %v3981 = vunpack.c.l.b16 %v2981
    %v3982 = vunpack.c.h.b16 %v2981
    %v3983 = vunpack.c.l.b16 %v2982
    %v3984 = vunpack.c.h.b16 %v2982
    %v3985 = vunpack.c.l.b16 %v2983
    %v3986 = vunpack.c.h.b16 %v2983
    %v3987 = vunpack.c.l.b16 %v2984
    %v3988 = vunpack.c.h.b16 %v2984
    %v3989 = vunpack.c.l.b16 %v2985
    %v3990 = vunpack.c.h.b16 %v2985
    %v3991 = vunpack.c.l.b16 %v2986
    %v3992 = vunpack.c.h.b16 %v2986
    %v3993 = vunpack.c.l.b16 %v2987
    %v3994 = vunpack.c.h.b16 %v2987
    %v3995 = vunpack.c.l.b16 %v2988
    %v3996 = vunpack.c.h.b16 %v2988
    %v3997 = vunpack.c.l.b16 %v2989
    %v3998 = vunpack.c.h.b16 %v2989
    %v3999 = vunpack.c.l.b16 %v2990
    %v4000 = vunpack.c.h.b16 %v2990
    %v4001 = vunpack.c.l.b16 %v2991
    %v4002 = vunpack.c.h.b16 %v2991
    %v4003 = vunpack.c.l.b16 %v2992
    %v4004 = vunpack.c.h.b16 %v2992
    %v4005 = vunpack.c.l.b16 %v2993
    %v4006 = vunpack.c.h.b16 %v2993
    %v4007 = vunpack.c.l.b16 %v2994
    %v4008 = vunpack.c.h.b16 %v2994
    %v4009 = vunpack.c.l.b16 %v2995
    %v4010 = vunpack.c.h.b16 %v2995
    %v4011 = vunpack.c.l.b16 %v2996
    %v4012 = vunpack.c.h.b16 %v2996
    %v4013 = vunpack.c.l.b16 %v2997
    %v4014 = vunpack.c.h.b16 %v2997
    %v4015 = vunpack.c.l.b16 %v2998
    %v4016 = vunpack.c.h.b16 %v2998
    %v4017 = vunpack.c.l.b16 %v2999
    %v4018 = vunpack.c.h.b16 %v2999
    %v4019 = vunpack.c.l.b16 %v3000
    %v4020 = vunpack.c.h.b16 %v3000
    %v4021 = vunpack.c.l.b16 %v3001
    %v4022 = vunpack.c.h.b16 %v3001
    %v4023 = vunpack.c.l.b16 %v3002
    %v4024 = vunpack.c.h.b16 %v3002
    %v4025 = vunpack.c.l.b16 %v3003
    %v4026 = vunpack.c.h.b16 %v3003
    %v4027 = vunpack.c.l.b16 %v3004
    %v4028 = vunpack.c.h.b16 %v3004
    %v4029 = vunpack.c.l.b16 %v3005
    %v4030 = vunpack.c.h.b16 %v3005
    %v4031 = vunpack.c.l.b16 %v3006
    %v4032 = vunpack.c.h.b16 %v3006
    %v4033 = vunpack.c.l.b16 %v3007
    %v4034 = vunpack.c.h.b16 %v3007
    %v4035 = vunpack.c.l.b16 %v3008
    %v4036 = vunpack.c.h.b16 %v3008
    %v4037 = vunpack.c.l.b16 %v3009
    %v4038 = vunpack.c.h.b16 %v3009
    %v4039 = vunpack.c.l.b16 %v3010
    %v4040 = vunpack.c.h.b16 %v3010
    %v4041 = vunpack.c.l.b16 %v3011
    %v4042 = vunpack.c.h.b16 %v3011
    %v4043 = vunpack.c.l.b16 %v3012
    %v4044 = vunpack.c.h.b16 %v3012
    %v4045 = vunpack.c.l.b16 %v3013
    %v4046 = vunpack.c.h.b16 %v3013
    %v4047 = vunpack.c.l.b16 %v3014
    %v4048 = vunpack.c.h.b16 %v3014
    %v4049 = vunpack.c.l.b16 %v3015
    %v4050 = vunpack.c.h.b16 %v3015
    %v4051 = vunpack.c.l.b16 %v3016
    %v4052 = vunpack.c.h.b16 %v3016
    %v4053 = vunpack.c.l.b16 %v3017
    %v4054 = vunpack.c.h.b16 %v3017
    %v4055 = vunpack.c.l.b16 %v3018
    %v4056 = vunpack.c.h.b16 %v3018
    %v4057 = vunpack.c.l.b16 %v3019
    %v4058 = vunpack.c.h.b16 %v3019
    %v4059 = vunpack.c.l.b16 %v3020
    %v4060 = vunpack.c.h.b16 %v3020
    %v4061 = vunpack.c.l.b16 %v3021
    %v4062 = vunpack.c.h.b16 %v3021
    %v4063 = vunpack.c.l.b16 %v3022
    %v4064 = vunpack.c.h.b16 %v3022
    %v4065 = vunpack.c.l.b16 %v3023
    %v4066 = vunpack.c.h.b16 %v3023
    %v4067 = vunpack.c.l.b16 %v3024
    %v4068 = vunpack.c.h.b16 %v3024
    %v4069 = vunpack.c.l.b16 %v3025
    %v4070 = vunpack.c.h.b16 %v3025
    %v4071 = vunpack.c.l.b16 %v3026
    %v4072 = vunpack.c.h.b16 %v3026
    %v4073 = vpack.c.b16 %v3953, %v3945
    %v4074 = vpack.c.b16 %v3954, %v3946
    %v4075 = vpack.c.b16 %v3955, %v3947
    %v4076 = vpack.c.b16 %v3956, %v3948
    %v4077 = vpack.c.b16 %v3957, %v3949
    %v4078 = vpack.c.b16 %v3958, %v3950
    %v4079 = vpack.c.b16 %v3959, %v3951
    %v4080 = vpack.c.b16 %v3960, %v3952
    %v4081 = vpack.c.b16 %v3969, %v3961
    %v4082 = vpack.c.b16 %v3970, %v3962
    %v4083 = vpack.c.b16 %v3971, %v3963
    %v4084 = vpack.c.b16 %v3972, %v3964
    %v4085 = vpack.c.b16 %v3973, %v3965
    %v4086 = vpack.c.b16 %v3974, %v3966
    %v4087 = vpack.c.b16 %v3975, %v3967
    %v4088 = vpack.c.b16 %v3976, %v3968
    %v4089 = vpack.c.b16 %v3985, %v3977
    %v4090 = vpack.c.b16 %v3986, %v3978
    %v4091 = vpack.c.b16 %v3987, %v3979
    %v4092 = vpack.c.b16 %v3988, %v3980
    %v4093 = vpack.c.b16 %v3989, %v3981
    %v4094 = vpack.c.b16 %v3990, %v3982
    %v4095 = vpack.c.b16 %v3991, %v3983
    %v4096 = vpack.c.b16 %v3992, %v3984
    %v4097 = vpack.c.b16 %v4001, %v3993
    %v4098 = vpack.c.b16 %v4002, %v3994
    %v4099 = vpack.c.b16 %v4003, %v3995
    %v4100 = vpack.c.b16 %v4004, %v3996
    %v4101 = vpack.c.b16 %v4005, %v3997
    %v4102 = vpack.c.b16 %v4006, %v3998
    %v4103 = vpack.c.b16 %v4007, %v3999
    %v4104 = vpack.c.b16 %v4008, %v4000
    %v4105 = vpack.c.b16 %v4017, %v4009
    %v4106 = vpack.c.b16 %v4018, %v4010
    %v4107 = vpack.c.b16 %v4019, %v4011
    %v4108 = vpack.c.b16 %v4020, %v4012
    %v4109 = vpack.c.b16 %v4021, %v4013
    %v4110 = vpack.c.b16 %v4022, %v4014
    %v4111 = vpack.c.b16 %v4023, %v4015
    %v4112 = vpack.c.b16 %v4024, %v4016
    %v4113 = vpack.c.b16 %v4033, %v4025
    %v4114 = vpack.c.b16 %v4034, %v4026
    %v4115 = vpack.c.b16 %v4035, %v4027
    %v4116 = vpack.c.b16 %v4036, %v4028
    %v4117 = vpack.c.b16 %v4037, %v4029
    %v4118 = vpack.c.b16 %v4038, %v4030
    %v4119 = vpack.c.b16 %v4039, %v4031
    %v4120 = vpack.c.b16 %v4040, %v4032
    %v4121 = vpack.c.b16 %v4049, %v4041
    %v4122 = vpack.c.b16 %v4050, %v4042
    %v4123 = vpack.c.b16 %v4051, %v4043
    %v4124 = vpack.c.b16 %v4052, %v4044
    %v4125 = vpack.c.b16 %v4053, %v4045
    %v4126 = vpack.c.b16 %v4054, %v4046
    %v4127 = vpack.c.b16 %v4055, %v4047
    %v4128 = vpack.c.b16 %v4056, %v4048
    %v4129 = vpack.c.b16 %v4065, %v4057
    %v4130 = vpack.c.b16 %v4066, %v4058
    %v4131 = vpack.c.b16 %v4067, %v4059
    %v4132 = vpack.c.b16 %v4068, %v4060
    %v4133 = vpack.c.b16 %v4069, %v4061
    %v4134 = vpack.c.b16 %v4070, %v4062
    %v4135 = vpack.c.b16 %v4071, %v4063
    %v4136 = vpack.c.b16 %v4072, %v4064
    %v4265 = vunpack.c.l.b16 %v3817
    %v4266 = vunpack.c.h.b16 %v3817
    %v4267 = vunpack.c.l.b16 %v3818
    %v4268 = vunpack.c.h.b16 %v3818
    %v4269 = vunpack.c.l.b16 %v3819
    %v4270 = vunpack.c.h.b16 %v3819
    %v4271 = vunpack.c.l.b16 %v3820
    %v4272 = vunpack.c.h.b16 %v3820
    %v4273 = vunpack.c.l.b16 %v3821
    %v4274 = vunpack.c.h.b16 %v3821
    %v4275 = vunpack.c.l.b16 %v3822
    %v4276 = vunpack.c.h.b16 %v3822
    %v4277 = vunpack.c.l.b16 %v3823
    %v4278 = vunpack.c.h.b16 %v3823
    %v4279 = vunpack.c.l.b16 %v3824
    %v4280 = vunpack.c.h.b16 %v3824
    %v4281 = vunpack.c.l.b16 %v3825
    %v4282 = vunpack.c.h.b16 %v3825
    %v4283 = vunpack.c.l.b16 %v3826
    %v4284 = vunpack.c.h.b16 %v3826
    %v4285 = vunpack.c.l.b16 %v3827
    %v4286 = vunpack.c.h.b16 %v3827
    %v4287 = vunpack.c.l.b16 %v3828
    %v4288 = vunpack.c.h.b16 %v3828
    %v4289 = vunpack.c.l.b16 %v3829
    %v4290 = vunpack.c.h.b16 %v3829
    %v4291 = vunpack.c.l.b16 %v3830
    %v4292 = vunpack.c.h.b16 %v3830
    %v4293 = vunpack.c.l.b16 %v3831
    %v4294 = vunpack.c.h.b16 %v3831
    %v4295 = vunpack.c.l.b16 %v3832
    %v4296 = vunpack.c.h.b16 %v3832
    %v4297 = vunpack.c.l.b16 %v3833
    %v4298 = vunpack.c.h.b16 %v3833
    %v4299 = vunpack.c.l.b16 %v3834
    %v4300 = vunpack.c.h.b16 %v3834
    %v4301 = vunpack.c.l.b16 %v3835
    %v4302 = vunpack.c.h.b16 %v3835
    %v4303 = vunpack.c.l.b16 %v3836
    %v4304 = vunpack.c.h.b16 %v3836
    %v4305 = vunpack.c.l.b16 %v3837
    %v4306 = vunpack.c.h.b16 %v3837
    %v4307 = vunpack.c.l.b16 %v3838
    %v4308 = vunpack.c.h.b16 %v3838
    %v4309 = vunpack.c.l.b16 %v3839
    %v4310 = vunpack.c.h.b16 %v3839
    %v4311 = vunpack.c.l.b16 %v3840
    %v4312 = vunpack.c.h.b16 %v3840
    %v4313 = vunpack.c.l.b16 %v3841
    %v4314 = vunpack.c.h.b16 %v3841
    %v4315 = vunpack.c.l.b16 %v3842
    %v4316 = vunpack.c.h.b16 %v3842
    %v4317 = vunpack.c.l.b16 %v3843
    %v4318 = vunpack.c.h.b16 %v3843
    %v4319 = vunpack.c.l.b16 %v3844
    %v4320 = vunpack.c.h.b16 %v3844
    %v4321 = vunpack.c.l.b16 %v3845
    %v4322 = vunpack.c.h.b16 %v3845
    %v4323 = vunpack.c.l.b16 %v3846
    %v4324 = vunpack.c.h.b16 %v3846
    %v4325 = vunpack.c.l.b16 %v3847
    %v4326 = vunpack.c.h.b16 %v3847
    %v4327 = vunpack.c.l.b16 %v3848
    %v4328 = vunpack.c.h.b16 %v3848
    %v4329 = vunpack.c.l.b16 %v3849
    %v4330 = vunpack.c.h.b16 %v3849
    %v4331 = vunpack.c.l.b16 %v3850
    %v4332 = vunpack.c.h.b16 %v3850
    %v4333 = vunpack.c.l.b16 %v3851
    %v4334 = vunpack.c.h.b16 %v3851
    %v4335 = vunpack.c.l.b16 %v3852
    %v4336 = vunpack.c.h.b16 %v3852
    %v4337 = vunpack.c.l.b16 %v3853
    %v4338 = vunpack.c.h.b16 %v3853
    %v4339 = vunpack.c.l.b16 %v3854
    %v4340 = vunpack.c.h.b16 %v3854
    %v4341 = vunpack.c.l.b16 %v3855
    %v4342 = vunpack.c.h.b16 %v3855
    %v4343 = vunpack.c.l.b16 %v3856
    %v4344 = vunpack.c.h.b16 %v3856
    %v4345 = vunpack.c.l.b16 %v3857
    %v4346 = vunpack.c.h.b16 %v3857
    %v4347 = vunpack.c.l.b16 %v3858
    %v4348 = vunpack.c.h.b16 %v3858
    %v4349 = vunpack.c.l.b16 %v3859
    %v4350 = vunpack.c.h.b16 %v3859
    %v4351 = vunpack.c.l.b16 %v3860
    %v4352 = vunpack.c.h.b16 %v3860
    %v4353 = vunpack.c.l.b16 %v3861
    %v4354 = vunpack.c.h.b16 %v3861
    %v4355 = vunpack.c.l.b16 %v3862
    %v4356 = vunpack.c.h.b16 %v3862
    %v4357 = vunpack.c.l.b16 %v3863
    %v4358 = vunpack.c.h.b16 %v3863
    %v4359 = vunpack.c.l.b16 %v3864
    %v4360 = vunpack.c.h.b16 %v3864
    %v4361 = vunpack.c.l.b16 %v3865
    %v4362 = vunpack.c.h.b16 %v3865
    %v4363 = vunpack.c.l.b16 %v3866
    %v4364 = vunpack.c.h.b16 %v3866
    %v4365 = vunpack.c.l.b16 %v3867
    %v4366 = vunpack.c.h.b16 %v3867
    %v4367 = vunpack.c.l.b16 %v3868
    %v4368 = vunpack.c.h.b16 %v3868
    %v4369 = vunpack.c.l.b16 %v3869
    %v4370 = vunpack.c.h.b16 %v3869
    %v4371 = vunpack.c.l.b16 %v3870
    %v4372 = vunpack.c.h.b16 %v3870
    %v4373 = vunpack.c.l.b16 %v3871
    %v4374 = vunpack.c.h.b16 %v3871
    %v4375 = vunpack.c.l.b16 %v3872
    %v4376 = vunpack.c.h.b16 %v3872
    %v4377 = vunpack.c.l.b16 %v3873
    %v4378 = vunpack.c.h.b16 %v3873
    %v4379 = vunpack.c.l.b16 %v3874
    %v4380 = vunpack.c.h.b16 %v3874
    %v4381 = vunpack.c.l.b16 %v3875
    %v4382 = vunpack.c.h.b16 %v3875
    %v4383 = vunpack.c.l.b16 %v3876
    %v4384 = vunpack.c.h.b16 %v3876
    %v4385 = vunpack.c.l.b16 %v3877
    %v4386 = vunpack.c.h.b16 %v3877
    %v4387 = vunpack.c.l.b16 %v3878
    %v4388 = vunpack.c.h.b16 %v3878
    %v4389 = vunpack.c.l.b16 %v3879
    %v4390 = vunpack.c.h.b16 %v3879
    %v4391 = vunpack.c.l.b16 %v3880
    %v4392 = vunpack.c.h.b16 %v3880
    %v4393 = vpack.c.b16 %v4273, %v4265
    %v4394 = vpack.c.b16 %v4274, %v4266
    %v4395 = vpack.c.b16 %v4275, %v4267
    %v4396 = vpack.c.b16 %v4276, %v4268
    %v4397 = vpack.c.b16 %v4277, %v4269
    %v4398 = vpack.c.b16 %v4278, %v4270
    %v4399 = vpack.c.b16 %v4279, %v4271
    %v4400 = vpack.c.b16 %v4280, %v4272
    %v4401 = vpack.c.b16 %v4289, %v4281
    %v4402 = vpack.c.b16 %v4290, %v4282
    %v4403 = vpack.c.b16 %v4291, %v4283
    %v4404 = vpack.c.b16 %v4292, %v4284
    %v4405 = vpack.c.b16 %v4293, %v4285
    %v4406 = vpack.c.b16 %v4294, %v4286
    %v4407 = vpack.c.b16 %v4295, %v4287
    %v4408 = vpack.c.b16 %v4296, %v4288
    %v4409 = vpack.c.b16 %v4305, %v4297
    %v4410 = vpack.c.b16 %v4306, %v4298
    %v4411 = vpack.c.b16 %v4307, %v4299
    %v4412 = vpack.c.b16 %v4308, %v4300
    %v4413 = vpack.c.b16 %v4309, %v4301
    %v4414 = vpack.c.b16 %v4310, %v4302
    %v4415 = vpack.c.b16 %v4311, %v4303
    %v4416 = vpack.c.b16 %v4312, %v4304
    %v4417 = vpack.c.b16 %v4321, %v4313
    %v4418 = vpack.c.b16 %v4322, %v4314
    %v4419 = vpack.c.b16 %v4323, %v4315
    %v4420 = vpack.c.b16 %v4324, %v4316
    %v4421 = vpack.c.b16 %v4325, %v4317
    %v4422 = vpack.c.b16 %v4326, %v4318
    %v4423 = vpack.c.b16 %v4327, %v4319
    %v4424 = vpack.c.b16 %v4328, %v4320
    %v4425 = vpack.c.b16 %v4337, %v4329
    %v4426 = vpack.c.b16 %v4338, %v4330
    %v4427 = vpack.c.b16 %v4339, %v4331
    %v4428 = vpack.c.b16 %v4340, %v4332
    %v4429 = vpack.c.b16 %v4341, %v4333
    %v4430 = vpack.c.b16 %v4342, %v4334
    %v4431 = vpack.c.b16 %v4343, %v4335
    %v4432 = vpack.c.b16 %v4344, %v4336
    %v4433 = vpack.c.b16 %v4353, %v4345
    %v4434 = vpack.c.b16 %v4354, %v4346
    %v4435 = vpack.c.b16 %v4355, %v4347
    %v4436 = vpack.c.b16 %v4356, %v4348
    %v4437 = vpack.c.b16 %v4357, %v4349
    %v4438 = vpack.c.b16 %v4358, %v4350
    %v4439 = vpack.c.b16 %v4359, %v4351
    %v4440 = vpack.c.b16 %v4360, %v4352
    %v4441 = vpack.c.b16 %v4369, %v4361
    %v4442 = vpack.c.b16 %v4370, %v4362
    %v4443 = vpack.c.b16 %v4371, %v4363
    %v4444 = vpack.c.b16 %v4372, %v4364
    %v4445 = vpack.c.b16 %v4373, %v4365
    %v4446 = vpack.c.b16 %v4374, %v4366
    %v4447 = vpack.c.b16 %v4375, %v4367
    %v4448 = vpack.c.b16 %v4376, %v4368
    %v4449 = vpack.c.b16 %v4385, %v4377
    %v4450 = vpack.c.b16 %v4386, %v4378
    %v4451 = vpack.c.b16 %v4387, %v4379
    %v4452 = vpack.c.b16 %v4388, %v4380
    %v4453 = vpack.c.b16 %v4389, %v4381
    %v4454 = vpack.c.b16 %v4390, %v4382
    %v4455 = vpack.c.b16 %v4391, %v4383
    %v4456 = vpack.c.b16 %v4392, %v4384
    %v4521 = vld [vmem:[#allocation5] sm:$0xf]
    %v4522 = vld [vmem:[#allocation5 + $0x4] sm:$0xf]
    %v4523 = vld [vmem:[#allocation5 + $0x8] sm:$0xf]
    %v4524 = vld [vmem:[#allocation5 + $0xc] sm:$0xf]
    %v4525 = vld [vmem:[#allocation5 + $0x10] sm:$0xf]
    %v4526 = vld [vmem:[#allocation5 + $0x14] sm:$0xf]
    %v4527 = vld [vmem:[#allocation5 + $0x18] sm:$0xf]
    %v4528 = vld [vmem:[#allocation5 + $0x1c] sm:$0xf]
    %v4529 = vld [vmem:[#allocation5 + $0x20] sm:$0xf]
    %v4530 = vld [vmem:[#allocation5 + $0x24] sm:$0xf]
    %v4531 = vld [vmem:[#allocation5 + $0x28] sm:$0xf]
    %v4532 = vld [vmem:[#allocation5 + $0x2c] sm:$0xf]
    %v4533 = vld [vmem:[#allocation5 + $0x30] sm:$0xf]
    %v4534 = vld [vmem:[#allocation5 + $0x34] sm:$0xf]
    %v4535 = vld [vmem:[#allocation5 + $0x38] sm:$0xf]
    %v4536 = vld [vmem:[#allocation5 + $0x3c] sm:$0xf]
    %v4537 = vld [vmem:[#allocation5 + $0x40] sm:$0xf]
    %v4538 = vld [vmem:[#allocation5 + $0x44] sm:$0xf]
    %v4539 = vld [vmem:[#allocation5 + $0x48] sm:$0xf]
    %v4540 = vld [vmem:[#allocation5 + $0x4c] sm:$0xf]
    %v4541 = vld [vmem:[#allocation5 + $0x50] sm:$0xf]
    %v4542 = vld [vmem:[#allocation5 + $0x54] sm:$0xf]
    %v4543 = vld [vmem:[#allocation5 + $0x58] sm:$0xf]
    %v4544 = vld [vmem:[#allocation5 + $0x5c] sm:$0xf]
    %v4545 = vld [vmem:[#allocation5 + $0x60] sm:$0xf]
    %v4546 = vld [vmem:[#allocation5 + $0x64] sm:$0xf]
    %v4547 = vld [vmem:[#allocation5 + $0x68] sm:$0xf]
    %v4548 = vld [vmem:[#allocation5 + $0x6c] sm:$0xf]
    %v4549 = vld [vmem:[#allocation5 + $0x70] sm:$0xf]
    %v4550 = vld [vmem:[#allocation5 + $0x74] sm:$0xf]
    %v4551 = vld [vmem:[#allocation5 + $0x78] sm:$0xf]
    %v4552 = vld [vmem:[#allocation5 + $0x7c] sm:$0xf]
    %v4553 = vld [vmem:[#allocation5 + $0x80] sm:$0xf]
    %v4554 = vld [vmem:[#allocation5 + $0x84] sm:$0xf]
    %v4555 = vld [vmem:[#allocation5 + $0x88] sm:$0xf]
    %v4556 = vld [vmem:[#allocation5 + $0x8c] sm:$0xf]
    %v4557 = vld [vmem:[#allocation5 + $0x90] sm:$0xf]
    %v4558 = vld [vmem:[#allocation5 + $0x94] sm:$0xf]
    %v4559 = vld [vmem:[#allocation5 + $0x98] sm:$0xf]
    %v4560 = vld [vmem:[#allocation5 + $0x9c] sm:$0xf]
    %v4561 = vld [vmem:[#allocation5 + $0xa0] sm:$0xf]
    %v4562 = vld [vmem:[#allocation5 + $0xa4] sm:$0xf]
    %v4563 = vld [vmem:[#allocation5 + $0xa8] sm:$0xf]
    %v4564 = vld [vmem:[#allocation5 + $0xac] sm:$0xf]
    %v4565 = vld [vmem:[#allocation5 + $0xb0] sm:$0xf]
    %v4566 = vld [vmem:[#allocation5 + $0xb4] sm:$0xf]
    %v4567 = vld [vmem:[#allocation5 + $0xb8] sm:$0xf]
    %v4568 = vld [vmem:[#allocation5 + $0xbc] sm:$0xf]
    %v4569 = vld [vmem:[#allocation5 + $0xc0] sm:$0xf]
    %v4570 = vld [vmem:[#allocation5 + $0xc4] sm:$0xf]
    %v4571 = vld [vmem:[#allocation5 + $0xc8] sm:$0xf]
    %v4572 = vld [vmem:[#allocation5 + $0xcc] sm:$0xf]
    %v4573 = vld [vmem:[#allocation5 + $0xd0] sm:$0xf]
    %v4574 = vld [vmem:[#allocation5 + $0xd4] sm:$0xf]
    %v4575 = vld [vmem:[#allocation5 + $0xd8] sm:$0xf]
    %v4576 = vld [vmem:[#allocation5 + $0xdc] sm:$0xf]
    %v4577 = vld [vmem:[#allocation5 + $0xe0] sm:$0xf]
    %v4578 = vld [vmem:[#allocation5 + $0xe4] sm:$0xf]
    %v4579 = vld [vmem:[#allocation5 + $0xe8] sm:$0xf]
    %v4580 = vld [vmem:[#allocation5 + $0xec] sm:$0xf]
    %v4581 = vld [vmem:[#allocation5 + $0xf0] sm:$0xf]
    %v4582 = vld [vmem:[#allocation5 + $0xf4] sm:$0xf]
    %v4583 = vld [vmem:[#allocation5 + $0xf8] sm:$0xf]
    %v4584 = vld [vmem:[#allocation5 + $0xfc] sm:$0xf]
    %v4585 = vld [vmem:[#allocation5 + $0x100] sm:$0xf]
    %v4586 = vld [vmem:[#allocation5 + $0x104] sm:$0xf]
    %v4587 = vld [vmem:[#allocation5 + $0x108] sm:$0xf]
    %v4588 = vld [vmem:[#allocation5 + $0x10c] sm:$0xf]
    %v4589 = vld [vmem:[#allocation5 + $0x110] sm:$0xf]
    %v4590 = vld [vmem:[#allocation5 + $0x114] sm:$0xf]
    %v4591 = vld [vmem:[#allocation5 + $0x118] sm:$0xf]
    %v4592 = vld [vmem:[#allocation5 + $0x11c] sm:$0xf]
    %v4593 = vld [vmem:[#allocation5 + $0x120] sm:$0xf]
    %v4594 = vld [vmem:[#allocation5 + $0x124] sm:$0xf]
    %v4595 = vld [vmem:[#allocation5 + $0x128] sm:$0xf]
    %v4596 = vld [vmem:[#allocation5 + $0x12c] sm:$0xf]
    %v4597 = vld [vmem:[#allocation5 + $0x130] sm:$0xf]
    %v4598 = vld [vmem:[#allocation5 + $0x134] sm:$0xf]
    %v4599 = vld [vmem:[#allocation5 + $0x138] sm:$0xf]
    %v4600 = vld [vmem:[#allocation5 + $0x13c] sm:$0xf]
    %v4601 = vld [vmem:[#allocation5 + $0x140] sm:$0xf]
    %v4602 = vld [vmem:[#allocation5 + $0x144] sm:$0xf]
    %v4603 = vld [vmem:[#allocation5 + $0x148] sm:$0xf]
    %v4604 = vld [vmem:[#allocation5 + $0x14c] sm:$0xf]
    %v4605 = vld [vmem:[#allocation5 + $0x150] sm:$0xf]
    %v4606 = vld [vmem:[#allocation5 + $0x154] sm:$0xf]
    %v4607 = vld [vmem:[#allocation5 + $0x158] sm:$0xf]
    %v4608 = vld [vmem:[#allocation5 + $0x15c] sm:$0xf]
    %v4609 = vld [vmem:[#allocation5 + $0x160] sm:$0xf]
    %v4610 = vld [vmem:[#allocation5 + $0x164] sm:$0xf]
    %v4611 = vld [vmem:[#allocation5 + $0x168] sm:$0xf]
    %v4612 = vld [vmem:[#allocation5 + $0x16c] sm:$0xf]
    %v4613 = vld [vmem:[#allocation5 + $0x170] sm:$0xf]
    %v4614 = vld [vmem:[#allocation5 + $0x174] sm:$0xf]
    %v4615 = vld [vmem:[#allocation5 + $0x178] sm:$0xf]
    %v4616 = vld [vmem:[#allocation5 + $0x17c] sm:$0xf]
    %v4617 = vld [vmem:[#allocation5 + $0x180] sm:$0xf]
    %v4618 = vld [vmem:[#allocation5 + $0x184] sm:$0xf]
    %v4619 = vld [vmem:[#allocation5 + $0x188] sm:$0xf]
    %v4620 = vld [vmem:[#allocation5 + $0x18c] sm:$0xf]
    %v4621 = vld [vmem:[#allocation5 + $0x190] sm:$0xf]
    %v4622 = vld [vmem:[#allocation5 + $0x194] sm:$0xf]
    %v4623 = vld [vmem:[#allocation5 + $0x198] sm:$0xf]
    %v4624 = vld [vmem:[#allocation5 + $0x19c] sm:$0xf]
    %v4625 = vld [vmem:[#allocation5 + $0x1a0] sm:$0xf]
    %v4626 = vld [vmem:[#allocation5 + $0x1a4] sm:$0xf]
    %v4627 = vld [vmem:[#allocation5 + $0x1a8] sm:$0xf]
    %v4628 = vld [vmem:[#allocation5 + $0x1ac] sm:$0xf]
    %v4629 = vld [vmem:[#allocation5 + $0x1b0] sm:$0xf]
    %v4630 = vld [vmem:[#allocation5 + $0x1b4] sm:$0xf]
    %v4631 = vld [vmem:[#allocation5 + $0x1b8] sm:$0xf]
    %v4632 = vld [vmem:[#allocation5 + $0x1bc] sm:$0xf]
    %v4633 = vld [vmem:[#allocation5 + $0x1c0] sm:$0xf]
    %v4634 = vld [vmem:[#allocation5 + $0x1c4] sm:$0xf]
    %v4635 = vld [vmem:[#allocation5 + $0x1c8] sm:$0xf]
    %v4636 = vld [vmem:[#allocation5 + $0x1cc] sm:$0xf]
    %v4637 = vld [vmem:[#allocation5 + $0x1d0] sm:$0xf]
    %v4638 = vld [vmem:[#allocation5 + $0x1d4] sm:$0xf]
    %v4639 = vld [vmem:[#allocation5 + $0x1d8] sm:$0xf]
    %v4640 = vld [vmem:[#allocation5 + $0x1dc] sm:$0xf]
    %v4641 = vld [vmem:[#allocation5 + $0x1e0] sm:$0xf]
    %v4642 = vld [vmem:[#allocation5 + $0x1e4] sm:$0xf]
    %v4643 = vld [vmem:[#allocation5 + $0x1e8] sm:$0xf]
    %v4644 = vld [vmem:[#allocation5 + $0x1ec] sm:$0xf]
    %v4645 = vld [vmem:[#allocation5 + $0x1f0] sm:$0xf]
    %v4646 = vld [vmem:[#allocation5 + $0x1f4] sm:$0xf]
    %v4647 = vld [vmem:[#allocation5 + $0x1f8] sm:$0xf]
    %v4648 = vld [vmem:[#allocation5 + $0x1fc] sm:$0xf]
    %v4777 = vunpack.c.l.b16 %v4521
    %v4778 = vunpack.c.l.b16 %v4522
    %v4779 = vunpack.c.l.b16 %v4523
    %v4780 = vunpack.c.l.b16 %v4524
    %v4781 = vunpack.c.l.b16 %v4525
    %v4782 = vunpack.c.l.b16 %v4526
    %v4783 = vunpack.c.l.b16 %v4527
    %v4784 = vunpack.c.l.b16 %v4528
    %v4785 = vunpack.c.l.b16 %v4529
    %v4786 = vunpack.c.l.b16 %v4530
    %v4787 = vunpack.c.l.b16 %v4531
    %v4788 = vunpack.c.l.b16 %v4532
    %v4789 = vunpack.c.l.b16 %v4533
    %v4790 = vunpack.c.l.b16 %v4534
    %v4791 = vunpack.c.l.b16 %v4535
    %v4792 = vunpack.c.l.b16 %v4536
    %v4793 = vunpack.c.l.b16 %v4537
    %v4794 = vunpack.c.l.b16 %v4538
    %v4795 = vunpack.c.l.b16 %v4539
    %v4796 = vunpack.c.l.b16 %v4540
    %v4797 = vunpack.c.l.b16 %v4541
    %v4798 = vunpack.c.l.b16 %v4542
    %v4799 = vunpack.c.l.b16 %v4543
    %v4800 = vunpack.c.l.b16 %v4544
    %v4801 = vunpack.c.l.b16 %v4545
    %v4802 = vunpack.c.l.b16 %v4546
    %v4803 = vunpack.c.l.b16 %v4547
    %v4804 = vunpack.c.l.b16 %v4548
    %v4805 = vunpack.c.l.b16 %v4549
    %v4806 = vunpack.c.l.b16 %v4550
    %v4807 = vunpack.c.l.b16 %v4551
    %v4808 = vunpack.c.l.b16 %v4552
    %v4809 = vunpack.c.l.b16 %v4553
    %v4810 = vunpack.c.l.b16 %v4554
    %v4811 = vunpack.c.l.b16 %v4555
    %v4812 = vunpack.c.l.b16 %v4556
    %v4813 = vunpack.c.l.b16 %v4557
    %v4814 = vunpack.c.l.b16 %v4558
    %v4815 = vunpack.c.l.b16 %v4559
    %v4816 = vunpack.c.l.b16 %v4560
    %v4817 = vunpack.c.l.b16 %v4561
    %v4818 = vunpack.c.l.b16 %v4562
    %v4819 = vunpack.c.l.b16 %v4563
    %v4820 = vunpack.c.l.b16 %v4564
    %v4821 = vunpack.c.l.b16 %v4565
    %v4822 = vunpack.c.l.b16 %v4566
    %v4823 = vunpack.c.l.b16 %v4567
    %v4824 = vunpack.c.l.b16 %v4568
    %v4825 = vunpack.c.l.b16 %v4569
    %v4826 = vunpack.c.l.b16 %v4570
    %v4827 = vunpack.c.l.b16 %v4571
    %v4828 = vunpack.c.l.b16 %v4572
    %v4829 = vunpack.c.l.b16 %v4573
    %v4830 = vunpack.c.l.b16 %v4574
    %v4831 = vunpack.c.l.b16 %v4575
    %v4832 = vunpack.c.l.b16 %v4576
    %v4833 = vunpack.c.l.b16 %v4577
    %v4834 = vunpack.c.l.b16 %v4578
    %v4835 = vunpack.c.l.b16 %v4579
    %v4836 = vunpack.c.l.b16 %v4580
    %v4837 = vunpack.c.l.b16 %v4581
    %v4838 = vunpack.c.l.b16 %v4582
    %v4839 = vunpack.c.l.b16 %v4583
    %v4840 = vunpack.c.l.b16 %v4584
    %v4841 = vunpack.c.l.b16 %v4585
    %v4842 = vunpack.c.l.b16 %v4586
    %v4843 = vunpack.c.l.b16 %v4587
    %v4844 = vunpack.c.l.b16 %v4588
    %v4845 = vunpack.c.l.b16 %v4589
    %v4846 = vunpack.c.l.b16 %v4590
    %v4847 = vunpack.c.l.b16 %v4591
    %v4848 = vunpack.c.l.b16 %v4592
    %v4849 = vunpack.c.l.b16 %v4593
    %v4850 = vunpack.c.l.b16 %v4594
    %v4851 = vunpack.c.l.b16 %v4595
    %v4852 = vunpack.c.l.b16 %v4596
    %v4853 = vunpack.c.l.b16 %v4597
    %v4854 = vunpack.c.l.b16 %v4598
    %v4855 = vunpack.c.l.b16 %v4599
    %v4856 = vunpack.c.l.b16 %v4600
    %v4857 = vunpack.c.l.b16 %v4601
    %v4858 = vunpack.c.l.b16 %v4602
    %v4859 = vunpack.c.l.b16 %v4603
    %v4860 = vunpack.c.l.b16 %v4604
    %v4861 = vunpack.c.l.b16 %v4605
    %v4862 = vunpack.c.l.b16 %v4606
    %v4863 = vunpack.c.l.b16 %v4607
    %v4864 = vunpack.c.l.b16 %v4608
    %v4865 = vunpack.c.l.b16 %v4609
    %v4866 = vunpack.c.l.b16 %v4610
    %v4867 = vunpack.c.l.b16 %v4611
    %v4868 = vunpack.c.l.b16 %v4612
    %v4869 = vunpack.c.l.b16 %v4613
    %v4870 = vunpack.c.l.b16 %v4614
    %v4871 = vunpack.c.l.b16 %v4615
    %v4872 = vunpack.c.l.b16 %v4616
    %v4873 = vunpack.c.l.b16 %v4617
    %v4874 = vunpack.c.l.b16 %v4618
    %v4875 = vunpack.c.l.b16 %v4619
    %v4876 = vunpack.c.l.b16 %v4620
    %v4877 = vunpack.c.l.b16 %v4621
    %v4878 = vunpack.c.l.b16 %v4622
    %v4879 = vunpack.c.l.b16 %v4623
    %v4880 = vunpack.c.l.b16 %v4624
    %v4881 = vunpack.c.l.b16 %v4625
    %v4882 = vunpack.c.l.b16 %v4626
    %v4883 = vunpack.c.l.b16 %v4627
    %v4884 = vunpack.c.l.b16 %v4628
    %v4885 = vunpack.c.l.b16 %v4629
    %v4886 = vunpack.c.l.b16 %v4630
    %v4887 = vunpack.c.l.b16 %v4631
    %v4888 = vunpack.c.l.b16 %v4632
    %v4889 = vunpack.c.l.b16 %v4633
    %v4890 = vunpack.c.l.b16 %v4634
    %v4891 = vunpack.c.l.b16 %v4635
    %v4892 = vunpack.c.l.b16 %v4636
    %v4893 = vunpack.c.l.b16 %v4637
    %v4894 = vunpack.c.l.b16 %v4638
    %v4895 = vunpack.c.l.b16 %v4639
    %v4896 = vunpack.c.l.b16 %v4640
    %v4897 = vunpack.c.l.b16 %v4641
    %v4898 = vunpack.c.l.b16 %v4642
    %v4899 = vunpack.c.l.b16 %v4643
    %v4900 = vunpack.c.l.b16 %v4644
    %v4901 = vunpack.c.l.b16 %v4645
    %v4902 = vunpack.c.l.b16 %v4646
    %v4903 = vunpack.c.l.b16 %v4647
    %v4904 = vunpack.c.l.b16 %v4648
    %v4905 = vpack.c.b16 %v4778, %v4777
    %v4906 = vpack.c.b16 %v4780, %v4779
    %v4907 = vpack.c.b16 %v4782, %v4781
    %v4908 = vpack.c.b16 %v4784, %v4783
    %v4909 = vpack.c.b16 %v4786, %v4785
    %v4910 = vpack.c.b16 %v4788, %v4787
    %v4911 = vpack.c.b16 %v4790, %v4789
    %v4912 = vpack.c.b16 %v4792, %v4791
    %v4913 = vpack.c.b16 %v4794, %v4793
    %v4914 = vpack.c.b16 %v4796, %v4795
    %v4915 = vpack.c.b16 %v4798, %v4797
    %v4916 = vpack.c.b16 %v4800, %v4799
    %v4917 = vpack.c.b16 %v4802, %v4801
    %v4918 = vpack.c.b16 %v4804, %v4803
    %v4919 = vpack.c.b16 %v4806, %v4805
    %v4920 = vpack.c.b16 %v4808, %v4807
    %v4921 = vpack.c.b16 %v4810, %v4809
    %v4922 = vpack.c.b16 %v4812, %v4811
    %v4923 = vpack.c.b16 %v4814, %v4813
    %v4924 = vpack.c.b16 %v4816, %v4815
    %v4925 = vpack.c.b16 %v4818, %v4817
    %v4926 = vpack.c.b16 %v4820, %v4819
    %v4927 = vpack.c.b16 %v4822, %v4821
    %v4928 = vpack.c.b16 %v4824, %v4823
    %v4929 = vpack.c.b16 %v4826, %v4825
    %v4930 = vpack.c.b16 %v4828, %v4827
    %v4931 = vpack.c.b16 %v4830, %v4829
    %v4932 = vpack.c.b16 %v4832, %v4831
    %v4933 = vpack.c.b16 %v4834, %v4833
    %v4934 = vpack.c.b16 %v4836, %v4835
    %v4935 = vpack.c.b16 %v4838, %v4837
    %v4936 = vpack.c.b16 %v4840, %v4839
    %v4937 = vpack.c.b16 %v4842, %v4841
    %v4938 = vpack.c.b16 %v4844, %v4843
    %v4939 = vpack.c.b16 %v4846, %v4845
    %v4940 = vpack.c.b16 %v4848, %v4847
    %v4941 = vpack.c.b16 %v4850, %v4849
    %v4942 = vpack.c.b16 %v4852, %v4851
    %v4943 = vpack.c.b16 %v4854, %v4853
    %v4944 = vpack.c.b16 %v4856, %v4855
    %v4945 = vpack.c.b16 %v4858, %v4857
    %v4946 = vpack.c.b16 %v4860, %v4859
    %v4947 = vpack.c.b16 %v4862, %v4861
    %v4948 = vpack.c.b16 %v4864, %v4863
    %v4949 = vpack.c.b16 %v4866, %v4865
    %v4950 = vpack.c.b16 %v4868, %v4867
    %v4951 = vpack.c.b16 %v4870, %v4869
    %v4952 = vpack.c.b16 %v4872, %v4871
    %v4953 = vpack.c.b16 %v4874, %v4873
    %v4954 = vpack.c.b16 %v4876, %v4875
    %v4955 = vpack.c.b16 %v4878, %v4877
    %v4956 = vpack.c.b16 %v4880, %v4879
    %v4957 = vpack.c.b16 %v4882, %v4881
    %v4958 = vpack.c.b16 %v4884, %v4883
    %v4959 = vpack.c.b16 %v4886, %v4885
    %v4960 = vpack.c.b16 %v4888, %v4887
    %v4961 = vpack.c.b16 %v4890, %v4889
    %v4962 = vpack.c.b16 %v4892, %v4891
    %v4963 = vpack.c.b16 %v4894, %v4893
    %v4964 = vpack.c.b16 %v4896, %v4895
    %v4965 = vpack.c.b16 %v4898, %v4897
    %v4966 = vpack.c.b16 %v4900, %v4899
    %v4967 = vpack.c.b16 %v4902, %v4901
    %v4968 = vpack.c.b16 %v4904, %v4903
    %5033 = vmatpush.bf16.msra.mxu0 %v4912
    %5034 = vmatpush.bf16.msra.mxu0 %v4911
    %5035 = vmatpush.bf16.msra.mxu0 %v4910
    %5036 = vmatpush.bf16.msra.mxu0 %v4909
    %5037 = vmatpush.bf16.msra.mxu0 %v4908
    %5038 = vmatpush.bf16.msra.mxu0 %v4907
    %5039 = vmatpush.bf16.msra.mxu0 %v4906
    %5040 = vmatpush.bf16.msra.mxu0 %v4905
    %5041 = vmatmul.bf16.gmra.mxu0 %v2399
    %v5042 = vpop.f32.mrf.mxu0
    %v5043 = vadd.f32 0.0, %v5042
    %v5044 = vpop.f32.mrf.mxu0
    %v5045 = vadd.f32 0.0, %v5044
    %5046 = vmatmul.bf16.gmra.mxu0 %v2407
    %v5047 = vpop.f32.mrf.mxu0
    %v5048 = vadd.f32 0.0, %v5047
    %v5049 = vpop.f32.mrf.mxu0
    %v5050 = vadd.f32 0.0, %v5049
    %5051 = vmatmul.bf16.gmra.mxu0 %v2415
    %v5052 = vpop.f32.mrf.mxu0
    %v5053 = vadd.f32 0.0, %v5052
    %v5054 = vpop.f32.mrf.mxu0
    %v5055 = vadd.f32 0.0, %v5054
    %5056 = vmatmul.bf16.gmra.mxu0 %v2423
    %v5057 = vpop.f32.mrf.mxu0
    %v5058 = vadd.f32 0.0, %v5057
    %v5059 = vpop.f32.mrf.mxu0
    %v5060 = vadd.f32 0.0, %v5059
    %5061 = vmatmul.bf16.gmra.mxu0 %v2431
    %v5062 = vpop.f32.mrf.mxu0
    %v5063 = vadd.f32 0.0, %v5062
    %v5064 = vpop.f32.mrf.mxu0
    %v5065 = vadd.f32 0.0, %v5064
    %5066 = vmatmul.bf16.gmra.mxu0 %v2439
    %v5067 = vpop.f32.mrf.mxu0
    %v5068 = vadd.f32 0.0, %v5067
    %v5069 = vpop.f32.mrf.mxu0
    %v5070 = vadd.f32 0.0, %v5069
    %5071 = vmatmul.bf16.gmra.mxu0 %v2447
    %v5072 = vpop.f32.mrf.mxu0
    %v5073 = vadd.f32 0.0, %v5072
    %v5074 = vpop.f32.mrf.mxu0
    %v5075 = vadd.f32 0.0, %v5074
    %5076 = vmatmul.bf16.gmra.mxu0 %v2455
    %v5077 = vpop.f32.mrf.mxu0
    %v5078 = vadd.f32 0.0, %v5077
    %v5079 = vpop.f32.mrf.mxu0
    %v5080 = vadd.f32 0.0, %v5079
    %5081 = vmatmul.bf16.gmra.mxu0 %v3261
    %v5082 = vpop.f32.mrf.mxu0
    %v5083 = vadd.f32 0.0, %v5082
    %v5084 = vpop.f32.mrf.mxu0
    %v5085 = vadd.f32 0.0, %v5084
    %5086 = vmatmul.bf16.gmra.mxu0 %v3269
    %v5087 = vpop.f32.mrf.mxu0
    %v5088 = vadd.f32 0.0, %v5087
    %v5089 = vpop.f32.mrf.mxu0
    %v5090 = vadd.f32 0.0, %v5089
    %5091 = vmatmul.bf16.gmra.mxu0 %v3277
    %v5092 = vpop.f32.mrf.mxu0
    %v5093 = vadd.f32 0.0, %v5092
    %v5094 = vpop.f32.mrf.mxu0
    %v5095 = vadd.f32 0.0, %v5094
    %5096 = vmatmul.bf16.gmra.mxu0 %v3285
    %v5097 = vpop.f32.mrf.mxu0
    %v5098 = vadd.f32 0.0, %v5097
    %v5099 = vpop.f32.mrf.mxu0
    %v5100 = vadd.f32 0.0, %v5099
    %5101 = vmatmul.bf16.gmra.mxu0 %v3293
    %v5102 = vpop.f32.mrf.mxu0
    %v5103 = vadd.f32 0.0, %v5102
    %v5104 = vpop.f32.mrf.mxu0
    %v5105 = vadd.f32 0.0, %v5104
    %5106 = vmatmul.bf16.gmra.mxu0 %v3301
    %v5107 = vpop.f32.mrf.mxu0
    %v5108 = vadd.f32 0.0, %v5107
    %v5109 = vpop.f32.mrf.mxu0
    %v5110 = vadd.f32 0.0, %v5109
    %5111 = vmatmul.bf16.gmra.mxu0 %v3309
    %v5112 = vpop.f32.mrf.mxu0
    %v5113 = vadd.f32 0.0, %v5112
    %v5114 = vpop.f32.mrf.mxu0
    %v5115 = vadd.f32 0.0, %v5114
    %5116 = vmatmul.bf16.gmra.mxu0 %v3317
    %v5117 = vpop.f32.mrf.mxu0
    %v5118 = vadd.f32 0.0, %v5117
    %v5119 = vpop.f32.mrf.mxu0
    %v5120 = vadd.f32 0.0, %v5119
    %5121 = vdwg.mxu0
    %5122 = vmatpush.bf16.msra.mxu0 %v4920
    %5123 = vmatpush.bf16.msra.mxu0 %v4919
    %5124 = vmatpush.bf16.msra.mxu0 %v4918
    %5125 = vmatpush.bf16.msra.mxu0 %v4917
    %5126 = vmatpush.bf16.msra.mxu0 %v4916
    %5127 = vmatpush.bf16.msra.mxu0 %v4915
    %5128 = vmatpush.bf16.msra.mxu0 %v4914
    %5129 = vmatpush.bf16.msra.mxu0 %v4913
    %5130 = vmatmul.bf16.gmra.mxu0 %v2400
    %v5131 = vpop.f32.mrf.mxu0
    %v5132 = vadd.f32 %v5043, %v5131
    %v5133 = vpop.f32.mrf.mxu0
    %v5134 = vadd.f32 %v5045, %v5133
    %5135 = vmatmul.bf16.gmra.mxu0 %v2408
    %v5136 = vpop.f32.mrf.mxu0
    %v5137 = vadd.f32 %v5048, %v5136
    %v5138 = vpop.f32.mrf.mxu0
    %v5139 = vadd.f32 %v5050, %v5138
    %5140 = vmatmul.bf16.gmra.mxu0 %v2416
    %v5141 = vpop.f32.mrf.mxu0
    %v5142 = vadd.f32 %v5053, %v5141
    %v5143 = vpop.f32.mrf.mxu0
    %v5144 = vadd.f32 %v5055, %v5143
    %5145 = vmatmul.bf16.gmra.mxu0 %v2424
    %v5146 = vpop.f32.mrf.mxu0
    %v5147 = vadd.f32 %v5058, %v5146
    %v5148 = vpop.f32.mrf.mxu0
    %v5149 = vadd.f32 %v5060, %v5148
    %5150 = vmatmul.bf16.gmra.mxu0 %v2432
    %v5151 = vpop.f32.mrf.mxu0
    %v5152 = vadd.f32 %v5063, %v5151
    %v5153 = vpop.f32.mrf.mxu0
    %v5154 = vadd.f32 %v5065, %v5153
    %5155 = vmatmul.bf16.gmra.mxu0 %v2440
    %v5156 = vpop.f32.mrf.mxu0
    %v5157 = vadd.f32 %v5068, %v5156
    %v5158 = vpop.f32.mrf.mxu0
    %v5159 = vadd.f32 %v5070, %v5158
    %5160 = vmatmul.bf16.gmra.mxu0 %v2448
    %v5161 = vpop.f32.mrf.mxu0
    %v5162 = vadd.f32 %v5073, %v5161
    %v5163 = vpop.f32.mrf.mxu0
    %v5164 = vadd.f32 %v5075, %v5163
    %5165 = vmatmul.bf16.gmra.mxu0 %v2456
    %v5166 = vpop.f32.mrf.mxu0
    %v5167 = vadd.f32 %v5078, %v5166
    %v5168 = vpop.f32.mrf.mxu0
    %v5169 = vadd.f32 %v5080, %v5168
    %5170 = vmatmul.bf16.gmra.mxu0 %v3262
    %v5171 = vpop.f32.mrf.mxu0
    %v5172 = vadd.f32 %v5083, %v5171
    %v5173 = vpop.f32.mrf.mxu0
    %v5174 = vadd.f32 %v5085, %v5173
    %5175 = vmatmul.bf16.gmra.mxu0 %v3270
    %v5176 = vpop.f32.mrf.mxu0
    %v5177 = vadd.f32 %v5088, %v5176
    %v5178 = vpop.f32.mrf.mxu0
    %v5179 = vadd.f32 %v5090, %v5178
    %5180 = vmatmul.bf16.gmra.mxu0 %v3278
    %v5181 = vpop.f32.mrf.mxu0
    %v5182 = vadd.f32 %v5093, %v5181
    %v5183 = vpop.f32.mrf.mxu0
    %v5184 = vadd.f32 %v5095, %v5183
    %5185 = vmatmul.bf16.gmra.mxu0 %v3286
    %v5186 = vpop.f32.mrf.mxu0
    %v5187 = vadd.f32 %v5098, %v5186
    %v5188 = vpop.f32.mrf.mxu0
    %v5189 = vadd.f32 %v5100, %v5188
    %5190 = vmatmul.bf16.gmra.mxu0 %v3294
    %v5191 = vpop.f32.mrf.mxu0
    %v5192 = vadd.f32 %v5103, %v5191
    %v5193 = vpop.f32.mrf.mxu0
    %v5194 = vadd.f32 %v5105, %v5193
    %5195 = vmatmul.bf16.gmra.mxu0 %v3302
    %v5196 = vpop.f32.mrf.mxu0
    %v5197 = vadd.f32 %v5108, %v5196
    %v5198 = vpop.f32.mrf.mxu0
    %v5199 = vadd.f32 %v5110, %v5198
    %5200 = vmatmul.bf16.gmra.mxu0 %v3310
    %v5201 = vpop.f32.mrf.mxu0
    %v5202 = vadd.f32 %v5113, %v5201
    %v5203 = vpop.f32.mrf.mxu0
    %v5204 = vadd.f32 %v5115, %v5203
    %5205 = vmatmul.bf16.gmra.mxu0 %v3318
    %v5206 = vpop.f32.mrf.mxu0
    %v5207 = vadd.f32 %v5118, %v5206
    %v5208 = vpop.f32.mrf.mxu0
    %v5209 = vadd.f32 %v5120, %v5208
    %5210 = vdwg.mxu0
    %5211 = vmatpush.bf16.msra.mxu0 %v4928
    %5212 = vmatpush.bf16.msra.mxu0 %v4927
    %5213 = vmatpush.bf16.msra.mxu0 %v4926
    %5214 = vmatpush.bf16.msra.mxu0 %v4925
    %5215 = vmatpush.bf16.msra.mxu0 %v4924
    %5216 = vmatpush.bf16.msra.mxu0 %v4923
    %5217 = vmatpush.bf16.msra.mxu0 %v4922
    %5218 = vmatpush.bf16.msra.mxu0 %v4921
    %5219 = vmatmul.bf16.gmra.mxu0 %v2401
    %v5220 = vpop.f32.mrf.mxu0
    %v5221 = vadd.f32 %v5132, %v5220
    %v5222 = vpop.f32.mrf.mxu0
    %v5223 = vadd.f32 %v5134, %v5222
    %5224 = vmatmul.bf16.gmra.mxu0 %v2409
    %v5225 = vpop.f32.mrf.mxu0
    %v5226 = vadd.f32 %v5137, %v5225
    %v5227 = vpop.f32.mrf.mxu0
    %v5228 = vadd.f32 %v5139, %v5227
    %5229 = vmatmul.bf16.gmra.mxu0 %v2417
    %v5230 = vpop.f32.mrf.mxu0
    %v5231 = vadd.f32 %v5142, %v5230
    %v5232 = vpop.f32.mrf.mxu0
    %v5233 = vadd.f32 %v5144, %v5232
    %5234 = vmatmul.bf16.gmra.mxu0 %v2425
    %v5235 = vpop.f32.mrf.mxu0
    %v5236 = vadd.f32 %v5147, %v5235
    %v5237 = vpop.f32.mrf.mxu0
    %v5238 = vadd.f32 %v5149, %v5237
    %5239 = vmatmul.bf16.gmra.mxu0 %v2433
    %v5240 = vpop.f32.mrf.mxu0
    %v5241 = vadd.f32 %v5152, %v5240
    %v5242 = vpop.f32.mrf.mxu0
    %v5243 = vadd.f32 %v5154, %v5242
    %5244 = vmatmul.bf16.gmra.mxu0 %v2441
    %v5245 = vpop.f32.mrf.mxu0
    %v5246 = vadd.f32 %v5157, %v5245
    %v5247 = vpop.f32.mrf.mxu0
    %v5248 = vadd.f32 %v5159, %v5247
    %5249 = vmatmul.bf16.gmra.mxu0 %v2449
    %v5250 = vpop.f32.mrf.mxu0
    %v5251 = vadd.f32 %v5162, %v5250
    %v5252 = vpop.f32.mrf.mxu0
    %v5253 = vadd.f32 %v5164, %v5252
    %5254 = vmatmul.bf16.gmra.mxu0 %v2457
    %v5255 = vpop.f32.mrf.mxu0
    %v5256 = vadd.f32 %v5167, %v5255
    %v5257 = vpop.f32.mrf.mxu0
    %v5258 = vadd.f32 %v5169, %v5257
    %5259 = vmatmul.bf16.gmra.mxu0 %v3263
    %v5260 = vpop.f32.mrf.mxu0
    %v5261 = vadd.f32 %v5172, %v5260
    %v5262 = vpop.f32.mrf.mxu0
    %v5263 = vadd.f32 %v5174, %v5262
    %5264 = vmatmul.bf16.gmra.mxu0 %v3271
    %v5265 = vpop.f32.mrf.mxu0
    %v5266 = vadd.f32 %v5177, %v5265
    %v5267 = vpop.f32.mrf.mxu0
    %v5268 = vadd.f32 %v5179, %v5267
    %5269 = vmatmul.bf16.gmra.mxu0 %v3279
    %v5270 = vpop.f32.mrf.mxu0
    %v5271 = vadd.f32 %v5182, %v5270
    %v5272 = vpop.f32.mrf.mxu0
    %v5273 = vadd.f32 %v5184, %v5272
    %5274 = vmatmul.bf16.gmra.mxu0 %v3287
    %v5275 = vpop.f32.mrf.mxu0
    %v5276 = vadd.f32 %v5187, %v5275
    %v5277 = vpop.f32.mrf.mxu0
    %v5278 = vadd.f32 %v5189, %v5277
    %5279 = vmatmul.bf16.gmra.mxu0 %v3295
    %v5280 = vpop.f32.mrf.mxu0
    %v5281 = vadd.f32 %v5192, %v5280
    %v5282 = vpop.f32.mrf.mxu0
    %v5283 = vadd.f32 %v5194, %v5282
    %5284 = vmatmul.bf16.gmra.mxu0 %v3303
    %v5285 = vpop.f32.mrf.mxu0
    %v5286 = vadd.f32 %v5197, %v5285
    %v5287 = vpop.f32.mrf.mxu0
    %v5288 = vadd.f32 %v5199, %v5287
    %5289 = vmatmul.bf16.gmra.mxu0 %v3311
    %v5290 = vpop.f32.mrf.mxu0
    %v5291 = vadd.f32 %v5202, %v5290
    %v5292 = vpop.f32.mrf.mxu0
    %v5293 = vadd.f32 %v5204, %v5292
    %5294 = vmatmul.bf16.gmra.mxu0 %v3319
    %v5295 = vpop.f32.mrf.mxu0
    %v5296 = vadd.f32 %v5207, %v5295
    %v5297 = vpop.f32.mrf.mxu0
    %v5298 = vadd.f32 %v5209, %v5297
    %5299 = vdwg.mxu0
    %5300 = vmatpush.bf16.msra.mxu0 %v4936
    %5301 = vmatpush.bf16.msra.mxu0 %v4935
    %5302 = vmatpush.bf16.msra.mxu0 %v4934
    %5303 = vmatpush.bf16.msra.mxu0 %v4933
    %5304 = vmatpush.bf16.msra.mxu0 %v4932
    %5305 = vmatpush.bf16.msra.mxu0 %v4931
    %5306 = vmatpush.bf16.msra.mxu0 %v4930
    %5307 = vmatpush.bf16.msra.mxu0 %v4929
    %5308 = vmatmul.bf16.gmra.mxu0 %v2402
    %v5309 = vpop.f32.mrf.mxu0
    %v5310 = vadd.f32 %v5221, %v5309
    %v5311 = vpop.f32.mrf.mxu0
    %v5312 = vadd.f32 %v5223, %v5311
    %5313 = vmatmul.bf16.gmra.mxu0 %v2410
    %v5314 = vpop.f32.mrf.mxu0
    %v5315 = vadd.f32 %v5226, %v5314
    %v5316 = vpop.f32.mrf.mxu0
    %v5317 = vadd.f32 %v5228, %v5316
    %5318 = vmatmul.bf16.gmra.mxu0 %v2418
    %v5319 = vpop.f32.mrf.mxu0
    %v5320 = vadd.f32 %v5231, %v5319
    %v5321 = vpop.f32.mrf.mxu0
    %v5322 = vadd.f32 %v5233, %v5321
    %5323 = vmatmul.bf16.gmra.mxu0 %v2426
    %v5324 = vpop.f32.mrf.mxu0
    %v5325 = vadd.f32 %v5236, %v5324
    %v5326 = vpop.f32.mrf.mxu0
    %v5327 = vadd.f32 %v5238, %v5326
    %5328 = vmatmul.bf16.gmra.mxu0 %v2434
    %v5329 = vpop.f32.mrf.mxu0
    %v5330 = vadd.f32 %v5241, %v5329
    %v5331 = vpop.f32.mrf.mxu0
    %v5332 = vadd.f32 %v5243, %v5331
    %5333 = vmatmul.bf16.gmra.mxu0 %v2442
    %v5334 = vpop.f32.mrf.mxu0
    %v5335 = vadd.f32 %v5246, %v5334
    %v5336 = vpop.f32.mrf.mxu0
    %v5337 = vadd.f32 %v5248, %v5336
    %5338 = vmatmul.bf16.gmra.mxu0 %v2450
    %v5339 = vpop.f32.mrf.mxu0
    %v5340 = vadd.f32 %v5251, %v5339
    %v5341 = vpop.f32.mrf.mxu0
    %v5342 = vadd.f32 %v5253, %v5341
    %5343 = vmatmul.bf16.gmra.mxu0 %v2458
    %v5344 = vpop.f32.mrf.mxu0
    %v5345 = vadd.f32 %v5256, %v5344
    %v5346 = vpop.f32.mrf.mxu0
    %v5347 = vadd.f32 %v5258, %v5346
    %5348 = vmatmul.bf16.gmra.mxu0 %v3264
    %v5349 = vpop.f32.mrf.mxu0
    %v5350 = vadd.f32 %v5261, %v5349
    %v5351 = vpop.f32.mrf.mxu0
    %v5352 = vadd.f32 %v5263, %v5351
    %5353 = vmatmul.bf16.gmra.mxu0 %v3272
    %v5354 = vpop.f32.mrf.mxu0
    %v5355 = vadd.f32 %v5266, %v5354
    %v5356 = vpop.f32.mrf.mxu0
    %v5357 = vadd.f32 %v5268, %v5356
    %5358 = vmatmul.bf16.gmra.mxu0 %v3280
    %v5359 = vpop.f32.mrf.mxu0
    %v5360 = vadd.f32 %v5271, %v5359
    %v5361 = vpop.f32.mrf.mxu0
    %v5362 = vadd.f32 %v5273, %v5361
    %5363 = vmatmul.bf16.gmra.mxu0 %v3288
    %v5364 = vpop.f32.mrf.mxu0
    %v5365 = vadd.f32 %v5276, %v5364
    %v5366 = vpop.f32.mrf.mxu0
    %v5367 = vadd.f32 %v5278, %v5366
    %5368 = vmatmul.bf16.gmra.mxu0 %v3296
    %v5369 = vpop.f32.mrf.mxu0
    %v5370 = vadd.f32 %v5281, %v5369
    %v5371 = vpop.f32.mrf.mxu0
    %v5372 = vadd.f32 %v5283, %v5371
    %5373 = vmatmul.bf16.gmra.mxu0 %v3304
    %v5374 = vpop.f32.mrf.mxu0
    %v5375 = vadd.f32 %v5286, %v5374
    %v5376 = vpop.f32.mrf.mxu0
    %v5377 = vadd.f32 %v5288, %v5376
    %5378 = vmatmul.bf16.gmra.mxu0 %v3312
    %v5379 = vpop.f32.mrf.mxu0
    %v5380 = vadd.f32 %v5291, %v5379
    %v5381 = vpop.f32.mrf.mxu0
    %v5382 = vadd.f32 %v5293, %v5381
    %5383 = vmatmul.bf16.gmra.mxu0 %v3320
    %v5384 = vpop.f32.mrf.mxu0
    %v5385 = vadd.f32 %v5296, %v5384
    %v5386 = vpop.f32.mrf.mxu0
    %v5387 = vadd.f32 %v5298, %v5386
    %5388 = vdwg.mxu0
    %5389 = vmatpush.bf16.msra.mxu0 %v4944
    %5390 = vmatpush.bf16.msra.mxu0 %v4943
    %5391 = vmatpush.bf16.msra.mxu0 %v4942
    %5392 = vmatpush.bf16.msra.mxu0 %v4941
    %5393 = vmatpush.bf16.msra.mxu0 %v4940
    %5394 = vmatpush.bf16.msra.mxu0 %v4939
    %5395 = vmatpush.bf16.msra.mxu0 %v4938
    %5396 = vmatpush.bf16.msra.mxu0 %v4937
    %5397 = vmatmul.bf16.gmra.mxu0 %v2403
    %v5398 = vpop.f32.mrf.mxu0
    %v5399 = vadd.f32 %v5310, %v5398
    %v5400 = vpop.f32.mrf.mxu0
    %v5401 = vadd.f32 %v5312, %v5400
    %5402 = vmatmul.bf16.gmra.mxu0 %v2411
    %v5403 = vpop.f32.mrf.mxu0
    %v5404 = vadd.f32 %v5315, %v5403
    %v5405 = vpop.f32.mrf.mxu0
    %v5406 = vadd.f32 %v5317, %v5405
    %5407 = vmatmul.bf16.gmra.mxu0 %v2419
    %v5408 = vpop.f32.mrf.mxu0
    %v5409 = vadd.f32 %v5320, %v5408
    %v5410 = vpop.f32.mrf.mxu0
    %v5411 = vadd.f32 %v5322, %v5410
    %5412 = vmatmul.bf16.gmra.mxu0 %v2427
    %v5413 = vpop.f32.mrf.mxu0
    %v5414 = vadd.f32 %v5325, %v5413
    %v5415 = vpop.f32.mrf.mxu0
    %v5416 = vadd.f32 %v5327, %v5415
    %5417 = vmatmul.bf16.gmra.mxu0 %v2435
    %v5418 = vpop.f32.mrf.mxu0
    %v5419 = vadd.f32 %v5330, %v5418
    %v5420 = vpop.f32.mrf.mxu0
    %v5421 = vadd.f32 %v5332, %v5420
    %5422 = vmatmul.bf16.gmra.mxu0 %v2443
    %v5423 = vpop.f32.mrf.mxu0
    %v5424 = vadd.f32 %v5335, %v5423
    %v5425 = vpop.f32.mrf.mxu0
    %v5426 = vadd.f32 %v5337, %v5425
    %5427 = vmatmul.bf16.gmra.mxu0 %v2451
    %v5428 = vpop.f32.mrf.mxu0
    %v5429 = vadd.f32 %v5340, %v5428
    %v5430 = vpop.f32.mrf.mxu0
    %v5431 = vadd.f32 %v5342, %v5430
    %5432 = vmatmul.bf16.gmra.mxu0 %v2459
    %v5433 = vpop.f32.mrf.mxu0
    %v5434 = vadd.f32 %v5345, %v5433
    %v5435 = vpop.f32.mrf.mxu0
    %v5436 = vadd.f32 %v5347, %v5435
    %5437 = vmatmul.bf16.gmra.mxu0 %v3265
    %v5438 = vpop.f32.mrf.mxu0
    %v5439 = vadd.f32 %v5350, %v5438
    %v5440 = vpop.f32.mrf.mxu0
    %v5441 = vadd.f32 %v5352, %v5440
    %5442 = vmatmul.bf16.gmra.mxu0 %v3273
    %v5443 = vpop.f32.mrf.mxu0
    %v5444 = vadd.f32 %v5355, %v5443
    %v5445 = vpop.f32.mrf.mxu0
    %v5446 = vadd.f32 %v5357, %v5445
    %5447 = vmatmul.bf16.gmra.mxu0 %v3281
    %v5448 = vpop.f32.mrf.mxu0
    %v5449 = vadd.f32 %v5360, %v5448
    %v5450 = vpop.f32.mrf.mxu0
    %v5451 = vadd.f32 %v5362, %v5450
    %5452 = vmatmul.bf16.gmra.mxu0 %v3289
    %v5453 = vpop.f32.mrf.mxu0
    %v5454 = vadd.f32 %v5365, %v5453
    %v5455 = vpop.f32.mrf.mxu0
    %v5456 = vadd.f32 %v5367, %v5455
    %5457 = vmatmul.bf16.gmra.mxu0 %v3297
    %v5458 = vpop.f32.mrf.mxu0
    %v5459 = vadd.f32 %v5370, %v5458
    %v5460 = vpop.f32.mrf.mxu0
    %v5461 = vadd.f32 %v5372, %v5460
    %5462 = vmatmul.bf16.gmra.mxu0 %v3305
    %v5463 = vpop.f32.mrf.mxu0
    %v5464 = vadd.f32 %v5375, %v5463
    %v5465 = vpop.f32.mrf.mxu0
    %v5466 = vadd.f32 %v5377, %v5465
    %5467 = vmatmul.bf16.gmra.mxu0 %v3313
    %v5468 = vpop.f32.mrf.mxu0
    %v5469 = vadd.f32 %v5380, %v5468
    %v5470 = vpop.f32.mrf.mxu0
    %v5471 = vadd.f32 %v5382, %v5470
    %5472 = vmatmul.bf16.gmra.mxu0 %v3321
    %v5473 = vpop.f32.mrf.mxu0
    %v5474 = vadd.f32 %v5385, %v5473
    %v5475 = vpop.f32.mrf.mxu0
    %v5476 = vadd.f32 %v5387, %v5475
    %5477 = vdwg.mxu0
    %5478 = vmatpush.bf16.msra.mxu0 %v4952
    %5479 = vmatpush.bf16.msra.mxu0 %v4951
    %5480 = vmatpush.bf16.msra.mxu0 %v4950
    %5481 = vmatpush.bf16.msra.mxu0 %v4949
    %5482 = vmatpush.bf16.msra.mxu0 %v4948
    %5483 = vmatpush.bf16.msra.mxu0 %v4947
    %5484 = vmatpush.bf16.msra.mxu0 %v4946
    %5485 = vmatpush.bf16.msra.mxu0 %v4945
    %5486 = vmatmul.bf16.gmra.mxu0 %v2404
    %v5487 = vpop.f32.mrf.mxu0
    %v5488 = vadd.f32 %v5399, %v5487
    %v5489 = vpop.f32.mrf.mxu0
    %v5490 = vadd.f32 %v5401, %v5489
    %5491 = vmatmul.bf16.gmra.mxu0 %v2412
    %v5492 = vpop.f32.mrf.mxu0
    %v5493 = vadd.f32 %v5404, %v5492
    %v5494 = vpop.f32.mrf.mxu0
    %v5495 = vadd.f32 %v5406, %v5494
    %5496 = vmatmul.bf16.gmra.mxu0 %v2420
    %v5497 = vpop.f32.mrf.mxu0
    %v5498 = vadd.f32 %v5409, %v5497
    %v5499 = vpop.f32.mrf.mxu0
    %v5500 = vadd.f32 %v5411, %v5499
    %5501 = vmatmul.bf16.gmra.mxu0 %v2428
    %v5502 = vpop.f32.mrf.mxu0
    %v5503 = vadd.f32 %v5414, %v5502
    %v5504 = vpop.f32.mrf.mxu0
    %v5505 = vadd.f32 %v5416, %v5504
    %5506 = vmatmul.bf16.gmra.mxu0 %v2436
    %v5507 = vpop.f32.mrf.mxu0
    %v5508 = vadd.f32 %v5419, %v5507
    %v5509 = vpop.f32.mrf.mxu0
    %v5510 = vadd.f32 %v5421, %v5509
    %5511 = vmatmul.bf16.gmra.mxu0 %v2444
    %v5512 = vpop.f32.mrf.mxu0
    %v5513 = vadd.f32 %v5424, %v5512
    %v5514 = vpop.f32.mrf.mxu0
    %v5515 = vadd.f32 %v5426, %v5514
    %5516 = vmatmul.bf16.gmra.mxu0 %v2452
    %v5517 = vpop.f32.mrf.mxu0
    %v5518 = vadd.f32 %v5429, %v5517
    %v5519 = vpop.f32.mrf.mxu0
    %v5520 = vadd.f32 %v5431, %v5519
    %5521 = vmatmul.bf16.gmra.mxu0 %v2460
    %v5522 = vpop.f32.mrf.mxu0
    %v5523 = vadd.f32 %v5434, %v5522
    %v5524 = vpop.f32.mrf.mxu0
    %v5525 = vadd.f32 %v5436, %v5524
    %5526 = vmatmul.bf16.gmra.mxu0 %v3266
    %v5527 = vpop.f32.mrf.mxu0
    %v5528 = vadd.f32 %v5439, %v5527
    %v5529 = vpop.f32.mrf.mxu0
    %v5530 = vadd.f32 %v5441, %v5529
    %5531 = vmatmul.bf16.gmra.mxu0 %v3274
    %v5532 = vpop.f32.mrf.mxu0
    %v5533 = vadd.f32 %v5444, %v5532
    %v5534 = vpop.f32.mrf.mxu0
    %v5535 = vadd.f32 %v5446, %v5534
    %5536 = vmatmul.bf16.gmra.mxu0 %v3282
    %v5537 = vpop.f32.mrf.mxu0
    %v5538 = vadd.f32 %v5449, %v5537
    %v5539 = vpop.f32.mrf.mxu0
    %v5540 = vadd.f32 %v5451, %v5539
    %5541 = vmatmul.bf16.gmra.mxu0 %v3290
    %v5542 = vpop.f32.mrf.mxu0
    %v5543 = vadd.f32 %v5454, %v5542
    %v5544 = vpop.f32.mrf.mxu0
    %v5545 = vadd.f32 %v5456, %v5544
    %5546 = vmatmul.bf16.gmra.mxu0 %v3298
    %v5547 = vpop.f32.mrf.mxu0
    %v5548 = vadd.f32 %v5459, %v5547
    %v5549 = vpop.f32.mrf.mxu0
    %v5550 = vadd.f32 %v5461, %v5549
    %5551 = vmatmul.bf16.gmra.mxu0 %v3306
    %v5552 = vpop.f32.mrf.mxu0
    %v5553 = vadd.f32 %v5464, %v5552
    %v5554 = vpop.f32.mrf.mxu0
    %v5555 = vadd.f32 %v5466, %v5554
    %5556 = vmatmul.bf16.gmra.mxu0 %v3314
    %v5557 = vpop.f32.mrf.mxu0
    %v5558 = vadd.f32 %v5469, %v5557
    %v5559 = vpop.f32.mrf.mxu0
    %v5560 = vadd.f32 %v5471, %v5559
    %5561 = vmatmul.bf16.gmra.mxu0 %v3322
    %v5562 = vpop.f32.mrf.mxu0
    %v5563 = vadd.f32 %v5474, %v5562
    %v5564 = vpop.f32.mrf.mxu0
    %v5565 = vadd.f32 %v5476, %v5564
    %5566 = vdwg.mxu0
    %5567 = vmatpush.bf16.msra.mxu0 %v4960
    %5568 = vmatpush.bf16.msra.mxu0 %v4959
    %5569 = vmatpush.bf16.msra.mxu0 %v4958
    %5570 = vmatpush.bf16.msra.mxu0 %v4957
    %5571 = vmatpush.bf16.msra.mxu0 %v4956
    %5572 = vmatpush.bf16.msra.mxu0 %v4955
    %5573 = vmatpush.bf16.msra.mxu0 %v4954
    %5574 = vmatpush.bf16.msra.mxu0 %v4953
    %5575 = vmatmul.bf16.gmra.mxu0 %v2405
    %v5576 = vpop.f32.mrf.mxu0
    %v5577 = vadd.f32 %v5488, %v5576
    %v5578 = vpop.f32.mrf.mxu0
    %v5579 = vadd.f32 %v5490, %v5578
    %5580 = vmatmul.bf16.gmra.mxu0 %v2413
    %v5581 = vpop.f32.mrf.mxu0
    %v5582 = vadd.f32 %v5493, %v5581
    %v5583 = vpop.f32.mrf.mxu0
    %v5584 = vadd.f32 %v5495, %v5583
    %5585 = vmatmul.bf16.gmra.mxu0 %v2421
    %v5586 = vpop.f32.mrf.mxu0
    %v5587 = vadd.f32 %v5498, %v5586
    %v5588 = vpop.f32.mrf.mxu0
    %v5589 = vadd.f32 %v5500, %v5588
    %5590 = vmatmul.bf16.gmra.mxu0 %v2429
    %v5591 = vpop.f32.mrf.mxu0
    %v5592 = vadd.f32 %v5503, %v5591
    %v5593 = vpop.f32.mrf.mxu0
    %v5594 = vadd.f32 %v5505, %v5593
    %5595 = vmatmul.bf16.gmra.mxu0 %v2437
    %v5596 = vpop.f32.mrf.mxu0
    %v5597 = vadd.f32 %v5508, %v5596
    %v5598 = vpop.f32.mrf.mxu0
    %v5599 = vadd.f32 %v5510, %v5598
    %5600 = vmatmul.bf16.gmra.mxu0 %v2445
    %v5601 = vpop.f32.mrf.mxu0
    %v5602 = vadd.f32 %v5513, %v5601
    %v5603 = vpop.f32.mrf.mxu0
    %v5604 = vadd.f32 %v5515, %v5603
    %5605 = vmatmul.bf16.gmra.mxu0 %v2453
    %v5606 = vpop.f32.mrf.mxu0
    %v5607 = vadd.f32 %v5518, %v5606
    %v5608 = vpop.f32.mrf.mxu0
    %v5609 = vadd.f32 %v5520, %v5608
    %5610 = vmatmul.bf16.gmra.mxu0 %v2461
    %v5611 = vpop.f32.mrf.mxu0
    %v5612 = vadd.f32 %v5523, %v5611
    %v5613 = vpop.f32.mrf.mxu0
    %v5614 = vadd.f32 %v5525, %v5613
    %5615 = vmatmul.bf16.gmra.mxu0 %v3267
    %v5616 = vpop.f32.mrf.mxu0
    %v5617 = vadd.f32 %v5528, %v5616
    %v5618 = vpop.f32.mrf.mxu0
    %v5619 = vadd.f32 %v5530, %v5618
    %5620 = vmatmul.bf16.gmra.mxu0 %v3275
    %v5621 = vpop.f32.mrf.mxu0
    %v5622 = vadd.f32 %v5533, %v5621
    %v5623 = vpop.f32.mrf.mxu0
    %v5624 = vadd.f32 %v5535, %v5623
    %5625 = vmatmul.bf16.gmra.mxu0 %v3283
    %v5626 = vpop.f32.mrf.mxu0
    %v5627 = vadd.f32 %v5538, %v5626
    %v5628 = vpop.f32.mrf.mxu0
    %v5629 = vadd.f32 %v5540, %v5628
    %5630 = vmatmul.bf16.gmra.mxu0 %v3291
    %v5631 = vpop.f32.mrf.mxu0
    %v5632 = vadd.f32 %v5543, %v5631
    %v5633 = vpop.f32.mrf.mxu0
    %v5634 = vadd.f32 %v5545, %v5633
    %5635 = vmatmul.bf16.gmra.mxu0 %v3299
    %v5636 = vpop.f32.mrf.mxu0
    %v5637 = vadd.f32 %v5548, %v5636
    %v5638 = vpop.f32.mrf.mxu0
    %v5639 = vadd.f32 %v5550, %v5638
    %5640 = vmatmul.bf16.gmra.mxu0 %v3307
    %v5641 = vpop.f32.mrf.mxu0
    %v5642 = vadd.f32 %v5553, %v5641
    %v5643 = vpop.f32.mrf.mxu0
    %v5644 = vadd.f32 %v5555, %v5643
    %5645 = vmatmul.bf16.gmra.mxu0 %v3315
    %v5646 = vpop.f32.mrf.mxu0
    %v5647 = vadd.f32 %v5558, %v5646
    %v5648 = vpop.f32.mrf.mxu0
    %v5649 = vadd.f32 %v5560, %v5648
    %5650 = vmatmul.bf16.gmra.mxu0 %v3323
    %v5651 = vpop.f32.mrf.mxu0
    %v5652 = vadd.f32 %v5563, %v5651
    %v5653 = vpop.f32.mrf.mxu0
    %v5654 = vadd.f32 %v5565, %v5653
    %5655 = vdwg.mxu0
    %5656 = vmatpush.bf16.msra.mxu0 %v4968
    %5657 = vmatpush.bf16.msra.mxu0 %v4967
    %5658 = vmatpush.bf16.msra.mxu0 %v4966
    %5659 = vmatpush.bf16.msra.mxu0 %v4965
    %5660 = vmatpush.bf16.msra.mxu0 %v4964
    %5661 = vmatpush.bf16.msra.mxu0 %v4963
    %5662 = vmatpush.bf16.msra.mxu0 %v4962
    %5663 = vmatpush.bf16.msra.mxu0 %v4961
    %5664 = vmatmul.bf16.gmra.mxu0 %v2406
    %v5665 = vpop.f32.mrf.mxu0
    %v5666 = vadd.f32 %v5577, %v5665
    %v5667 = vpop.f32.mrf.mxu0
    %v5668 = vadd.f32 %v5579, %v5667
    %5669 = vmatmul.bf16.gmra.mxu0 %v2414
    %v5670 = vpop.f32.mrf.mxu0
    %v5671 = vadd.f32 %v5582, %v5670
    %v5672 = vpop.f32.mrf.mxu0
    %v5673 = vadd.f32 %v5584, %v5672
    %5674 = vmatmul.bf16.gmra.mxu0 %v2422
    %v5675 = vpop.f32.mrf.mxu0
    %v5676 = vadd.f32 %v5587, %v5675
    %v5677 = vpop.f32.mrf.mxu0
    %v5678 = vadd.f32 %v5589, %v5677
    %5679 = vmatmul.bf16.gmra.mxu0 %v2430
    %v5680 = vpop.f32.mrf.mxu0
    %v5681 = vadd.f32 %v5592, %v5680
    %v5682 = vpop.f32.mrf.mxu0
    %v5683 = vadd.f32 %v5594, %v5682
    %5684 = vmatmul.bf16.gmra.mxu0 %v2438
    %v5685 = vpop.f32.mrf.mxu0
    %v5686 = vadd.f32 %v5597, %v5685
    %v5687 = vpop.f32.mrf.mxu0
    %v5688 = vadd.f32 %v5599, %v5687
    %5689 = vmatmul.bf16.gmra.mxu0 %v2446
    %v5690 = vpop.f32.mrf.mxu0
    %v5691 = vadd.f32 %v5602, %v5690
    %v5692 = vpop.f32.mrf.mxu0
    %v5693 = vadd.f32 %v5604, %v5692
    %5694 = vmatmul.bf16.gmra.mxu0 %v2454
    %v5695 = vpop.f32.mrf.mxu0
    %v5696 = vadd.f32 %v5607, %v5695
    %v5697 = vpop.f32.mrf.mxu0
    %v5698 = vadd.f32 %v5609, %v5697
    %5699 = vmatmul.bf16.gmra.mxu0 %v2462
    %v5700 = vpop.f32.mrf.mxu0
    %v5701 = vadd.f32 %v5612, %v5700
    %v5702 = vpop.f32.mrf.mxu0
    %v5703 = vadd.f32 %v5614, %v5702
    %5704 = vmatmul.bf16.gmra.mxu0 %v3268
    %v5705 = vpop.f32.mrf.mxu0
    %v5706 = vadd.f32 %v5617, %v5705
    %v5707 = vpop.f32.mrf.mxu0
    %v5708 = vadd.f32 %v5619, %v5707
    %5709 = vmatmul.bf16.gmra.mxu0 %v3276
    %v5710 = vpop.f32.mrf.mxu0
    %v5711 = vadd.f32 %v5622, %v5710
    %v5712 = vpop.f32.mrf.mxu0
    %v5713 = vadd.f32 %v5624, %v5712
    %5714 = vmatmul.bf16.gmra.mxu0 %v3284
    %v5715 = vpop.f32.mrf.mxu0
    %v5716 = vadd.f32 %v5627, %v5715
    %v5717 = vpop.f32.mrf.mxu0
    %v5718 = vadd.f32 %v5629, %v5717
    %5719 = vmatmul.bf16.gmra.mxu0 %v3292
    %v5720 = vpop.f32.mrf.mxu0
    %v5721 = vadd.f32 %v5632, %v5720
    %v5722 = vpop.f32.mrf.mxu0
    %v5723 = vadd.f32 %v5634, %v5722
    %5724 = vmatmul.bf16.gmra.mxu0 %v3300
    %v5725 = vpop.f32.mrf.mxu0
    %v5726 = vadd.f32 %v5637, %v5725
    %v5727 = vpop.f32.mrf.mxu0
    %v5728 = vadd.f32 %v5639, %v5727
    %5729 = vmatmul.bf16.gmra.mxu0 %v3308
    %v5730 = vpop.f32.mrf.mxu0
    %v5731 = vadd.f32 %v5642, %v5730
    %v5732 = vpop.f32.mrf.mxu0
    %v5733 = vadd.f32 %v5644, %v5732
    %5734 = vmatmul.bf16.gmra.mxu0 %v3316
    %v5735 = vpop.f32.mrf.mxu0
    %v5736 = vadd.f32 %v5647, %v5735
    %v5737 = vpop.f32.mrf.mxu0
    %v5738 = vadd.f32 %v5649, %v5737
    %5739 = vmatmul.bf16.gmra.mxu0 %v3324
    %v5740 = vpop.f32.mrf.mxu0
    %v5741 = vadd.f32 %v5652, %v5740
    %v5742 = vpop.f32.mrf.mxu0
    %v5743 = vadd.f32 %v5654, %v5742
    %5744 = vdwg.mxu0
    %v5745 = vperm.slane %v88, 1
    %v5746 = vadd.f32 %v5745, %v5666
    %v5747 = vadd.f32 %v5745, %v5668
    %v5748 = vadd.f32 %v5745, %v5671
    %v5749 = vadd.f32 %v5745, %v5673
    %v5750 = vadd.f32 %v5745, %v5676
    %v5751 = vadd.f32 %v5745, %v5678
    %v5752 = vadd.f32 %v5745, %v5681
    %v5753 = vadd.f32 %v5745, %v5683
    %v5754 = vadd.f32 %v5745, %v5686
    %v5755 = vadd.f32 %v5745, %v5688
    %v5756 = vadd.f32 %v5745, %v5691
    %v5757 = vadd.f32 %v5745, %v5693
    %v5758 = vadd.f32 %v5745, %v5696
    %v5759 = vadd.f32 %v5745, %v5698
    %v5760 = vadd.f32 %v5745, %v5701
    %v5761 = vadd.f32 %v5745, %v5703
    %v5762 = vadd.f32 %v5745, %v5706
    %v5763 = vadd.f32 %v5745, %v5708
    %v5764 = vadd.f32 %v5745, %v5711
    %v5765 = vadd.f32 %v5745, %v5713
    %v5766 = vadd.f32 %v5745, %v5716
    %v5767 = vadd.f32 %v5745, %v5718
    %v5768 = vadd.f32 %v5745, %v5721
    %v5769 = vadd.f32 %v5745, %v5723
    %v5770 = vadd.f32 %v5745, %v5726
    %v5771 = vadd.f32 %v5745, %v5728
    %v5772 = vadd.f32 %v5745, %v5731
    %v5773 = vadd.f32 %v5745, %v5733
    %v5774 = vadd.f32 %v5745, %v5736
    %v5775 = vadd.f32 %v5745, %v5738
    %v5776 = vadd.f32 %v5745, %v5741
    %v5777 = vadd.f32 %v5745, %v5743
    %v5778 = vld [vmem:[#allocation7] sm:$0xf]
    %v5779 = vld [vmem:[#allocation7 + $0x4] sm:$0xf]
    %v5780 = vld [vmem:[#allocation7 + $0x8] sm:$0xf]
    %v5781 = vld [vmem:[#allocation7 + $0xc] sm:$0xf]
    %v5782 = vld [vmem:[#allocation7 + $0x10] sm:$0xf]
    %v5783 = vld [vmem:[#allocation7 + $0x14] sm:$0xf]
    %v5784 = vld [vmem:[#allocation7 + $0x18] sm:$0xf]
    %v5785 = vld [vmem:[#allocation7 + $0x1c] sm:$0xf]
    %v5786 = vld [vmem:[#allocation7 + $0x20] sm:$0xf]
    %v5787 = vld [vmem:[#allocation7 + $0x24] sm:$0xf]
    %v5788 = vld [vmem:[#allocation7 + $0x28] sm:$0xf]
    %v5789 = vld [vmem:[#allocation7 + $0x2c] sm:$0xf]
    %v5790 = vld [vmem:[#allocation7 + $0x30] sm:$0xf]
    %v5791 = vld [vmem:[#allocation7 + $0x34] sm:$0xf]
    %v5792 = vld [vmem:[#allocation7 + $0x38] sm:$0xf]
    %v5793 = vld [vmem:[#allocation7 + $0x3c] sm:$0xf]
    %v5794 = vld [vmem:[#allocation7 + $0x40] sm:$0xf]
    %v5795 = vld [vmem:[#allocation7 + $0x44] sm:$0xf]
    %v5796 = vld [vmem:[#allocation7 + $0x48] sm:$0xf]
    %v5797 = vld [vmem:[#allocation7 + $0x4c] sm:$0xf]
    %v5798 = vld [vmem:[#allocation7 + $0x50] sm:$0xf]
    %v5799 = vld [vmem:[#allocation7 + $0x54] sm:$0xf]
    %v5800 = vld [vmem:[#allocation7 + $0x58] sm:$0xf]
    %v5801 = vld [vmem:[#allocation7 + $0x5c] sm:$0xf]
    %v5802 = vld [vmem:[#allocation7 + $0x60] sm:$0xf]
    %v5803 = vld [vmem:[#allocation7 + $0x64] sm:$0xf]
    %v5804 = vld [vmem:[#allocation7 + $0x68] sm:$0xf]
    %v5805 = vld [vmem:[#allocation7 + $0x6c] sm:$0xf]
    %v5806 = vld [vmem:[#allocation7 + $0x70] sm:$0xf]
    %v5807 = vld [vmem:[#allocation7 + $0x74] sm:$0xf]
    %v5808 = vld [vmem:[#allocation7 + $0x78] sm:$0xf]
    %v5809 = vld [vmem:[#allocation7 + $0x7c] sm:$0xf]
    %v5810 = vld [vmem:[#allocation7 + $0x80] sm:$0xf]
    %v5811 = vld [vmem:[#allocation7 + $0x84] sm:$0xf]
    %v5812 = vld [vmem:[#allocation7 + $0x88] sm:$0xf]
    %v5813 = vld [vmem:[#allocation7 + $0x8c] sm:$0xf]
    %v5814 = vld [vmem:[#allocation7 + $0x90] sm:$0xf]
    %v5815 = vld [vmem:[#allocation7 + $0x94] sm:$0xf]
    %v5816 = vld [vmem:[#allocation7 + $0x98] sm:$0xf]
    %v5817 = vld [vmem:[#allocation7 + $0x9c] sm:$0xf]
    %v5818 = vld [vmem:[#allocation7 + $0xa0] sm:$0xf]
    %v5819 = vld [vmem:[#allocation7 + $0xa4] sm:$0xf]
    %v5820 = vld [vmem:[#allocation7 + $0xa8] sm:$0xf]
    %v5821 = vld [vmem:[#allocation7 + $0xac] sm:$0xf]
    %v5822 = vld [vmem:[#allocation7 + $0xb0] sm:$0xf]
    %v5823 = vld [vmem:[#allocation7 + $0xb4] sm:$0xf]
    %v5824 = vld [vmem:[#allocation7 + $0xb8] sm:$0xf]
    %v5825 = vld [vmem:[#allocation7 + $0xbc] sm:$0xf]
    %v5826 = vld [vmem:[#allocation7 + $0xc0] sm:$0xf]
    %v5827 = vld [vmem:[#allocation7 + $0xc4] sm:$0xf]
    %v5828 = vld [vmem:[#allocation7 + $0xc8] sm:$0xf]
    %v5829 = vld [vmem:[#allocation7 + $0xcc] sm:$0xf]
    %v5830 = vld [vmem:[#allocation7 + $0xd0] sm:$0xf]
    %v5831 = vld [vmem:[#allocation7 + $0xd4] sm:$0xf]
    %v5832 = vld [vmem:[#allocation7 + $0xd8] sm:$0xf]
    %v5833 = vld [vmem:[#allocation7 + $0xdc] sm:$0xf]
    %v5834 = vld [vmem:[#allocation7 + $0xe0] sm:$0xf]
    %v5835 = vld [vmem:[#allocation7 + $0xe4] sm:$0xf]
    %v5836 = vld [vmem:[#allocation7 + $0xe8] sm:$0xf]
    %v5837 = vld [vmem:[#allocation7 + $0xec] sm:$0xf]
    %v5838 = vld [vmem:[#allocation7 + $0xf0] sm:$0xf]
    %v5839 = vld [vmem:[#allocation7 + $0xf4] sm:$0xf]
    %v5840 = vld [vmem:[#allocation7 + $0xf8] sm:$0xf]
    %v5841 = vld [vmem:[#allocation7 + $0xfc] sm:$0xf]
    %v5842 = vld [vmem:[#allocation7 + $0x100] sm:$0xf]
    %v5843 = vld [vmem:[#allocation7 + $0x104] sm:$0xf]
    %v5844 = vld [vmem:[#allocation7 + $0x108] sm:$0xf]
    %v5845 = vld [vmem:[#allocation7 + $0x10c] sm:$0xf]
    %v5846 = vld [vmem:[#allocation7 + $0x110] sm:$0xf]
    %v5847 = vld [vmem:[#allocation7 + $0x114] sm:$0xf]
    %v5848 = vld [vmem:[#allocation7 + $0x118] sm:$0xf]
    %v5849 = vld [vmem:[#allocation7 + $0x11c] sm:$0xf]
    %v5850 = vld [vmem:[#allocation7 + $0x120] sm:$0xf]
    %v5851 = vld [vmem:[#allocation7 + $0x124] sm:$0xf]
    %v5852 = vld [vmem:[#allocation7 + $0x128] sm:$0xf]
    %v5853 = vld [vmem:[#allocation7 + $0x12c] sm:$0xf]
    %v5854 = vld [vmem:[#allocation7 + $0x130] sm:$0xf]
    %v5855 = vld [vmem:[#allocation7 + $0x134] sm:$0xf]
    %v5856 = vld [vmem:[#allocation7 + $0x138] sm:$0xf]
    %v5857 = vld [vmem:[#allocation7 + $0x13c] sm:$0xf]
    %v5858 = vld [vmem:[#allocation7 + $0x140] sm:$0xf]
    %v5859 = vld [vmem:[#allocation7 + $0x144] sm:$0xf]
    %v5860 = vld [vmem:[#allocation7 + $0x148] sm:$0xf]
    %v5861 = vld [vmem:[#allocation7 + $0x14c] sm:$0xf]
    %v5862 = vld [vmem:[#allocation7 + $0x150] sm:$0xf]
    %v5863 = vld [vmem:[#allocation7 + $0x154] sm:$0xf]
    %v5864 = vld [vmem:[#allocation7 + $0x158] sm:$0xf]
    %v5865 = vld [vmem:[#allocation7 + $0x15c] sm:$0xf]
    %v5866 = vld [vmem:[#allocation7 + $0x160] sm:$0xf]
    %v5867 = vld [vmem:[#allocation7 + $0x164] sm:$0xf]
    %v5868 = vld [vmem:[#allocation7 + $0x168] sm:$0xf]
    %v5869 = vld [vmem:[#allocation7 + $0x16c] sm:$0xf]
    %v5870 = vld [vmem:[#allocation7 + $0x170] sm:$0xf]
    %v5871 = vld [vmem:[#allocation7 + $0x174] sm:$0xf]
    %v5872 = vld [vmem:[#allocation7 + $0x178] sm:$0xf]
    %v5873 = vld [vmem:[#allocation7 + $0x17c] sm:$0xf]
    %v5874 = vld [vmem:[#allocation7 + $0x180] sm:$0xf]
    %v5875 = vld [vmem:[#allocation7 + $0x184] sm:$0xf]
    %v5876 = vld [vmem:[#allocation7 + $0x188] sm:$0xf]
    %v5877 = vld [vmem:[#allocation7 + $0x18c] sm:$0xf]
    %v5878 = vld [vmem:[#allocation7 + $0x190] sm:$0xf]
    %v5879 = vld [vmem:[#allocation7 + $0x194] sm:$0xf]
    %v5880 = vld [vmem:[#allocation7 + $0x198] sm:$0xf]
    %v5881 = vld [vmem:[#allocation7 + $0x19c] sm:$0xf]
    %v5882 = vld [vmem:[#allocation7 + $0x1a0] sm:$0xf]
    %v5883 = vld [vmem:[#allocation7 + $0x1a4] sm:$0xf]
    %v5884 = vld [vmem:[#allocation7 + $0x1a8] sm:$0xf]
    %v5885 = vld [vmem:[#allocation7 + $0x1ac] sm:$0xf]
    %v5886 = vld [vmem:[#allocation7 + $0x1b0] sm:$0xf]
    %v5887 = vld [vmem:[#allocation7 + $0x1b4] sm:$0xf]
    %v5888 = vld [vmem:[#allocation7 + $0x1b8] sm:$0xf]
    %v5889 = vld [vmem:[#allocation7 + $0x1bc] sm:$0xf]
    %v5890 = vld [vmem:[#allocation7 + $0x1c0] sm:$0xf]
    %v5891 = vld [vmem:[#allocation7 + $0x1c4] sm:$0xf]
    %v5892 = vld [vmem:[#allocation7 + $0x1c8] sm:$0xf]
    %v5893 = vld [vmem:[#allocation7 + $0x1cc] sm:$0xf]
    %v5894 = vld [vmem:[#allocation7 + $0x1d0] sm:$0xf]
    %v5895 = vld [vmem:[#allocation7 + $0x1d4] sm:$0xf]
    %v5896 = vld [vmem:[#allocation7 + $0x1d8] sm:$0xf]
    %v5897 = vld [vmem:[#allocation7 + $0x1dc] sm:$0xf]
    %v5898 = vld [vmem:[#allocation7 + $0x1e0] sm:$0xf]
    %v5899 = vld [vmem:[#allocation7 + $0x1e4] sm:$0xf]
    %v5900 = vld [vmem:[#allocation7 + $0x1e8] sm:$0xf]
    %v5901 = vld [vmem:[#allocation7 + $0x1ec] sm:$0xf]
    %v5902 = vld [vmem:[#allocation7 + $0x1f0] sm:$0xf]
    %v5903 = vld [vmem:[#allocation7 + $0x1f4] sm:$0xf]
    %v5904 = vld [vmem:[#allocation7 + $0x1f8] sm:$0xf]
    %v5905 = vld [vmem:[#allocation7 + $0x1fc] sm:$0xf]
    %v6034 = vunpack.c.l.b16 %v5778
    %v6035 = vunpack.c.l.b16 %v5779
    %v6036 = vunpack.c.l.b16 %v5780
    %v6037 = vunpack.c.l.b16 %v5781
    %v6038 = vunpack.c.l.b16 %v5782
    %v6039 = vunpack.c.l.b16 %v5783
    %v6040 = vunpack.c.l.b16 %v5784
    %v6041 = vunpack.c.l.b16 %v5785
    %v6042 = vunpack.c.l.b16 %v5786
    %v6043 = vunpack.c.l.b16 %v5787
    %v6044 = vunpack.c.l.b16 %v5788
    %v6045 = vunpack.c.l.b16 %v5789
    %v6046 = vunpack.c.l.b16 %v5790
    %v6047 = vunpack.c.l.b16 %v5791
    %v6048 = vunpack.c.l.b16 %v5792
    %v6049 = vunpack.c.l.b16 %v5793
    %v6050 = vunpack.c.l.b16 %v5794
    %v6051 = vunpack.c.l.b16 %v5795
    %v6052 = vunpack.c.l.b16 %v5796
    %v6053 = vunpack.c.l.b16 %v5797
    %v6054 = vunpack.c.l.b16 %v5798
    %v6055 = vunpack.c.l.b16 %v5799
    %v6056 = vunpack.c.l.b16 %v5800
    %v6057 = vunpack.c.l.b16 %v5801
    %v6058 = vunpack.c.l.b16 %v5802
    %v6059 = vunpack.c.l.b16 %v5803
    %v6060 = vunpack.c.l.b16 %v5804
    %v6061 = vunpack.c.l.b16 %v5805
    %v6062 = vunpack.c.l.b16 %v5806
    %v6063 = vunpack.c.l.b16 %v5807
    %v6064 = vunpack.c.l.b16 %v5808
    %v6065 = vunpack.c.l.b16 %v5809
    %v6066 = vunpack.c.l.b16 %v5810
    %v6067 = vunpack.c.l.b16 %v5811
    %v6068 = vunpack.c.l.b16 %v5812
    %v6069 = vunpack.c.l.b16 %v5813
    %v6070 = vunpack.c.l.b16 %v5814
    %v6071 = vunpack.c.l.b16 %v5815
    %v6072 = vunpack.c.l.b16 %v5816
    %v6073 = vunpack.c.l.b16 %v5817
    %v6074 = vunpack.c.l.b16 %v5818
    %v6075 = vunpack.c.l.b16 %v5819
    %v6076 = vunpack.c.l.b16 %v5820
    %v6077 = vunpack.c.l.b16 %v5821
    %v6078 = vunpack.c.l.b16 %v5822
    %v6079 = vunpack.c.l.b16 %v5823
    %v6080 = vunpack.c.l.b16 %v5824
    %v6081 = vunpack.c.l.b16 %v5825
    %v6082 = vunpack.c.l.b16 %v5826
    %v6083 = vunpack.c.l.b16 %v5827
    %v6084 = vunpack.c.l.b16 %v5828
    %v6085 = vunpack.c.l.b16 %v5829
    %v6086 = vunpack.c.l.b16 %v5830
    %v6087 = vunpack.c.l.b16 %v5831
    %v6088 = vunpack.c.l.b16 %v5832
    %v6089 = vunpack.c.l.b16 %v5833
    %v6090 = vunpack.c.l.b16 %v5834
    %v6091 = vunpack.c.l.b16 %v5835
    %v6092 = vunpack.c.l.b16 %v5836
    %v6093 = vunpack.c.l.b16 %v5837
    %v6094 = vunpack.c.l.b16 %v5838
    %v6095 = vunpack.c.l.b16 %v5839
    %v6096 = vunpack.c.l.b16 %v5840
    %v6097 = vunpack.c.l.b16 %v5841
    %v6098 = vunpack.c.l.b16 %v5842
    %v6099 = vunpack.c.l.b16 %v5843
    %v6100 = vunpack.c.l.b16 %v5844
    %v6101 = vunpack.c.l.b16 %v5845
    %v6102 = vunpack.c.l.b16 %v5846
    %v6103 = vunpack.c.l.b16 %v5847
    %v6104 = vunpack.c.l.b16 %v5848
    %v6105 = vunpack.c.l.b16 %v5849
    %v6106 = vunpack.c.l.b16 %v5850
    %v6107 = vunpack.c.l.b16 %v5851
    %v6108 = vunpack.c.l.b16 %v5852
    %v6109 = vunpack.c.l.b16 %v5853
    %v6110 = vunpack.c.l.b16 %v5854
    %v6111 = vunpack.c.l.b16 %v5855
    %v6112 = vunpack.c.l.b16 %v5856
    %v6113 = vunpack.c.l.b16 %v5857
    %v6114 = vunpack.c.l.b16 %v5858
    %v6115 = vunpack.c.l.b16 %v5859
    %v6116 = vunpack.c.l.b16 %v5860
    %v6117 = vunpack.c.l.b16 %v5861
    %v6118 = vunpack.c.l.b16 %v5862
    %v6119 = vunpack.c.l.b16 %v5863
    %v6120 = vunpack.c.l.b16 %v5864
    %v6121 = vunpack.c.l.b16 %v5865
    %v6122 = vunpack.c.l.b16 %v5866
    %v6123 = vunpack.c.l.b16 %v5867
    %v6124 = vunpack.c.l.b16 %v5868
    %v6125 = vunpack.c.l.b16 %v5869
    %v6126 = vunpack.c.l.b16 %v5870
    %v6127 = vunpack.c.l.b16 %v5871
    %v6128 = vunpack.c.l.b16 %v5872
    %v6129 = vunpack.c.l.b16 %v5873
    %v6130 = vunpack.c.l.b16 %v5874
    %v6131 = vunpack.c.l.b16 %v5875
    %v6132 = vunpack.c.l.b16 %v5876
    %v6133 = vunpack.c.l.b16 %v5877
    %v6134 = vunpack.c.l.b16 %v5878
    %v6135 = vunpack.c.l.b16 %v5879
    %v6136 = vunpack.c.l.b16 %v5880
    %v6137 = vunpack.c.l.b16 %v5881
    %v6138 = vunpack.c.l.b16 %v5882
    %v6139 = vunpack.c.l.b16 %v5883
    %v6140 = vunpack.c.l.b16 %v5884
    %v6141 = vunpack.c.l.b16 %v5885
    %v6142 = vunpack.c.l.b16 %v5886
    %v6143 = vunpack.c.l.b16 %v5887
    %v6144 = vunpack.c.l.b16 %v5888
    %v6145 = vunpack.c.l.b16 %v5889
    %v6146 = vunpack.c.l.b16 %v5890
    %v6147 = vunpack.c.l.b16 %v5891
    %v6148 = vunpack.c.l.b16 %v5892
    %v6149 = vunpack.c.l.b16 %v5893
    %v6150 = vunpack.c.l.b16 %v5894
    %v6151 = vunpack.c.l.b16 %v5895
    %v6152 = vunpack.c.l.b16 %v5896
    %v6153 = vunpack.c.l.b16 %v5897
    %v6154 = vunpack.c.l.b16 %v5898
    %v6155 = vunpack.c.l.b16 %v5899
    %v6156 = vunpack.c.l.b16 %v5900
    %v6157 = vunpack.c.l.b16 %v5901
    %v6158 = vunpack.c.l.b16 %v5902
    %v6159 = vunpack.c.l.b16 %v5903
    %v6160 = vunpack.c.l.b16 %v5904
    %v6161 = vunpack.c.l.b16 %v5905
    %v6162 = vpack.c.b16 %v6035, %v6034
    %v6163 = vpack.c.b16 %v6037, %v6036
    %v6164 = vpack.c.b16 %v6039, %v6038
    %v6165 = vpack.c.b16 %v6041, %v6040
    %v6166 = vpack.c.b16 %v6043, %v6042
    %v6167 = vpack.c.b16 %v6045, %v6044
    %v6168 = vpack.c.b16 %v6047, %v6046
    %v6169 = vpack.c.b16 %v6049, %v6048
    %v6170 = vpack.c.b16 %v6051, %v6050
    %v6171 = vpack.c.b16 %v6053, %v6052
    %v6172 = vpack.c.b16 %v6055, %v6054
    %v6173 = vpack.c.b16 %v6057, %v6056
    %v6174 = vpack.c.b16 %v6059, %v6058
    %v6175 = vpack.c.b16 %v6061, %v6060
    %v6176 = vpack.c.b16 %v6063, %v6062
    %v6177 = vpack.c.b16 %v6065, %v6064
    %v6178 = vpack.c.b16 %v6067, %v6066
    %v6179 = vpack.c.b16 %v6069, %v6068
    %v6180 = vpack.c.b16 %v6071, %v6070
    %v6181 = vpack.c.b16 %v6073, %v6072
    %v6182 = vpack.c.b16 %v6075, %v6074
    %v6183 = vpack.c.b16 %v6077, %v6076
    %v6184 = vpack.c.b16 %v6079, %v6078
    %v6185 = vpack.c.b16 %v6081, %v6080
    %v6186 = vpack.c.b16 %v6083, %v6082
    %v6187 = vpack.c.b16 %v6085, %v6084
    %v6188 = vpack.c.b16 %v6087, %v6086
    %v6189 = vpack.c.b16 %v6089, %v6088
    %v6190 = vpack.c.b16 %v6091, %v6090
    %v6191 = vpack.c.b16 %v6093, %v6092
    %v6192 = vpack.c.b16 %v6095, %v6094
    %v6193 = vpack.c.b16 %v6097, %v6096
    %v6194 = vpack.c.b16 %v6099, %v6098
    %v6195 = vpack.c.b16 %v6101, %v6100
    %v6196 = vpack.c.b16 %v6103, %v6102
    %v6197 = vpack.c.b16 %v6105, %v6104
    %v6198 = vpack.c.b16 %v6107, %v6106
    %v6199 = vpack.c.b16 %v6109, %v6108
    %v6200 = vpack.c.b16 %v6111, %v6110
    %v6201 = vpack.c.b16 %v6113, %v6112
    %v6202 = vpack.c.b16 %v6115, %v6114
    %v6203 = vpack.c.b16 %v6117, %v6116
    %v6204 = vpack.c.b16 %v6119, %v6118
    %v6205 = vpack.c.b16 %v6121, %v6120
    %v6206 = vpack.c.b16 %v6123, %v6122
    %v6207 = vpack.c.b16 %v6125, %v6124
    %v6208 = vpack.c.b16 %v6127, %v6126
    %v6209 = vpack.c.b16 %v6129, %v6128
    %v6210 = vpack.c.b16 %v6131, %v6130
    %v6211 = vpack.c.b16 %v6133, %v6132
    %v6212 = vpack.c.b16 %v6135, %v6134
    %v6213 = vpack.c.b16 %v6137, %v6136
    %v6214 = vpack.c.b16 %v6139, %v6138
    %v6215 = vpack.c.b16 %v6141, %v6140
    %v6216 = vpack.c.b16 %v6143, %v6142
    %v6217 = vpack.c.b16 %v6145, %v6144
    %v6218 = vpack.c.b16 %v6147, %v6146
    %v6219 = vpack.c.b16 %v6149, %v6148
    %v6220 = vpack.c.b16 %v6151, %v6150
    %v6221 = vpack.c.b16 %v6153, %v6152
    %v6222 = vpack.c.b16 %v6155, %v6154
    %v6223 = vpack.c.b16 %v6157, %v6156
    %v6224 = vpack.c.b16 %v6159, %v6158
    %v6225 = vpack.c.b16 %v6161, %v6160
    %6290 = vmatpush.bf16.msra.mxu0 %v6169
    %6291 = vmatpush.bf16.msra.mxu0 %v6168
    %6292 = vmatpush.bf16.msra.mxu0 %v6167
    %6293 = vmatpush.bf16.msra.mxu0 %v6166
    %6294 = vmatpush.bf16.msra.mxu0 %v6165
    %6295 = vmatpush.bf16.msra.mxu0 %v6164
    %6296 = vmatpush.bf16.msra.mxu0 %v6163
    %6297 = vmatpush.bf16.msra.mxu0 %v6162
    %6298 = vmatmul.bf16.gmra.mxu0 %v4073
    %v6299 = vpop.f32.mrf.mxu0
    %v6300 = vadd.f32 0.0, %v6299
    %v6301 = vpop.f32.mrf.mxu0
    %v6302 = vadd.f32 0.0, %v6301
    %6303 = vmatmul.bf16.gmra.mxu0 %v4081
    %v6304 = vpop.f32.mrf.mxu0
    %v6305 = vadd.f32 0.0, %v6304
    %v6306 = vpop.f32.mrf.mxu0
    %v6307 = vadd.f32 0.0, %v6306
    %6308 = vmatmul.bf16.gmra.mxu0 %v4089
    %v6309 = vpop.f32.mrf.mxu0
    %v6310 = vadd.f32 0.0, %v6309
    %v6311 = vpop.f32.mrf.mxu0
    %v6312 = vadd.f32 0.0, %v6311
    %6313 = vmatmul.bf16.gmra.mxu0 %v4097
    %v6314 = vpop.f32.mrf.mxu0
    %v6315 = vadd.f32 0.0, %v6314
    %v6316 = vpop.f32.mrf.mxu0
    %v6317 = vadd.f32 0.0, %v6316
    %6318 = vmatmul.bf16.gmra.mxu0 %v4105
    %v6319 = vpop.f32.mrf.mxu0
    %v6320 = vadd.f32 0.0, %v6319
    %v6321 = vpop.f32.mrf.mxu0
    %v6322 = vadd.f32 0.0, %v6321
    %6323 = vmatmul.bf16.gmra.mxu0 %v4113
    %v6324 = vpop.f32.mrf.mxu0
    %v6325 = vadd.f32 0.0, %v6324
    %v6326 = vpop.f32.mrf.mxu0
    %v6327 = vadd.f32 0.0, %v6326
    %6328 = vmatmul.bf16.gmra.mxu0 %v4121
    %v6329 = vpop.f32.mrf.mxu0
    %v6330 = vadd.f32 0.0, %v6329
    %v6331 = vpop.f32.mrf.mxu0
    %v6332 = vadd.f32 0.0, %v6331
    %6333 = vmatmul.bf16.gmra.mxu0 %v4129
    %v6334 = vpop.f32.mrf.mxu0
    %v6335 = vadd.f32 0.0, %v6334
    %v6336 = vpop.f32.mrf.mxu0
    %v6337 = vadd.f32 0.0, %v6336
    %6338 = vmatmul.bf16.gmra.mxu0 %v4393
    %v6339 = vpop.f32.mrf.mxu0
    %v6340 = vadd.f32 0.0, %v6339
    %v6341 = vpop.f32.mrf.mxu0
    %v6342 = vadd.f32 0.0, %v6341
    %6343 = vmatmul.bf16.gmra.mxu0 %v4401
    %v6344 = vpop.f32.mrf.mxu0
    %v6345 = vadd.f32 0.0, %v6344
    %v6346 = vpop.f32.mrf.mxu0
    %v6347 = vadd.f32 0.0, %v6346
    %6348 = vmatmul.bf16.gmra.mxu0 %v4409
    %v6349 = vpop.f32.mrf.mxu0
    %v6350 = vadd.f32 0.0, %v6349
    %v6351 = vpop.f32.mrf.mxu0
    %v6352 = vadd.f32 0.0, %v6351
    %6353 = vmatmul.bf16.gmra.mxu0 %v4417
    %v6354 = vpop.f32.mrf.mxu0
    %v6355 = vadd.f32 0.0, %v6354
    %v6356 = vpop.f32.mrf.mxu0
    %v6357 = vadd.f32 0.0, %v6356
    %6358 = vmatmul.bf16.gmra.mxu0 %v4425
    %v6359 = vpop.f32.mrf.mxu0
    %v6360 = vadd.f32 0.0, %v6359
    %v6361 = vpop.f32.mrf.mxu0
    %v6362 = vadd.f32 0.0, %v6361
    %6363 = vmatmul.bf16.gmra.mxu0 %v4433
    %v6364 = vpop.f32.mrf.mxu0
    %v6365 = vadd.f32 0.0, %v6364
    %v6366 = vpop.f32.mrf.mxu0
    %v6367 = vadd.f32 0.0, %v6366
    %6368 = vmatmul.bf16.gmra.mxu0 %v4441
    %v6369 = vpop.f32.mrf.mxu0
    %v6370 = vadd.f32 0.0, %v6369
    %v6371 = vpop.f32.mrf.mxu0
    %v6372 = vadd.f32 0.0, %v6371
    %6373 = vmatmul.bf16.gmra.mxu0 %v4449
    %v6374 = vpop.f32.mrf.mxu0
    %v6375 = vadd.f32 0.0, %v6374
    %v6376 = vpop.f32.mrf.mxu0
    %v6377 = vadd.f32 0.0, %v6376
    %6378 = vdwg.mxu0
    %6379 = vmatpush.bf16.msra.mxu0 %v6177
    %6380 = vmatpush.bf16.msra.mxu0 %v6176
    %6381 = vmatpush.bf16.msra.mxu0 %v6175
    %6382 = vmatpush.bf16.msra.mxu0 %v6174
    %6383 = vmatpush.bf16.msra.mxu0 %v6173
    %6384 = vmatpush.bf16.msra.mxu0 %v6172
    %6385 = vmatpush.bf16.msra.mxu0 %v6171
    %6386 = vmatpush.bf16.msra.mxu0 %v6170
    %6387 = vmatmul.bf16.gmra.mxu0 %v4074
    %v6388 = vpop.f32.mrf.mxu0
    %v6389 = vadd.f32 %v6300, %v6388
    %v6390 = vpop.f32.mrf.mxu0
    %v6391 = vadd.f32 %v6302, %v6390
    %6392 = vmatmul.bf16.gmra.mxu0 %v4082
    %v6393 = vpop.f32.mrf.mxu0
    %v6394 = vadd.f32 %v6305, %v6393
    %v6395 = vpop.f32.mrf.mxu0
    %v6396 = vadd.f32 %v6307, %v6395
    %6397 = vmatmul.bf16.gmra.mxu0 %v4090
    %v6398 = vpop.f32.mrf.mxu0
    %v6399 = vadd.f32 %v6310, %v6398
    %v6400 = vpop.f32.mrf.mxu0
    %v6401 = vadd.f32 %v6312, %v6400
    %6402 = vmatmul.bf16.gmra.mxu0 %v4098
    %v6403 = vpop.f32.mrf.mxu0
    %v6404 = vadd.f32 %v6315, %v6403
    %v6405 = vpop.f32.mrf.mxu0
    %v6406 = vadd.f32 %v6317, %v6405
    %6407 = vmatmul.bf16.gmra.mxu0 %v4106
    %v6408 = vpop.f32.mrf.mxu0
    %v6409 = vadd.f32 %v6320, %v6408
    %v6410 = vpop.f32.mrf.mxu0
    %v6411 = vadd.f32 %v6322, %v6410
    %6412 = vmatmul.bf16.gmra.mxu0 %v4114
    %v6413 = vpop.f32.mrf.mxu0
    %v6414 = vadd.f32 %v6325, %v6413
    %v6415 = vpop.f32.mrf.mxu0
    %v6416 = vadd.f32 %v6327, %v6415
    %6417 = vmatmul.bf16.gmra.mxu0 %v4122
    %v6418 = vpop.f32.mrf.mxu0
    %v6419 = vadd.f32 %v6330, %v6418
    %v6420 = vpop.f32.mrf.mxu0
    %v6421 = vadd.f32 %v6332, %v6420
    %6422 = vmatmul.bf16.gmra.mxu0 %v4130
    %v6423 = vpop.f32.mrf.mxu0
    %v6424 = vadd.f32 %v6335, %v6423
    %v6425 = vpop.f32.mrf.mxu0
    %v6426 = vadd.f32 %v6337, %v6425
    %6427 = vmatmul.bf16.gmra.mxu0 %v4394
    %v6428 = vpop.f32.mrf.mxu0
    %v6429 = vadd.f32 %v6340, %v6428
    %v6430 = vpop.f32.mrf.mxu0
    %v6431 = vadd.f32 %v6342, %v6430
    %6432 = vmatmul.bf16.gmra.mxu0 %v4402
    %v6433 = vpop.f32.mrf.mxu0
    %v6434 = vadd.f32 %v6345, %v6433
    %v6435 = vpop.f32.mrf.mxu0
    %v6436 = vadd.f32 %v6347, %v6435
    %6437 = vmatmul.bf16.gmra.mxu0 %v4410
    %v6438 = vpop.f32.mrf.mxu0
    %v6439 = vadd.f32 %v6350, %v6438
    %v6440 = vpop.f32.mrf.mxu0
    %v6441 = vadd.f32 %v6352, %v6440
    %6442 = vmatmul.bf16.gmra.mxu0 %v4418
    %v6443 = vpop.f32.mrf.mxu0
    %v6444 = vadd.f32 %v6355, %v6443
    %v6445 = vpop.f32.mrf.mxu0
    %v6446 = vadd.f32 %v6357, %v6445
    %6447 = vmatmul.bf16.gmra.mxu0 %v4426
    %v6448 = vpop.f32.mrf.mxu0
    %v6449 = vadd.f32 %v6360, %v6448
    %v6450 = vpop.f32.mrf.mxu0
    %v6451 = vadd.f32 %v6362, %v6450
    %6452 = vmatmul.bf16.gmra.mxu0 %v4434
    %v6453 = vpop.f32.mrf.mxu0
    %v6454 = vadd.f32 %v6365, %v6453
    %v6455 = vpop.f32.mrf.mxu0
    %v6456 = vadd.f32 %v6367, %v6455
    %6457 = vmatmul.bf16.gmra.mxu0 %v4442
    %v6458 = vpop.f32.mrf.mxu0
    %v6459 = vadd.f32 %v6370, %v6458
    %v6460 = vpop.f32.mrf.mxu0
    %v6461 = vadd.f32 %v6372, %v6460
    %6462 = vmatmul.bf16.gmra.mxu0 %v4450
    %v6463 = vpop.f32.mrf.mxu0
    %v6464 = vadd.f32 %v6375, %v6463
    %v6465 = vpop.f32.mrf.mxu0
    %v6466 = vadd.f32 %v6377, %v6465
    %6467 = vdwg.mxu0
    %6468 = vmatpush.bf16.msra.mxu0 %v6185
    %6469 = vmatpush.bf16.msra.mxu0 %v6184
    %6470 = vmatpush.bf16.msra.mxu0 %v6183
    %6471 = vmatpush.bf16.msra.mxu0 %v6182
    %6472 = vmatpush.bf16.msra.mxu0 %v6181
    %6473 = vmatpush.bf16.msra.mxu0 %v6180
    %6474 = vmatpush.bf16.msra.mxu0 %v6179
    %6475 = vmatpush.bf16.msra.mxu0 %v6178
    %6476 = vmatmul.bf16.gmra.mxu0 %v4075
    %v6477 = vpop.f32.mrf.mxu0
    %v6478 = vadd.f32 %v6389, %v6477
    %v6479 = vpop.f32.mrf.mxu0
    %v6480 = vadd.f32 %v6391, %v6479
    %6481 = vmatmul.bf16.gmra.mxu0 %v4083
    %v6482 = vpop.f32.mrf.mxu0
    %v6483 = vadd.f32 %v6394, %v6482
    %v6484 = vpop.f32.mrf.mxu0
    %v6485 = vadd.f32 %v6396, %v6484
    %6486 = vmatmul.bf16.gmra.mxu0 %v4091
    %v6487 = vpop.f32.mrf.mxu0
    %v6488 = vadd.f32 %v6399, %v6487
    %v6489 = vpop.f32.mrf.mxu0
    %v6490 = vadd.f32 %v6401, %v6489
    %6491 = vmatmul.bf16.gmra.mxu0 %v4099
    %v6492 = vpop.f32.mrf.mxu0
    %v6493 = vadd.f32 %v6404, %v6492
    %v6494 = vpop.f32.mrf.mxu0
    %v6495 = vadd.f32 %v6406, %v6494
    %6496 = vmatmul.bf16.gmra.mxu0 %v4107
    %v6497 = vpop.f32.mrf.mxu0
    %v6498 = vadd.f32 %v6409, %v6497
    %v6499 = vpop.f32.mrf.mxu0
    %v6500 = vadd.f32 %v6411, %v6499
    %6501 = vmatmul.bf16.gmra.mxu0 %v4115
    %v6502 = vpop.f32.mrf.mxu0
    %v6503 = vadd.f32 %v6414, %v6502
    %v6504 = vpop.f32.mrf.mxu0
    %v6505 = vadd.f32 %v6416, %v6504
    %6506 = vmatmul.bf16.gmra.mxu0 %v4123
    %v6507 = vpop.f32.mrf.mxu0
    %v6508 = vadd.f32 %v6419, %v6507
    %v6509 = vpop.f32.mrf.mxu0
    %v6510 = vadd.f32 %v6421, %v6509
    %6511 = vmatmul.bf16.gmra.mxu0 %v4131
    %v6512 = vpop.f32.mrf.mxu0
    %v6513 = vadd.f32 %v6424, %v6512
    %v6514 = vpop.f32.mrf.mxu0
    %v6515 = vadd.f32 %v6426, %v6514
    %6516 = vmatmul.bf16.gmra.mxu0 %v4395
    %v6517 = vpop.f32.mrf.mxu0
    %v6518 = vadd.f32 %v6429, %v6517
    %v6519 = vpop.f32.mrf.mxu0
    %v6520 = vadd.f32 %v6431, %v6519
    %6521 = vmatmul.bf16.gmra.mxu0 %v4403
    %v6522 = vpop.f32.mrf.mxu0
    %v6523 = vadd.f32 %v6434, %v6522
    %v6524 = vpop.f32.mrf.mxu0
    %v6525 = vadd.f32 %v6436, %v6524
    %6526 = vmatmul.bf16.gmra.mxu0 %v4411
    %v6527 = vpop.f32.mrf.mxu0
    %v6528 = vadd.f32 %v6439, %v6527
    %v6529 = vpop.f32.mrf.mxu0
    %v6530 = vadd.f32 %v6441, %v6529
    %6531 = vmatmul.bf16.gmra.mxu0 %v4419
    %v6532 = vpop.f32.mrf.mxu0
    %v6533 = vadd.f32 %v6444, %v6532
    %v6534 = vpop.f32.mrf.mxu0
    %v6535 = vadd.f32 %v6446, %v6534
    %6536 = vmatmul.bf16.gmra.mxu0 %v4427
    %v6537 = vpop.f32.mrf.mxu0
    %v6538 = vadd.f32 %v6449, %v6537
    %v6539 = vpop.f32.mrf.mxu0
    %v6540 = vadd.f32 %v6451, %v6539
    %6541 = vmatmul.bf16.gmra.mxu0 %v4435
    %v6542 = vpop.f32.mrf.mxu0
    %v6543 = vadd.f32 %v6454, %v6542
    %v6544 = vpop.f32.mrf.mxu0
    %v6545 = vadd.f32 %v6456, %v6544
    %6546 = vmatmul.bf16.gmra.mxu0 %v4443
    %v6547 = vpop.f32.mrf.mxu0
    %v6548 = vadd.f32 %v6459, %v6547
    %v6549 = vpop.f32.mrf.mxu0
    %v6550 = vadd.f32 %v6461, %v6549
    %6551 = vmatmul.bf16.gmra.mxu0 %v4451
    %v6552 = vpop.f32.mrf.mxu0
    %v6553 = vadd.f32 %v6464, %v6552
    %v6554 = vpop.f32.mrf.mxu0
    %v6555 = vadd.f32 %v6466, %v6554
    %6556 = vdwg.mxu0
    %6557 = vmatpush.bf16.msra.mxu0 %v6193
    %6558 = vmatpush.bf16.msra.mxu0 %v6192
    %6559 = vmatpush.bf16.msra.mxu0 %v6191
    %6560 = vmatpush.bf16.msra.mxu0 %v6190
    %6561 = vmatpush.bf16.msra.mxu0 %v6189
    %6562 = vmatpush.bf16.msra.mxu0 %v6188
    %6563 = vmatpush.bf16.msra.mxu0 %v6187
    %6564 = vmatpush.bf16.msra.mxu0 %v6186
    %6565 = vmatmul.bf16.gmra.mxu0 %v4076
    %v6566 = vpop.f32.mrf.mxu0
    %v6567 = vadd.f32 %v6478, %v6566
    %v6568 = vpop.f32.mrf.mxu0
    %v6569 = vadd.f32 %v6480, %v6568
    %6570 = vmatmul.bf16.gmra.mxu0 %v4084
    %v6571 = vpop.f32.mrf.mxu0
    %v6572 = vadd.f32 %v6483, %v6571
    %v6573 = vpop.f32.mrf.mxu0
    %v6574 = vadd.f32 %v6485, %v6573
    %6575 = vmatmul.bf16.gmra.mxu0 %v4092
    %v6576 = vpop.f32.mrf.mxu0
    %v6577 = vadd.f32 %v6488, %v6576
    %v6578 = vpop.f32.mrf.mxu0
    %v6579 = vadd.f32 %v6490, %v6578
    %6580 = vmatmul.bf16.gmra.mxu0 %v4100
    %v6581 = vpop.f32.mrf.mxu0
    %v6582 = vadd.f32 %v6493, %v6581
    %v6583 = vpop.f32.mrf.mxu0
    %v6584 = vadd.f32 %v6495, %v6583
    %6585 = vmatmul.bf16.gmra.mxu0 %v4108
    %v6586 = vpop.f32.mrf.mxu0
    %v6587 = vadd.f32 %v6498, %v6586
    %v6588 = vpop.f32.mrf.mxu0
    %v6589 = vadd.f32 %v6500, %v6588
    %6590 = vmatmul.bf16.gmra.mxu0 %v4116
    %v6591 = vpop.f32.mrf.mxu0
    %v6592 = vadd.f32 %v6503, %v6591
    %v6593 = vpop.f32.mrf.mxu0
    %v6594 = vadd.f32 %v6505, %v6593
    %6595 = vmatmul.bf16.gmra.mxu0 %v4124
    %v6596 = vpop.f32.mrf.mxu0
    %v6597 = vadd.f32 %v6508, %v6596
    %v6598 = vpop.f32.mrf.mxu0
    %v6599 = vadd.f32 %v6510, %v6598
    %6600 = vmatmul.bf16.gmra.mxu0 %v4132
    %v6601 = vpop.f32.mrf.mxu0
    %v6602 = vadd.f32 %v6513, %v6601
    %v6603 = vpop.f32.mrf.mxu0
    %v6604 = vadd.f32 %v6515, %v6603
    %6605 = vmatmul.bf16.gmra.mxu0 %v4396
    %v6606 = vpop.f32.mrf.mxu0
    %v6607 = vadd.f32 %v6518, %v6606
    %v6608 = vpop.f32.mrf.mxu0
    %v6609 = vadd.f32 %v6520, %v6608
    %6610 = vmatmul.bf16.gmra.mxu0 %v4404
    %v6611 = vpop.f32.mrf.mxu0
    %v6612 = vadd.f32 %v6523, %v6611
    %v6613 = vpop.f32.mrf.mxu0
    %v6614 = vadd.f32 %v6525, %v6613
    %6615 = vmatmul.bf16.gmra.mxu0 %v4412
    %v6616 = vpop.f32.mrf.mxu0
    %v6617 = vadd.f32 %v6528, %v6616
    %v6618 = vpop.f32.mrf.mxu0
    %v6619 = vadd.f32 %v6530, %v6618
    %6620 = vmatmul.bf16.gmra.mxu0 %v4420
    %v6621 = vpop.f32.mrf.mxu0
    %v6622 = vadd.f32 %v6533, %v6621
    %v6623 = vpop.f32.mrf.mxu0
    %v6624 = vadd.f32 %v6535, %v6623
    %6625 = vmatmul.bf16.gmra.mxu0 %v4428
    %v6626 = vpop.f32.mrf.mxu0
    %v6627 = vadd.f32 %v6538, %v6626
    %v6628 = vpop.f32.mrf.mxu0
    %v6629 = vadd.f32 %v6540, %v6628
    %6630 = vmatmul.bf16.gmra.mxu0 %v4436
    %v6631 = vpop.f32.mrf.mxu0
    %v6632 = vadd.f32 %v6543, %v6631
    %v6633 = vpop.f32.mrf.mxu0
    %v6634 = vadd.f32 %v6545, %v6633
    %6635 = vmatmul.bf16.gmra.mxu0 %v4444
    %v6636 = vpop.f32.mrf.mxu0
    %v6637 = vadd.f32 %v6548, %v6636
    %v6638 = vpop.f32.mrf.mxu0
    %v6639 = vadd.f32 %v6550, %v6638
    %6640 = vmatmul.bf16.gmra.mxu0 %v4452
    %v6641 = vpop.f32.mrf.mxu0
    %v6642 = vadd.f32 %v6553, %v6641
    %v6643 = vpop.f32.mrf.mxu0
    %v6644 = vadd.f32 %v6555, %v6643
    %6645 = vdwg.mxu0
    %6646 = vmatpush.bf16.msra.mxu0 %v6201
    %6647 = vmatpush.bf16.msra.mxu0 %v6200
    %6648 = vmatpush.bf16.msra.mxu0 %v6199
    %6649 = vmatpush.bf16.msra.mxu0 %v6198
    %6650 = vmatpush.bf16.msra.mxu0 %v6197
    %6651 = vmatpush.bf16.msra.mxu0 %v6196
    %6652 = vmatpush.bf16.msra.mxu0 %v6195
    %6653 = vmatpush.bf16.msra.mxu0 %v6194
    %6654 = vmatmul.bf16.gmra.mxu0 %v4077
    %v6655 = vpop.f32.mrf.mxu0
    %v6656 = vadd.f32 %v6567, %v6655
    %v6657 = vpop.f32.mrf.mxu0
    %v6658 = vadd.f32 %v6569, %v6657
    %6659 = vmatmul.bf16.gmra.mxu0 %v4085
    %v6660 = vpop.f32.mrf.mxu0
    %v6661 = vadd.f32 %v6572, %v6660
    %v6662 = vpop.f32.mrf.mxu0
    %v6663 = vadd.f32 %v6574, %v6662
    %6664 = vmatmul.bf16.gmra.mxu0 %v4093
    %v6665 = vpop.f32.mrf.mxu0
    %v6666 = vadd.f32 %v6577, %v6665
    %v6667 = vpop.f32.mrf.mxu0
    %v6668 = vadd.f32 %v6579, %v6667
    %6669 = vmatmul.bf16.gmra.mxu0 %v4101
    %v6670 = vpop.f32.mrf.mxu0
    %v6671 = vadd.f32 %v6582, %v6670
    %v6672 = vpop.f32.mrf.mxu0
    %v6673 = vadd.f32 %v6584, %v6672
    %6674 = vmatmul.bf16.gmra.mxu0 %v4109
    %v6675 = vpop.f32.mrf.mxu0
    %v6676 = vadd.f32 %v6587, %v6675
    %v6677 = vpop.f32.mrf.mxu0
    %v6678 = vadd.f32 %v6589, %v6677
    %6679 = vmatmul.bf16.gmra.mxu0 %v4117
    %v6680 = vpop.f32.mrf.mxu0
    %v6681 = vadd.f32 %v6592, %v6680
    %v6682 = vpop.f32.mrf.mxu0
    %v6683 = vadd.f32 %v6594, %v6682
    %6684 = vmatmul.bf16.gmra.mxu0 %v4125
    %v6685 = vpop.f32.mrf.mxu0
    %v6686 = vadd.f32 %v6597, %v6685
    %v6687 = vpop.f32.mrf.mxu0
    %v6688 = vadd.f32 %v6599, %v6687
    %6689 = vmatmul.bf16.gmra.mxu0 %v4133
    %v6690 = vpop.f32.mrf.mxu0
    %v6691 = vadd.f32 %v6602, %v6690
    %v6692 = vpop.f32.mrf.mxu0
    %v6693 = vadd.f32 %v6604, %v6692
    %6694 = vmatmul.bf16.gmra.mxu0 %v4397
    %v6695 = vpop.f32.mrf.mxu0
    %v6696 = vadd.f32 %v6607, %v6695
    %v6697 = vpop.f32.mrf.mxu0
    %v6698 = vadd.f32 %v6609, %v6697
    %6699 = vmatmul.bf16.gmra.mxu0 %v4405
    %v6700 = vpop.f32.mrf.mxu0
    %v6701 = vadd.f32 %v6612, %v6700
    %v6702 = vpop.f32.mrf.mxu0
    %v6703 = vadd.f32 %v6614, %v6702
    %6704 = vmatmul.bf16.gmra.mxu0 %v4413
    %v6705 = vpop.f32.mrf.mxu0
    %v6706 = vadd.f32 %v6617, %v6705
    %v6707 = vpop.f32.mrf.mxu0
    %v6708 = vadd.f32 %v6619, %v6707
    %6709 = vmatmul.bf16.gmra.mxu0 %v4421
    %v6710 = vpop.f32.mrf.mxu0
    %v6711 = vadd.f32 %v6622, %v6710
    %v6712 = vpop.f32.mrf.mxu0
    %v6713 = vadd.f32 %v6624, %v6712
    %6714 = vmatmul.bf16.gmra.mxu0 %v4429
    %v6715 = vpop.f32.mrf.mxu0
    %v6716 = vadd.f32 %v6627, %v6715
    %v6717 = vpop.f32.mrf.mxu0
    %v6718 = vadd.f32 %v6629, %v6717
    %6719 = vmatmul.bf16.gmra.mxu0 %v4437
    %v6720 = vpop.f32.mrf.mxu0
    %v6721 = vadd.f32 %v6632, %v6720
    %v6722 = vpop.f32.mrf.mxu0
    %v6723 = vadd.f32 %v6634, %v6722
    %6724 = vmatmul.bf16.gmra.mxu0 %v4445
    %v6725 = vpop.f32.mrf.mxu0
    %v6726 = vadd.f32 %v6637, %v6725
    %v6727 = vpop.f32.mrf.mxu0
    %v6728 = vadd.f32 %v6639, %v6727
    %6729 = vmatmul.bf16.gmra.mxu0 %v4453
    %v6730 = vpop.f32.mrf.mxu0
    %v6731 = vadd.f32 %v6642, %v6730
    %v6732 = vpop.f32.mrf.mxu0
    %v6733 = vadd.f32 %v6644, %v6732
    %6734 = vdwg.mxu0
    %6735 = vmatpush.bf16.msra.mxu0 %v6209
    %6736 = vmatpush.bf16.msra.mxu0 %v6208
    %6737 = vmatpush.bf16.msra.mxu0 %v6207
    %6738 = vmatpush.bf16.msra.mxu0 %v6206
    %6739 = vmatpush.bf16.msra.mxu0 %v6205
    %6740 = vmatpush.bf16.msra.mxu0 %v6204
    %6741 = vmatpush.bf16.msra.mxu0 %v6203
    %6742 = vmatpush.bf16.msra.mxu0 %v6202
    %6743 = vmatmul.bf16.gmra.mxu0 %v4078
    %v6744 = vpop.f32.mrf.mxu0
    %v6745 = vadd.f32 %v6656, %v6744
    %v6746 = vpop.f32.mrf.mxu0
    %v6747 = vadd.f32 %v6658, %v6746
    %6748 = vmatmul.bf16.gmra.mxu0 %v4086
    %v6749 = vpop.f32.mrf.mxu0
    %v6750 = vadd.f32 %v6661, %v6749
    %v6751 = vpop.f32.mrf.mxu0
    %v6752 = vadd.f32 %v6663, %v6751
    %6753 = vmatmul.bf16.gmra.mxu0 %v4094
    %v6754 = vpop.f32.mrf.mxu0
    %v6755 = vadd.f32 %v6666, %v6754
    %v6756 = vpop.f32.mrf.mxu0
    %v6757 = vadd.f32 %v6668, %v6756
    %6758 = vmatmul.bf16.gmra.mxu0 %v4102
    %v6759 = vpop.f32.mrf.mxu0
    %v6760 = vadd.f32 %v6671, %v6759
    %v6761 = vpop.f32.mrf.mxu0
    %v6762 = vadd.f32 %v6673, %v6761
    %6763 = vmatmul.bf16.gmra.mxu0 %v4110
    %v6764 = vpop.f32.mrf.mxu0
    %v6765 = vadd.f32 %v6676, %v6764
    %v6766 = vpop.f32.mrf.mxu0
    %v6767 = vadd.f32 %v6678, %v6766
    %6768 = vmatmul.bf16.gmra.mxu0 %v4118
    %v6769 = vpop.f32.mrf.mxu0
    %v6770 = vadd.f32 %v6681, %v6769
    %v6771 = vpop.f32.mrf.mxu0
    %v6772 = vadd.f32 %v6683, %v6771
    %6773 = vmatmul.bf16.gmra.mxu0 %v4126
    %v6774 = vpop.f32.mrf.mxu0
    %v6775 = vadd.f32 %v6686, %v6774
    %v6776 = vpop.f32.mrf.mxu0
    %v6777 = vadd.f32 %v6688, %v6776
    %6778 = vmatmul.bf16.gmra.mxu0 %v4134
    %v6779 = vpop.f32.mrf.mxu0
    %v6780 = vadd.f32 %v6691, %v6779
    %v6781 = vpop.f32.mrf.mxu0
    %v6782 = vadd.f32 %v6693, %v6781
    %6783 = vmatmul.bf16.gmra.mxu0 %v4398
    %v6784 = vpop.f32.mrf.mxu0
    %v6785 = vadd.f32 %v6696, %v6784
    %v6786 = vpop.f32.mrf.mxu0
    %v6787 = vadd.f32 %v6698, %v6786
    %6788 = vmatmul.bf16.gmra.mxu0 %v4406
    %v6789 = vpop.f32.mrf.mxu0
    %v6790 = vadd.f32 %v6701, %v6789
    %v6791 = vpop.f32.mrf.mxu0
    %v6792 = vadd.f32 %v6703, %v6791
    %6793 = vmatmul.bf16.gmra.mxu0 %v4414
    %v6794 = vpop.f32.mrf.mxu0
    %v6795 = vadd.f32 %v6706, %v6794
    %v6796 = vpop.f32.mrf.mxu0
    %v6797 = vadd.f32 %v6708, %v6796
    %6798 = vmatmul.bf16.gmra.mxu0 %v4422
    %v6799 = vpop.f32.mrf.mxu0
    %v6800 = vadd.f32 %v6711, %v6799
    %v6801 = vpop.f32.mrf.mxu0
    %v6802 = vadd.f32 %v6713, %v6801
    %6803 = vmatmul.bf16.gmra.mxu0 %v4430
    %v6804 = vpop.f32.mrf.mxu0
    %v6805 = vadd.f32 %v6716, %v6804
    %v6806 = vpop.f32.mrf.mxu0
    %v6807 = vadd.f32 %v6718, %v6806
    %6808 = vmatmul.bf16.gmra.mxu0 %v4438
    %v6809 = vpop.f32.mrf.mxu0
    %v6810 = vadd.f32 %v6721, %v6809
    %v6811 = vpop.f32.mrf.mxu0
    %v6812 = vadd.f32 %v6723, %v6811
    %6813 = vmatmul.bf16.gmra.mxu0 %v4446
    %v6814 = vpop.f32.mrf.mxu0
    %v6815 = vadd.f32 %v6726, %v6814
    %v6816 = vpop.f32.mrf.mxu0
    %v6817 = vadd.f32 %v6728, %v6816
    %6818 = vmatmul.bf16.gmra.mxu0 %v4454
    %v6819 = vpop.f32.mrf.mxu0
    %v6820 = vadd.f32 %v6731, %v6819
    %v6821 = vpop.f32.mrf.mxu0
    %v6822 = vadd.f32 %v6733, %v6821
    %6823 = vdwg.mxu0
    %6824 = vmatpush.bf16.msra.mxu0 %v6217
    %6825 = vmatpush.bf16.msra.mxu0 %v6216
    %6826 = vmatpush.bf16.msra.mxu0 %v6215
    %6827 = vmatpush.bf16.msra.mxu0 %v6214
    %6828 = vmatpush.bf16.msra.mxu0 %v6213
    %6829 = vmatpush.bf16.msra.mxu0 %v6212
    %6830 = vmatpush.bf16.msra.mxu0 %v6211
    %6831 = vmatpush.bf16.msra.mxu0 %v6210
    %6832 = vmatmul.bf16.gmra.mxu0 %v4079
    %v6833 = vpop.f32.mrf.mxu0
    %v6834 = vadd.f32 %v6745, %v6833
    %v6835 = vpop.f32.mrf.mxu0
    %v6836 = vadd.f32 %v6747, %v6835
    %6837 = vmatmul.bf16.gmra.mxu0 %v4087
    %v6838 = vpop.f32.mrf.mxu0
    %v6839 = vadd.f32 %v6750, %v6838
    %v6840 = vpop.f32.mrf.mxu0
    %v6841 = vadd.f32 %v6752, %v6840
    %6842 = vmatmul.bf16.gmra.mxu0 %v4095
    %v6843 = vpop.f32.mrf.mxu0
    %v6844 = vadd.f32 %v6755, %v6843
    %v6845 = vpop.f32.mrf.mxu0
    %v6846 = vadd.f32 %v6757, %v6845
    %6847 = vmatmul.bf16.gmra.mxu0 %v4103
    %v6848 = vpop.f32.mrf.mxu0
    %v6849 = vadd.f32 %v6760, %v6848
    %v6850 = vpop.f32.mrf.mxu0
    %v6851 = vadd.f32 %v6762, %v6850
    %6852 = vmatmul.bf16.gmra.mxu0 %v4111
    %v6853 = vpop.f32.mrf.mxu0
    %v6854 = vadd.f32 %v6765, %v6853
    %v6855 = vpop.f32.mrf.mxu0
    %v6856 = vadd.f32 %v6767, %v6855
    %6857 = vmatmul.bf16.gmra.mxu0 %v4119
    %v6858 = vpop.f32.mrf.mxu0
    %v6859 = vadd.f32 %v6770, %v6858
    %v6860 = vpop.f32.mrf.mxu0
    %v6861 = vadd.f32 %v6772, %v6860
    %6862 = vmatmul.bf16.gmra.mxu0 %v4127
    %v6863 = vpop.f32.mrf.mxu0
    %v6864 = vadd.f32 %v6775, %v6863
    %v6865 = vpop.f32.mrf.mxu0
    %v6866 = vadd.f32 %v6777, %v6865
    %6867 = vmatmul.bf16.gmra.mxu0 %v4135
    %v6868 = vpop.f32.mrf.mxu0
    %v6869 = vadd.f32 %v6780, %v6868
    %v6870 = vpop.f32.mrf.mxu0
    %v6871 = vadd.f32 %v6782, %v6870
    %6872 = vmatmul.bf16.gmra.mxu0 %v4399
    %v6873 = vpop.f32.mrf.mxu0
    %v6874 = vadd.f32 %v6785, %v6873
    %v6875 = vpop.f32.mrf.mxu0
    %v6876 = vadd.f32 %v6787, %v6875
    %6877 = vmatmul.bf16.gmra.mxu0 %v4407
    %v6878 = vpop.f32.mrf.mxu0
    %v6879 = vadd.f32 %v6790, %v6878
    %v6880 = vpop.f32.mrf.mxu0
    %v6881 = vadd.f32 %v6792, %v6880
    %6882 = vmatmul.bf16.gmra.mxu0 %v4415
    %v6883 = vpop.f32.mrf.mxu0
    %v6884 = vadd.f32 %v6795, %v6883
    %v6885 = vpop.f32.mrf.mxu0
    %v6886 = vadd.f32 %v6797, %v6885
    %6887 = vmatmul.bf16.gmra.mxu0 %v4423
    %v6888 = vpop.f32.mrf.mxu0
    %v6889 = vadd.f32 %v6800, %v6888
    %v6890 = vpop.f32.mrf.mxu0
    %v6891 = vadd.f32 %v6802, %v6890
    %6892 = vmatmul.bf16.gmra.mxu0 %v4431
    %v6893 = vpop.f32.mrf.mxu0
    %v6894 = vadd.f32 %v6805, %v6893
    %v6895 = vpop.f32.mrf.mxu0
    %v6896 = vadd.f32 %v6807, %v6895
    %6897 = vmatmul.bf16.gmra.mxu0 %v4439
    %v6898 = vpop.f32.mrf.mxu0
    %v6899 = vadd.f32 %v6810, %v6898
    %v6900 = vpop.f32.mrf.mxu0
    %v6901 = vadd.f32 %v6812, %v6900
    %6902 = vmatmul.bf16.gmra.mxu0 %v4447
    %v6903 = vpop.f32.mrf.mxu0
    %v6904 = vadd.f32 %v6815, %v6903
    %v6905 = vpop.f32.mrf.mxu0
    %v6906 = vadd.f32 %v6817, %v6905
    %6907 = vmatmul.bf16.gmra.mxu0 %v4455
    %v6908 = vpop.f32.mrf.mxu0
    %v6909 = vadd.f32 %v6820, %v6908
    %v6910 = vpop.f32.mrf.mxu0
    %v6911 = vadd.f32 %v6822, %v6910
    %6912 = vdwg.mxu0
    %6913 = vmatpush.bf16.msra.mxu0 %v6225
    %6914 = vmatpush.bf16.msra.mxu0 %v6224
    %6915 = vmatpush.bf16.msra.mxu0 %v6223
    %6916 = vmatpush.bf16.msra.mxu0 %v6222
    %6917 = vmatpush.bf16.msra.mxu0 %v6221
    %6918 = vmatpush.bf16.msra.mxu0 %v6220
    %6919 = vmatpush.bf16.msra.mxu0 %v6219
    %6920 = vmatpush.bf16.msra.mxu0 %v6218
    %6921 = vmatmul.bf16.gmra.mxu0 %v4080
    %v6922 = vpop.f32.mrf.mxu0
    %v6923 = vadd.f32 %v6834, %v6922
    %v6924 = vpop.f32.mrf.mxu0
    %v6925 = vadd.f32 %v6836, %v6924
    %6926 = vmatmul.bf16.gmra.mxu0 %v4088
    %v6927 = vpop.f32.mrf.mxu0
    %v6928 = vadd.f32 %v6839, %v6927
    %v6929 = vpop.f32.mrf.mxu0
    %v6930 = vadd.f32 %v6841, %v6929
    %6931 = vmatmul.bf16.gmra.mxu0 %v4096
    %v6932 = vpop.f32.mrf.mxu0
    %v6933 = vadd.f32 %v6844, %v6932
    %v6934 = vpop.f32.mrf.mxu0
    %v6935 = vadd.f32 %v6846, %v6934
    %6936 = vmatmul.bf16.gmra.mxu0 %v4104
    %v6937 = vpop.f32.mrf.mxu0
    %v6938 = vadd.f32 %v6849, %v6937
    %v6939 = vpop.f32.mrf.mxu0
    %v6940 = vadd.f32 %v6851, %v6939
    %6941 = vmatmul.bf16.gmra.mxu0 %v4112
    %v6942 = vpop.f32.mrf.mxu0
    %v6943 = vadd.f32 %v6854, %v6942
    %v6944 = vpop.f32.mrf.mxu0
    %v6945 = vadd.f32 %v6856, %v6944
    %6946 = vmatmul.bf16.gmra.mxu0 %v4120
    %v6947 = vpop.f32.mrf.mxu0
    %v6948 = vadd.f32 %v6859, %v6947
    %v6949 = vpop.f32.mrf.mxu0
    %v6950 = vadd.f32 %v6861, %v6949
    %6951 = vmatmul.bf16.gmra.mxu0 %v4128
    %v6952 = vpop.f32.mrf.mxu0
    %v6953 = vadd.f32 %v6864, %v6952
    %v6954 = vpop.f32.mrf.mxu0
    %v6955 = vadd.f32 %v6866, %v6954
    %6956 = vmatmul.bf16.gmra.mxu0 %v4136
    %v6957 = vpop.f32.mrf.mxu0
    %v6958 = vadd.f32 %v6869, %v6957
    %v6959 = vpop.f32.mrf.mxu0
    %v6960 = vadd.f32 %v6871, %v6959
    %6961 = vmatmul.bf16.gmra.mxu0 %v4400
    %v6962 = vpop.f32.mrf.mxu0
    %v6963 = vadd.f32 %v6874, %v6962
    %v6964 = vpop.f32.mrf.mxu0
    %v6965 = vadd.f32 %v6876, %v6964
    %6966 = vmatmul.bf16.gmra.mxu0 %v4408
    %v6967 = vpop.f32.mrf.mxu0
    %v6968 = vadd.f32 %v6879, %v6967
    %v6969 = vpop.f32.mrf.mxu0
    %v6970 = vadd.f32 %v6881, %v6969
    %6971 = vmatmul.bf16.gmra.mxu0 %v4416
    %v6972 = vpop.f32.mrf.mxu0
    %v6973 = vadd.f32 %v6884, %v6972
    %v6974 = vpop.f32.mrf.mxu0
    %v6975 = vadd.f32 %v6886, %v6974
    %6976 = vmatmul.bf16.gmra.mxu0 %v4424
    %v6977 = vpop.f32.mrf.mxu0
    %v6978 = vadd.f32 %v6889, %v6977
    %v6979 = vpop.f32.mrf.mxu0
    %v6980 = vadd.f32 %v6891, %v6979
    %6981 = vmatmul.bf16.gmra.mxu0 %v4432
    %v6982 = vpop.f32.mrf.mxu0
    %v6983 = vadd.f32 %v6894, %v6982
    %v6984 = vpop.f32.mrf.mxu0
    %v6985 = vadd.f32 %v6896, %v6984
    %6986 = vmatmul.bf16.gmra.mxu0 %v4440
    %v6987 = vpop.f32.mrf.mxu0
    %v6988 = vadd.f32 %v6899, %v6987
    %v6989 = vpop.f32.mrf.mxu0
    %v6990 = vadd.f32 %v6901, %v6989
    %6991 = vmatmul.bf16.gmra.mxu0 %v4448
    %v6992 = vpop.f32.mrf.mxu0
    %v6993 = vadd.f32 %v6904, %v6992
    %v6994 = vpop.f32.mrf.mxu0
    %v6995 = vadd.f32 %v6906, %v6994
    %6996 = vmatmul.bf16.gmra.mxu0 %v4456
    %v6997 = vpop.f32.mrf.mxu0
    %v6998 = vadd.f32 %v6909, %v6997
    %v6999 = vpop.f32.mrf.mxu0
    %v7000 = vadd.f32 %v6911, %v6999
    %7001 = vdwg.mxu0
    %v7002 = vadd.f32 %v5746, %v6923
    %v7003 = vadd.f32 %v5747, %v6925
    %v7004 = vadd.f32 %v5748, %v6928
    %v7005 = vadd.f32 %v5749, %v6930
    %v7006 = vadd.f32 %v5750, %v6933
    %v7007 = vadd.f32 %v5751, %v6935
    %v7008 = vadd.f32 %v5752, %v6938
    %v7009 = vadd.f32 %v5753, %v6940
    %v7010 = vadd.f32 %v5754, %v6943
    %v7011 = vadd.f32 %v5755, %v6945
    %v7012 = vadd.f32 %v5756, %v6948
    %v7013 = vadd.f32 %v5757, %v6950
    %v7014 = vadd.f32 %v5758, %v6953
    %v7015 = vadd.f32 %v5759, %v6955
    %v7016 = vadd.f32 %v5760, %v6958
    %v7017 = vadd.f32 %v5761, %v6960
    %v7018 = vadd.f32 %v5762, %v6963
    %v7019 = vadd.f32 %v5763, %v6965
    %v7020 = vadd.f32 %v5764, %v6968
    %v7021 = vadd.f32 %v5765, %v6970
    %v7022 = vadd.f32 %v5766, %v6973
    %v7023 = vadd.f32 %v5767, %v6975
    %v7024 = vadd.f32 %v5768, %v6978
    %v7025 = vadd.f32 %v5769, %v6980
    %v7026 = vadd.f32 %v5770, %v6983
    %v7027 = vadd.f32 %v5771, %v6985
    %v7028 = vadd.f32 %v5772, %v6988
    %v7029 = vadd.f32 %v5773, %v6990
    %v7030 = vadd.f32 %v5774, %v6993
    %v7031 = vadd.f32 %v5775, %v6995
    %v7032 = vadd.f32 %v5776, %v6998
    %v7033 = vadd.f32 %v5777, %v7000
    %v7034 = vadd.f32 %v722, %v7002
    %v7035 = vadd.f32 %v723, %v7003
    %v7036 = vadd.f32 %v724, %v7004
    %v7037 = vadd.f32 %v725, %v7005
    %v7038 = vadd.f32 %v726, %v7006
    %v7039 = vadd.f32 %v727, %v7007
    %v7040 = vadd.f32 %v728, %v7008
    %v7041 = vadd.f32 %v729, %v7009
    %v7042 = vadd.f32 %v730, %v7010
    %v7043 = vadd.f32 %v731, %v7011
    %v7044 = vadd.f32 %v732, %v7012
    %v7045 = vadd.f32 %v733, %v7013
    %v7046 = vadd.f32 %v734, %v7014
    %v7047 = vadd.f32 %v735, %v7015
    %v7048 = vadd.f32 %v736, %v7016
    %v7049 = vadd.f32 %v737, %v7017
    %v7050 = vadd.f32 %v738, %v7018
    %v7051 = vadd.f32 %v739, %v7019
    %v7052 = vadd.f32 %v740, %v7020
    %v7053 = vadd.f32 %v741, %v7021
    %v7054 = vadd.f32 %v742, %v7022
    %v7055 = vadd.f32 %v743, %v7023
    %v7056 = vadd.f32 %v744, %v7024
    %v7057 = vadd.f32 %v745, %v7025
    %v7058 = vadd.f32 %v746, %v7026
    %v7059 = vadd.f32 %v747, %v7027
    %v7060 = vadd.f32 %v748, %v7028
    %v7061 = vadd.f32 %v749, %v7029
    %v7062 = vadd.f32 %v750, %v7030
    %v7063 = vadd.f32 %v751, %v7031
    %v7064 = vadd.f32 %v752, %v7032
    %v7065 = vadd.f32 %v753, %v7033
    %7066 = vadd.xlane.f32.xlu0 %v7034
    %v7067 = vpop.xlane.xlu0 %7066
    %7068 = vadd.xlane.f32.xlu0 %v7035
    %v7069 = vpop.xlane.xlu0 %7068
    %7070 = vadd.xlane.f32.xlu0 %v7036
    %v7071 = vpop.xlane.xlu0 %7070
    %7072 = vadd.xlane.f32.xlu0 %v7037
    %v7073 = vpop.xlane.xlu0 %7072
    %7074 = vadd.xlane.f32.xlu0 %v7038
    %v7075 = vpop.xlane.xlu0 %7074
    %7076 = vadd.xlane.f32.xlu0 %v7039
    %v7077 = vpop.xlane.xlu0 %7076
    %7078 = vadd.xlane.f32.xlu0 %v7040
    %v7079 = vpop.xlane.xlu0 %7078
    %7080 = vadd.xlane.f32.xlu0 %v7041
    %v7081 = vpop.xlane.xlu0 %7080
    %7082 = vadd.xlane.f32.xlu0 %v7042
    %v7083 = vpop.xlane.xlu0 %7082
    %7084 = vadd.xlane.f32.xlu0 %v7043
    %v7085 = vpop.xlane.xlu0 %7084
    %7086 = vadd.xlane.f32.xlu0 %v7044
    %v7087 = vpop.xlane.xlu0 %7086
    %7088 = vadd.xlane.f32.xlu0 %v7045
    %v7089 = vpop.xlane.xlu0 %7088
    %7090 = vadd.xlane.f32.xlu0 %v7046
    %v7091 = vpop.xlane.xlu0 %7090
    %7092 = vadd.xlane.f32.xlu0 %v7047
    %v7093 = vpop.xlane.xlu0 %7092
    %7094 = vadd.xlane.f32.xlu0 %v7048
    %v7095 = vpop.xlane.xlu0 %7094
    %7096 = vadd.xlane.f32.xlu0 %v7049
    %v7097 = vpop.xlane.xlu0 %7096
    %7098 = vadd.xlane.f32.xlu0 %v7050
    %v7099 = vpop.xlane.xlu0 %7098
    %7100 = vadd.xlane.f32.xlu0 %v7051
    %v7101 = vpop.xlane.xlu0 %7100
    %7102 = vadd.xlane.f32.xlu0 %v7052
    %v7103 = vpop.xlane.xlu0 %7102
    %7104 = vadd.xlane.f32.xlu0 %v7053
    %v7105 = vpop.xlane.xlu0 %7104
    %7106 = vadd.xlane.f32.xlu0 %v7054
    %v7107 = vpop.xlane.xlu0 %7106
    %7108 = vadd.xlane.f32.xlu0 %v7055
    %v7109 = vpop.xlane.xlu0 %7108
    %7110 = vadd.xlane.f32.xlu0 %v7056
    %v7111 = vpop.xlane.xlu0 %7110
    %7112 = vadd.xlane.f32.xlu0 %v7057
    %v7113 = vpop.xlane.xlu0 %7112
    %7114 = vadd.xlane.f32.xlu0 %v7058
    %v7115 = vpop.xlane.xlu0 %7114
    %7116 = vadd.xlane.f32.xlu0 %v7059
    %v7117 = vpop.xlane.xlu0 %7116
    %7118 = vadd.xlane.f32.xlu0 %v7060
    %v7119 = vpop.xlane.xlu0 %7118
    %7120 = vadd.xlane.f32.xlu0 %v7061
    %v7121 = vpop.xlane.xlu0 %7120
    %7122 = vadd.xlane.f32.xlu0 %v7062
    %v7123 = vpop.xlane.xlu0 %7122
    %7124 = vadd.xlane.f32.xlu0 %v7063
    %v7125 = vpop.xlane.xlu0 %7124
    %7126 = vadd.xlane.f32.xlu0 %v7064
    %v7127 = vpop.xlane.xlu0 %7126
    %7128 = vadd.xlane.f32.xlu0 %v7065
    %v7129 = vpop.xlane.xlu0 %7128
    %v7130 = vrcp.pop 128.0
    %v7131 = vmul.f32 128.0, %v7130
    %v7132 = vsub.f32 1.0, %v7131
    %v7133 = vmul.f32 %v7130, %v7132
    %v7134 = vadd.f32 %v7130, %v7133
    %vm7135 = vweird.f32 %v7130
    %v7136 = vsel %vm7135, %v7130, %v7134
    %v7137 = vmul.f32 %v7067, %v7136
    %v7138 = vmul.f32 %v7069, %v7136
    %v7139 = vmul.f32 %v7071, %v7136
    %v7140 = vmul.f32 %v7073, %v7136
    %v7141 = vmul.f32 %v7075, %v7136
    %v7142 = vmul.f32 %v7077, %v7136
    %v7143 = vmul.f32 %v7079, %v7136
    %v7144 = vmul.f32 %v7081, %v7136
    %v7145 = vmul.f32 %v7083, %v7136
    %v7146 = vmul.f32 %v7085, %v7136
    %v7147 = vmul.f32 %v7087, %v7136
    %v7148 = vmul.f32 %v7089, %v7136
    %v7149 = vmul.f32 %v7091, %v7136
    %v7150 = vmul.f32 %v7093, %v7136
    %v7151 = vmul.f32 %v7095, %v7136
    %v7152 = vmul.f32 %v7097, %v7136
    %v7153 = vmul.f32 %v7099, %v7136
    %v7154 = vmul.f32 %v7101, %v7136
    %v7155 = vmul.f32 %v7103, %v7136
    %v7156 = vmul.f32 %v7105, %v7136
    %v7157 = vmul.f32 %v7107, %v7136
    %v7158 = vmul.f32 %v7109, %v7136
    %v7159 = vmul.f32 %v7111, %v7136
    %v7160 = vmul.f32 %v7113, %v7136
    %v7161 = vmul.f32 %v7115, %v7136
    %v7162 = vmul.f32 %v7117, %v7136
    %v7163 = vmul.f32 %v7119, %v7136
    %v7164 = vmul.f32 %v7121, %v7136
    %v7165 = vmul.f32 %v7123, %v7136
    %v7166 = vmul.f32 %v7125, %v7136
    %v7167 = vmul.f32 %v7127, %v7136
    %v7168 = vmul.f32 %v7129, %v7136
    %v7169 = vsub.f32 %v7034, %v7137
    %v7170 = vsub.f32 %v7035, %v7138
    %v7171 = vsub.f32 %v7036, %v7139
    %v7172 = vsub.f32 %v7037, %v7140
    %v7173 = vsub.f32 %v7038, %v7141
    %v7174 = vsub.f32 %v7039, %v7142
    %v7175 = vsub.f32 %v7040, %v7143
    %v7176 = vsub.f32 %v7041, %v7144
    %v7177 = vsub.f32 %v7042, %v7145
    %v7178 = vsub.f32 %v7043, %v7146
    %v7179 = vsub.f32 %v7044, %v7147
    %v7180 = vsub.f32 %v7045, %v7148
    %v7181 = vsub.f32 %v7046, %v7149
    %v7182 = vsub.f32 %v7047, %v7150
    %v7183 = vsub.f32 %v7048, %v7151
    %v7184 = vsub.f32 %v7049, %v7152
    %v7185 = vsub.f32 %v7050, %v7153
    %v7186 = vsub.f32 %v7051, %v7154
    %v7187 = vsub.f32 %v7052, %v7155
    %v7188 = vsub.f32 %v7053, %v7156
    %v7189 = vsub.f32 %v7054, %v7157
    %v7190 = vsub.f32 %v7055, %v7158
    %v7191 = vsub.f32 %v7056, %v7159
    %v7192 = vsub.f32 %v7057, %v7160
    %v7193 = vsub.f32 %v7058, %v7161
    %v7194 = vsub.f32 %v7059, %v7162
    %v7195 = vsub.f32 %v7060, %v7163
    %v7196 = vsub.f32 %v7061, %v7164
    %v7197 = vsub.f32 %v7062, %v7165
    %v7198 = vsub.f32 %v7063, %v7166
    %v7199 = vsub.f32 %v7064, %v7167
    %v7200 = vsub.f32 %v7065, %v7168
    %v7201 = vmul.f32 %v7169, %v7169
    %v7202 = vmul.f32 %v7170, %v7170
    %v7203 = vmul.f32 %v7171, %v7171
    %v7204 = vmul.f32 %v7172, %v7172
    %v7205 = vmul.f32 %v7173, %v7173
    %v7206 = vmul.f32 %v7174, %v7174
    %v7207 = vmul.f32 %v7175, %v7175
    %v7208 = vmul.f32 %v7176, %v7176
    %v7209 = vmul.f32 %v7177, %v7177
    %v7210 = vmul.f32 %v7178, %v7178
    %v7211 = vmul.f32 %v7179, %v7179
    %v7212 = vmul.f32 %v7180, %v7180
    %v7213 = vmul.f32 %v7181, %v7181
    %v7214 = vmul.f32 %v7182, %v7182
    %v7215 = vmul.f32 %v7183, %v7183
    %v7216 = vmul.f32 %v7184, %v7184
    %v7217 = vmul.f32 %v7185, %v7185
    %v7218 = vmul.f32 %v7186, %v7186
    %v7219 = vmul.f32 %v7187, %v7187
    %v7220 = vmul.f32 %v7188, %v7188
    %v7221 = vmul.f32 %v7189, %v7189
    %v7222 = vmul.f32 %v7190, %v7190
    %v7223 = vmul.f32 %v7191, %v7191
    %v7224 = vmul.f32 %v7192, %v7192
    %v7225 = vmul.f32 %v7193, %v7193
    %v7226 = vmul.f32 %v7194, %v7194
    %v7227 = vmul.f32 %v7195, %v7195
    %v7228 = vmul.f32 %v7196, %v7196
    %v7229 = vmul.f32 %v7197, %v7197
    %v7230 = vmul.f32 %v7198, %v7198
    %v7231 = vmul.f32 %v7199, %v7199
    %v7232 = vmul.f32 %v7200, %v7200
    %7233 = vadd.xlane.f32.xlu0 %v7201
    %v7234 = vpop.xlane.xlu0 %7233
    %7235 = vadd.xlane.f32.xlu0 %v7202
    %v7236 = vpop.xlane.xlu0 %7235
    %7237 = vadd.xlane.f32.xlu0 %v7203
    %v7238 = vpop.xlane.xlu0 %7237
    %7239 = vadd.xlane.f32.xlu0 %v7204
    %v7240 = vpop.xlane.xlu0 %7239
    %7241 = vadd.xlane.f32.xlu0 %v7205
    %v7242 = vpop.xlane.xlu0 %7241
    %7243 = vadd.xlane.f32.xlu0 %v7206
    %v7244 = vpop.xlane.xlu0 %7243
    %7245 = vadd.xlane.f32.xlu0 %v7207
    %v7246 = vpop.xlane.xlu0 %7245
    %7247 = vadd.xlane.f32.xlu0 %v7208
    %v7248 = vpop.xlane.xlu0 %7247
    %7249 = vadd.xlane.f32.xlu0 %v7209
    %v7250 = vpop.xlane.xlu0 %7249
    %7251 = vadd.xlane.f32.xlu0 %v7210
    %v7252 = vpop.xlane.xlu0 %7251
    %7253 = vadd.xlane.f32.xlu0 %v7211
    %v7254 = vpop.xlane.xlu0 %7253
    %7255 = vadd.xlane.f32.xlu0 %v7212
    %v7256 = vpop.xlane.xlu0 %7255
    %7257 = vadd.xlane.f32.xlu0 %v7213
    %v7258 = vpop.xlane.xlu0 %7257
    %7259 = vadd.xlane.f32.xlu0 %v7214
    %v7260 = vpop.xlane.xlu0 %7259
    %7261 = vadd.xlane.f32.xlu0 %v7215
    %v7262 = vpop.xlane.xlu0 %7261
    %7263 = vadd.xlane.f32.xlu0 %v7216
    %v7264 = vpop.xlane.xlu0 %7263
    %7265 = vadd.xlane.f32.xlu0 %v7217
    %v7266 = vpop.xlane.xlu0 %7265
    %7267 = vadd.xlane.f32.xlu0 %v7218
    %v7268 = vpop.xlane.xlu0 %7267
    %7269 = vadd.xlane.f32.xlu0 %v7219
    %v7270 = vpop.xlane.xlu0 %7269
    %7271 = vadd.xlane.f32.xlu0 %v7220
    %v7272 = vpop.xlane.xlu0 %7271
    %7273 = vadd.xlane.f32.xlu0 %v7221
    %v7274 = vpop.xlane.xlu0 %7273
    %7275 = vadd.xlane.f32.xlu0 %v7222
    %v7276 = vpop.xlane.xlu0 %7275
    %7277 = vadd.xlane.f32.xlu0 %v7223
    %v7278 = vpop.xlane.xlu0 %7277
    %7279 = vadd.xlane.f32.xlu0 %v7224
    %v7280 = vpop.xlane.xlu0 %7279
    %7281 = vadd.xlane.f32.xlu0 %v7225
    %v7282 = vpop.xlane.xlu0 %7281
    %7283 = vadd.xlane.f32.xlu0 %v7226
    %v7284 = vpop.xlane.xlu0 %7283
    %7285 = vadd.xlane.f32.xlu0 %v7227
    %v7286 = vpop.xlane.xlu0 %7285
    %7287 = vadd.xlane.f32.xlu0 %v7228
    %v7288 = vpop.xlane.xlu0 %7287
    %7289 = vadd.xlane.f32.xlu0 %v7229
    %v7290 = vpop.xlane.xlu0 %7289
    %7291 = vadd.xlane.f32.xlu0 %v7230
    %v7292 = vpop.xlane.xlu0 %7291
    %7293 = vadd.xlane.f32.xlu0 %v7231
    %v7294 = vpop.xlane.xlu0 %7293
    %7295 = vadd.xlane.f32.xlu0 %v7232
    %v7296 = vpop.xlane.xlu0 %7295
    %v7297 = vmul.f32 %v7234, %v7136
    %v7298 = vmul.f32 %v7236, %v7136
    %v7299 = vmul.f32 %v7238, %v7136
    %v7300 = vmul.f32 %v7240, %v7136
    %v7301 = vmul.f32 %v7242, %v7136
    %v7302 = vmul.f32 %v7244, %v7136
    %v7303 = vmul.f32 %v7246, %v7136
    %v7304 = vmul.f32 %v7248, %v7136
    %v7305 = vmul.f32 %v7250, %v7136
    %v7306 = vmul.f32 %v7252, %v7136
    %v7307 = vmul.f32 %v7254, %v7136
    %v7308 = vmul.f32 %v7256, %v7136
    %v7309 = vmul.f32 %v7258, %v7136
    %v7310 = vmul.f32 %v7260, %v7136
    %v7311 = vmul.f32 %v7262, %v7136
    %v7312 = vmul.f32 %v7264, %v7136
    %v7313 = vmul.f32 %v7266, %v7136
    %v7314 = vmul.f32 %v7268, %v7136
    %v7315 = vmul.f32 %v7270, %v7136
    %v7316 = vmul.f32 %v7272, %v7136
    %v7317 = vmul.f32 %v7274, %v7136
    %v7318 = vmul.f32 %v7276, %v7136
    %v7319 = vmul.f32 %v7278, %v7136
    %v7320 = vmul.f32 %v7280, %v7136
    %v7321 = vmul.f32 %v7282, %v7136
    %v7322 = vmul.f32 %v7284, %v7136
    %v7323 = vmul.f32 %v7286, %v7136
    %v7324 = vmul.f32 %v7288, %v7136
    %v7325 = vmul.f32 %v7290, %v7136
    %v7326 = vmul.f32 %v7292, %v7136
    %v7327 = vmul.f32 %v7294, %v7136
    %v7328 = vmul.f32 %v7296, %v7136
    %v7329 = vadd.f32 %v7297, 1e-05
    %v7330 = vadd.f32 %v7298, 1e-05
    %v7331 = vadd.f32 %v7299, 1e-05
    %v7332 = vadd.f32 %v7300, 1e-05
    %v7333 = vadd.f32 %v7301, 1e-05
    %v7334 = vadd.f32 %v7302, 1e-05
    %v7335 = vadd.f32 %v7303, 1e-05
    %v7336 = vadd.f32 %v7304, 1e-05
    %v7337 = vadd.f32 %v7305, 1e-05
    %v7338 = vadd.f32 %v7306, 1e-05
    %v7339 = vadd.f32 %v7307, 1e-05
    %v7340 = vadd.f32 %v7308, 1e-05
    %v7341 = vadd.f32 %v7309, 1e-05
    %v7342 = vadd.f32 %v7310, 1e-05
    %v7343 = vadd.f32 %v7311, 1e-05
    %v7344 = vadd.f32 %v7312, 1e-05
    %v7345 = vadd.f32 %v7313, 1e-05
    %v7346 = vadd.f32 %v7314, 1e-05
    %v7347 = vadd.f32 %v7315, 1e-05
    %v7348 = vadd.f32 %v7316, 1e-05
    %v7349 = vadd.f32 %v7317, 1e-05
    %v7350 = vadd.f32 %v7318, 1e-05
    %v7351 = vadd.f32 %v7319, 1e-05
    %v7352 = vadd.f32 %v7320, 1e-05
    %v7353 = vadd.f32 %v7321, 1e-05
    %v7354 = vadd.f32 %v7322, 1e-05
    %v7355 = vadd.f32 %v7323, 1e-05
    %v7356 = vadd.f32 %v7324, 1e-05
    %v7357 = vadd.f32 %v7325, 1e-05
    %v7358 = vadd.f32 %v7326, 1e-05
    %v7359 = vadd.f32 %v7327, 1e-05
    %v7360 = vadd.f32 %v7328, 1e-05
    %v7361 = vrsqrt.pop %v7329
    %v7362 = vmul.f32 %v7361, %v7329
    %v7363 = vmul.f32 %v7362, %v7361
    %v7364 = vmul.f32 0.5, %v7363
    %v7365 = vsub.f32 1.5, %v7364
    %v7366 = vmul.f32 %v7361, %v7365
    %vm7367 = vweird.f32 %v7329
    %vm7368 = vweird.f32 %v7361
    %vm7369 = vmor %vm7367, %vm7368
    %v7370 = vsel %vm7369, %v7361, %v7366
    %v7371 = vrsqrt.pop %v7330
    %v7372 = vmul.f32 %v7371, %v7330
    %v7373 = vmul.f32 %v7372, %v7371
    %v7374 = vmul.f32 0.5, %v7373
    %v7375 = vsub.f32 1.5, %v7374
    %v7376 = vmul.f32 %v7371, %v7375
    %vm7377 = vweird.f32 %v7330
    %vm7378 = vweird.f32 %v7371
    %vm7379 = vmor %vm7377, %vm7378
    %v7380 = vsel %vm7379, %v7371, %v7376
    %v7381 = vrsqrt.pop %v7331
    %v7382 = vmul.f32 %v7381, %v7331
    %v7383 = vmul.f32 %v7382, %v7381
    %v7384 = vmul.f32 0.5, %v7383
    %v7385 = vsub.f32 1.5, %v7384
    %v7386 = vmul.f32 %v7381, %v7385
    %vm7387 = vweird.f32 %v7331
    %vm7388 = vweird.f32 %v7381
    %vm7389 = vmor %vm7387, %vm7388
    %v7390 = vsel %vm7389, %v7381, %v7386
    %v7391 = vrsqrt.pop %v7332
    %v7392 = vmul.f32 %v7391, %v7332
    %v7393 = vmul.f32 %v7392, %v7391
    %v7394 = vmul.f32 0.5, %v7393
    %v7395 = vsub.f32 1.5, %v7394
    %v7396 = vmul.f32 %v7391, %v7395
    %vm7397 = vweird.f32 %v7332
    %vm7398 = vweird.f32 %v7391
    %vm7399 = vmor %vm7397, %vm7398
    %v7400 = vsel %vm7399, %v7391, %v7396
    %v7401 = vrsqrt.pop %v7333
    %v7402 = vmul.f32 %v7401, %v7333
    %v7403 = vmul.f32 %v7402, %v7401
    %v7404 = vmul.f32 0.5, %v7403
    %v7405 = vsub.f32 1.5, %v7404
    %v7406 = vmul.f32 %v7401, %v7405
    %vm7407 = vweird.f32 %v7333
    %vm7408 = vweird.f32 %v7401
    %vm7409 = vmor %vm7407, %vm7408
    %v7410 = vsel %vm7409, %v7401, %v7406
    %v7411 = vrsqrt.pop %v7334
    %v7412 = vmul.f32 %v7411, %v7334
    %v7413 = vmul.f32 %v7412, %v7411
    %v7414 = vmul.f32 0.5, %v7413
    %v7415 = vsub.f32 1.5, %v7414
    %v7416 = vmul.f32 %v7411, %v7415
    %vm7417 = vweird.f32 %v7334
    %vm7418 = vweird.f32 %v7411
    %vm7419 = vmor %vm7417, %vm7418
    %v7420 = vsel %vm7419, %v7411, %v7416
    %v7421 = vrsqrt.pop %v7335
    %v7422 = vmul.f32 %v7421, %v7335
    %v7423 = vmul.f32 %v7422, %v7421
    %v7424 = vmul.f32 0.5, %v7423
    %v7425 = vsub.f32 1.5, %v7424
    %v7426 = vmul.f32 %v7421, %v7425
    %vm7427 = vweird.f32 %v7335
    %vm7428 = vweird.f32 %v7421
    %vm7429 = vmor %vm7427, %vm7428
    %v7430 = vsel %vm7429, %v7421, %v7426
    %v7431 = vrsqrt.pop %v7336
    %v7432 = vmul.f32 %v7431, %v7336
    %v7433 = vmul.f32 %v7432, %v7431
    %v7434 = vmul.f32 0.5, %v7433
    %v7435 = vsub.f32 1.5, %v7434
    %v7436 = vmul.f32 %v7431, %v7435
    %vm7437 = vweird.f32 %v7336
    %vm7438 = vweird.f32 %v7431
    %vm7439 = vmor %vm7437, %vm7438
    %v7440 = vsel %vm7439, %v7431, %v7436
    %v7441 = vrsqrt.pop %v7337
    %v7442 = vmul.f32 %v7441, %v7337
    %v7443 = vmul.f32 %v7442, %v7441
    %v7444 = vmul.f32 0.5, %v7443
    %v7445 = vsub.f32 1.5, %v7444
    %v7446 = vmul.f32 %v7441, %v7445
    %vm7447 = vweird.f32 %v7337
    %vm7448 = vweird.f32 %v7441
    %vm7449 = vmor %vm7447, %vm7448
    %v7450 = vsel %vm7449, %v7441, %v7446
    %v7451 = vrsqrt.pop %v7338
    %v7452 = vmul.f32 %v7451, %v7338
    %v7453 = vmul.f32 %v7452, %v7451
    %v7454 = vmul.f32 0.5, %v7453
    %v7455 = vsub.f32 1.5, %v7454
    %v7456 = vmul.f32 %v7451, %v7455
    %vm7457 = vweird.f32 %v7338
    %vm7458 = vweird.f32 %v7451
    %vm7459 = vmor %vm7457, %vm7458
    %v7460 = vsel %vm7459, %v7451, %v7456
    %v7461 = vrsqrt.pop %v7339
    %v7462 = vmul.f32 %v7461, %v7339
    %v7463 = vmul.f32 %v7462, %v7461
    %v7464 = vmul.f32 0.5, %v7463
    %v7465 = vsub.f32 1.5, %v7464
    %v7466 = vmul.f32 %v7461, %v7465
    %vm7467 = vweird.f32 %v7339
    %vm7468 = vweird.f32 %v7461
    %vm7469 = vmor %vm7467, %vm7468
    %v7470 = vsel %vm7469, %v7461, %v7466
    %v7471 = vrsqrt.pop %v7340
    %v7472 = vmul.f32 %v7471, %v7340
    %v7473 = vmul.f32 %v7472, %v7471
    %v7474 = vmul.f32 0.5, %v7473
    %v7475 = vsub.f32 1.5, %v7474
    %v7476 = vmul.f32 %v7471, %v7475
    %vm7477 = vweird.f32 %v7340
    %vm7478 = vweird.f32 %v7471
    %vm7479 = vmor %vm7477, %vm7478
    %v7480 = vsel %vm7479, %v7471, %v7476
    %v7481 = vrsqrt.pop %v7341
    %v7482 = vmul.f32 %v7481, %v7341
    %v7483 = vmul.f32 %v7482, %v7481
    %v7484 = vmul.f32 0.5, %v7483
    %v7485 = vsub.f32 1.5, %v7484
    %v7486 = vmul.f32 %v7481, %v7485
    %vm7487 = vweird.f32 %v7341
    %vm7488 = vweird.f32 %v7481
    %vm7489 = vmor %vm7487, %vm7488
    %v7490 = vsel %vm7489, %v7481, %v7486
    %v7491 = vrsqrt.pop %v7342
    %v7492 = vmul.f32 %v7491, %v7342
    %v7493 = vmul.f32 %v7492, %v7491
    %v7494 = vmul.f32 0.5, %v7493
    %v7495 = vsub.f32 1.5, %v7494
    %v7496 = vmul.f32 %v7491, %v7495
    %vm7497 = vweird.f32 %v7342
    %vm7498 = vweird.f32 %v7491
    %vm7499 = vmor %vm7497, %vm7498
    %v7500 = vsel %vm7499, %v7491, %v7496
    %v7501 = vrsqrt.pop %v7343
    %v7502 = vmul.f32 %v7501, %v7343
    %v7503 = vmul.f32 %v7502, %v7501
    %v7504 = vmul.f32 0.5, %v7503
    %v7505 = vsub.f32 1.5, %v7504
    %v7506 = vmul.f32 %v7501, %v7505
    %vm7507 = vweird.f32 %v7343
    %vm7508 = vweird.f32 %v7501
    %vm7509 = vmor %vm7507, %vm7508
    %v7510 = vsel %vm7509, %v7501, %v7506
    %v7511 = vrsqrt.pop %v7344
    %v7512 = vmul.f32 %v7511, %v7344
    %v7513 = vmul.f32 %v7512, %v7511
    %v7514 = vmul.f32 0.5, %v7513
    %v7515 = vsub.f32 1.5, %v7514
    %v7516 = vmul.f32 %v7511, %v7515
    %vm7517 = vweird.f32 %v7344
    %vm7518 = vweird.f32 %v7511
    %vm7519 = vmor %vm7517, %vm7518
    %v7520 = vsel %vm7519, %v7511, %v7516
    %v7521 = vrsqrt.pop %v7345
    %v7522 = vmul.f32 %v7521, %v7345
    %v7523 = vmul.f32 %v7522, %v7521
    %v7524 = vmul.f32 0.5, %v7523
    %v7525 = vsub.f32 1.5, %v7524
    %v7526 = vmul.f32 %v7521, %v7525
    %vm7527 = vweird.f32 %v7345
    %vm7528 = vweird.f32 %v7521
    %vm7529 = vmor %vm7527, %vm7528
    %v7530 = vsel %vm7529, %v7521, %v7526
    %v7531 = vrsqrt.pop %v7346
    %v7532 = vmul.f32 %v7531, %v7346
    %v7533 = vmul.f32 %v7532, %v7531
    %v7534 = vmul.f32 0.5, %v7533
    %v7535 = vsub.f32 1.5, %v7534
    %v7536 = vmul.f32 %v7531, %v7535
    %vm7537 = vweird.f32 %v7346
    %vm7538 = vweird.f32 %v7531
    %vm7539 = vmor %vm7537, %vm7538
    %v7540 = vsel %vm7539, %v7531, %v7536
    %v7541 = vrsqrt.pop %v7347
    %v7542 = vmul.f32 %v7541, %v7347
    %v7543 = vmul.f32 %v7542, %v7541
    %v7544 = vmul.f32 0.5, %v7543
    %v7545 = vsub.f32 1.5, %v7544
    %v7546 = vmul.f32 %v7541, %v7545
    %vm7547 = vweird.f32 %v7347
    %vm7548 = vweird.f32 %v7541
    %vm7549 = vmor %vm7547, %vm7548
    %v7550 = vsel %vm7549, %v7541, %v7546
    %v7551 = vrsqrt.pop %v7348
    %v7552 = vmul.f32 %v7551, %v7348
    %v7553 = vmul.f32 %v7552, %v7551
    %v7554 = vmul.f32 0.5, %v7553
    %v7555 = vsub.f32 1.5, %v7554
    %v7556 = vmul.f32 %v7551, %v7555
    %vm7557 = vweird.f32 %v7348
    %vm7558 = vweird.f32 %v7551
    %vm7559 = vmor %vm7557, %vm7558
    %v7560 = vsel %vm7559, %v7551, %v7556
    %v7561 = vrsqrt.pop %v7349
    %v7562 = vmul.f32 %v7561, %v7349
    %v7563 = vmul.f32 %v7562, %v7561
    %v7564 = vmul.f32 0.5, %v7563
    %v7565 = vsub.f32 1.5, %v7564
    %v7566 = vmul.f32 %v7561, %v7565
    %vm7567 = vweird.f32 %v7349
    %vm7568 = vweird.f32 %v7561
    %vm7569 = vmor %vm7567, %vm7568
    %v7570 = vsel %vm7569, %v7561, %v7566
    %v7571 = vrsqrt.pop %v7350
    %v7572 = vmul.f32 %v7571, %v7350
    %v7573 = vmul.f32 %v7572, %v7571
    %v7574 = vmul.f32 0.5, %v7573
    %v7575 = vsub.f32 1.5, %v7574
    %v7576 = vmul.f32 %v7571, %v7575
    %vm7577 = vweird.f32 %v7350
    %vm7578 = vweird.f32 %v7571
    %vm7579 = vmor %vm7577, %vm7578
    %v7580 = vsel %vm7579, %v7571, %v7576
    %v7581 = vrsqrt.pop %v7351
    %v7582 = vmul.f32 %v7581, %v7351
    %v7583 = vmul.f32 %v7582, %v7581
    %v7584 = vmul.f32 0.5, %v7583
    %v7585 = vsub.f32 1.5, %v7584
    %v7586 = vmul.f32 %v7581, %v7585
    %vm7587 = vweird.f32 %v7351
    %vm7588 = vweird.f32 %v7581
    %vm7589 = vmor %vm7587, %vm7588
    %v7590 = vsel %vm7589, %v7581, %v7586
    %v7591 = vrsqrt.pop %v7352
    %v7592 = vmul.f32 %v7591, %v7352
    %v7593 = vmul.f32 %v7592, %v7591
    %v7594 = vmul.f32 0.5, %v7593
    %v7595 = vsub.f32 1.5, %v7594
    %v7596 = vmul.f32 %v7591, %v7595
    %vm7597 = vweird.f32 %v7352
    %vm7598 = vweird.f32 %v7591
    %vm7599 = vmor %vm7597, %vm7598
    %v7600 = vsel %vm7599, %v7591, %v7596
    %v7601 = vrsqrt.pop %v7353
    %v7602 = vmul.f32 %v7601, %v7353
    %v7603 = vmul.f32 %v7602, %v7601
    %v7604 = vmul.f32 0.5, %v7603
    %v7605 = vsub.f32 1.5, %v7604
    %v7606 = vmul.f32 %v7601, %v7605
    %vm7607 = vweird.f32 %v7353
    %vm7608 = vweird.f32 %v7601
    %vm7609 = vmor %vm7607, %vm7608
    %v7610 = vsel %vm7609, %v7601, %v7606
    %v7611 = vrsqrt.pop %v7354
    %v7612 = vmul.f32 %v7611, %v7354
    %v7613 = vmul.f32 %v7612, %v7611
    %v7614 = vmul.f32 0.5, %v7613
    %v7615 = vsub.f32 1.5, %v7614
    %v7616 = vmul.f32 %v7611, %v7615
    %vm7617 = vweird.f32 %v7354
    %vm7618 = vweird.f32 %v7611
    %vm7619 = vmor %vm7617, %vm7618
    %v7620 = vsel %vm7619, %v7611, %v7616
    %v7621 = vrsqrt.pop %v7355
    %v7622 = vmul.f32 %v7621, %v7355
    %v7623 = vmul.f32 %v7622, %v7621
    %v7624 = vmul.f32 0.5, %v7623
    %v7625 = vsub.f32 1.5, %v7624
    %v7626 = vmul.f32 %v7621, %v7625
    %vm7627 = vweird.f32 %v7355
    %vm7628 = vweird.f32 %v7621
    %vm7629 = vmor %vm7627, %vm7628
    %v7630 = vsel %vm7629, %v7621, %v7626
    %v7631 = vrsqrt.pop %v7356
    %v7632 = vmul.f32 %v7631, %v7356
    %v7633 = vmul.f32 %v7632, %v7631
    %v7634 = vmul.f32 0.5, %v7633
    %v7635 = vsub.f32 1.5, %v7634
    %v7636 = vmul.f32 %v7631, %v7635
    %vm7637 = vweird.f32 %v7356
    %vm7638 = vweird.f32 %v7631
    %vm7639 = vmor %vm7637, %vm7638
    %v7640 = vsel %vm7639, %v7631, %v7636
    %v7641 = vrsqrt.pop %v7357
    %v7642 = vmul.f32 %v7641, %v7357
    %v7643 = vmul.f32 %v7642, %v7641
    %v7644 = vmul.f32 0.5, %v7643
    %v7645 = vsub.f32 1.5, %v7644
    %v7646 = vmul.f32 %v7641, %v7645
    %vm7647 = vweird.f32 %v7357
    %vm7648 = vweird.f32 %v7641
    %vm7649 = vmor %vm7647, %vm7648
    %v7650 = vsel %vm7649, %v7641, %v7646
    %v7651 = vrsqrt.pop %v7358
    %v7652 = vmul.f32 %v7651, %v7358
    %v7653 = vmul.f32 %v7652, %v7651
    %v7654 = vmul.f32 0.5, %v7653
    %v7655 = vsub.f32 1.5, %v7654
    %v7656 = vmul.f32 %v7651, %v7655
    %vm7657 = vweird.f32 %v7358
    %vm7658 = vweird.f32 %v7651
    %vm7659 = vmor %vm7657, %vm7658
    %v7660 = vsel %vm7659, %v7651, %v7656
    %v7661 = vrsqrt.pop %v7359
    %v7662 = vmul.f32 %v7661, %v7359
    %v7663 = vmul.f32 %v7662, %v7661
    %v7664 = vmul.f32 0.5, %v7663
    %v7665 = vsub.f32 1.5, %v7664
    %v7666 = vmul.f32 %v7661, %v7665
    %vm7667 = vweird.f32 %v7359
    %vm7668 = vweird.f32 %v7661
    %vm7669 = vmor %vm7667, %vm7668
    %v7670 = vsel %vm7669, %v7661, %v7666
    %v7671 = vrsqrt.pop %v7360
    %v7672 = vmul.f32 %v7671, %v7360
    %v7673 = vmul.f32 %v7672, %v7671
    %v7674 = vmul.f32 0.5, %v7673
    %v7675 = vsub.f32 1.5, %v7674
    %v7676 = vmul.f32 %v7671, %v7675
    %vm7677 = vweird.f32 %v7360
    %vm7678 = vweird.f32 %v7671
    %vm7679 = vmor %vm7677, %vm7678
    %v7680 = vsel %vm7679, %v7671, %v7676
    %v7681 = vmul.f32 %v7169, %v7370
    %v7682 = vmul.f32 %v7170, %v7380
    %v7683 = vmul.f32 %v7171, %v7390
    %v7684 = vmul.f32 %v7172, %v7400
    %v7685 = vmul.f32 %v7173, %v7410
    %v7686 = vmul.f32 %v7174, %v7420
    %v7687 = vmul.f32 %v7175, %v7430
    %v7688 = vmul.f32 %v7176, %v7440
    %v7689 = vmul.f32 %v7177, %v7450
    %v7690 = vmul.f32 %v7178, %v7460
    %v7691 = vmul.f32 %v7179, %v7470
    %v7692 = vmul.f32 %v7180, %v7480
    %v7693 = vmul.f32 %v7181, %v7490
    %v7694 = vmul.f32 %v7182, %v7500
    %v7695 = vmul.f32 %v7183, %v7510
    %v7696 = vmul.f32 %v7184, %v7520
    %v7697 = vmul.f32 %v7185, %v7530
    %v7698 = vmul.f32 %v7186, %v7540
    %v7699 = vmul.f32 %v7187, %v7550
    %v7700 = vmul.f32 %v7188, %v7560
    %v7701 = vmul.f32 %v7189, %v7570
    %v7702 = vmul.f32 %v7190, %v7580
    %v7703 = vmul.f32 %v7191, %v7590
    %v7704 = vmul.f32 %v7192, %v7600
    %v7705 = vmul.f32 %v7193, %v7610
    %v7706 = vmul.f32 %v7194, %v7620
    %v7707 = vmul.f32 %v7195, %v7630
    %v7708 = vmul.f32 %v7196, %v7640
    %v7709 = vmul.f32 %v7197, %v7650
    %v7710 = vmul.f32 %v7198, %v7660
    %v7711 = vmul.f32 %v7199, %v7670
    %v7712 = vmul.f32 %v7200, %v7680
    %v7713 = vperm.slane %v88, 2
    %v7714 = vmul.f32 %v7681, %v7713
    %v7715 = vmul.f32 %v7682, %v7713
    %v7716 = vmul.f32 %v7683, %v7713
    %v7717 = vmul.f32 %v7684, %v7713
    %v7718 = vmul.f32 %v7685, %v7713
    %v7719 = vmul.f32 %v7686, %v7713
    %v7720 = vmul.f32 %v7687, %v7713
    %v7721 = vmul.f32 %v7688, %v7713
    %v7722 = vmul.f32 %v7689, %v7713
    %v7723 = vmul.f32 %v7690, %v7713
    %v7724 = vmul.f32 %v7691, %v7713
    %v7725 = vmul.f32 %v7692, %v7713
    %v7726 = vmul.f32 %v7693, %v7713
    %v7727 = vmul.f32 %v7694, %v7713
    %v7728 = vmul.f32 %v7695, %v7713
    %v7729 = vmul.f32 %v7696, %v7713
    %v7730 = vmul.f32 %v7697, %v7713
    %v7731 = vmul.f32 %v7698, %v7713
    %v7732 = vmul.f32 %v7699, %v7713
    %v7733 = vmul.f32 %v7700, %v7713
    %v7734 = vmul.f32 %v7701, %v7713
    %v7735 = vmul.f32 %v7702, %v7713
    %v7736 = vmul.f32 %v7703, %v7713
    %v7737 = vmul.f32 %v7704, %v7713
    %v7738 = vmul.f32 %v7705, %v7713
    %v7739 = vmul.f32 %v7706, %v7713
    %v7740 = vmul.f32 %v7707, %v7713
    %v7741 = vmul.f32 %v7708, %v7713
    %v7742 = vmul.f32 %v7709, %v7713
    %v7743 = vmul.f32 %v7710, %v7713
    %v7744 = vmul.f32 %v7711, %v7713
    %v7745 = vmul.f32 %v7712, %v7713
    %v7746 = vperm.slane %v88, 3
    %v7747 = vadd.f32 %v7714, %v7746
    %v7748 = vadd.f32 %v7715, %v7746
    %v7749 = vadd.f32 %v7716, %v7746
    %v7750 = vadd.f32 %v7717, %v7746
    %v7751 = vadd.f32 %v7718, %v7746
    %v7752 = vadd.f32 %v7719, %v7746
    %v7753 = vadd.f32 %v7720, %v7746
    %v7754 = vadd.f32 %v7721, %v7746
    %v7755 = vadd.f32 %v7722, %v7746
    %v7756 = vadd.f32 %v7723, %v7746
    %v7757 = vadd.f32 %v7724, %v7746
    %v7758 = vadd.f32 %v7725, %v7746
    %v7759 = vadd.f32 %v7726, %v7746
    %v7760 = vadd.f32 %v7727, %v7746
    %v7761 = vadd.f32 %v7728, %v7746
    %v7762 = vadd.f32 %v7729, %v7746
    %v7763 = vadd.f32 %v7730, %v7746
    %v7764 = vadd.f32 %v7731, %v7746
    %v7765 = vadd.f32 %v7732, %v7746
    %v7766 = vadd.f32 %v7733, %v7746
    %v7767 = vadd.f32 %v7734, %v7746
    %v7768 = vadd.f32 %v7735, %v7746
    %v7769 = vadd.f32 %v7736, %v7746
    %v7770 = vadd.f32 %v7737, %v7746
    %v7771 = vadd.f32 %v7738, %v7746
    %v7772 = vadd.f32 %v7739, %v7746
    %v7773 = vadd.f32 %v7740, %v7746
    %v7774 = vadd.f32 %v7741, %v7746
    %v7775 = vadd.f32 %v7742, %v7746
    %v7776 = vadd.f32 %v7743, %v7746
    %v7777 = vadd.f32 %v7744, %v7746
    %v7778 = vadd.f32 %v7745, %v7746
    %v7779 = vpack.c.bf16 %v7748, %v7747
    %v7780 = vpack.c.bf16 %v7750, %v7749
    %v7781 = vpack.c.bf16 %v7752, %v7751
    %v7782 = vpack.c.bf16 %v7754, %v7753
    %v7783 = vpack.c.bf16 %v7756, %v7755
    %v7784 = vpack.c.bf16 %v7758, %v7757
    %v7785 = vpack.c.bf16 %v7760, %v7759
    %v7786 = vpack.c.bf16 %v7762, %v7761
    %v7787 = vpack.c.bf16 %v7764, %v7763
    %v7788 = vpack.c.bf16 %v7766, %v7765
    %v7789 = vpack.c.bf16 %v7768, %v7767
    %v7790 = vpack.c.bf16 %v7770, %v7769
    %v7791 = vpack.c.bf16 %v7772, %v7771
    %v7792 = vpack.c.bf16 %v7774, %v7773
    %v7793 = vpack.c.bf16 %v7776, %v7775
    %v7794 = vpack.c.bf16 %v7778, %v7777
    %v7795 = vld [vmem:[%s9] sm:$0xf]
    %v7796 = vld [vmem:[%s9 + $0x4] sm:$0xf]
    %v7797 = vld [vmem:[%s9 + $0x8] sm:$0xf]
    %v7798 = vld [vmem:[%s9 + $0xc] sm:$0xf]
    %v7799 = vld [vmem:[%s9 + $0x10] sm:$0xf]
    %v7800 = vld [vmem:[%s9 + $0x14] sm:$0xf]
    %v7801 = vld [vmem:[%s9 + $0x18] sm:$0xf]
    %v7802 = vld [vmem:[%s9 + $0x1c] sm:$0xf]
    %v7803 = vld [vmem:[%s9 + $0x20] sm:$0xf]
    %v7804 = vld [vmem:[%s9 + $0x24] sm:$0xf]
    %v7805 = vld [vmem:[%s9 + $0x28] sm:$0xf]
    %v7806 = vld [vmem:[%s9 + $0x2c] sm:$0xf]
    %v7807 = vld [vmem:[%s9 + $0x30] sm:$0xf]
    %v7808 = vld [vmem:[%s9 + $0x34] sm:$0xf]
    %v7809 = vld [vmem:[%s9 + $0x38] sm:$0xf]
    %v7810 = vld [vmem:[%s9 + $0x3c] sm:$0xf]
    %v7811 = vperm.slane %v88, 4
    %v7828 = vunpack.c.l.b16 %v7795
    %v7829 = vunpack.c.l.b16 %v7796
    %v7830 = vunpack.c.l.b16 %v7797
    %v7831 = vunpack.c.l.b16 %v7798
    %v7832 = vunpack.c.l.b16 %v7799
    %v7833 = vunpack.c.l.b16 %v7800
    %v7834 = vunpack.c.l.b16 %v7801
    %v7835 = vunpack.c.l.b16 %v7802
    %v7836 = vunpack.c.l.b16 %v7803
    %v7837 = vunpack.c.l.b16 %v7804
    %v7838 = vunpack.c.l.b16 %v7805
    %v7839 = vunpack.c.l.b16 %v7806
    %v7840 = vunpack.c.l.b16 %v7807
    %v7841 = vunpack.c.l.b16 %v7808
    %v7842 = vunpack.c.l.b16 %v7809
    %v7843 = vunpack.c.l.b16 %v7810
    %v7844 = vpack.c.b16 %v7829, %v7828
    %v7845 = vpack.c.b16 %v7831, %v7830
    %v7846 = vpack.c.b16 %v7833, %v7832
    %v7847 = vpack.c.b16 %v7835, %v7834
    %v7848 = vpack.c.b16 %v7837, %v7836
    %v7849 = vpack.c.b16 %v7839, %v7838
    %v7850 = vpack.c.b16 %v7841, %v7840
    %v7851 = vpack.c.b16 %v7843, %v7842
    %7860 = vmatpush.bf16.msra.mxu0 %v7851
    %7861 = vmatpush.bf16.msra.mxu0 %v7850
    %7862 = vmatpush.bf16.msra.mxu0 %v7849
    %7863 = vmatpush.bf16.msra.mxu0 %v7848
    %7864 = vmatpush.bf16.msra.mxu0 %v7847
    %7865 = vmatpush.bf16.msra.mxu0 %v7846
    %7866 = vmatpush.bf16.msra.mxu0 %v7845
    %7867 = vmatpush.bf16.msra.mxu0 %v7844
    %7868 = vmatmul.bf16.gmra.mxu0 %v7779
    %v7869 = vpop.f32.mrf.mxu0
    %v7870 = vadd.f32 %v7811, %v7869
    %v7871 = vpop.f32.mrf.mxu0
    %v7872 = vadd.f32 %v7811, %v7871
    %7873 = vmatmul.bf16.gmra.mxu0 %v7780
    %v7874 = vpop.f32.mrf.mxu0
    %v7875 = vadd.f32 %v7811, %v7874
    %v7876 = vpop.f32.mrf.mxu0
    %v7877 = vadd.f32 %v7811, %v7876
    %7878 = vmatmul.bf16.gmra.mxu0 %v7781
    %v7879 = vpop.f32.mrf.mxu0
    %v7880 = vadd.f32 %v7811, %v7879
    %v7881 = vpop.f32.mrf.mxu0
    %v7882 = vadd.f32 %v7811, %v7881
    %7883 = vmatmul.bf16.gmra.mxu0 %v7782
    %v7884 = vpop.f32.mrf.mxu0
    %v7885 = vadd.f32 %v7811, %v7884
    %v7886 = vpop.f32.mrf.mxu0
    %v7887 = vadd.f32 %v7811, %v7886
    %7888 = vmatmul.bf16.gmra.mxu0 %v7783
    %v7889 = vpop.f32.mrf.mxu0
    %v7890 = vadd.f32 %v7811, %v7889
    %v7891 = vpop.f32.mrf.mxu0
    %v7892 = vadd.f32 %v7811, %v7891
    %7893 = vmatmul.bf16.gmra.mxu0 %v7784
    %v7894 = vpop.f32.mrf.mxu0
    %v7895 = vadd.f32 %v7811, %v7894
    %v7896 = vpop.f32.mrf.mxu0
    %v7897 = vadd.f32 %v7811, %v7896
    %7898 = vmatmul.bf16.gmra.mxu0 %v7785
    %v7899 = vpop.f32.mrf.mxu0
    %v7900 = vadd.f32 %v7811, %v7899
    %v7901 = vpop.f32.mrf.mxu0
    %v7902 = vadd.f32 %v7811, %v7901
    %7903 = vmatmul.bf16.gmra.mxu0 %v7786
    %v7904 = vpop.f32.mrf.mxu0
    %v7905 = vadd.f32 %v7811, %v7904
    %v7906 = vpop.f32.mrf.mxu0
    %v7907 = vadd.f32 %v7811, %v7906
    %7908 = vmatmul.bf16.gmra.mxu0 %v7787
    %v7909 = vpop.f32.mrf.mxu0
    %v7910 = vadd.f32 %v7811, %v7909
    %v7911 = vpop.f32.mrf.mxu0
    %v7912 = vadd.f32 %v7811, %v7911
    %7913 = vmatmul.bf16.gmra.mxu0 %v7788
    %v7914 = vpop.f32.mrf.mxu0
    %v7915 = vadd.f32 %v7811, %v7914
    %v7916 = vpop.f32.mrf.mxu0
    %v7917 = vadd.f32 %v7811, %v7916
    %7918 = vmatmul.bf16.gmra.mxu0 %v7789
    %v7919 = vpop.f32.mrf.mxu0
    %v7920 = vadd.f32 %v7811, %v7919
    %v7921 = vpop.f32.mrf.mxu0
    %v7922 = vadd.f32 %v7811, %v7921
    %7923 = vmatmul.bf16.gmra.mxu0 %v7790
    %v7924 = vpop.f32.mrf.mxu0
    %v7925 = vadd.f32 %v7811, %v7924
    %v7926 = vpop.f32.mrf.mxu0
    %v7927 = vadd.f32 %v7811, %v7926
    %7928 = vmatmul.bf16.gmra.mxu0 %v7791
    %v7929 = vpop.f32.mrf.mxu0
    %v7930 = vadd.f32 %v7811, %v7929
    %v7931 = vpop.f32.mrf.mxu0
    %v7932 = vadd.f32 %v7811, %v7931
    %7933 = vmatmul.bf16.gmra.mxu0 %v7792
    %v7934 = vpop.f32.mrf.mxu0
    %v7935 = vadd.f32 %v7811, %v7934
    %v7936 = vpop.f32.mrf.mxu0
    %v7937 = vadd.f32 %v7811, %v7936
    %7938 = vmatmul.bf16.gmra.mxu0 %v7793
    %v7939 = vpop.f32.mrf.mxu0
    %v7940 = vadd.f32 %v7811, %v7939
    %v7941 = vpop.f32.mrf.mxu0
    %v7942 = vadd.f32 %v7811, %v7941
    %7943 = vmatmul.bf16.gmra.mxu0 %v7794
    %v7944 = vpop.f32.mrf.mxu0
    %v7945 = vadd.f32 %v7811, %v7944
    %v7946 = vpop.f32.mrf.mxu0
    %v7947 = vadd.f32 %v7811, %v7946
    %7948 = vdwg.mxu0
    %v7949 = vmax.f32 %v7870, 0.0
    %v7950 = vmax.f32 %v7872, 0.0
    %v7951 = vmax.f32 %v7875, 0.0
    %v7952 = vmax.f32 %v7877, 0.0
    %v7953 = vmax.f32 %v7880, 0.0
    %v7954 = vmax.f32 %v7882, 0.0
    %v7955 = vmax.f32 %v7885, 0.0
    %v7956 = vmax.f32 %v7887, 0.0
    %v7957 = vmax.f32 %v7890, 0.0
    %v7958 = vmax.f32 %v7892, 0.0
    %v7959 = vmax.f32 %v7895, 0.0
    %v7960 = vmax.f32 %v7897, 0.0
    %v7961 = vmax.f32 %v7900, 0.0
    %v7962 = vmax.f32 %v7902, 0.0
    %v7963 = vmax.f32 %v7905, 0.0
    %v7964 = vmax.f32 %v7907, 0.0
    %v7965 = vmax.f32 %v7910, 0.0
    %v7966 = vmax.f32 %v7912, 0.0
    %v7967 = vmax.f32 %v7915, 0.0
    %v7968 = vmax.f32 %v7917, 0.0
    %v7969 = vmax.f32 %v7920, 0.0
    %v7970 = vmax.f32 %v7922, 0.0
    %v7971 = vmax.f32 %v7925, 0.0
    %v7972 = vmax.f32 %v7927, 0.0
    %v7973 = vmax.f32 %v7930, 0.0
    %v7974 = vmax.f32 %v7932, 0.0
    %v7975 = vmax.f32 %v7935, 0.0
    %v7976 = vmax.f32 %v7937, 0.0
    %v7977 = vmax.f32 %v7940, 0.0
    %v7978 = vmax.f32 %v7942, 0.0
    %v7979 = vmax.f32 %v7945, 0.0
    %v7980 = vmax.f32 %v7947, 0.0
    %v7981 = vpack.c.bf16 %v7950, %v7949
    %v7982 = vpack.c.bf16 %v7952, %v7951
    %v7983 = vpack.c.bf16 %v7954, %v7953
    %v7984 = vpack.c.bf16 %v7956, %v7955
    %v7985 = vpack.c.bf16 %v7958, %v7957
    %v7986 = vpack.c.bf16 %v7960, %v7959
    %v7987 = vpack.c.bf16 %v7962, %v7961
    %v7988 = vpack.c.bf16 %v7964, %v7963
    %v7989 = vpack.c.bf16 %v7966, %v7965
    %v7990 = vpack.c.bf16 %v7968, %v7967
    %v7991 = vpack.c.bf16 %v7970, %v7969
    %v7992 = vpack.c.bf16 %v7972, %v7971
    %v7993 = vpack.c.bf16 %v7974, %v7973
    %v7994 = vpack.c.bf16 %v7976, %v7975
    %v7995 = vpack.c.bf16 %v7978, %v7977
    %v7996 = vpack.c.bf16 %v7980, %v7979
    %v7997 = vld [vmem:[%s10] sm:$0xf]
    %v7998 = vld [vmem:[%s10 + $0x4] sm:$0xf]
    %v7999 = vld [vmem:[%s10 + $0x8] sm:$0xf]
    %v8000 = vld [vmem:[%s10 + $0xc] sm:$0xf]
    %v8001 = vld [vmem:[%s10 + $0x10] sm:$0xf]
    %v8002 = vld [vmem:[%s10 + $0x14] sm:$0xf]
    %v8003 = vld [vmem:[%s10 + $0x18] sm:$0xf]
    %v8004 = vld [vmem:[%s10 + $0x1c] sm:$0xf]
    %v8005 = vld [vmem:[%s10 + $0x20] sm:$0xf]
    %v8006 = vld [vmem:[%s10 + $0x24] sm:$0xf]
    %v8007 = vld [vmem:[%s10 + $0x28] sm:$0xf]
    %v8008 = vld [vmem:[%s10 + $0x2c] sm:$0xf]
    %v8009 = vld [vmem:[%s10 + $0x30] sm:$0xf]
    %v8010 = vld [vmem:[%s10 + $0x34] sm:$0xf]
    %v8011 = vld [vmem:[%s10 + $0x38] sm:$0xf]
    %v8012 = vld [vmem:[%s10 + $0x3c] sm:$0xf]
    %v8013 = vperm.slane %v88, 5
    %v8030 = vunpack.c.l.b16 %v7997
    %v8031 = vunpack.c.l.b16 %v7998
    %v8032 = vunpack.c.l.b16 %v7999
    %v8033 = vunpack.c.l.b16 %v8000
    %v8034 = vunpack.c.l.b16 %v8001
    %v8035 = vunpack.c.l.b16 %v8002
    %v8036 = vunpack.c.l.b16 %v8003
    %v8037 = vunpack.c.l.b16 %v8004
    %v8038 = vunpack.c.l.b16 %v8005
    %v8039 = vunpack.c.l.b16 %v8006
    %v8040 = vunpack.c.l.b16 %v8007
    %v8041 = vunpack.c.l.b16 %v8008
    %v8042 = vunpack.c.l.b16 %v8009
    %v8043 = vunpack.c.l.b16 %v8010
    %v8044 = vunpack.c.l.b16 %v8011
    %v8045 = vunpack.c.l.b16 %v8012
    %v8046 = vpack.c.b16 %v8031, %v8030
    %v8047 = vpack.c.b16 %v8033, %v8032
    %v8048 = vpack.c.b16 %v8035, %v8034
    %v8049 = vpack.c.b16 %v8037, %v8036
    %v8050 = vpack.c.b16 %v8039, %v8038
    %v8051 = vpack.c.b16 %v8041, %v8040
    %v8052 = vpack.c.b16 %v8043, %v8042
    %v8053 = vpack.c.b16 %v8045, %v8044
    %8062 = vmatpush.bf16.msra.mxu0 %v8053
    %8063 = vmatpush.bf16.msra.mxu0 %v8052
    %8064 = vmatpush.bf16.msra.mxu0 %v8051
    %8065 = vmatpush.bf16.msra.mxu0 %v8050
    %8066 = vmatpush.bf16.msra.mxu0 %v8049
    %8067 = vmatpush.bf16.msra.mxu0 %v8048
    %8068 = vmatpush.bf16.msra.mxu0 %v8047
    %8069 = vmatpush.bf16.msra.mxu0 %v8046
    %8070 = vmatmul.bf16.gmra.mxu0 %v7981
    %v8071 = vpop.f32.mrf.mxu0
    %v8072 = vadd.f32 %v8013, %v8071
    %v8073 = vpop.f32.mrf.mxu0
    %v8074 = vadd.f32 %v8013, %v8073
    %8075 = vmatmul.bf16.gmra.mxu0 %v7982
    %v8076 = vpop.f32.mrf.mxu0
    %v8077 = vadd.f32 %v8013, %v8076
    %v8078 = vpop.f32.mrf.mxu0
    %v8079 = vadd.f32 %v8013, %v8078
    %8080 = vmatmul.bf16.gmra.mxu0 %v7983
    %v8081 = vpop.f32.mrf.mxu0
    %v8082 = vadd.f32 %v8013, %v8081
    %v8083 = vpop.f32.mrf.mxu0
    %v8084 = vadd.f32 %v8013, %v8083
    %8085 = vmatmul.bf16.gmra.mxu0 %v7984
    %v8086 = vpop.f32.mrf.mxu0
    %v8087 = vadd.f32 %v8013, %v8086
    %v8088 = vpop.f32.mrf.mxu0
    %v8089 = vadd.f32 %v8013, %v8088
    %8090 = vmatmul.bf16.gmra.mxu0 %v7985
    %v8091 = vpop.f32.mrf.mxu0
    %v8092 = vadd.f32 %v8013, %v8091
    %v8093 = vpop.f32.mrf.mxu0
    %v8094 = vadd.f32 %v8013, %v8093
    %8095 = vmatmul.bf16.gmra.mxu0 %v7986
    %v8096 = vpop.f32.mrf.mxu0
    %v8097 = vadd.f32 %v8013, %v8096
    %v8098 = vpop.f32.mrf.mxu0
    %v8099 = vadd.f32 %v8013, %v8098
    %8100 = vmatmul.bf16.gmra.mxu0 %v7987
    %v8101 = vpop.f32.mrf.mxu0
    %v8102 = vadd.f32 %v8013, %v8101
    %v8103 = vpop.f32.mrf.mxu0
    %8104 = vmatmul.bf16.gmra.mxu0 %v7988
    %v8105 = vpop.f32.mrf.mxu0
    %v8106 = vpop.f32.mrf.mxu0
    %8107 = vmatmul.bf16.gmra.mxu0 %v7989
    %v8108 = vpop.f32.mrf.mxu0
    %v8109 = vadd.f32 %v8013, %v8108
    %v8110 = vpop.f32.mrf.mxu0
    %v8111 = vadd.f32 %v8013, %v8110
    %8112 = vmatmul.bf16.gmra.mxu0 %v7990
    %v8113 = vpop.f32.mrf.mxu0
    %v8114 = vadd.f32 %v8013, %v8113
    %v8115 = vpop.f32.mrf.mxu0
    %v8116 = vadd.f32 %v8013, %v8115
    %8117 = vmatmul.bf16.gmra.mxu0 %v7991
    %v8118 = vpop.f32.mrf.mxu0
    %v8119 = vadd.f32 %v8013, %v8118
    %v8120 = vpop.f32.mrf.mxu0
    %v8121 = vadd.f32 %v8013, %v8120
    %8122 = vmatmul.bf16.gmra.mxu0 %v7992
    %v8123 = vpop.f32.mrf.mxu0
    %v8124 = vadd.f32 %v8013, %v8123
    %v8125 = vpop.f32.mrf.mxu0
    %v8126 = vadd.f32 %v8013, %v8125
    %8127 = vmatmul.bf16.gmra.mxu0 %v7993
    %v8128 = vpop.f32.mrf.mxu0
    %v8129 = vadd.f32 %v8013, %v8128
    %v8130 = vpop.f32.mrf.mxu0
    %v8131 = vadd.f32 %v8013, %v8130
    %8132 = vmatmul.bf16.gmra.mxu0 %v7994
    %v8133 = vpop.f32.mrf.mxu0
    %v8134 = vadd.f32 %v8013, %v8133
    %v8135 = vpop.f32.mrf.mxu0
    %v8136 = vadd.f32 %v8013, %v8135
    %8137 = vmatmul.bf16.gmra.mxu0 %v7995
    %v8138 = vpop.f32.mrf.mxu0
    %v8139 = vadd.f32 %v8013, %v8138
    %v8140 = vpop.f32.mrf.mxu0
    %8141 = vmatmul.bf16.gmra.mxu0 %v7996
    %v8142 = vpop.f32.mrf.mxu0
    %v8143 = vpop.f32.mrf.mxu0
    %8144 = vdwg.mxu0
    %v8145 = vadd.f32 %v8072, %v7747
    %v8146 = vadd.f32 %v8074, %v7748
    %v8147 = vadd.f32 %v8077, %v7749
    %v8148 = vadd.f32 %v8079, %v7750
    %v8149 = vadd.f32 %v8082, %v7751
    %v8150 = vadd.f32 %v8084, %v7752
    %v8151 = vadd.f32 %v8087, %v7753
    %v8152 = vadd.f32 %v8089, %v7754
    %v8153 = vadd.f32 %v8092, %v7755
    %v8154 = vadd.f32 %v8094, %v7756
    %v8155 = vadd.f32 %v8097, %v7757
    %v8156 = vadd.f32 %v8099, %v7758
    %v8157 = vadd.f32 %v8102, %v7759
    %v8158 = vadd.f32 %v8109, %v7763
    %v8159 = vadd.f32 %v8111, %v7764
    %v8160 = vadd.f32 %v8114, %v7765
    %v8161 = vadd.f32 %v8116, %v7766
    %v8162 = vadd.f32 %v8119, %v7767
    %v8163 = vadd.f32 %v8121, %v7768
    %v8164 = vadd.f32 %v8124, %v7769
    %v8165 = vadd.f32 %v8126, %v7770
    %v8166 = vadd.f32 %v8129, %v7771
    %v8167 = vadd.f32 %v8131, %v7772
    %v8168 = vadd.f32 %v8134, %v7773
    %v8169 = vadd.f32 %v8136, %v7774
    %v8170 = vadd.f32 %v8139, %v7775
    %8171 = vadd.xlane.f32.xlu0 %v8145
    %v8172 = vpop.xlane.xlu0 %8171
    %8173 = vadd.xlane.f32.xlu0 %v8146
    %v8174 = vpop.xlane.xlu0 %8173
    %8175 = vadd.xlane.f32.xlu0 %v8147
    %v8176 = vpop.xlane.xlu0 %8175
    %8177 = vadd.xlane.f32.xlu0 %v8148
    %v8178 = vpop.xlane.xlu0 %8177
    %8179 = vadd.xlane.f32.xlu0 %v8149
    %v8180 = vpop.xlane.xlu0 %8179
    %8181 = vadd.xlane.f32.xlu0 %v8150
    %v8182 = vpop.xlane.xlu0 %8181
    %8183 = vadd.xlane.f32.xlu0 %v8151
    %v8184 = vpop.xlane.xlu0 %8183
    %8185 = vadd.xlane.f32.xlu0 %v8152
    %v8186 = vpop.xlane.xlu0 %8185
    %8187 = vadd.xlane.f32.xlu0 %v8153
    %v8188 = vpop.xlane.xlu0 %8187
    %8189 = vadd.xlane.f32.xlu0 %v8154
    %v8190 = vpop.xlane.xlu0 %8189
    %8191 = vadd.xlane.f32.xlu0 %v8155
    %v8192 = vpop.xlane.xlu0 %8191
    %8193 = vadd.xlane.f32.xlu0 %v8156
    %v8194 = vpop.xlane.xlu0 %8193
    %8195 = vadd.xlane.f32.xlu0 %v8157
    %v8196 = vpop.xlane.xlu0 %8195
    %8197 = vadd.xlane.f32.xlu0 %v8158
    %v8198 = vpop.xlane.xlu0 %8197
    %8199 = vadd.xlane.f32.xlu0 %v8159
    %v8200 = vpop.xlane.xlu0 %8199
    %8201 = vadd.xlane.f32.xlu0 %v8160
    %v8202 = vpop.xlane.xlu0 %8201
    %8203 = vadd.xlane.f32.xlu0 %v8161
    %v8204 = vpop.xlane.xlu0 %8203
    %8205 = vadd.xlane.f32.xlu0 %v8162
    %v8206 = vpop.xlane.xlu0 %8205
    %8207 = vadd.xlane.f32.xlu0 %v8163
    %v8208 = vpop.xlane.xlu0 %8207
    %8209 = vadd.xlane.f32.xlu0 %v8164
    %v8210 = vpop.xlane.xlu0 %8209
    %8211 = vadd.xlane.f32.xlu0 %v8165
    %v8212 = vpop.xlane.xlu0 %8211
    %8213 = vadd.xlane.f32.xlu0 %v8166
    %v8214 = vpop.xlane.xlu0 %8213
    %8215 = vadd.xlane.f32.xlu0 %v8167
    %v8216 = vpop.xlane.xlu0 %8215
    %8217 = vadd.xlane.f32.xlu0 %v8168
    %v8218 = vpop.xlane.xlu0 %8217
    %8219 = vadd.xlane.f32.xlu0 %v8169
    %v8220 = vpop.xlane.xlu0 %8219
    %8221 = vadd.xlane.f32.xlu0 %v8170
    %v8222 = vpop.xlane.xlu0 %8221
    %v8223 = vmul.f32 %v8172, %v7136
    %v8224 = vmul.f32 %v8174, %v7136
    %v8225 = vmul.f32 %v8176, %v7136
    %v8226 = vmul.f32 %v8178, %v7136
    %v8227 = vmul.f32 %v8180, %v7136
    %v8228 = vmul.f32 %v8182, %v7136
    %v8229 = vmul.f32 %v8184, %v7136
    %v8230 = vmul.f32 %v8186, %v7136
    %v8231 = vmul.f32 %v8188, %v7136
    %v8232 = vmul.f32 %v8190, %v7136
    %v8233 = vmul.f32 %v8192, %v7136
    %v8234 = vmul.f32 %v8194, %v7136
    %v8235 = vmul.f32 %v8196, %v7136
    %v8236 = vmul.f32 %v8198, %v7136
    %v8237 = vmul.f32 %v8200, %v7136
    %v8238 = vmul.f32 %v8202, %v7136
    %v8239 = vmul.f32 %v8204, %v7136
    %v8240 = vmul.f32 %v8206, %v7136
    %v8241 = vmul.f32 %v8208, %v7136
    %v8242 = vmul.f32 %v8210, %v7136
    %v8243 = vmul.f32 %v8212, %v7136
    %v8244 = vmul.f32 %v8214, %v7136
    %v8245 = vmul.f32 %v8216, %v7136
    %v8246 = vmul.f32 %v8218, %v7136
    %v8247 = vmul.f32 %v8220, %v7136
    %v8248 = vmul.f32 %v8222, %v7136
    %v8249 = vsub.f32 %v8145, %v8223
    %v8250 = vsub.f32 %v8146, %v8224
    %v8251 = vsub.f32 %v8147, %v8225
    %v8252 = vsub.f32 %v8148, %v8226
    %v8253 = vsub.f32 %v8149, %v8227
    %v8254 = vsub.f32 %v8150, %v8228
    %v8255 = vsub.f32 %v8151, %v8229
    %v8256 = vsub.f32 %v8152, %v8230
    %v8257 = vsub.f32 %v8153, %v8231
    %v8258 = vsub.f32 %v8154, %v8232
    %v8259 = vsub.f32 %v8155, %v8233
    %v8260 = vsub.f32 %v8156, %v8234
    %v8261 = vsub.f32 %v8157, %v8235
    %v8262 = vsub.f32 %v8158, %v8236
    %v8263 = vsub.f32 %v8159, %v8237
    %v8264 = vsub.f32 %v8160, %v8238
    %v8265 = vsub.f32 %v8161, %v8239
    %v8266 = vsub.f32 %v8162, %v8240
    %v8267 = vsub.f32 %v8163, %v8241
    %v8268 = vsub.f32 %v8164, %v8242
    %v8269 = vsub.f32 %v8165, %v8243
    %v8270 = vsub.f32 %v8166, %v8244
    %v8271 = vsub.f32 %v8167, %v8245
    %v8272 = vsub.f32 %v8168, %v8246
    %v8273 = vsub.f32 %v8169, %v8247
    %v8274 = vsub.f32 %v8170, %v8248
    %v8275 = vmul.f32 %v8249, %v8249
    %v8276 = vmul.f32 %v8250, %v8250
    %v8277 = vmul.f32 %v8251, %v8251
    %v8278 = vmul.f32 %v8252, %v8252
    %v8279 = vmul.f32 %v8253, %v8253
    %v8280 = vmul.f32 %v8254, %v8254
    %v8281 = vmul.f32 %v8255, %v8255
    %v8282 = vmul.f32 %v8256, %v8256
    %v8283 = vmul.f32 %v8257, %v8257
    %v8284 = vmul.f32 %v8258, %v8258
    %v8285 = vmul.f32 %v8259, %v8259
    %v8286 = vmul.f32 %v8260, %v8260
    %v8287 = vmul.f32 %v8261, %v8261
    %v8288 = vmul.f32 %v8262, %v8262
    %v8289 = vmul.f32 %v8263, %v8263
    %v8290 = vmul.f32 %v8264, %v8264
    %v8291 = vmul.f32 %v8265, %v8265
    %v8292 = vmul.f32 %v8266, %v8266
    %v8293 = vmul.f32 %v8267, %v8267
    %v8294 = vmul.f32 %v8268, %v8268
    %v8295 = vmul.f32 %v8269, %v8269
    %v8296 = vmul.f32 %v8270, %v8270
    %v8297 = vmul.f32 %v8271, %v8271
    %v8298 = vmul.f32 %v8272, %v8272
    %v8299 = vmul.f32 %v8273, %v8273
    %v8300 = vmul.f32 %v8274, %v8274
    %8301 = vadd.xlane.f32.xlu0 %v8275
    %v8302 = vpop.xlane.xlu0 %8301
    %8303 = vadd.xlane.f32.xlu0 %v8276
    %v8304 = vpop.xlane.xlu0 %8303
    %8305 = vadd.xlane.f32.xlu0 %v8277
    %v8306 = vpop.xlane.xlu0 %8305
    %8307 = vadd.xlane.f32.xlu0 %v8278
    %v8308 = vpop.xlane.xlu0 %8307
    %8309 = vadd.xlane.f32.xlu0 %v8279
    %v8310 = vpop.xlane.xlu0 %8309
    %8311 = vadd.xlane.f32.xlu0 %v8280
    %v8312 = vpop.xlane.xlu0 %8311
    %8313 = vadd.xlane.f32.xlu0 %v8281
    %v8314 = vpop.xlane.xlu0 %8313
    %8315 = vadd.xlane.f32.xlu0 %v8282
    %v8316 = vpop.xlane.xlu0 %8315
    %8317 = vadd.xlane.f32.xlu0 %v8283
    %v8318 = vpop.xlane.xlu0 %8317
    %8319 = vadd.xlane.f32.xlu0 %v8284
    %v8320 = vpop.xlane.xlu0 %8319
    %8321 = vadd.xlane.f32.xlu0 %v8285
    %v8322 = vpop.xlane.xlu0 %8321
    %8323 = vadd.xlane.f32.xlu0 %v8286
    %v8324 = vpop.xlane.xlu0 %8323
    %8325 = vadd.xlane.f32.xlu0 %v8287
    %v8326 = vpop.xlane.xlu0 %8325
    %8327 = vadd.xlane.f32.xlu0 %v8288
    %v8328 = vpop.xlane.xlu0 %8327
    %8329 = vadd.xlane.f32.xlu0 %v8289
    %v8330 = vpop.xlane.xlu0 %8329
    %8331 = vadd.xlane.f32.xlu0 %v8290
    %v8332 = vpop.xlane.xlu0 %8331
    %8333 = vadd.xlane.f32.xlu0 %v8291
    %v8334 = vpop.xlane.xlu0 %8333
    %8335 = vadd.xlane.f32.xlu0 %v8292
    %v8336 = vpop.xlane.xlu0 %8335
    %8337 = vadd.xlane.f32.xlu0 %v8293
    %v8338 = vpop.xlane.xlu0 %8337
    %8339 = vadd.xlane.f32.xlu0 %v8294
    %v8340 = vpop.xlane.xlu0 %8339
    %8341 = vadd.xlane.f32.xlu0 %v8295
    %v8342 = vpop.xlane.xlu0 %8341
    %8343 = vadd.xlane.f32.xlu0 %v8296
    %v8344 = vpop.xlane.xlu0 %8343
    %8345 = vadd.xlane.f32.xlu0 %v8297
    %v8346 = vpop.xlane.xlu0 %8345
    %8347 = vadd.xlane.f32.xlu0 %v8298
    %v8348 = vpop.xlane.xlu0 %8347
    %8349 = vadd.xlane.f32.xlu0 %v8299
    %v8350 = vpop.xlane.xlu0 %8349
    %8351 = vadd.xlane.f32.xlu0 %v8300
    %v8352 = vpop.xlane.xlu0 %8351
    %v8353 = vmul.f32 %v8302, %v7136
    %v8354 = vmul.f32 %v8304, %v7136
    %v8355 = vmul.f32 %v8306, %v7136
    %v8356 = vmul.f32 %v8308, %v7136
    %v8357 = vmul.f32 %v8310, %v7136
    %v8358 = vmul.f32 %v8312, %v7136
    %v8359 = vmul.f32 %v8314, %v7136
    %v8360 = vmul.f32 %v8316, %v7136
    %v8361 = vmul.f32 %v8318, %v7136
    %v8362 = vmul.f32 %v8320, %v7136
    %v8363 = vmul.f32 %v8322, %v7136
    %v8364 = vmul.f32 %v8324, %v7136
    %v8365 = vmul.f32 %v8326, %v7136
    %v8366 = vmul.f32 %v8328, %v7136
    %v8367 = vmul.f32 %v8330, %v7136
    %v8368 = vmul.f32 %v8332, %v7136
    %v8369 = vmul.f32 %v8334, %v7136
    %v8370 = vmul.f32 %v8336, %v7136
    %v8371 = vmul.f32 %v8338, %v7136
    %v8372 = vmul.f32 %v8340, %v7136
    %v8373 = vmul.f32 %v8342, %v7136
    %v8374 = vmul.f32 %v8344, %v7136
    %v8375 = vmul.f32 %v8346, %v7136
    %v8376 = vmul.f32 %v8348, %v7136
    %v8377 = vmul.f32 %v8350, %v7136
    %v8378 = vmul.f32 %v8352, %v7136
    %v8379 = vadd.f32 %v8353, 1e-05
    %v8380 = vadd.f32 %v8354, 1e-05
    %v8381 = vadd.f32 %v8355, 1e-05
    %v8382 = vadd.f32 %v8356, 1e-05
    %v8383 = vadd.f32 %v8357, 1e-05
    %v8384 = vadd.f32 %v8358, 1e-05
    %v8385 = vadd.f32 %v8359, 1e-05
    %v8386 = vadd.f32 %v8360, 1e-05
    %v8387 = vadd.f32 %v8361, 1e-05
    %v8388 = vadd.f32 %v8362, 1e-05
    %v8389 = vadd.f32 %v8363, 1e-05
    %v8390 = vadd.f32 %v8364, 1e-05
    %v8391 = vadd.f32 %v8365, 1e-05
    %v8392 = vadd.f32 %v8366, 1e-05
    %v8393 = vadd.f32 %v8367, 1e-05
    %v8394 = vadd.f32 %v8368, 1e-05
    %v8395 = vadd.f32 %v8369, 1e-05
    %v8396 = vadd.f32 %v8370, 1e-05
    %v8397 = vadd.f32 %v8371, 1e-05
    %v8398 = vadd.f32 %v8372, 1e-05
    %v8399 = vadd.f32 %v8373, 1e-05
    %v8400 = vadd.f32 %v8374, 1e-05
    %v8401 = vadd.f32 %v8375, 1e-05
    %v8402 = vadd.f32 %v8376, 1e-05
    %v8403 = vadd.f32 %v8377, 1e-05
    %v8404 = vadd.f32 %v8378, 1e-05
    %v8405 = vrsqrt.pop %v8379
    %v8406 = vmul.f32 %v8405, %v8379
    %v8407 = vmul.f32 %v8406, %v8405
    %v8408 = vmul.f32 0.5, %v8407
    %v8409 = vsub.f32 1.5, %v8408
    %v8410 = vmul.f32 %v8405, %v8409
    %vm8411 = vweird.f32 %v8379
    %vm8412 = vweird.f32 %v8405
    %vm8413 = vmor %vm8411, %vm8412
    %v8414 = vsel %vm8413, %v8405, %v8410
    %v8415 = vrsqrt.pop %v8380
    %v8416 = vmul.f32 %v8415, %v8380
    %v8417 = vmul.f32 %v8416, %v8415
    %v8418 = vmul.f32 0.5, %v8417
    %v8419 = vsub.f32 1.5, %v8418
    %v8420 = vmul.f32 %v8415, %v8419
    %vm8421 = vweird.f32 %v8380
    %vm8422 = vweird.f32 %v8415
    %vm8423 = vmor %vm8421, %vm8422
    %v8424 = vsel %vm8423, %v8415, %v8420
    %v8425 = vrsqrt.pop %v8381
    %v8426 = vmul.f32 %v8425, %v8381
    %v8427 = vmul.f32 %v8426, %v8425
    %v8428 = vmul.f32 0.5, %v8427
    %v8429 = vsub.f32 1.5, %v8428
    %v8430 = vmul.f32 %v8425, %v8429
    %vm8431 = vweird.f32 %v8381
    %vm8432 = vweird.f32 %v8425
    %vm8433 = vmor %vm8431, %vm8432
    %v8434 = vsel %vm8433, %v8425, %v8430
    %v8435 = vrsqrt.pop %v8382
    %v8436 = vmul.f32 %v8435, %v8382
    %v8437 = vmul.f32 %v8436, %v8435
    %v8438 = vmul.f32 0.5, %v8437
    %v8439 = vsub.f32 1.5, %v8438
    %v8440 = vmul.f32 %v8435, %v8439
    %vm8441 = vweird.f32 %v8382
    %vm8442 = vweird.f32 %v8435
    %vm8443 = vmor %vm8441, %vm8442
    %v8444 = vsel %vm8443, %v8435, %v8440
    %v8445 = vrsqrt.pop %v8383
    %v8446 = vmul.f32 %v8445, %v8383
    %v8447 = vmul.f32 %v8446, %v8445
    %v8448 = vmul.f32 0.5, %v8447
    %v8449 = vsub.f32 1.5, %v8448
    %v8450 = vmul.f32 %v8445, %v8449
    %vm8451 = vweird.f32 %v8383
    %vm8452 = vweird.f32 %v8445
    %vm8453 = vmor %vm8451, %vm8452
    %v8454 = vsel %vm8453, %v8445, %v8450
    %v8455 = vrsqrt.pop %v8384
    %v8456 = vmul.f32 %v8455, %v8384
    %v8457 = vmul.f32 %v8456, %v8455
    %v8458 = vmul.f32 0.5, %v8457
    %v8459 = vsub.f32 1.5, %v8458
    %v8460 = vmul.f32 %v8455, %v8459
    %vm8461 = vweird.f32 %v8384
    %vm8462 = vweird.f32 %v8455
    %vm8463 = vmor %vm8461, %vm8462
    %v8464 = vsel %vm8463, %v8455, %v8460
    %v8465 = vrsqrt.pop %v8385
    %v8466 = vmul.f32 %v8465, %v8385
    %v8467 = vmul.f32 %v8466, %v8465
    %v8468 = vmul.f32 0.5, %v8467
    %v8469 = vsub.f32 1.5, %v8468
    %v8470 = vmul.f32 %v8465, %v8469
    %vm8471 = vweird.f32 %v8385
    %vm8472 = vweird.f32 %v8465
    %vm8473 = vmor %vm8471, %vm8472
    %v8474 = vsel %vm8473, %v8465, %v8470
    %v8475 = vrsqrt.pop %v8386
    %v8476 = vmul.f32 %v8475, %v8386
    %v8477 = vmul.f32 %v8476, %v8475
    %v8478 = vmul.f32 0.5, %v8477
    %v8479 = vsub.f32 1.5, %v8478
    %v8480 = vmul.f32 %v8475, %v8479
    %vm8481 = vweird.f32 %v8386
    %vm8482 = vweird.f32 %v8475
    %vm8483 = vmor %vm8481, %vm8482
    %v8484 = vsel %vm8483, %v8475, %v8480
    %v8485 = vrsqrt.pop %v8387
    %v8486 = vmul.f32 %v8485, %v8387
    %v8487 = vmul.f32 %v8486, %v8485
    %v8488 = vmul.f32 0.5, %v8487
    %v8489 = vsub.f32 1.5, %v8488
    %v8490 = vmul.f32 %v8485, %v8489
    %vm8491 = vweird.f32 %v8387
    %vm8492 = vweird.f32 %v8485
    %vm8493 = vmor %vm8491, %vm8492
    %v8494 = vsel %vm8493, %v8485, %v8490
    %v8495 = vrsqrt.pop %v8388
    %v8496 = vmul.f32 %v8495, %v8388
    %v8497 = vmul.f32 %v8496, %v8495
    %v8498 = vmul.f32 0.5, %v8497
    %v8499 = vsub.f32 1.5, %v8498
    %v8500 = vmul.f32 %v8495, %v8499
    %vm8501 = vweird.f32 %v8388
    %vm8502 = vweird.f32 %v8495
    %vm8503 = vmor %vm8501, %vm8502
    %v8504 = vsel %vm8503, %v8495, %v8500
    %v8505 = vrsqrt.pop %v8389
    %v8506 = vmul.f32 %v8505, %v8389
    %v8507 = vmul.f32 %v8506, %v8505
    %v8508 = vmul.f32 0.5, %v8507
    %v8509 = vsub.f32 1.5, %v8508
    %v8510 = vmul.f32 %v8505, %v8509
    %vm8511 = vweird.f32 %v8389
    %vm8512 = vweird.f32 %v8505
    %vm8513 = vmor %vm8511, %vm8512
    %v8514 = vsel %vm8513, %v8505, %v8510
    %v8515 = vrsqrt.pop %v8390
    %v8516 = vmul.f32 %v8515, %v8390
    %v8517 = vmul.f32 %v8516, %v8515
    %v8518 = vmul.f32 0.5, %v8517
    %v8519 = vsub.f32 1.5, %v8518
    %v8520 = vmul.f32 %v8515, %v8519
    %vm8521 = vweird.f32 %v8390
    %vm8522 = vweird.f32 %v8515
    %vm8523 = vmor %vm8521, %vm8522
    %v8524 = vsel %vm8523, %v8515, %v8520
    %v8525 = vrsqrt.pop %v8391
    %v8526 = vmul.f32 %v8525, %v8391
    %v8527 = vmul.f32 %v8526, %v8525
    %v8528 = vmul.f32 0.5, %v8527
    %v8529 = vsub.f32 1.5, %v8528
    %v8530 = vmul.f32 %v8525, %v8529
    %vm8531 = vweird.f32 %v8391
    %vm8532 = vweird.f32 %v8525
    %vm8533 = vmor %vm8531, %vm8532
    %v8534 = vsel %vm8533, %v8525, %v8530
    %v8535 = vrsqrt.pop %v8392
    %v8536 = vmul.f32 %v8535, %v8392
    %v8537 = vmul.f32 %v8536, %v8535
    %v8538 = vmul.f32 0.5, %v8537
    %v8539 = vsub.f32 1.5, %v8538
    %v8540 = vmul.f32 %v8535, %v8539
    %vm8541 = vweird.f32 %v8392
    %vm8542 = vweird.f32 %v8535
    %vm8543 = vmor %vm8541, %vm8542
    %v8544 = vsel %vm8543, %v8535, %v8540
    %v8545 = vrsqrt.pop %v8393
    %v8546 = vmul.f32 %v8545, %v8393
    %v8547 = vmul.f32 %v8546, %v8545
    %v8548 = vmul.f32 0.5, %v8547
    %v8549 = vsub.f32 1.5, %v8548
    %v8550 = vmul.f32 %v8545, %v8549
    %vm8551 = vweird.f32 %v8393
    %vm8552 = vweird.f32 %v8545
    %vm8553 = vmor %vm8551, %vm8552
    %v8554 = vsel %vm8553, %v8545, %v8550
    %v8555 = vrsqrt.pop %v8394
    %v8556 = vmul.f32 %v8555, %v8394
    %v8557 = vmul.f32 %v8556, %v8555
    %v8558 = vmul.f32 0.5, %v8557
    %v8559 = vsub.f32 1.5, %v8558
    %v8560 = vmul.f32 %v8555, %v8559
    %vm8561 = vweird.f32 %v8394
    %vm8562 = vweird.f32 %v8555
    %vm8563 = vmor %vm8561, %vm8562
    %v8564 = vsel %vm8563, %v8555, %v8560
    %v8565 = vrsqrt.pop %v8395
    %v8566 = vmul.f32 %v8565, %v8395
    %v8567 = vmul.f32 %v8566, %v8565
    %v8568 = vmul.f32 0.5, %v8567
    %v8569 = vsub.f32 1.5, %v8568
    %v8570 = vmul.f32 %v8565, %v8569
    %vm8571 = vweird.f32 %v8395
    %vm8572 = vweird.f32 %v8565
    %vm8573 = vmor %vm8571, %vm8572
    %v8574 = vsel %vm8573, %v8565, %v8570
    %v8575 = vrsqrt.pop %v8396
    %v8576 = vmul.f32 %v8575, %v8396
    %v8577 = vmul.f32 %v8576, %v8575
    %v8578 = vmul.f32 0.5, %v8577
    %v8579 = vsub.f32 1.5, %v8578
    %v8580 = vmul.f32 %v8575, %v8579
    %vm8581 = vweird.f32 %v8396
    %vm8582 = vweird.f32 %v8575
    %vm8583 = vmor %vm8581, %vm8582
    %v8584 = vsel %vm8583, %v8575, %v8580
    %v8585 = vrsqrt.pop %v8397
    %v8586 = vmul.f32 %v8585, %v8397
    %v8587 = vmul.f32 %v8586, %v8585
    %v8588 = vmul.f32 0.5, %v8587
    %v8589 = vsub.f32 1.5, %v8588
    %v8590 = vmul.f32 %v8585, %v8589
    %vm8591 = vweird.f32 %v8397
    %vm8592 = vweird.f32 %v8585
    %vm8593 = vmor %vm8591, %vm8592
    %v8594 = vsel %vm8593, %v8585, %v8590
    %v8595 = vrsqrt.pop %v8398
    %v8596 = vmul.f32 %v8595, %v8398
    %v8597 = vmul.f32 %v8596, %v8595
    %v8598 = vmul.f32 0.5, %v8597
    %v8599 = vsub.f32 1.5, %v8598
    %v8600 = vmul.f32 %v8595, %v8599
    %vm8601 = vweird.f32 %v8398
    %vm8602 = vweird.f32 %v8595
    %vm8603 = vmor %vm8601, %vm8602
    %v8604 = vsel %vm8603, %v8595, %v8600
    %v8605 = vrsqrt.pop %v8399
    %v8606 = vmul.f32 %v8605, %v8399
    %v8607 = vmul.f32 %v8606, %v8605
    %v8608 = vmul.f32 0.5, %v8607
    %v8609 = vsub.f32 1.5, %v8608
    %v8610 = vmul.f32 %v8605, %v8609
    %vm8611 = vweird.f32 %v8399
    %vm8612 = vweird.f32 %v8605
    %vm8613 = vmor %vm8611, %vm8612
    %v8614 = vsel %vm8613, %v8605, %v8610
    %v8615 = vrsqrt.pop %v8400
    %v8616 = vmul.f32 %v8615, %v8400
    %v8617 = vmul.f32 %v8616, %v8615
    %v8618 = vmul.f32 0.5, %v8617
    %v8619 = vsub.f32 1.5, %v8618
    %v8620 = vmul.f32 %v8615, %v8619
    %vm8621 = vweird.f32 %v8400
    %vm8622 = vweird.f32 %v8615
    %vm8623 = vmor %vm8621, %vm8622
    %v8624 = vsel %vm8623, %v8615, %v8620
    %v8625 = vrsqrt.pop %v8401
    %v8626 = vmul.f32 %v8625, %v8401
    %v8627 = vmul.f32 %v8626, %v8625
    %v8628 = vmul.f32 0.5, %v8627
    %v8629 = vsub.f32 1.5, %v8628
    %v8630 = vmul.f32 %v8625, %v8629
    %vm8631 = vweird.f32 %v8401
    %vm8632 = vweird.f32 %v8625
    %vm8633 = vmor %vm8631, %vm8632
    %v8634 = vsel %vm8633, %v8625, %v8630
    %v8635 = vrsqrt.pop %v8402
    %v8636 = vmul.f32 %v8635, %v8402
    %v8637 = vmul.f32 %v8636, %v8635
    %v8638 = vmul.f32 0.5, %v8637
    %v8639 = vsub.f32 1.5, %v8638
    %v8640 = vmul.f32 %v8635, %v8639
    %vm8641 = vweird.f32 %v8402
    %vm8642 = vweird.f32 %v8635
    %vm8643 = vmor %vm8641, %vm8642
    %v8644 = vsel %vm8643, %v8635, %v8640
    %v8645 = vrsqrt.pop %v8403
    %v8646 = vmul.f32 %v8645, %v8403
    %v8647 = vmul.f32 %v8646, %v8645
    %v8648 = vmul.f32 0.5, %v8647
    %v8649 = vsub.f32 1.5, %v8648
    %v8650 = vmul.f32 %v8645, %v8649
    %vm8651 = vweird.f32 %v8403
    %vm8652 = vweird.f32 %v8645
    %vm8653 = vmor %vm8651, %vm8652
    %v8654 = vsel %vm8653, %v8645, %v8650
    %v8655 = vrsqrt.pop %v8404
    %v8656 = vmul.f32 %v8655, %v8404
    %v8657 = vmul.f32 %v8656, %v8655
    %v8658 = vmul.f32 0.5, %v8657
    %v8659 = vsub.f32 1.5, %v8658
    %v8660 = vmul.f32 %v8655, %v8659
    %vm8661 = vweird.f32 %v8404
    %vm8662 = vweird.f32 %v8655
    %vm8663 = vmor %vm8661, %vm8662
    %v8664 = vsel %vm8663, %v8655, %v8660
    %v8665 = vmul.f32 %v8249, %v8414
    %v8666 = vmul.f32 %v8250, %v8424
    %v8667 = vmul.f32 %v8251, %v8434
    %v8668 = vmul.f32 %v8252, %v8444
    %v8669 = vmul.f32 %v8253, %v8454
    %v8670 = vmul.f32 %v8254, %v8464
    %v8671 = vmul.f32 %v8255, %v8474
    %v8672 = vmul.f32 %v8256, %v8484
    %v8673 = vmul.f32 %v8257, %v8494
    %v8674 = vmul.f32 %v8258, %v8504
    %v8675 = vmul.f32 %v8259, %v8514
    %v8676 = vmul.f32 %v8260, %v8524
    %v8677 = vmul.f32 %v8261, %v8534
    %v8678 = vmul.f32 %v8262, %v8544
    %v8679 = vmul.f32 %v8263, %v8554
    %v8680 = vmul.f32 %v8264, %v8564
    %v8681 = vmul.f32 %v8265, %v8574
    %v8682 = vmul.f32 %v8266, %v8584
    %v8683 = vmul.f32 %v8267, %v8594
    %v8684 = vmul.f32 %v8268, %v8604
    %v8685 = vmul.f32 %v8269, %v8614
    %v8686 = vmul.f32 %v8270, %v8624
    %v8687 = vmul.f32 %v8271, %v8634
    %v8688 = vmul.f32 %v8272, %v8644
    %v8689 = vmul.f32 %v8273, %v8654
    %v8690 = vmul.f32 %v8274, %v8664
    %v8691 = vperm.slane %v88, 6
    %v8692 = vmul.f32 %v8665, %v8691
    %v8693 = vmul.f32 %v8666, %v8691
    %v8694 = vmul.f32 %v8667, %v8691
    %v8695 = vmul.f32 %v8668, %v8691
    %v8696 = vmul.f32 %v8669, %v8691
    %v8697 = vmul.f32 %v8670, %v8691
    %v8698 = vmul.f32 %v8671, %v8691
    %v8699 = vmul.f32 %v8672, %v8691
    %v8700 = vmul.f32 %v8673, %v8691
    %v8701 = vmul.f32 %v8674, %v8691
    %v8702 = vmul.f32 %v8675, %v8691
    %v8703 = vmul.f32 %v8676, %v8691
    %v8704 = vmul.f32 %v8677, %v8691
    %v8705 = vmul.f32 %v8678, %v8691
    %v8706 = vmul.f32 %v8679, %v8691
    %v8707 = vmul.f32 %v8680, %v8691
    %v8708 = vmul.f32 %v8681, %v8691
    %v8709 = vmul.f32 %v8682, %v8691
    %v8710 = vmul.f32 %v8683, %v8691
    %v8711 = vmul.f32 %v8684, %v8691
    %v8712 = vmul.f32 %v8685, %v8691
    %v8713 = vmul.f32 %v8686, %v8691
    %v8714 = vmul.f32 %v8687, %v8691
    %v8715 = vmul.f32 %v8688, %v8691
    %v8716 = vmul.f32 %v8689, %v8691
    %v8717 = vmul.f32 %v8690, %v8691
    %v8718 = vperm.slane %v88, 7
    %v8719 = vadd.f32 %v8692, %v8718
    %v8720 = vadd.f32 %v8693, %v8718
    %v8721 = vadd.f32 %v8694, %v8718
    %v8722 = vadd.f32 %v8695, %v8718
    %v8723 = vadd.f32 %v8696, %v8718
    %v8724 = vadd.f32 %v8697, %v8718
    %v8725 = vadd.f32 %v8698, %v8718
    %v8726 = vadd.f32 %v8699, %v8718
    %v8727 = vadd.f32 %v8700, %v8718
    %v8728 = vadd.f32 %v8701, %v8718
    %v8729 = vadd.f32 %v8702, %v8718
    %v8730 = vadd.f32 %v8703, %v8718
    %v8731 = vadd.f32 %v8704, %v8718
    %v8732 = vadd.f32 %v8705, %v8718
    %v8733 = vadd.f32 %v8706, %v8718
    %v8734 = vadd.f32 %v8707, %v8718
    %v8735 = vadd.f32 %v8708, %v8718
    %v8736 = vadd.f32 %v8709, %v8718
    %v8737 = vadd.f32 %v8710, %v8718
    %v8738 = vadd.f32 %v8711, %v8718
    %v8739 = vadd.f32 %v8712, %v8718
    %v8740 = vadd.f32 %v8713, %v8718
    %v8741 = vadd.f32 %v8714, %v8718
    %v8742 = vadd.f32 %v8715, %v8718
    %v8743 = vadd.f32 %v8716, %v8718
    %v8744 = vadd.f32 %v8717, %v8718
    %8745 = vst [vmem:[%s12] sm:$0xff] %v8719
    %8746 = vst [vmem:[%s12 + $0x8] sm:$0xff] %v8720
    %8747 = vst [vmem:[%s12 + $0x10] sm:$0xff] %v8721
    %8748 = vst [vmem:[%s12 + $0x18] sm:$0xff] %v8722
    %8749 = vst [vmem:[%s12 + $0x20] sm:$0xff] %v8723
    %8750 = vst [vmem:[%s12 + $0x28] sm:$0xff] %v8724
    %8751 = vst [vmem:[%s12 + $0x30] sm:$0xff] %v8725
    %8752 = vst [vmem:[%s12 + $0x38] sm:$0xff] %v8726
    %8753 = vst [vmem:[%s12 + $0x40] sm:$0xff] %v8727
    %8754 = vst [vmem:[%s12 + $0x48] sm:$0xff] %v8728
    %8755 = vst [vmem:[%s12 + $0x50] sm:$0xff] %v8729
    %8756 = vst [vmem:[%s12 + $0x58] sm:$0xff] %v8730
    %8757 = vst [vmem:[%s12 + $0x60] sm:$0x3] %v8731
    %s8758 = scalar_lea.vmem %s12, 104
    %8759 = vst [vmem:[%s8758] sm:$0xff] %v8732
    %8760 = vst [vmem:[%s8758 + $0x8] sm:$0xff] %v8733
    %8761 = vst [vmem:[%s8758 + $0x10] sm:$0xff] %v8734
    %8762 = vst [vmem:[%s8758 + $0x18] sm:$0xff] %v8735
    %8763 = vst [vmem:[%s8758 + $0x20] sm:$0xff] %v8736
    %8764 = vst [vmem:[%s8758 + $0x28] sm:$0xff] %v8737
    %8765 = vst [vmem:[%s8758 + $0x30] sm:$0xff] %v8738
    %8766 = vst [vmem:[%s8758 + $0x38] sm:$0xff] %v8739
    %8767 = vst [vmem:[%s8758 + $0x40] sm:$0xff] %v8740
    %8768 = vst [vmem:[%s8758 + $0x48] sm:$0xff] %v8741
    %8769 = vst [vmem:[%s8758 + $0x50] sm:$0xff] %v8742
    %8770 = vst [vmem:[%s8758 + $0x58] sm:$0xff] %v8743
    %8771 = vst [vmem:[%s8758 + $0x60] sm:$0x3] %v8744
    // Predicated region
    $region62: #{tpu_custom_call.1} parent=1 // pred_check
      _
    $region63: #{tpu_custom_call.1} parent=1 // pred_check_branch
      %8773 = sbr.rel (0) target = $region65
    $region64: #{tpu_custom_call.1} parent=1 // pred_region
      _
    $region65: #{tpu_custom_call.1} parent=1 // pred_fallthru
      _
    // Predicated region
    $region66: #{tpu_custom_call.1} parent=1 // pred_check
      _
    $region67: #{tpu_custom_call.1} parent=1 // pred_check_branch
      %8775 = sbr.rel (0) target = $region69
    $region68: #{tpu_custom_call.1} parent=1 // pred_region
      _
    $region69: #{tpu_custom_call.1} parent=1 // pred_fallthru
      _
    %8776 = vsyncpa [#allocation4], 1
    %8777 = vsyncpa [#allocation6], 1

</llo_original>
